<compile_context>
chip_gen: v7x
topology: tpu7x:2x2x1
jax: 0.10.0
libtpu: 0.0.40
codegen_flags: <defaults>
</compile_context>

<pallas_src>
import functools

import jax
import jax.numpy as jnp
from jax import lax
from jax.experimental import pallas as pl
from jax.experimental.pallas import tpu as pltpu

EPS = 1e-5  # PyTorch BatchNorm2d default eps


def _tpu_vmem_bytes():
    try:
        return int(pltpu.get_tpu_info().vmem_capacity_bytes)
    except Exception:
        return 64 * 1024 * 1024


_VMEM_CAP = _tpu_vmem_bytes()
# ~100 MiB on v5e/v6e (128 MiB physical), ~51 MiB on v7x (64 MiB per core).
_VMEM_LIMIT = min(int(_VMEM_CAP * 0.8), 100 * 1024 * 1024)
_TILE_M_TARGET = 1024 if _VMEM_CAP >= 96 * 1024 * 1024 else 512


# ------------------------------ tiling helpers ------------------------------

def _pick_tile_m(m, target):
    """Row tile for the 1x1-matmul kernels (multiple of 8, prefer a divisor)."""
    if m <= target:
        return m
    for t in range(target, 7, -8):
        if m % t == 0:
            return t
    return target  # non-dividing M: Pallas clips the ragged last block


def _pick_rows(ho, wo, wp, stride):
    """Output-row block for the fused conv1+conv2 kernel: smallest divisor of
    Ho giving >= 256 matmul rows per tap and a sublane-aligned output block."""
    target = -(-256 // (stride * wp))
    for r in range(1, ho + 1):
        if ho % r or r < target:
            continue
        if r < ho and (r * wo) % 8:
            continue
        return r
    return ho


# ------------------------------ Pallas kernels -------------------------------

def _fused_conv12_kernel(x_ref, w1_ref, sb1_ref, w2_ref, sb2_ref, o_ref,
                         h1p_ref, *, stride, W, Wo, Ro):
    """conv1(1x1)+bn1+relu -> conv2(3x3,'same',stride)+bn2+relu for one
    (image, output-row-block) grid point.

    h1p_ref: flat ((stride*Ro+2)*(W+2)+2, Cm) scratch holding the zero-padded
    conv1 rows this block needs; tap (dy,dx) of the 3x3 conv is the contiguous
    slab starting at flat row dy*(W+2)+dx.
    """
    s = stride
    Wp = W + 2
    Cm = w1_ref.shape[1]
    L = s * Ro * Wp

    rb = pl.program_id(1)
    r0 = s * Ro * rb                       # first input row of the core slab

    s1 = sb1_ref[0:1, :]
    b1 = sb1_ref[1:2, :]

    def conv1_rows(row_start, nrows):
        xm = x_ref[0, pl.ds(row_start * W, nrows * W), :]
        h = jnp.dot(xm, w1_ref[...], preferred_element_type=jnp.float32)
        h = jnp.maximum(h * s1 + b1, 0.0).reshape(nrows, W, Cm)
        z = jnp.zeros((nrows, 1, Cm), jnp.float32)
        h = jnp.concatenate([z, h, z], axis=1)          # left/right zero pad
        return h.reshape(nrows * Wp, Cm).astype(h1p_ref.dtype)

    # core rows (padded rows 1 .. s*Ro) -- one contiguous store
    h1p_ref[pl.ds(Wp, s * Ro * Wp), :] = conv1_rows(r0, s * Ro)

    # top halo (padded row 0): zeros at the image top, conv1(r0-1) otherwise
    @pl.when(rb == 0)
    def _():
        h1p_ref[pl.ds(0, Wp), :] = jnp.zeros((Wp, Cm), h1p_ref.dtype)

    @pl.when(rb > 0)
    def _():
        h1p_ref[pl.ds(0, Wp), :] = conv1_rows(r0 - 1, 1)

    if s == 1:
        # bottom halo (padded row Ro+1) is only read when stride == 1
        last = pl.num_programs(1) - 1

        @pl.when(rb == last)
        def _():
            h1p_ref[pl.ds((Ro + 1) * Wp, Wp), :] = (
                jnp.zeros((Wp, Cm), h1p_ref.dtype))

        @pl.when(rb < last)
        def _():
            h1p_ref[pl.ds((Ro + 1) * Wp, Wp), :] = conv1_rows(r0 + Ro, 1)

    # 3x3 conv: 9 MXU matmuls on contiguous slabs, f32 accumulation.
    acc = None
    for dy in range(3):
        for dx in range(3):
            lhs = h1p_ref[pl.ds(dy * Wp + dx, L), :]
            part = jnp.dot(lhs, w2_ref[3 * dy + dx],
                           preferred_element_type=jnp.float32)
            acc = part if acc is None else acc + part

    out = jnp.maximum(acc * sb2_ref[0:1, :] + sb2_ref[1:2, :], 0.0)
    out = out.reshape(s * Ro, Wp, Cm)
    if s != 1:                              # keep every s-th row / column
        out = out.reshape(Ro, s, Wp, Cm)[:, 0]
        out = out.reshape(Ro, Wp // s, s, Cm)[:, :, 0, :]
    out = out[:, :Wo, :]
    o_ref[0] = out.reshape(Ro * Wo, Cm).astype(o_ref.dtype)


def _matmul_affine_kernel(x_ref, w_ref, sb_ref, o_ref, *, relu):
    acc = jnp.dot(x_ref[...], w_ref[...], preferred_element_type=jnp.float32)
    acc = acc * sb_ref[0:1, :] + sb_ref[1:2, :]
    if relu:
        acc = jnp.maximum(acc, 0.0)
    o_ref[...] = acc.astype(o_ref.dtype)


def _conv3_identity_kernel(h_ref, r_ref, w3_ref, sb3_ref, o_ref):
    acc = jnp.dot(h_ref[...], w3_ref[...], preferred_element_type=jnp.float32)
    acc = acc * sb3_ref[0:1, :] + sb3_ref[1:2, :] + r_ref[...].astype(jnp.float32)
    o_ref[...] = jnp.maximum(acc, 0.0).astype(o_ref.dtype)


def _conv3_proj_kernel(h_ref, r_ref, w3_ref, sb3_ref, wsc_ref, sbsc_ref, o_ref):
    acc = jnp.dot(h_ref[...], w3_ref[...], preferred_element_type=jnp.float32)
    acc = acc * sb3_ref[0:1, :] + sb3_ref[1:2, :]
    sc = jnp.dot(r_ref[...], wsc_ref[...], preferred_element_type=jnp.float32)
    acc = acc + sc * sbsc_ref[0:1, :] + sbsc_ref[1:2, :]
    o_ref[...] = jnp.maximum(acc, 0.0).astype(o_ref.dtype)


# --------------------------- pallas_call wrappers ----------------------------

def _fused_conv1_conv2(x3d, w1, sb1, w2r, sb2, *, H, W, stride):
    """x3d: (N, H*W, Ci) -> (N, Ho*Wo, Cm).  w2r: (9, Cm, Cm)."""
    N, _, Ci = x3d.shape
    Cm = w1.shape[1]
    Ho, Wo = H // stride, W // stride
    Wp = W + 2
    Ro = _pick_rows(Ho, Wo, Wp, stride)
    kern = functools.partial(_fused_conv12_kernel, stride=stride, W=W,
                             Wo=Wo, Ro=Ro)
    return pl.pallas_call(
        kern,
        out_shape=jax.ShapeDtypeStruct((N, Ho * Wo, Cm), x3d.dtype),
        grid=(N, Ho // Ro),
        in_specs=[
            pl.BlockSpec((1, H * W, Ci), lambda n, r: (n, 0, 0)),
            pl.BlockSpec((Ci, Cm), lambda n, r: (0, 0)),
            pl.BlockSpec((2, Cm), lambda n, r: (0, 0)),
            pl.BlockSpec((9, Cm, Cm), lambda n, r: (0, 0, 0)),
            pl.BlockSpec((2, Cm), lambda n, r: (0, 0)),
        ],
        out_specs=pl.BlockSpec((1, Ro * Wo, Cm), lambda n, r: (n, r, 0)),
        scratch_shapes=[
            pltpu.VMEM(((stride * Ro + 2) * Wp + 2, Cm), x3d.dtype)],
        compiler_params=pltpu.CompilerParams(
            dimension_semantics=("parallel", "parallel"),
            vmem_limit_bytes=_VMEM_LIMIT),
    )(x3d, w1, sb1, w2r, sb2)


def _matmul_affine(x2d, w, sb, *, relu, out_dtype):
    M, K = x2d.shape
    N = w.shape[1]
    tm = _pick_tile_m(M, _TILE_M_TARGET)
    return pl.pallas_call(
        functools.partial(_matmul_affine_kernel, relu=relu),
        out_shape=jax.ShapeDtypeStruct((M, N), out_dtype),
        grid=(pl.cdiv(M, tm),),
        in_specs=[pl.BlockSpec((tm, K), lambda i: (i, 0)),
                  pl.BlockSpec((K, N), lambda i: (0, 0)),     # resident weight
                  pl.BlockSpec((2, N), lambda i: (0, 0))],
        out_specs=pl.BlockSpec((tm, N), lambda i: (i, 0)),
        compiler_params=pltpu.CompilerParams(
            dimension_semantics=("parallel",),
            vmem_limit_bytes=_VMEM_LIMIT),
    )(x2d, w, sb)


def _conv3_residual(h2d, res2d, w3, sb3, wsc=None, sbsc=None, *, out_dtype):
    """Fused conv3(1x1)+bn3 + shortcut(+1x1 conv/bn) + add + relu over M tiles."""
    M, Km = h2d.shape
    Kr = res2d.shape[1]
    Co = w3.shape[1]
    tm = _pick_tile_m(M, _TILE_M_TARGET)
    in_specs = [pl.BlockSpec((tm, Km), lambda i: (i, 0)),
                pl.BlockSpec((tm, Kr), lambda i: (i, 0)),
                pl.BlockSpec((Km, Co), lambda i: (0, 0)),
                pl.BlockSpec((2, Co), lambda i: (0, 0))]
    args = [h2d, res2d, w3, sb3]
    if wsc is None:
        kern = _conv3_identity_kernel
    else:
        kern = _conv3_proj_kernel
        in_specs += [pl.BlockSpec((Kr, Co), lambda i: (0, 0)),
                     pl.BlockSpec((2, Co), lambda i: (0, 0))]
        args += [wsc, sbsc]
    return pl.pallas_call(
        kern,
        out_shape=jax.ShapeDtypeStruct((M, Co), out_dtype),
        grid=(pl.cdiv(M, tm),),
        in_specs=in_specs,
        out_specs=pl.BlockSpec((tm, Co), lambda i: (i, 0)),
        compiler_params=pltpu.CompilerParams(
            dimension_semantics=("parallel",),
            vmem_limit_bytes=_VMEM_LIMIT),
    )(*args)


# ---------------------------- Bottleneck forward -----------------------------

def bottleneck_forward(x_nchw, params, *, stride=1, compute_dtype=jnp.float32):
    """Bottleneck.forward(x) with x in NCHW (inference-mode BatchNorm)."""
    N, Ci, H, W = x_nchw.shape
    cdt = jnp.dtype(compute_dtype)
    x = jnp.transpose(x_nchw, (0, 2, 3, 1)).astype(cdt)            # NHWC
    # TODO(synk): when stacking blocks, keep activations NHWC (and bf16) and
    #             drop the per-block NCHW<->NHWC transposes.
    w1 = params["w1"].astype(cdt)                                  # (Ci, Cm)
    w2 = params["w2"].astype(cdt)                                  # (3,3,Cm,Cm)
    w3 = params["w3"].astype(cdt)                                  # (Cm, Co)
    Cm, Co = w1.shape[1], w3.shape[1]
    sb1 = jnp.stack([params["s1"], params["b1"]]).astype(jnp.float32)
    sb2 = jnp.stack([params["s2"], params["b2"]]).astype(jnp.float32)
    sb3 = jnp.stack([params["s3"], params["b3"]]).astype(jnp.float32)

    fused_ok = stride == 1 or (stride == 2 and H % 2 == 0 and W % 2 == 0)
    if fused_ok:
        Ho, Wo = H // stride, W // stride
        h2 = _fused_conv1_conv2(x.reshape(N, H * W, Ci), w1, sb1,
                                w2.reshape(9, Cm, Cm), sb2,
                                H=H, W=W, stride=stride)      # (N, Ho*Wo, Cm)
        h2 = h2.reshape(N * Ho * Wo, Cm)
    else:
        # TODO(synk): generic-stride fallback still im2cols the conv1
        #             activation through HBM (odd spatial dims / stride > 2).
        Ho = (H - 1) // stride + 1
        Wo = (W - 1) // stride + 1
        h1 = _matmul_affine(x.reshape(N * H * W, Ci), w1, sb1,
                            relu=True, out_dtype=cdt).reshape(N, H, W, Cm)
        hp = jnp.pad(h1, ((0, 0), (1, 1), (1, 1), (0, 0)))
        taps = [lax.slice(hp, (0, dy, dx, 0),
                          (N, dy + (Ho - 1) * stride + 1,
                           dx + (Wo - 1) * stride + 1, Cm),
                          (1, stride, stride, 1))
                for dy in range(3) for dx in range(3)]
        him = jnp.concatenate(taps, axis=-1)                  # (N,Ho,Wo,9Cm)
        h2 = _matmul_affine(him.reshape(N * Ho * Wo, 9 * Cm),
                            w2.reshape(9 * Cm, Cm), sb2,
                            relu=True, out_dtype=cdt)

    M = N * Ho * Wo
    if "w_sc" in params:
        wsc = params["w_sc"].astype(cdt)
        sbsc = jnp.stack([params["s_sc"], params["b_sc"]]).astype(jnp.float32)
        xs = x[:, ::stride, ::stride, :] if stride != 1 else x
        out2d = _conv3_residual(h2, xs.reshape(M, Ci), w3, sb3, wsc, sbsc,
                                out_dtype=cdt)
    else:
        assert stride == 1 and Ci == Co, (
            "identity shortcut needs stride == 1 and in_planes == 4*planes")
        out2d = _conv3_residual(h2, x.reshape(M, Co), w3, sb3, out_dtype=cdt)
    out = out2d.reshape(N, Ho, Wo, Co)
    return jnp.transpose(out, (0, 3, 1, 2))                        # NCHW


# ----------------------- deterministic parameter init ------------------------

def _fold_bn(gamma, beta, mean, var):
    scale = gamma / jnp.sqrt(var + EPS)
    return scale, beta - mean * scale


def init_params(key, in_planes, planes, stride=1):
    exp = 4
    ks = jax.random.split(key, 8)

    def bn(k, c):
        k1, k2, k3, k4 = jax.random.split(k, 4)
        gamma = 1.0 + 0.1 * jax.random.normal(k1, (c,), jnp.float32)
        beta = 0.1 * jax.random.normal(k2, (c,), jnp.float32)
        mean = 0.1 * jax.random.normal(k3, (c,), jnp.float32)
        var = 1.0 + 0.1 * jax.random.uniform(k4, (c,), jnp.float32)
        return _fold_bn(gamma, beta, mean, var)

    p = {}
    p["w1"] = 0.1 * jax.random.normal(ks[0], (in_planes, planes), jnp.float32)
    p["s1"], p["b1"] = bn(ks[1], planes)
    p["w2"] = 0.1 * jax.random.normal(ks[2], (3, 3, planes, planes), jnp.float32)
    p["s2"], p["b2"] = bn(ks[3], planes)
    p["w3"] = 0.1 * jax.random.normal(ks[4], (planes, exp * planes), jnp.float32)
    p["s3"], p["b3"] = bn(ks[5], exp * planes)
    if stride != 1 or in_planes != exp * planes:
        p["w_sc"] = 0.1 * jax.random.normal(ks[6], (in_planes, exp * planes),
                                            jnp.float32)
        p["s_sc"], p["b_sc"] = bn(ks[7], exp * planes)
    return p


# ------------------------------- JAX reference --------------------------------

def bottleneck_reference(x_nchw, params, *, stride=1):
    x = jnp.transpose(x_nchw, (0, 2, 3, 1)).astype(jnp.float32)
    out = jax.nn.relu(jnp.einsum("nhwc,co->nhwo", x, params["w1"])
                      * params["s1"] + params["b1"])
    out = lax.conv_general_dilated(out, params["w2"],
                                   window_strides=(stride, stride),
                                   padding=((1, 1), (1, 1)),
                                   dimension_numbers=("NHWC", "HWIO", "NHWC"))
    out = jax.nn.relu(out * params["s2"] + params["b2"])
    out = jnp.einsum("nhwc,co->nhwo", out, params["w3"]) * params["s3"] \
        + params["b3"]
    if "w_sc" in params:
        xs = x[:, ::stride, ::stride, :]
        sc = jnp.einsum("nhwc,co->nhwo", xs, params["w_sc"]) * params["s_sc"] \
            + params["b_sc"]
    else:
        sc = x
    out = jax.nn.relu(out + sc)
    return jnp.transpose(out, (0, 3, 1, 2))


# ------------------------------------ main ------------------------------------

if __name__ == "__main__":
    key = jax.random.PRNGKey(0)

    configs = [
        dict(in_planes=8, planes=4, stride=1),    # projection shortcut
        dict(in_planes=16, planes=4, stride=1),   # identity shortcut
        dict(in_planes=8, planes=4, stride=2),    # downsampling block
    ]
    for i, cfg in enumerate(configs):
        kx, kp = jax.random.split(jax.random.fold_in(key, i))
        x = jax.random.normal(kx, (2, cfg["in_planes"], 16, 16), jnp.float32)
        params = init_params(kp, **cfg)
        fwd = jax.jit(functools.partial(bottleneck_forward,
                                        stride=cfg["stride"]))
        out = jax.block_until_ready(fwd(x, params))
        ref = bottleneck_reference(x, params, stride=cfg["stride"])
        ho = 16 // cfg["stride"]
        assert out.shape == (2, 4 * cfg["planes"], ho, ho), (cfg, out.shape)
        err = float(jnp.max(jnp.abs(out - ref)))
        assert err < 2e-3, (cfg, err)

    # bfloat16 MXU path (f32 accumulation), looser tolerance.
    kx, kp = jax.random.split(key)
    x = jax.random.normal(kx, (2, 8, 16, 16), jnp.float32)
    params = init_params(kp, in_planes=8, planes=4, stride=1)
    fwd_bf16 = jax.jit(functools.partial(bottleneck_forward, stride=1,
                                         compute_dtype=jnp.bfloat16))
    out_bf = jax.block_until_ready(fwd_bf16(x, params))
    ref = bottleneck_reference(x, params, stride=1)
    err_bf = float(jnp.max(jnp.abs(out_bf.astype(jnp.float32) - ref)))
    assert err_bf < 5e-2, err_bf

    print("KERNEL_OK")
</pallas_src>

<mosaic_0001>
module attributes {stable_mosaic.version = 11 : i64} {
  func.func @_conv3_proj_kernel(%arg0: i32, %arg1: memref<512x4xf32, #tpu.memory_space<vmem>>, %arg2: memref<512x8xf32, #tpu.memory_space<vmem>>, %arg3: memref<4x16xf32, #tpu.memory_space<vmem>>, %arg4: memref<2x16xf32, #tpu.memory_space<vmem>>, %arg5: memref<8x16xf32, #tpu.memory_space<vmem>>, %arg6: memref<2x16xf32, #tpu.memory_space<vmem>>, %arg7: memref<512x16xf32, #tpu.memory_space<vmem>>) attributes {dimension_semantics = [#tpu.dimension_semantics<parallel>], iteration_bounds = array<i64: 1>, scalar_prefetch = 0 : i64, scratch_operands = 0 : i64, tpu.core_type = #tpu.core_type<tc>, window_params = [{transform_indices = @transform_0, window_bounds = array<i64: 512, 4>}, {transform_indices = @transform_1, window_bounds = array<i64: 512, 8>}, {pipeline_mode = #tpu.pipeline_mode<synchronous>, transform_indices = @transform_2, window_bounds = array<i64: 4, 16>}, {pipeline_mode = #tpu.pipeline_mode<synchronous>, transform_indices = @transform_3, window_bounds = array<i64: 2, 16>}, {pipeline_mode = #tpu.pipeline_mode<synchronous>, transform_indices = @transform_4, window_bounds = array<i64: 8, 16>}, {pipeline_mode = #tpu.pipeline_mode<synchronous>, transform_indices = @transform_5, window_bounds = array<i64: 2, 16>}, {transform_indices = @transform_6, window_bounds = array<i64: 512, 16>}]} {
    %c0 = arith.constant 0 : index
    %c0_0 = arith.constant 0 : index
    %0 = vector.load %arg1[%c0, %c0_0] : memref<512x4xf32, #tpu.memory_space<vmem>>, vector<512x4xf32>
    %c0_1 = arith.constant 0 : index
    %c0_2 = arith.constant 0 : index
    %1 = vector.load %arg3[%c0_1, %c0_2] : memref<4x16xf32, #tpu.memory_space<vmem>>, vector<4x16xf32>
    %cst = arith.constant dense<0.000000e+00> : vector<512x16xf32>
    %2 = tpu.matmul %0, %1, %cst {dimension_numbers = #tpu.dot_dimension_numbers<[1], [0], [0], [1], [0, 0, 1, 1], [], []>} : vector<512x4xf32>, vector<4x16xf32>, vector<512x16xf32> -> vector<512x16xf32>
    %c0_3 = arith.constant 0 : index
    %c0_4 = arith.constant 0 : index
    %3 = vector.load %arg4[%c0_3, %c0_4] : memref<2x16xf32, #tpu.memory_space<vmem>>, vector<1x16xf32>
    %4 = vector.broadcast %3 : vector<1x16xf32> to vector<512x16xf32>
    %5 = arith.mulf %2, %4 : vector<512x16xf32>
    %c1 = arith.constant 1 : index
    %c0_5 = arith.constant 0 : index
    %6 = vector.load %arg4[%c1, %c0_5] : memref<2x16xf32, #tpu.memory_space<vmem>>, vector<1x16xf32>
    %7 = vector.broadcast %6 : vector<1x16xf32> to vector<512x16xf32>
    %8 = arith.addf %5, %7 : vector<512x16xf32>
    %c0_6 = arith.constant 0 : index
    %c0_7 = arith.constant 0 : index
    %9 = vector.load %arg2[%c0_6, %c0_7] : memref<512x8xf32, #tpu.memory_space<vmem>>, vector<512x8xf32>
    %c0_8 = arith.constant 0 : index
    %c0_9 = arith.constant 0 : index
    %10 = vector.load %arg5[%c0_8, %c0_9] : memref<8x16xf32, #tpu.memory_space<vmem>>, vector<8x16xf32>
    %cst_10 = arith.constant dense<0.000000e+00> : vector<512x16xf32>
    %11 = tpu.matmul %9, %10, %cst_10 {dimension_numbers = #tpu.dot_dimension_numbers<[1], [0], [0], [1], [0, 0, 1, 1], [], []>} : vector<512x8xf32>, vector<8x16xf32>, vector<512x16xf32> -> vector<512x16xf32>
    %c0_11 = arith.constant 0 : index
    %c0_12 = arith.constant 0 : index
    %12 = vector.load %arg6[%c0_11, %c0_12] : memref<2x16xf32, #tpu.memory_space<vmem>>, vector<1x16xf32>
    %13 = vector.broadcast %12 : vector<1x16xf32> to vector<512x16xf32>
    %14 = arith.mulf %11, %13 : vector<512x16xf32>
    %15 = arith.addf %8, %14 : vector<512x16xf32>
    %c1_13 = arith.constant 1 : index
    %c0_14 = arith.constant 0 : index
    %16 = vector.load %arg6[%c1_13, %c0_14] : memref<2x16xf32, #tpu.memory_space<vmem>>, vector<1x16xf32>
    %17 = vector.broadcast %16 : vector<1x16xf32> to vector<512x16xf32>
    %18 = arith.addf %15, %17 : vector<512x16xf32>
    %cst_15 = arith.constant 0.000000e+00 : f32
    %19 = vector.broadcast %cst_15 : f32 to vector<512x16xf32>
    %20 = arith.maximumf %18, %19 : vector<512x16xf32>
    %c0_16 = arith.constant 0 : index
    %c0_17 = arith.constant 0 : index
    %21 = vector.load %arg7[%c0_16, %c0_17] : memref<512x16xf32, #tpu.memory_space<vmem>>, vector<512x16xf32>
    tpu.vector_store %arg7[%c0_16, %c0_17], %20 {strides = array<i32>} : memref<512x16xf32, #tpu.memory_space<vmem>>, vector<512x16xf32>,
    return
  }
  func.func @transform_0(%arg0: i32) -> (i32, i32) {
    %c0_i32 = arith.constant 0 : i32
    %c0_i32_0 = arith.constant 0 : i32
    return %arg0, %c0_i32 : i32, i32
  }
  func.func @transform_1(%arg0: i32) -> (i32, i32) {
    %c0_i32 = arith.constant 0 : i32
    %c0_i32_0 = arith.constant 0 : i32
    return %arg0, %c0_i32 : i32, i32
  }
  func.func @transform_2(%arg0: i32) -> (i32, i32) {
    %c0_i32 = arith.constant 0 : i32
    %c0_i32_0 = arith.constant 0 : i32
    %c0_i32_1 = arith.constant 0 : i32
    return %c0_i32, %c0_i32_0 : i32, i32
  }
  func.func @transform_3(%arg0: i32) -> (i32, i32) {
    %c0_i32 = arith.constant 0 : i32
    %c0_i32_0 = arith.constant 0 : i32
    %c0_i32_1 = arith.constant 0 : i32
    return %c0_i32, %c0_i32_0 : i32, i32
  }
  func.func @transform_4(%arg0: i32) -> (i32, i32) {
    %c0_i32 = arith.constant 0 : i32
    %c0_i32_0 = arith.constant 0 : i32
    %c0_i32_1 = arith.constant 0 : i32
    return %c0_i32, %c0_i32_0 : i32, i32
  }
  func.func @transform_5(%arg0: i32) -> (i32, i32) {
    %c0_i32 = arith.constant 0 : i32
    %c0_i32_0 = arith.constant 0 : i32
    %c0_i32_1 = arith.constant 0 : i32
    return %c0_i32, %c0_i32_0 : i32, i32
  }
  func.func @transform_6(%arg0: i32) -> (i32, i32) {
    %c0_i32 = arith.constant 0 : i32
    %c0_i32_0 = arith.constant 0 : i32
    return %arg0, %c0_i32 : i32, i32
  }
}

module attributes {stable_mosaic.version = 11 : i64} {
  func.func @_fused_conv12_kernel(%arg0: i32, %arg1: i32, %arg2: memref<1x256x8xf32, #tpu.memory_space<vmem>>, %arg3: memref<8x4xf32, #tpu.memory_space<vmem>>, %arg4: memref<2x4xf32, #tpu.memory_space<vmem>>, %arg5: memref<9x4x4xf32, #tpu.memory_space<vmem>>, %arg6: memref<2x4xf32, #tpu.memory_space<vmem>>, %arg7: memref<1x256x4xf32, #tpu.memory_space<vmem>>, %arg8: memref<326x4xf32, #tpu.memory_space<vmem>>) attributes {dimension_semantics = [#tpu.dimension_semantics<parallel>, #tpu.dimension_semantics<parallel>], iteration_bounds = array<i64: 2, 1>, scalar_prefetch = 0 : i64, scratch_operands = 1 : i64, tpu.core_type = #tpu.core_type<tc>, window_params = [{transform_indices = @transform_0, window_bounds = array<i64: 1, 256, 8>}, {pipeline_mode = #tpu.pipeline_mode<synchronous>, transform_indices = @transform_1, window_bounds = array<i64: 8, 4>}, {pipeline_mode = #tpu.pipeline_mode<synchronous>, transform_indices = @transform_2, window_bounds = array<i64: 2, 4>}, {pipeline_mode = #tpu.pipeline_mode<synchronous>, transform_indices = @transform_3, window_bounds = array<i64: 9, 4, 4>}, {pipeline_mode = #tpu.pipeline_mode<synchronous>, transform_indices = @transform_4, window_bounds = array<i64: 2, 4>}, {transform_indices = @transform_5, window_bounds = array<i64: 1, 256, 4>}]} {
    %c16_i32 = arith.constant 16 : i32
    %0 = arith.muli %c16_i32, %arg1 : i32
    %c0 = arith.constant 0 : index
    %c0_0 = arith.constant 0 : index
    %1 = vector.load %arg4[%c0, %c0_0] : memref<2x4xf32, #tpu.memory_space<vmem>>, vector<1x4xf32>
    %c1 = arith.constant 1 : index
    %c0_1 = arith.constant 0 : index
    %2 = vector.load %arg4[%c1, %c0_1] : memref<2x4xf32, #tpu.memory_space<vmem>>, vector<1x4xf32>
    %c16_i32_2 = arith.constant 16 : i32
    %3 = arith.muli %0, %c16_i32_2 : i32
    %c0_3 = arith.constant 0 : index
    %4 = arith.index_cast %3 : i32 to index
    %c0_4 = arith.constant 0 : index
    %5 = vector.load %arg2[%c0_3, %4, %c0_4] : memref<1x256x8xf32, #tpu.memory_space<vmem>>, vector<1x256x8xf32>
    %6 = vector.shape_cast %5 : vector<1x256x8xf32> to vector<256x8xf32>
    %c0_5 = arith.constant 0 : index
    %c0_6 = arith.constant 0 : index
    %7 = vector.load %arg3[%c0_5, %c0_6] : memref<8x4xf32, #tpu.memory_space<vmem>>, vector<8x4xf32>
    %cst = arith.constant dense<0.000000e+00> : vector<256x4xf32>
    %8 = tpu.matmul %6, %7, %cst {dimension_numbers = #tpu.dot_dimension_numbers<[1], [0], [0], [1], [0, 0, 1, 1], [], []>} : vector<256x8xf32>, vector<8x4xf32>, vector<256x4xf32> -> vector<256x4xf32>
    %9 = vector.broadcast %1 : vector<1x4xf32> to vector<256x4xf32>
    %10 = arith.mulf %8, %9 : vector<256x4xf32>
    %11 = vector.broadcast %2 : vector<1x4xf32> to vector<256x4xf32>
    %12 = arith.addf %10, %11 : vector<256x4xf32>
    %cst_7 = arith.constant 0.000000e+00 : f32
    %13 = vector.broadcast %cst_7 : f32 to vector<256x4xf32>
    %14 = arith.maximumf %12, %13 : vector<256x4xf32>
    %15 = vector.shape_cast %14 : vector<256x4xf32> to vector<16x16x4xf32>
    %cst_8 = arith.constant 0.000000e+00 : f32
    %16 = vector.broadcast %cst_8 : f32 to vector<16x1x4xf32>
    %17 = tpu.concatenate %16, %15, %16 in 1 : vector<16x1x4xf32>, vector<16x16x4xf32>, vector<16x1x4xf32> -> vector<16x18x4xf32>
    %18 = vector.shape_cast %17 : vector<16x18x4xf32> to vector<288x4xf32>
    %c18 = arith.constant 18 : index
    %c0_9 = arith.constant 0 : index
    %19 = vector.load %arg8[%c18, %c0_9] : memref<326x4xf32, #tpu.memory_space<vmem>>, vector<288x4xf32>
    tpu.vector_store %arg8[%c18, %c0_9], %18 {strides = array<i32>} : memref<326x4xf32, #tpu.memory_space<vmem>>, vector<288x4xf32>,
    %c0_i32 = arith.constant 0 : i32
    %20 = arith.cmpi eq, %arg1, %c0_i32 : i32
    %21 = arith.extui %20 : i1 to i32
    %c0_i32_10 = arith.constant 0 : i32
    %22 = arith.cmpi ne, %21, %c0_i32_10 : i32
    scf.if %22 {
      %cst_67 = arith.constant 0.000000e+00 : f32
      %90 = vector.broadcast %cst_67 : f32 to vector<18x4xf32>
      %c0_68 = arith.constant 0 : index
      %c0_69 = arith.constant 0 : index
      %91 = vector.load %arg8[%c0_68, %c0_69] : memref<326x4xf32, #tpu.memory_space<vmem>>, vector<18x4xf32>
      tpu.vector_store %arg8[%c0_68, %c0_69], %90 {strides = array<i32>} : memref<326x4xf32, #tpu.memory_space<vmem>>, vector<18x4xf32>,
    } else {
    }
    %c0_i32_11 = arith.constant 0 : i32
    %23 = arith.cmpi sgt, %arg1, %c0_i32_11 : i32
    %24 = arith.extui %23 : i1 to i32
    %c0_i32_12 = arith.constant 0 : i32
    %25 = arith.cmpi ne, %24, %c0_i32_12 : i32
    scf.if %25 {
      %c1_i32 = arith.constant 1 : i32
      %90 = arith.subi %0, %c1_i32 : i32
      %c16_i32_67 = arith.constant 16 : i32
      %91 = arith.muli %90, %c16_i32_67 : i32
      %c0_68 = arith.constant 0 : index
      %92 = arith.index_cast %91 : i32 to index
      %c0_69 = arith.constant 0 : index
      %93 = vector.load %arg2[%c0_68, %92, %c0_69] : memref<1x256x8xf32, #tpu.memory_space<vmem>>, vector<1x16x8xf32>
      %94 = vector.shape_cast %93 : vector<1x16x8xf32> to vector<16x8xf32>
      %c0_70 = arith.constant 0 : index
      %c0_71 = arith.constant 0 : index
      %95 = vector.load %arg3[%c0_70, %c0_71] : memref<8x4xf32, #tpu.memory_space<vmem>>, vector<8x4xf32>
      %cst_72 = arith.constant dense<0.000000e+00> : vector<16x4xf32>
      %96 = tpu.matmul %94, %95, %cst_72 {dimension_numbers = #tpu.dot_dimension_numbers<[1], [0], [0], [1], [0, 0, 1, 1], [], []>} : vector<16x8xf32>, vector<8x4xf32>, vector<16x4xf32> -> vector<16x4xf32>
      %97 = vector.broadcast %1 : vector<1x4xf32> to vector<16x4xf32>
      %98 = arith.mulf %96, %97 : vector<16x4xf32>
      %99 = vector.broadcast %2 : vector<1x4xf32> to vector<16x4xf32>
      %100 = arith.addf %98, %99 : vector<16x4xf32>
      %cst_73 = arith.constant 0.000000e+00 : f32
      %101 = vector.broadcast %cst_73 : f32 to vector<16x4xf32>
      %102 = arith.maximumf %100, %101 : vector<16x4xf32>
      %103 = vector.shape_cast %102 : vector<16x4xf32> to vector<1x16x4xf32>
      %cst_74 = arith.constant 0.000000e+00 : f32
      %104 = vector.broadcast %cst_74 : f32 to vector<1x1x4xf32>
      %105 = tpu.concatenate %104, %103, %104 in 1 : vector<1x1x4xf32>, vector<1x16x4xf32>, vector<1x1x4xf32> -> vector<1x18x4xf32>
      %106 = vector.shape_cast %105 : vector<1x18x4xf32> to vector<18x4xf32>
      %c0_75 = arith.constant 0 : index
      %c0_76 = arith.constant 0 : index
      %107 = vector.load %arg8[%c0_75, %c0_76] : memref<326x4xf32, #tpu.memory_space<vmem>>, vector<18x4xf32>
      tpu.vector_store %arg8[%c0_75, %c0_76], %106 {strides = array<i32>} : memref<326x4xf32, #tpu.memory_space<vmem>>, vector<18x4xf32>,
    } else {
    }
    %c0_i32_13 = arith.constant 0 : i32
    %26 = arith.cmpi eq, %arg1, %c0_i32_13 : i32
    %27 = arith.extui %26 : i1 to i32
    %c0_i32_14 = arith.constant 0 : i32
    %28 = arith.cmpi ne, %27, %c0_i32_14 : i32
    scf.if %28 {
      %cst_67 = arith.constant 0.000000e+00 : f32
      %90 = vector.broadcast %cst_67 : f32 to vector<18x4xf32>
      %c306 = arith.constant 306 : index
      %c0_68 = arith.constant 0 : index
      %91 = vector.load %arg8[%c306, %c0_68] : memref<326x4xf32, #tpu.memory_space<vmem>>, vector<18x4xf32>
      tpu.vector_store %arg8[%c306, %c0_68], %90 {strides = array<i32>} : memref<326x4xf32, #tpu.memory_space<vmem>>, vector<18x4xf32>,
    } else {
    }
    %c0_i32_15 = arith.constant 0 : i32
    %29 = arith.cmpi slt, %arg1, %c0_i32_15 : i32
    %30 = arith.extui %29 : i1 to i32
    %c0_i32_16 = arith.constant 0 : i32
    %31 = arith.cmpi ne, %30, %c0_i32_16 : i32
    scf.if %31 {
      %c16_i32_67 = arith.constant 16 : i32
      %90 = arith.addi %0, %c16_i32_67 : i32
      %c16_i32_68 = arith.constant 16 : i32
      %91 = arith.muli %90, %c16_i32_68 : i32
      %c0_69 = arith.constant 0 : index
      %92 = arith.index_cast %91 : i32 to index
      %c0_70 = arith.constant 0 : index
      %93 = vector.load %arg2[%c0_69, %92, %c0_70] : memref<1x256x8xf32, #tpu.memory_space<vmem>>, vector<1x16x8xf32>
      %94 = vector.shape_cast %93 : vector<1x16x8xf32> to vector<16x8xf32>
      %c0_71 = arith.constant 0 : index
      %c0_72 = arith.constant 0 : index
      %95 = vector.load %arg3[%c0_71, %c0_72] : memref<8x4xf32, #tpu.memory_space<vmem>>, vector<8x4xf32>
      %cst_73 = arith.constant dense<0.000000e+00> : vector<16x4xf32>
      %96 = tpu.matmul %94, %95, %cst_73 {dimension_numbers = #tpu.dot_dimension_numbers<[1], [0], [0], [1], [0, 0, 1, 1], [], []>} : vector<16x8xf32>, vector<8x4xf32>, vector<16x4xf32> -> vector<16x4xf32>
      %97 = vector.broadcast %1 : vector<1x4xf32> to vector<16x4xf32>
      %98 = arith.mulf %96, %97 : vector<16x4xf32>
      %99 = vector.broadcast %2 : vector<1x4xf32> to vector<16x4xf32>
      %100 = arith.addf %98, %99 : vector<16x4xf32>
      %cst_74 = arith.constant 0.000000e+00 : f32
      %101 = vector.broadcast %cst_74 : f32 to vector<16x4xf32>
      %102 = arith.maximumf %100, %101 : vector<16x4xf32>
      %103 = vector.shape_cast %102 : vector<16x4xf32> to vector<1x16x4xf32>
      %cst_75 = arith.constant 0.000000e+00 : f32
      %104 = vector.broadcast %cst_75 : f32 to vector<1x1x4xf32>
      %105 = tpu.concatenate %104, %103, %104 in 1 : vector<1x1x4xf32>, vector<1x16x4xf32>, vector<1x1x4xf32> -> vector<1x18x4xf32>
      %106 = vector.shape_cast %105 : vector<1x18x4xf32> to vector<18x4xf32>
      %c306 = arith.constant 306 : index
      %c0_76 = arith.constant 0 : index
      %107 = vector.load %arg8[%c306, %c0_76] : memref<326x4xf32, #tpu.memory_space<vmem>>, vector<18x4xf32>
      tpu.vector_store %arg8[%c306, %c0_76], %106 {strides = array<i32>} : memref<326x4xf32, #tpu.memory_space<vmem>>, vector<18x4xf32>,
    } else {
    }
    %c0_17 = arith.constant 0 : index
    %c0_18 = arith.constant 0 : index
    %32 = vector.load %arg8[%c0_17, %c0_18] : memref<326x4xf32, #tpu.memory_space<vmem>>, vector<288x4xf32>
    %c0_19 = arith.constant 0 : index
    %c0_20 = arith.constant 0 : index
    %c0_21 = arith.constant 0 : index
    %33 = vector.load %arg5[%c0_19, %c0_20, %c0_21] : memref<9x4x4xf32, #tpu.memory_space<vmem>>, vector<1x4x4xf32>
    %34 = vector.shape_cast %33 : vector<1x4x4xf32> to vector<4x4xf32>
    %cst_22 = arith.constant dense<0.000000e+00> : vector<288x4xf32>
    %35 = tpu.matmul %32, %34, %cst_22 {dimension_numbers = #tpu.dot_dimension_numbers<[1], [0], [0], [1], [0, 0, 1, 1], [], []>} : vector<288x4xf32>, vector<4x4xf32>, vector<288x4xf32> -> vector<288x4xf32>
    %c1_23 = arith.constant 1 : index
    %c0_24 = arith.constant 0 : index
    %36 = vector.load %arg8[%c1_23, %c0_24] : memref<326x4xf32, #tpu.memory_space<vmem>>, vector<288x4xf32>
    %c1_25 = arith.constant 1 : index
    %c0_26 = arith.constant 0 : index
    %c0_27 = arith.constant 0 : index
    %37 = vector.load %arg5[%c1_25, %c0_26, %c0_27] : memref<9x4x4xf32, #tpu.memory_space<vmem>>, vector<1x4x4xf32>
    %38 = vector.shape_cast %37 : vector<1x4x4xf32> to vector<4x4xf32>
    %cst_28 = arith.constant dense<0.000000e+00> : vector<288x4xf32>
    %39 = tpu.matmul %36, %38, %cst_28 {dimension_numbers = #tpu.dot_dimension_numbers<[1], [0], [0], [1], [0, 0, 1, 1], [], []>} : vector<288x4xf32>, vector<4x4xf32>, vector<288x4xf32> -> vector<288x4xf32>
    %40 = arith.addf %35, %39 : vector<288x4xf32>
    %c2 = arith.constant 2 : index
    %c0_29 = arith.constant 0 : index
    %41 = vector.load %arg8[%c2, %c0_29] : memref<326x4xf32, #tpu.memory_space<vmem>>, vector<288x4xf32>
    %c2_30 = arith.constant 2 : index
    %c0_31 = arith.constant 0 : index
    %c0_32 = arith.constant 0 : index
    %42 = vector.load %arg5[%c2_30, %c0_31, %c0_32] : memref<9x4x4xf32, #tpu.memory_space<vmem>>, vector<1x4x4xf32>
    %43 = vector.shape_cast %42 : vector<1x4x4xf32> to vector<4x4xf32>
    %cst_33 = arith.constant dense<0.000000e+00> : vector<288x4xf32>
    %44 = tpu.matmul %41, %43, %cst_33 {dimension_numbers = #tpu.dot_dimension_numbers<[1], [0], [0], [1], [0, 0, 1, 1], [], []>} : vector<288x4xf32>, vector<4x4xf32>, vector<288x4xf32> -> vector<288x4xf32>
    %45 = arith.addf %40, %44 : vector<288x4xf32>
    %c18_34 = arith.constant 18 : index
    %c0_35 = arith.constant 0 : index
    %46 = vector.load %arg8[%c18_34, %c0_35] : memref<326x4xf32, #tpu.memory_space<vmem>>, vector<288x4xf32>
    %c3 = arith.constant 3 : index
    %c0_36 = arith.constant 0 : index
    %c0_37 = arith.constant 0 : index
    %47 = vector.load %arg5[%c3, %c0_36, %c0_37] : memref<9x4x4xf32, #tpu.memory_space<vmem>>, vector<1x4x4xf32>
    %48 = vector.shape_cast %47 : vector<1x4x4xf32> to vector<4x4xf32>
    %cst_38 = arith.constant dense<0.000000e+00> : vector<288x4xf32>
    %49 = tpu.matmul %46, %48, %cst_38 {dimension_numbers = #tpu.dot_dimension_numbers<[1], [0], [0], [1], [0, 0, 1, 1], [], []>} : vector<288x4xf32>, vector<4x4xf32>, vector<288x4xf32> -> vector<288x4xf32>
    %50 = arith.addf %45, %49 : vector<288x4xf32>
    %c19 = arith.constant 19 : index
    %c0_39 = arith.constant 0 : index
    %51 = vector.load %arg8[%c19, %c0_39] : memref<326x4xf32, #tpu.memory_space<vmem>>, vector<288x4xf32>
    %c4 = arith.constant 4 : index
    %c0_40 = arith.constant 0 : index
    %c0_41 = arith.constant 0 : index
    %52 = vector.load %arg5[%c4, %c0_40, %c0_41] : memref<9x4x4xf32, #tpu.memory_space<vmem>>, vector<1x4x4xf32>
    %53 = vector.shape_cast %52 : vector<1x4x4xf32> to vector<4x4xf32>
    %cst_42 = arith.constant dense<0.000000e+00> : vector<288x4xf32>
    %54 = tpu.matmul %51, %53, %cst_42 {dimension_numbers = #tpu.dot_dimension_numbers<[1], [0], [0], [1], [0, 0, 1, 1], [], []>} : vector<288x4xf32>, vector<4x4xf32>, vector<288x4xf32> -> vector<288x4xf32>
    %55 = arith.addf %50, %54 : vector<288x4xf32>
    %c20 = arith.constant 20 : index
    %c0_43 = arith.constant 0 : index
    %56 = vector.load %arg8[%c20, %c0_43] : memref<326x4xf32, #tpu.memory_space<vmem>>, vector<288x4xf32>
    %c5 = arith.constant 5 : index
    %c0_44 = arith.constant 0 : index
    %c0_45 = arith.constant 0 : index
    %57 = vector.load %arg5[%c5, %c0_44, %c0_45] : memref<9x4x4xf32, #tpu.memory_space<vmem>>, vector<1x4x4xf32>
    %58 = vector.shape_cast %57 : vector<1x4x4xf32> to vector<4x4xf32>
    %cst_46 = arith.constant dense<0.000000e+00> : vector<288x4xf32>
    %59 = tpu.matmul %56, %58, %cst_46 {dimension_numbers = #tpu.dot_dimension_numbers<[1], [0], [0], [1], [0, 0, 1, 1], [], []>} : vector<288x4xf32>, vector<4x4xf32>, vector<288x4xf32> -> vector<288x4xf32>
    %60 = arith.addf %55, %59 : vector<288x4xf32>
    %c36 = arith.constant 36 : index
    %c0_47 = arith.constant 0 : index
    %61 = vector.load %arg8[%c36, %c0_47] : memref<326x4xf32, #tpu.memory_space<vmem>>, vector<288x4xf32>
    %c6 = arith.constant 6 : index
    %c0_48 = arith.constant 0 : index
    %c0_49 = arith.constant 0 : index
    %62 = vector.load %arg5[%c6, %c0_48, %c0_49] : memref<9x4x4xf32, #tpu.memory_space<vmem>>, vector<1x4x4xf32>
    %63 = vector.shape_cast %62 : vector<1x4x4xf32> to vector<4x4xf32>
    %cst_50 = arith.constant dense<0.000000e+00> : vector<288x4xf32>
    %64 = tpu.matmul %61, %63, %cst_50 {dimension_numbers = #tpu.dot_dimension_numbers<[1], [0], [0], [1], [0, 0, 1, 1], [], []>} : vector<288x4xf32>, vector<4x4xf32>, vector<288x4xf32> -> vector<288x4xf32>
    %65 = arith.addf %60, %64 : vector<288x4xf32>
    %c37 = arith.constant 37 : index
    %c0_51 = arith.constant 0 : index
    %66 = vector.load %arg8[%c37, %c0_51] : memref<326x4xf32, #tpu.memory_space<vmem>>, vector<288x4xf32>
    %c7 = arith.constant 7 : index
    %c0_52 = arith.constant 0 : index
    %c0_53 = arith.constant 0 : index
    %67 = vector.load %arg5[%c7, %c0_52, %c0_53] : memref<9x4x4xf32, #tpu.memory_space<vmem>>, vector<1x4x4xf32>
    %68 = vector.shape_cast %67 : vector<1x4x4xf32> to vector<4x4xf32>
    %cst_54 = arith.constant dense<0.000000e+00> : vector<288x4xf32>
    %69 = tpu.matmul %66, %68, %cst_54 {dimension_numbers = #tpu.dot_dimension_numbers<[1], [0], [0], [1], [0, 0, 1, 1], [], []>} : vector<288x4xf32>, vector<4x4xf32>, vector<288x4xf32> -> vector<288x4xf32>
    %70 = arith.addf %65, %69 : vector<288x4xf32>
    %c38 = arith.constant 38 : index
    %c0_55 = arith.constant 0 : index
    %71 = vector.load %arg8[%c38, %c0_55] : memref<326x4xf32, #tpu.memory_space<vmem>>, vector<288x4xf32>
    %c8 = arith.constant 8 : index
    %c0_56 = arith.constant 0 : index
    %c0_57 = arith.constant 0 : index
    %72 = vector.load %arg5[%c8, %c0_56, %c0_57] : memref<9x4x4xf32, #tpu.memory_space<vmem>>, vector<1x4x4xf32>
    %73 = vector.shape_cast %72 : vector<1x4x4xf32> to vector<4x4xf32>
    %cst_58 = arith.constant dense<0.000000e+00> : vector<288x4xf32>
    %74 = tpu.matmul %71, %73, %cst_58 {dimension_numbers = #tpu.dot_dimension_numbers<[1], [0], [0], [1], [0, 0, 1, 1], [], []>} : vector<288x4xf32>, vector<4x4xf32>, vector<288x4xf32> -> vector<288x4xf32>
    %75 = arith.addf %70, %74 : vector<288x4xf32>
    %c0_59 = arith.constant 0 : index
    %c0_60 = arith.constant 0 : index
    %76 = vector.load %arg6[%c0_59, %c0_60] : memref<2x4xf32, #tpu.memory_space<vmem>>, vector<1x4xf32>
    %77 = vector.broadcast %76 : vector<1x4xf32> to vector<288x4xf32>
    %78 = arith.mulf %75, %77 : vector<288x4xf32>
    %c1_61 = arith.constant 1 : index
    %c0_62 = arith.constant 0 : index
    %79 = vector.load %arg6[%c1_61, %c0_62] : memref<2x4xf32, #tpu.memory_space<vmem>>, vector<1x4xf32>
    %80 = vector.broadcast %79 : vector<1x4xf32> to vector<288x4xf32>
    %81 = arith.addf %78, %80 : vector<288x4xf32>
    %cst_63 = arith.constant 0.000000e+00 : f32
    %82 = vector.broadcast %cst_63 : f32 to vector<288x4xf32>
    %83 = arith.maximumf %81, %82 : vector<288x4xf32>
    %84 = vector.shape_cast %83 : vector<288x4xf32> to vector<16x18x4xf32>
    %85 = vector.extract_strided_slice %84 {offsets = [0, 0, 0], sizes = [16, 16, 4], strides = [1, 1, 1]} : vector<16x18x4xf32> to vector<16x16x4xf32>
    %86 = vector.shape_cast %85 : vector<16x16x4xf32> to vector<256x4xf32>
    %c0_64 = arith.constant 0 : index
    %c0_65 = arith.constant 0 : index
    %c0_66 = arith.constant 0 : index
    %87 = vector.load %arg7[%c0_64, %c0_65, %c0_66] : memref<1x256x4xf32, #tpu.memory_space<vmem>>, vector<1x256x4xf32>
    %88 = vector.shape_cast %87 : vector<1x256x4xf32> to vector<256x4xf32>
    %89 = vector.shape_cast %86 : vector<256x4xf32> to vector<1x256x4xf32>
    tpu.vector_store %arg7[%c0_64, %c0_65, %c0_66], %89 {strides = array<i32>} : memref<1x256x4xf32, #tpu.memory_space<vmem>>, vector<1x256x4xf32>,
    return
  }
  func.func @transform_0(%arg0: i32, %arg1: i32) -> (i32, i32, i32) {
    %c0_i32 = arith.constant 0 : i32
    %c0_i32_0 = arith.constant 0 : i32
    %c0_i32_1 = arith.constant 0 : i32
    return %arg0, %c0_i32, %c0_i32_0 : i32, i32, i32
  }
  func.func @transform_1(%arg0: i32, %arg1: i32) -> (i32, i32) {
    %c0_i32 = arith.constant 0 : i32
    %c0_i32_0 = arith.constant 0 : i32
    %c0_i32_1 = arith.constant 0 : i32
    return %c0_i32, %c0_i32_0 : i32, i32
  }
  func.func @transform_2(%arg0: i32, %arg1: i32) -> (i32, i32) {
    %c0_i32 = arith.constant 0 : i32
    %c0_i32_0 = arith.constant 0 : i32
    %c0_i32_1 = arith.constant 0 : i32
    return %c0_i32, %c0_i32_0 : i32, i32
  }
  func.func @transform_3(%arg0: i32, %arg1: i32) -> (i32, i32, i32) {
    %c0_i32 = arith.constant 0 : i32
    %c0_i32_0 = arith.constant 0 : i32
    %c0_i32_1 = arith.constant 0 : i32
    %c0_i32_2 = arith.constant 0 : i32
    return %c0_i32, %c0_i32_0, %c0_i32_1 : i32, i32, i32
  }
  func.func @transform_4(%arg0: i32, %arg1: i32) -> (i32, i32) {
    %c0_i32 = arith.constant 0 : i32
    %c0_i32_0 = arith.constant 0 : i32
    %c0_i32_1 = arith.constant 0 : i32
    return %c0_i32, %c0_i32_0 : i32, i32
  }
  func.func @transform_5(%arg0: i32, %arg1: i32) -> (i32, i32, i32) {
    %c0_i32 = arith.constant 0 : i32
    %c0_i32_0 = arith.constant 0 : i32
    return %arg0, %arg1, %c0_i32 : i32, i32, i32
  }
}

</mosaic_0001>

<llo_original>
// kernel: bottleneck_forward.3
$region0: #{bottleneck_forward.3}
  #allocation0 [shape = 'u32[]', space=smem, size = 0x4, offset = 0x4, fixed_abs, tag = 'smem constant byte address 0x4 - core index']
  #allocation1 [shape = 'u32[144,128]{1,0:T(1,128)}', space=vmem, size = 0x12000, scoped, tag = 'internal scratch']
  %s0 = inlined_call_operand.vmem [shape: f32[512,4], index: 0, kind: input, shape index: {}]
  %s1 = inlined_call_operand.vmem [shape: f32[512,8], index: 1, kind: input, shape index: {}]
  %s2 = inlined_call_operand.vmem [shape: f32[4,16], index: 2, kind: input, shape index: {}]
  %s3 = inlined_call_operand.vmem [shape: f32[2,16], index: 3, kind: input, shape index: {}]
  %s4 = inlined_call_operand.vmem [shape: f32[8,16], index: 4, kind: input, shape index: {}]
  %s5 = inlined_call_operand.vmem [shape: f32[2,16], index: 5, kind: input, shape index: {}]
  %s6 = inlined_call_operand.vmem [shape: f32[512,16], index: 6, kind: output, shape index: {}]
  %s7 = sld [smem:[#allocation0]]
  $region34: #{bottleneck_forward.3} parent=0
    _
  %s9 = ssub.s32 1, %s7
  %s10 = scalar_select 0, %s9, %s7
  // Predicated region
  $region2: #{bottleneck_forward.3} parent=0 // pred_check
    _
  $region3: #{bottleneck_forward.3} parent=0 // pred_check_branch
    %12 = sbr.rel (0) target = $region5
  $region4: #{bottleneck_forward.3} parent=0 // pred_region
    _
  $region5: #{bottleneck_forward.3} parent=0 // pred_fallthru
    _
  // Predicated region
  $region6: #{bottleneck_forward.3} parent=0 // pred_check
    _
  $region7: #{bottleneck_forward.3} parent=0 // pred_check_branch
    %14 = sbr.rel (0) target = $region9
  $region8: #{bottleneck_forward.3} parent=0 // pred_region
    _
  $region9: #{bottleneck_forward.3} parent=0 // pred_fallthru
    _
  // Predicated region
  $region10: #{bottleneck_forward.3} parent=0 // pred_check
    _
  $region11: #{bottleneck_forward.3} parent=0 // pred_check_branch
    %16 = sbr.rel (0) target = $region13
  $region12: #{bottleneck_forward.3} parent=0 // pred_region
    _
  $region13: #{bottleneck_forward.3} parent=0 // pred_fallthru
    _
  // Predicated region
  $region14: #{bottleneck_forward.3} parent=0 // pred_check
    _
  $region15: #{bottleneck_forward.3} parent=0 // pred_check_branch
    %18 = sbr.rel (0) target = $region17
  $region16: #{bottleneck_forward.3} parent=0 // pred_region
    _
  $region17: #{bottleneck_forward.3} parent=0 // pred_fallthru
    _
  // Predicated region
  $region18: #{bottleneck_forward.3} parent=0 // pred_check
    _
  $region19: #{bottleneck_forward.3} parent=0 // pred_check_branch
    %20 = sbr.rel (0) target = $region21
  $region20: #{bottleneck_forward.3} parent=0 // pred_region
    _
  $region21: #{bottleneck_forward.3} parent=0 // pred_fallthru
    _
  // Predicated region
  $region22: #{bottleneck_forward.3} parent=0 // pred_check
    _
  $region23: #{bottleneck_forward.3} parent=0 // pred_check_branch
    %22 = sbr.rel (0) target = $region25
  $region24: #{bottleneck_forward.3} parent=0 // pred_region
    _
  $region25: #{bottleneck_forward.3} parent=0 // pred_fallthru
    _
  %v23 = vld [vmem:[%s0] sm:$0xff]
  %v24 = vld [vmem:[%s0 + $0x8] sm:$0xff]
  %v25 = vld [vmem:[%s0 + $0x10] sm:$0xff]
  %v26 = vld [vmem:[%s0 + $0x18] sm:$0xff]
  %v27 = vld [vmem:[%s0 + $0x20] sm:$0xff]
  %v28 = vld [vmem:[%s0 + $0x28] sm:$0xff]
  %v29 = vld [vmem:[%s0 + $0x30] sm:$0xff]
  %v30 = vld [vmem:[%s0 + $0x38] sm:$0xff]
  %v31 = vld [vmem:[%s0 + $0x40] sm:$0xff]
  %v32 = vld [vmem:[%s0 + $0x48] sm:$0xff]
  %v33 = vld [vmem:[%s0 + $0x50] sm:$0xff]
  %v34 = vld [vmem:[%s0 + $0x58] sm:$0xff]
  %v35 = vld [vmem:[%s0 + $0x60] sm:$0xff]
  %v36 = vld [vmem:[%s0 + $0x68] sm:$0xff]
  %v37 = vld [vmem:[%s0 + $0x70] sm:$0xff]
  %v38 = vld [vmem:[%s0 + $0x78] sm:$0xff]
  %v39 = vld [vmem:[%s0 + $0x80] sm:$0xff]
  %v40 = vld [vmem:[%s0 + $0x88] sm:$0xff]
  %v41 = vld [vmem:[%s0 + $0x90] sm:$0xff]
  %v42 = vld [vmem:[%s0 + $0x98] sm:$0xff]
  %v43 = vld [vmem:[%s0 + $0xa0] sm:$0xff]
  %v44 = vld [vmem:[%s0 + $0xa8] sm:$0xff]
  %v45 = vld [vmem:[%s0 + $0xb0] sm:$0xff]
  %v46 = vld [vmem:[%s0 + $0xb8] sm:$0xff]
  %v47 = vld [vmem:[%s0 + $0xc0] sm:$0xff]
  %v48 = vld [vmem:[%s0 + $0xc8] sm:$0xff]
  %v49 = vld [vmem:[%s0 + $0xd0] sm:$0xff]
  %v50 = vld [vmem:[%s0 + $0xd8] sm:$0xff]
  %v51 = vld [vmem:[%s0 + $0xe0] sm:$0xff]
  %v52 = vld [vmem:[%s0 + $0xe8] sm:$0xff]
  %v53 = vld [vmem:[%s0 + $0xf0] sm:$0xff]
  %v54 = vld [vmem:[%s0 + $0xf8] sm:$0xff]
  %v55 = vld [vmem:[%s0 + $0x100] sm:$0xff]
  %v56 = vld [vmem:[%s0 + $0x108] sm:$0xff]
  %v57 = vld [vmem:[%s0 + $0x110] sm:$0xff]
  %v58 = vld [vmem:[%s0 + $0x118] sm:$0xff]
  %v59 = vld [vmem:[%s0 + $0x120] sm:$0xff]
  %v60 = vld [vmem:[%s0 + $0x128] sm:$0xff]
  %v61 = vld [vmem:[%s0 + $0x130] sm:$0xff]
  %v62 = vld [vmem:[%s0 + $0x138] sm:$0xff]
  %v63 = vld [vmem:[%s0 + $0x140] sm:$0xff]
  %v64 = vld [vmem:[%s0 + $0x148] sm:$0xff]
  %v65 = vld [vmem:[%s0 + $0x150] sm:$0xff]
  %v66 = vld [vmem:[%s0 + $0x158] sm:$0xff]
  %v67 = vld [vmem:[%s0 + $0x160] sm:$0xff]
  %v68 = vld [vmem:[%s0 + $0x168] sm:$0xff]
  %v69 = vld [vmem:[%s0 + $0x170] sm:$0xff]
  %v70 = vld [vmem:[%s0 + $0x178] sm:$0xff]
  %v71 = vld [vmem:[%s0 + $0x180] sm:$0xff]
  %v72 = vld [vmem:[%s0 + $0x188] sm:$0xff]
  %v73 = vld [vmem:[%s0 + $0x190] sm:$0xff]
  %v74 = vld [vmem:[%s0 + $0x198] sm:$0xff]
  %v75 = vld [vmem:[%s0 + $0x1a0] sm:$0xff]
  %v76 = vld [vmem:[%s0 + $0x1a8] sm:$0xff]
  %v77 = vld [vmem:[%s0 + $0x1b0] sm:$0xff]
  %v78 = vld [vmem:[%s0 + $0x1b8] sm:$0xff]
  %v79 = vld [vmem:[%s0 + $0x1c0] sm:$0xff]
  %v80 = vld [vmem:[%s0 + $0x1c8] sm:$0xff]
  %v81 = vld [vmem:[%s0 + $0x1d0] sm:$0xff]
  %v82 = vld [vmem:[%s0 + $0x1d8] sm:$0xff]
  %v83 = vld [vmem:[%s0 + $0x1e0] sm:$0xff]
  %v84 = vld [vmem:[%s0 + $0x1e8] sm:$0xff]
  %v85 = vld [vmem:[%s0 + $0x1f0] sm:$0xff]
  %v86 = vld [vmem:[%s0 + $0x1f8] sm:$0xff]
  %v87 = vld [vmem:[%s2] sm:$0xf]
  %vm88 = vcmask 31744
  %v90 = vsel %vm88, %v23, 0
  %v93 = vsel %vm88, %v24, 0
  %v96 = vsel %vm88, %v25, 0
  %v99 = vsel %vm88, %v26, 0
  %v102 = vsel %vm88, %v27, 0
  %v105 = vsel %vm88, %v28, 0
  %v108 = vsel %vm88, %v29, 0
  %v111 = vsel %vm88, %v30, 0
  %v114 = vsel %vm88, %v31, 0
  %v117 = vsel %vm88, %v32, 0
  %v120 = vsel %vm88, %v33, 0
  %v123 = vsel %vm88, %v34, 0
  %v126 = vsel %vm88, %v35, 0
  %v129 = vsel %vm88, %v36, 0
  %v132 = vsel %vm88, %v37, 0
  %v135 = vsel %vm88, %v38, 0
  %v138 = vsel %vm88, %v39, 0
  %v141 = vsel %vm88, %v40, 0
  %v144 = vsel %vm88, %v41, 0
  %v147 = vsel %vm88, %v42, 0
  %v150 = vsel %vm88, %v43, 0
  %v153 = vsel %vm88, %v44, 0
  %v156 = vsel %vm88, %v45, 0
  %v159 = vsel %vm88, %v46, 0
  %v162 = vsel %vm88, %v47, 0
  %v165 = vsel %vm88, %v48, 0
  %v168 = vsel %vm88, %v49, 0
  %v171 = vsel %vm88, %v50, 0
  %v174 = vsel %vm88, %v51, 0
  %v177 = vsel %vm88, %v52, 0
  %v180 = vsel %vm88, %v53, 0
  %v183 = vsel %vm88, %v54, 0
  %v186 = vsel %vm88, %v55, 0
  %v189 = vsel %vm88, %v56, 0
  %v192 = vsel %vm88, %v57, 0
  %v195 = vsel %vm88, %v58, 0
  %v198 = vsel %vm88, %v59, 0
  %v201 = vsel %vm88, %v60, 0
  %v204 = vsel %vm88, %v61, 0
  %v207 = vsel %vm88, %v62, 0
  %v210 = vsel %vm88, %v63, 0
  %v213 = vsel %vm88, %v64, 0
  %v216 = vsel %vm88, %v65, 0
  %v219 = vsel %vm88, %v66, 0
  %v222 = vsel %vm88, %v67, 0
  %v225 = vsel %vm88, %v68, 0
  %v228 = vsel %vm88, %v69, 0
  %v231 = vsel %vm88, %v70, 0
  %v234 = vsel %vm88, %v71, 0
  %v237 = vsel %vm88, %v72, 0
  %v240 = vsel %vm88, %v73, 0
  %v243 = vsel %vm88, %v74, 0
  %v246 = vsel %vm88, %v75, 0
  %v249 = vsel %vm88, %v76, 0
  %v252 = vsel %vm88, %v77, 0
  %v255 = vsel %vm88, %v78, 0
  %v258 = vsel %vm88, %v79, 0
  %v261 = vsel %vm88, %v80, 0
  %v264 = vsel %vm88, %v81, 0
  %v267 = vsel %vm88, %v82, 0
  %v270 = vsel %vm88, %v83, 0
  %v273 = vsel %vm88, %v84, 0
  %v276 = vsel %vm88, %v85, 0
  %v279 = vsel %vm88, %v86, 0
  %vm281 = vcmask 1043456
  %v283 = vsel %vm281, %v87, 0
  %285 = vmatprep.subr.mxu0 0.0
  %286 = vmatpush1.msra.mxu0 %v283
  %287 = vmatprep.subr.mxu0 0.0
  %288 = vmatpush1.msra.mxu0 0.0
  %289 = vmatprep.subr.mxu0 0.0
  %290 = vmatpush1.msra.mxu0 0.0
  %291 = vmatprep.subr.mxu0 0.0
  %292 = vmatpush1.msra.mxu0 0.0
  %293 = vmatprep.subr.mxu0 0.0
  %294 = vmatpush1.msra.mxu0 0.0
  %295 = vmatprep.subr.mxu0 0.0
  %296 = vmatpush1.msra.mxu0 0.0
  %297 = vmatprep.subr.mxu0 0.0
  %298 = vmatpush1.msra.mxu0 0.0
  %299 = vmatprep.subr.mxu0 0.0
  %300 = vmatpush1.msra.mxu0 0.0
  %301 = vmatprep.subr.mxu0 0.0
  %302 = vmatpush1.msra.mxu0 0.0
  %303 = vmatprep.subr.mxu0 0.0
  %304 = vmatpush1.msra.mxu0 0.0
  %305 = vmatprep.subr.mxu0 0.0
  %306 = vmatpush1.msra.mxu0 0.0
  %307 = vmatprep.subr.mxu0 0.0
  %308 = vmatpush1.msra.mxu0 0.0
  %309 = vmatprep.subr.mxu0 0.0
  %310 = vmatpush1.msra.mxu0 0.0
  %311 = vmatprep.subr.mxu0 0.0
  %312 = vmatpush1.msra.mxu0 0.0
  %313 = vmatprep.subr.mxu0 0.0
  %314 = vmatpush1.msra.mxu0 0.0
  %315 = vmatprep.subr.mxu0 0.0
  %316 = vmatpush1.msra.mxu0 0.0
  %317 = vmatprep.subr.mxu0 0.0
  %318 = vmatpush1.msra.mxu0 0.0
  %319 = vmatprep.subr.mxu0 0.0
  %320 = vmatpush1.msra.mxu0 0.0
  %321 = vmatprep.subr.mxu0 0.0
  %322 = vmatpush1.msra.mxu0 0.0
  %323 = vmatprep.subr.mxu0 0.0
  %324 = vmatpush1.msra.mxu0 0.0
  %325 = vmatprep.subr.mxu0 0.0
  %326 = vmatpush1.msra.mxu0 0.0
  %327 = vmatprep.subr.mxu0 0.0
  %328 = vmatpush1.msra.mxu0 0.0
  %329 = vmatprep.subr.mxu0 0.0
  %330 = vmatpush1.msra.mxu0 0.0
  %331 = vmatprep.subr.mxu0 0.0
  %332 = vmatpush1.msra.mxu0 0.0
  %333 = vmatprep.subr.mxu0 0.0
  %334 = vmatpush1.msra.mxu0 0.0
  %335 = vmatprep.subr.mxu0 0.0
  %336 = vmatpush1.msra.mxu0 0.0
  %337 = vmatprep.subr.mxu0 0.0
  %338 = vmatpush1.msra.mxu0 0.0
  %339 = vmatprep.subr.mxu0 0.0
  %340 = vmatpush1.msra.mxu0 0.0
  %341 = vmatprep.subr.mxu0 0.0
  %342 = vmatpush1.msra.mxu0 0.0
  %343 = vmatprep.subr.mxu0 0.0
  %344 = vmatpush1.msra.mxu0 0.0
  %345 = vmatprep.subr.mxu0 0.0
  %346 = vmatpush1.msra.mxu0 0.0
  %347 = vmatprep.subr.mxu0 0.0
  %348 = vmatpush1.msra.mxu0 0.0
  %349 = vmatprep.mubr.f32.mxu0 0.0
  %350 = vmatmul.mubr.f32.gmra.mrb[0].mxu0 %v90
  %v351 = vpop.f32.mrb[0].mxu0
  %v352 = vadd.f32 0.0, %v351
  %v353 = vpop.f32.mrb[0].mxu0
  %354 = vmatprep.mubr.f32.mxu0 0.0
  %355 = vmatmul.mubr.f32.gmra.mrb[0].mxu0 %v93
  %v356 = vpop.f32.mrb[0].mxu0
  %v357 = vadd.f32 0.0, %v356
  %v358 = vpop.f32.mrb[0].mxu0
  %359 = vmatprep.mubr.f32.mxu0 0.0
  %360 = vmatmul.mubr.f32.gmra.mrb[0].mxu0 %v96
  %v361 = vpop.f32.mrb[0].mxu0
  %v362 = vadd.f32 0.0, %v361
  %v363 = vpop.f32.mrb[0].mxu0
  %364 = vmatprep.mubr.f32.mxu0 0.0
  %365 = vmatmul.mubr.f32.gmra.mrb[0].mxu0 %v99
  %v366 = vpop.f32.mrb[0].mxu0
  %v367 = vadd.f32 0.0, %v366
  %v368 = vpop.f32.mrb[0].mxu0
  %369 = vmatprep.mubr.f32.mxu0 0.0
  %370 = vmatmul.mubr.f32.gmra.mrb[0].mxu0 %v102
  %v371 = vpop.f32.mrb[0].mxu0
  %v372 = vadd.f32 0.0, %v371
  %v373 = vpop.f32.mrb[0].mxu0
  %374 = vmatprep.mubr.f32.mxu0 0.0
  %375 = vmatmul.mubr.f32.gmra.mrb[0].mxu0 %v105
  %v376 = vpop.f32.mrb[0].mxu0
  %v377 = vadd.f32 0.0, %v376
  %v378 = vpop.f32.mrb[0].mxu0
  %379 = vmatprep.mubr.f32.mxu0 0.0
  %380 = vmatmul.mubr.f32.gmra.mrb[0].mxu0 %v108
  %v381 = vpop.f32.mrb[0].mxu0
  %v382 = vadd.f32 0.0, %v381
  %v383 = vpop.f32.mrb[0].mxu0
  %384 = vmatprep.mubr.f32.mxu0 0.0
  %385 = vmatmul.mubr.f32.gmra.mrb[0].mxu0 %v111
  %v386 = vpop.f32.mrb[0].mxu0
  %v387 = vadd.f32 0.0, %v386
  %v388 = vpop.f32.mrb[0].mxu0
  %389 = vmatprep.mubr.f32.mxu0 0.0
  %390 = vmatmul.mubr.f32.gmra.mrb[0].mxu0 %v114
  %v391 = vpop.f32.mrb[0].mxu0
  %v392 = vadd.f32 0.0, %v391
  %v393 = vpop.f32.mrb[0].mxu0
  %394 = vmatprep.mubr.f32.mxu0 0.0
  %395 = vmatmul.mubr.f32.gmra.mrb[0].mxu0 %v117
  %v396 = vpop.f32.mrb[0].mxu0
  %v397 = vadd.f32 0.0, %v396
  %v398 = vpop.f32.mrb[0].mxu0
  %399 = vmatprep.mubr.f32.mxu0 0.0
  %400 = vmatmul.mubr.f32.gmra.mrb[0].mxu0 %v120
  %v401 = vpop.f32.mrb[0].mxu0
  %v402 = vadd.f32 0.0, %v401
  %v403 = vpop.f32.mrb[0].mxu0
  %404 = vmatprep.mubr.f32.mxu0 0.0
  %405 = vmatmul.mubr.f32.gmra.mrb[0].mxu0 %v123
  %v406 = vpop.f32.mrb[0].mxu0
  %v407 = vadd.f32 0.0, %v406
  %v408 = vpop.f32.mrb[0].mxu0
  %409 = vmatprep.mubr.f32.mxu0 0.0
  %410 = vmatmul.mubr.f32.gmra.mrb[0].mxu0 %v126
  %v411 = vpop.f32.mrb[0].mxu0
  %v412 = vadd.f32 0.0, %v411
  %v413 = vpop.f32.mrb[0].mxu0
  %414 = vmatprep.mubr.f32.mxu0 0.0
  %415 = vmatmul.mubr.f32.gmra.mrb[0].mxu0 %v129
  %v416 = vpop.f32.mrb[0].mxu0
  %v417 = vadd.f32 0.0, %v416
  %v418 = vpop.f32.mrb[0].mxu0
  %419 = vmatprep.mubr.f32.mxu0 0.0
  %420 = vmatmul.mubr.f32.gmra.mrb[0].mxu0 %v132
  %v421 = vpop.f32.mrb[0].mxu0
  %v422 = vadd.f32 0.0, %v421
  %v423 = vpop.f32.mrb[0].mxu0
  %424 = vmatprep.mubr.f32.mxu0 0.0
  %425 = vmatmul.mubr.f32.gmra.mrb[0].mxu0 %v135
  %v426 = vpop.f32.mrb[0].mxu0
  %v427 = vadd.f32 0.0, %v426
  %v428 = vpop.f32.mrb[0].mxu0
  %429 = vmatprep.mubr.f32.mxu0 0.0
  %430 = vmatmul.mubr.f32.gmra.mrb[0].mxu0 %v138
  %v431 = vpop.f32.mrb[0].mxu0
  %v432 = vadd.f32 0.0, %v431
  %v433 = vpop.f32.mrb[0].mxu0
  %434 = vmatprep.mubr.f32.mxu0 0.0
  %435 = vmatmul.mubr.f32.gmra.mrb[0].mxu0 %v141
  %v436 = vpop.f32.mrb[0].mxu0
  %v437 = vadd.f32 0.0, %v436
  %v438 = vpop.f32.mrb[0].mxu0
  %439 = vmatprep.mubr.f32.mxu0 0.0
  %440 = vmatmul.mubr.f32.gmra.mrb[0].mxu0 %v144
  %v441 = vpop.f32.mrb[0].mxu0
  %v442 = vadd.f32 0.0, %v441
  %v443 = vpop.f32.mrb[0].mxu0
  %444 = vmatprep.mubr.f32.mxu0 0.0
  %445 = vmatmul.mubr.f32.gmra.mrb[0].mxu0 %v147
  %v446 = vpop.f32.mrb[0].mxu0
  %v447 = vadd.f32 0.0, %v446
  %v448 = vpop.f32.mrb[0].mxu0
  %449 = vmatprep.mubr.f32.mxu0 0.0
  %450 = vmatmul.mubr.f32.gmra.mrb[0].mxu0 %v150
  %v451 = vpop.f32.mrb[0].mxu0
  %v452 = vadd.f32 0.0, %v451
  %v453 = vpop.f32.mrb[0].mxu0
  %454 = vmatprep.mubr.f32.mxu0 0.0
  %455 = vmatmul.mubr.f32.gmra.mrb[0].mxu0 %v153
  %v456 = vpop.f32.mrb[0].mxu0
  %v457 = vadd.f32 0.0, %v456
  %v458 = vpop.f32.mrb[0].mxu0
  %459 = vmatprep.mubr.f32.mxu0 0.0
  %460 = vmatmul.mubr.f32.gmra.mrb[0].mxu0 %v156
  %v461 = vpop.f32.mrb[0].mxu0
  %v462 = vadd.f32 0.0, %v461
  %v463 = vpop.f32.mrb[0].mxu0
  %464 = vmatprep.mubr.f32.mxu0 0.0
  %465 = vmatmul.mubr.f32.gmra.mrb[0].mxu0 %v159
  %v466 = vpop.f32.mrb[0].mxu0
  %v467 = vadd.f32 0.0, %v466
  %v468 = vpop.f32.mrb[0].mxu0
  %469 = vmatprep.mubr.f32.mxu0 0.0
  %470 = vmatmul.mubr.f32.gmra.mrb[0].mxu0 %v162
  %v471 = vpop.f32.mrb[0].mxu0
  %v472 = vadd.f32 0.0, %v471
  %v473 = vpop.f32.mrb[0].mxu0
  %474 = vmatprep.mubr.f32.mxu0 0.0
  %475 = vmatmul.mubr.f32.gmra.mrb[0].mxu0 %v165
  %v476 = vpop.f32.mrb[0].mxu0
  %v477 = vadd.f32 0.0, %v476
  %v478 = vpop.f32.mrb[0].mxu0
  %479 = vmatprep.mubr.f32.mxu0 0.0
  %480 = vmatmul.mubr.f32.gmra.mrb[0].mxu0 %v168
  %v481 = vpop.f32.mrb[0].mxu0
  %v482 = vadd.f32 0.0, %v481
  %v483 = vpop.f32.mrb[0].mxu0
  %484 = vmatprep.mubr.f32.mxu0 0.0
  %485 = vmatmul.mubr.f32.gmra.mrb[0].mxu0 %v171
  %v486 = vpop.f32.mrb[0].mxu0
  %v487 = vadd.f32 0.0, %v486
  %v488 = vpop.f32.mrb[0].mxu0
  %489 = vmatprep.mubr.f32.mxu0 0.0
  %490 = vmatmul.mubr.f32.gmra.mrb[0].mxu0 %v174
  %v491 = vpop.f32.mrb[0].mxu0
  %v492 = vadd.f32 0.0, %v491
  %v493 = vpop.f32.mrb[0].mxu0
  %494 = vmatprep.mubr.f32.mxu0 0.0
  %495 = vmatmul.mubr.f32.gmra.mrb[0].mxu0 %v177
  %v496 = vpop.f32.mrb[0].mxu0
  %v497 = vadd.f32 0.0, %v496
  %v498 = vpop.f32.mrb[0].mxu0
  %499 = vmatprep.mubr.f32.mxu0 0.0
  %500 = vmatmul.mubr.f32.gmra.mrb[0].mxu0 %v180
  %v501 = vpop.f32.mrb[0].mxu0
  %v502 = vadd.f32 0.0, %v501
  %v503 = vpop.f32.mrb[0].mxu0
  %504 = vmatprep.mubr.f32.mxu0 0.0
  %505 = vmatmul.mubr.f32.gmra.mrb[0].mxu0 %v183
  %v506 = vpop.f32.mrb[0].mxu0
  %v507 = vadd.f32 0.0, %v506
  %v508 = vpop.f32.mrb[0].mxu0
  %509 = vmatprep.mubr.f32.mxu0 0.0
  %510 = vmatmul.mubr.f32.gmra.mrb[0].mxu0 %v186
  %v511 = vpop.f32.mrb[0].mxu0
  %v512 = vadd.f32 0.0, %v511
  %v513 = vpop.f32.mrb[0].mxu0
  %514 = vmatprep.mubr.f32.mxu0 0.0
  %515 = vmatmul.mubr.f32.gmra.mrb[0].mxu0 %v189
  %v516 = vpop.f32.mrb[0].mxu0
  %v517 = vadd.f32 0.0, %v516
  %v518 = vpop.f32.mrb[0].mxu0
  %519 = vmatprep.mubr.f32.mxu0 0.0
  %520 = vmatmul.mubr.f32.gmra.mrb[0].mxu0 %v192
  %v521 = vpop.f32.mrb[0].mxu0
  %v522 = vadd.f32 0.0, %v521
  %v523 = vpop.f32.mrb[0].mxu0
  %524 = vmatprep.mubr.f32.mxu0 0.0
  %525 = vmatmul.mubr.f32.gmra.mrb[0].mxu0 %v195
  %v526 = vpop.f32.mrb[0].mxu0
  %v527 = vadd.f32 0.0, %v526
  %v528 = vpop.f32.mrb[0].mxu0
  %529 = vmatprep.mubr.f32.mxu0 0.0
  %530 = vmatmul.mubr.f32.gmra.mrb[0].mxu0 %v198
  %v531 = vpop.f32.mrb[0].mxu0
  %v532 = vadd.f32 0.0, %v531
  %v533 = vpop.f32.mrb[0].mxu0
  %534 = vmatprep.mubr.f32.mxu0 0.0
  %535 = vmatmul.mubr.f32.gmra.mrb[0].mxu0 %v201
  %v536 = vpop.f32.mrb[0].mxu0
  %v537 = vadd.f32 0.0, %v536
  %v538 = vpop.f32.mrb[0].mxu0
  %539 = vmatprep.mubr.f32.mxu0 0.0
  %540 = vmatmul.mubr.f32.gmra.mrb[0].mxu0 %v204
  %v541 = vpop.f32.mrb[0].mxu0
  %v542 = vadd.f32 0.0, %v541
  %v543 = vpop.f32.mrb[0].mxu0
  %544 = vmatprep.mubr.f32.mxu0 0.0
  %545 = vmatmul.mubr.f32.gmra.mrb[0].mxu0 %v207
  %v546 = vpop.f32.mrb[0].mxu0
  %v547 = vadd.f32 0.0, %v546
  %v548 = vpop.f32.mrb[0].mxu0
  %549 = vmatprep.mubr.f32.mxu0 0.0
  %550 = vmatmul.mubr.f32.gmra.mrb[0].mxu0 %v210
  %v551 = vpop.f32.mrb[0].mxu0
  %v552 = vadd.f32 0.0, %v551
  %v553 = vpop.f32.mrb[0].mxu0
  %554 = vmatprep.mubr.f32.mxu0 0.0
  %555 = vmatmul.mubr.f32.gmra.mrb[0].mxu0 %v213
  %v556 = vpop.f32.mrb[0].mxu0
  %v557 = vadd.f32 0.0, %v556
  %v558 = vpop.f32.mrb[0].mxu0
  %559 = vmatprep.mubr.f32.mxu0 0.0
  %560 = vmatmul.mubr.f32.gmra.mrb[0].mxu0 %v216
  %v561 = vpop.f32.mrb[0].mxu0
  %v562 = vadd.f32 0.0, %v561
  %v563 = vpop.f32.mrb[0].mxu0
  %564 = vmatprep.mubr.f32.mxu0 0.0
  %565 = vmatmul.mubr.f32.gmra.mrb[0].mxu0 %v219
  %v566 = vpop.f32.mrb[0].mxu0
  %v567 = vadd.f32 0.0, %v566
  %v568 = vpop.f32.mrb[0].mxu0
  %569 = vmatprep.mubr.f32.mxu0 0.0
  %570 = vmatmul.mubr.f32.gmra.mrb[0].mxu0 %v222
  %v571 = vpop.f32.mrb[0].mxu0
  %v572 = vadd.f32 0.0, %v571
  %v573 = vpop.f32.mrb[0].mxu0
  %574 = vmatprep.mubr.f32.mxu0 0.0
  %575 = vmatmul.mubr.f32.gmra.mrb[0].mxu0 %v225
  %v576 = vpop.f32.mrb[0].mxu0
  %v577 = vadd.f32 0.0, %v576
  %v578 = vpop.f32.mrb[0].mxu0
  %579 = vmatprep.mubr.f32.mxu0 0.0
  %580 = vmatmul.mubr.f32.gmra.mrb[0].mxu0 %v228
  %v581 = vpop.f32.mrb[0].mxu0
  %v582 = vadd.f32 0.0, %v581
  %v583 = vpop.f32.mrb[0].mxu0
  %584 = vmatprep.mubr.f32.mxu0 0.0
  %585 = vmatmul.mubr.f32.gmra.mrb[0].mxu0 %v231
  %v586 = vpop.f32.mrb[0].mxu0
  %v587 = vadd.f32 0.0, %v586
  %v588 = vpop.f32.mrb[0].mxu0
  %589 = vmatprep.mubr.f32.mxu0 0.0
  %590 = vmatmul.mubr.f32.gmra.mrb[0].mxu0 %v234
  %v591 = vpop.f32.mrb[0].mxu0
  %v592 = vadd.f32 0.0, %v591
  %v593 = vpop.f32.mrb[0].mxu0
  %594 = vmatprep.mubr.f32.mxu0 0.0
  %595 = vmatmul.mubr.f32.gmra.mrb[0].mxu0 %v237
  %v596 = vpop.f32.mrb[0].mxu0
  %v597 = vadd.f32 0.0, %v596
  %v598 = vpop.f32.mrb[0].mxu0
  %599 = vmatprep.mubr.f32.mxu0 0.0
  %600 = vmatmul.mubr.f32.gmra.mrb[0].mxu0 %v240
  %v601 = vpop.f32.mrb[0].mxu0
  %v602 = vadd.f32 0.0, %v601
  %v603 = vpop.f32.mrb[0].mxu0
  %604 = vmatprep.mubr.f32.mxu0 0.0
  %605 = vmatmul.mubr.f32.gmra.mrb[0].mxu0 %v243
  %v606 = vpop.f32.mrb[0].mxu0
  %v607 = vadd.f32 0.0, %v606
  %v608 = vpop.f32.mrb[0].mxu0
  %609 = vmatprep.mubr.f32.mxu0 0.0
  %610 = vmatmul.mubr.f32.gmra.mrb[0].mxu0 %v246
  %v611 = vpop.f32.mrb[0].mxu0
  %v612 = vadd.f32 0.0, %v611
  %v613 = vpop.f32.mrb[0].mxu0
  %614 = vmatprep.mubr.f32.mxu0 0.0
  %615 = vmatmul.mubr.f32.gmra.mrb[0].mxu0 %v249
  %v616 = vpop.f32.mrb[0].mxu0
  %v617 = vadd.f32 0.0, %v616
  %v618 = vpop.f32.mrb[0].mxu0
  %619 = vmatprep.mubr.f32.mxu0 0.0
  %620 = vmatmul.mubr.f32.gmra.mrb[0].mxu0 %v252
  %v621 = vpop.f32.mrb[0].mxu0
  %v622 = vadd.f32 0.0, %v621
  %v623 = vpop.f32.mrb[0].mxu0
  %624 = vmatprep.mubr.f32.mxu0 0.0
  %625 = vmatmul.mubr.f32.gmra.mrb[0].mxu0 %v255
  %v626 = vpop.f32.mrb[0].mxu0
  %v627 = vadd.f32 0.0, %v626
  %v628 = vpop.f32.mrb[0].mxu0
  %629 = vmatprep.mubr.f32.mxu0 0.0
  %630 = vmatmul.mubr.f32.gmra.mrb[0].mxu0 %v258
  %v631 = vpop.f32.mrb[0].mxu0
  %v632 = vadd.f32 0.0, %v631
  %v633 = vpop.f32.mrb[0].mxu0
  %634 = vmatprep.mubr.f32.mxu0 0.0
  %635 = vmatmul.mubr.f32.gmra.mrb[0].mxu0 %v261
  %v636 = vpop.f32.mrb[0].mxu0
  %v637 = vadd.f32 0.0, %v636
  %v638 = vpop.f32.mrb[0].mxu0
  %639 = vmatprep.mubr.f32.mxu0 0.0
  %640 = vmatmul.mubr.f32.gmra.mrb[0].mxu0 %v264
  %v641 = vpop.f32.mrb[0].mxu0
  %v642 = vadd.f32 0.0, %v641
  %v643 = vpop.f32.mrb[0].mxu0
  %644 = vmatprep.mubr.f32.mxu0 0.0
  %645 = vmatmul.mubr.f32.gmra.mrb[0].mxu0 %v267
  %v646 = vpop.f32.mrb[0].mxu0
  %v647 = vadd.f32 0.0, %v646
  %v648 = vpop.f32.mrb[0].mxu0
  %649 = vmatprep.mubr.f32.mxu0 0.0
  %650 = vmatmul.mubr.f32.gmra.mrb[0].mxu0 %v270
  %v651 = vpop.f32.mrb[0].mxu0
  %v652 = vadd.f32 0.0, %v651
  %v653 = vpop.f32.mrb[0].mxu0
  %654 = vmatprep.mubr.f32.mxu0 0.0
  %655 = vmatmul.mubr.f32.gmra.mrb[0].mxu0 %v273
  %v656 = vpop.f32.mrb[0].mxu0
  %v657 = vadd.f32 0.0, %v656
  %v658 = vpop.f32.mrb[0].mxu0
  %659 = vmatprep.mubr.f32.mxu0 0.0
  %660 = vmatmul.mubr.f32.gmra.mrb[0].mxu0 %v276
  %v661 = vpop.f32.mrb[0].mxu0
  %v662 = vadd.f32 0.0, %v661
  %v663 = vpop.f32.mrb[0].mxu0
  %664 = vmatprep.mubr.f32.mxu0 0.0
  %665 = vmatmul.mubr.f32.gmra.mrb[0].mxu0 %v279
  %v666 = vpop.f32.mrb[0].mxu0
  %v667 = vadd.f32 0.0, %v666
  %v668 = vpop.f32.mrb[0].mxu0
  %669 = vdwg.mxu0
  %v670 = vld [vmem:[%s3] sm:$0x1]
  %v671 = vlaneseq
  %v672 = vshrl.u32 %v671, 7
  %v673 = vsub.s32 0, %v672
  %v674 = vrot.slane %v670, %v673
  %v675 = vmul.f32 %v352, %v674
  %v676 = vmul.f32 %v357, %v674
  %v677 = vmul.f32 %v362, %v674
  %v678 = vmul.f32 %v367, %v674
  %v679 = vmul.f32 %v372, %v674
  %v680 = vmul.f32 %v377, %v674
  %v681 = vmul.f32 %v382, %v674
  %v682 = vmul.f32 %v387, %v674
  %v683 = vmul.f32 %v392, %v674
  %v684 = vmul.f32 %v397, %v674
  %v685 = vmul.f32 %v402, %v674
  %v686 = vmul.f32 %v407, %v674
  %v687 = vmul.f32 %v412, %v674
  %v688 = vmul.f32 %v417, %v674
  %v689 = vmul.f32 %v422, %v674
  %v690 = vmul.f32 %v427, %v674
  %v691 = vmul.f32 %v432, %v674
  %v692 = vmul.f32 %v437, %v674
  %v693 = vmul.f32 %v442, %v674
  %v694 = vmul.f32 %v447, %v674
  %v695 = vmul.f32 %v452, %v674
  %v696 = vmul.f32 %v457, %v674
  %v697 = vmul.f32 %v462, %v674
  %v698 = vmul.f32 %v467, %v674
  %v699 = vmul.f32 %v472, %v674
  %v700 = vmul.f32 %v477, %v674
  %v701 = vmul.f32 %v482, %v674
  %v702 = vmul.f32 %v487, %v674
  %v703 = vmul.f32 %v492, %v674
  %v704 = vmul.f32 %v497, %v674
  %v705 = vmul.f32 %v502, %v674
  %v706 = vmul.f32 %v507, %v674
  %v707 = vmul.f32 %v512, %v674
  %v708 = vmul.f32 %v517, %v674
  %v709 = vmul.f32 %v522, %v674
  %v710 = vmul.f32 %v527, %v674
  %v711 = vmul.f32 %v532, %v674
  %v712 = vmul.f32 %v537, %v674
  %v713 = vmul.f32 %v542, %v674
  %v714 = vmul.f32 %v547, %v674
  %v715 = vmul.f32 %v552, %v674
  %v716 = vmul.f32 %v557, %v674
  %v717 = vmul.f32 %v562, %v674
  %v718 = vmul.f32 %v567, %v674
  %v719 = vmul.f32 %v572, %v674
  %v720 = vmul.f32 %v577, %v674
  %v721 = vmul.f32 %v582, %v674
  %v722 = vmul.f32 %v587, %v674
  %v723 = vmul.f32 %v592, %v674
  %v724 = vmul.f32 %v597, %v674
  %v725 = vmul.f32 %v602, %v674
  %v726 = vmul.f32 %v607, %v674
  %v727 = vmul.f32 %v612, %v674
  %v728 = vmul.f32 %v617, %v674
  %v729 = vmul.f32 %v622, %v674
  %v730 = vmul.f32 %v627, %v674
  %v731 = vmul.f32 %v632, %v674
  %v732 = vmul.f32 %v637, %v674
  %v733 = vmul.f32 %v642, %v674
  %v734 = vmul.f32 %v647, %v674
  %v735 = vmul.f32 %v652, %v674
  %v736 = vmul.f32 %v657, %v674
  %v737 = vmul.f32 %v662, %v674
  %v738 = vmul.f32 %v667, %v674
  %v739 = vld [vmem:[%s3 + $0x1] sm:$0x1]
  %v740 = vlaneseq
  %v741 = vshrl.u32 %v740, 7
  %v742 = vsub.s32 0, %v741
  %v743 = vrot.slane %v739, %v742
  %v744 = vadd.f32 %v675, %v743
  %v745 = vadd.f32 %v676, %v743
  %v746 = vadd.f32 %v677, %v743
  %v747 = vadd.f32 %v678, %v743
  %v748 = vadd.f32 %v679, %v743
  %v749 = vadd.f32 %v680, %v743
  %v750 = vadd.f32 %v681, %v743
  %v751 = vadd.f32 %v682, %v743
  %v752 = vadd.f32 %v683, %v743
  %v753 = vadd.f32 %v684, %v743
  %v754 = vadd.f32 %v685, %v743
  %v755 = vadd.f32 %v686, %v743
  %v756 = vadd.f32 %v687, %v743
  %v757 = vadd.f32 %v688, %v743
  %v758 = vadd.f32 %v689, %v743
  %v759 = vadd.f32 %v690, %v743
  %v760 = vadd.f32 %v691, %v743
  %v761 = vadd.f32 %v692, %v743
  %v762 = vadd.f32 %v693, %v743
  %v763 = vadd.f32 %v694, %v743
  %v764 = vadd.f32 %v695, %v743
  %v765 = vadd.f32 %v696, %v743
  %v766 = vadd.f32 %v697, %v743
  %v767 = vadd.f32 %v698, %v743
  %v768 = vadd.f32 %v699, %v743
  %v769 = vadd.f32 %v700, %v743
  %v770 = vadd.f32 %v701, %v743
  %v771 = vadd.f32 %v702, %v743
  %v772 = vadd.f32 %v703, %v743
  %v773 = vadd.f32 %v704, %v743
  %v774 = vadd.f32 %v705, %v743
  %v775 = vadd.f32 %v706, %v743
  %v776 = vadd.f32 %v707, %v743
  %v777 = vadd.f32 %v708, %v743
  %v778 = vadd.f32 %v709, %v743
  %v779 = vadd.f32 %v710, %v743
  %v780 = vadd.f32 %v711, %v743
  %v781 = vadd.f32 %v712, %v743
  %v782 = vadd.f32 %v713, %v743
  %v783 = vadd.f32 %v714, %v743
  %v784 = vadd.f32 %v715, %v743
  %v785 = vadd.f32 %v716, %v743
  %v786 = vadd.f32 %v717, %v743
  %v787 = vadd.f32 %v718, %v743
  %v788 = vadd.f32 %v719, %v743
  %v789 = vadd.f32 %v720, %v743
  %v790 = vadd.f32 %v721, %v743
  %v791 = vadd.f32 %v722, %v743
  %v792 = vadd.f32 %v723, %v743
  %v793 = vadd.f32 %v724, %v743
  %v794 = vadd.f32 %v725, %v743
  %v795 = vadd.f32 %v726, %v743
  %v796 = vadd.f32 %v727, %v743
  %v797 = vadd.f32 %v728, %v743
  %v798 = vadd.f32 %v729, %v743
  %v799 = vadd.f32 %v730, %v743
  %v800 = vadd.f32 %v731, %v743
  %v801 = vadd.f32 %v732, %v743
  %v802 = vadd.f32 %v733, %v743
  %v803 = vadd.f32 %v734, %v743
  %v804 = vadd.f32 %v735, %v743
  %v805 = vadd.f32 %v736, %v743
  %v806 = vadd.f32 %v737, %v743
  %v807 = vadd.f32 %v738, %v743
  %v808 = vld [vmem:[%s1] sm:$0xff]
  %v809 = vld [vmem:[%s1 + $0x8] sm:$0xff]
  %v810 = vld [vmem:[%s1 + $0x10] sm:$0xff]
  %v811 = vld [vmem:[%s1 + $0x18] sm:$0xff]
  %v812 = vld [vmem:[%s1 + $0x20] sm:$0xff]
  %v813 = vld [vmem:[%s1 + $0x28] sm:$0xff]
  %v814 = vld [vmem:[%s1 + $0x30] sm:$0xff]
  %v815 = vld [vmem:[%s1 + $0x38] sm:$0xff]
  %v816 = vld [vmem:[%s1 + $0x40] sm:$0xff]
  %v817 = vld [vmem:[%s1 + $0x48] sm:$0xff]
  %v818 = vld [vmem:[%s1 + $0x50] sm:$0xff]
  %v819 = vld [vmem:[%s1 + $0x58] sm:$0xff]
  %v820 = vld [vmem:[%s1 + $0x60] sm:$0xff]
  %v821 = vld [vmem:[%s1 + $0x68] sm:$0xff]
  %v822 = vld [vmem:[%s1 + $0x70] sm:$0xff]
  %v823 = vld [vmem:[%s1 + $0x78] sm:$0xff]
  %v824 = vld [vmem:[%s1 + $0x80] sm:$0xff]
  %v825 = vld [vmem:[%s1 + $0x88] sm:$0xff]
  %v826 = vld [vmem:[%s1 + $0x90] sm:$0xff]
  %v827 = vld [vmem:[%s1 + $0x98] sm:$0xff]
  %v828 = vld [vmem:[%s1 + $0xa0] sm:$0xff]
  %v829 = vld [vmem:[%s1 + $0xa8] sm:$0xff]
  %v830 = vld [vmem:[%s1 + $0xb0] sm:$0xff]
  %v831 = vld [vmem:[%s1 + $0xb8] sm:$0xff]
  %v832 = vld [vmem:[%s1 + $0xc0] sm:$0xff]
  %v833 = vld [vmem:[%s1 + $0xc8] sm:$0xff]
  %v834 = vld [vmem:[%s1 + $0xd0] sm:$0xff]
  %v835 = vld [vmem:[%s1 + $0xd8] sm:$0xff]
  %v836 = vld [vmem:[%s1 + $0xe0] sm:$0xff]
  %v837 = vld [vmem:[%s1 + $0xe8] sm:$0xff]
  %v838 = vld [vmem:[%s1 + $0xf0] sm:$0xff]
  %v839 = vld [vmem:[%s1 + $0xf8] sm:$0xff]
  %v840 = vld [vmem:[%s1 + $0x100] sm:$0xff]
  %v841 = vld [vmem:[%s1 + $0x108] sm:$0xff]
  %v842 = vld [vmem:[%s1 + $0x110] sm:$0xff]
  %v843 = vld [vmem:[%s1 + $0x118] sm:$0xff]
  %v844 = vld [vmem:[%s1 + $0x120] sm:$0xff]
  %v845 = vld [vmem:[%s1 + $0x128] sm:$0xff]
  %v846 = vld [vmem:[%s1 + $0x130] sm:$0xff]
  %v847 = vld [vmem:[%s1 + $0x138] sm:$0xff]
  %v848 = vld [vmem:[%s1 + $0x140] sm:$0xff]
  %v849 = vld [vmem:[%s1 + $0x148] sm:$0xff]
  %v850 = vld [vmem:[%s1 + $0x150] sm:$0xff]
  %v851 = vld [vmem:[%s1 + $0x158] sm:$0xff]
  %v852 = vld [vmem:[%s1 + $0x160] sm:$0xff]
  %v853 = vld [vmem:[%s1 + $0x168] sm:$0xff]
  %v854 = vld [vmem:[%s1 + $0x170] sm:$0xff]
  %v855 = vld [vmem:[%s1 + $0x178] sm:$0xff]
  %v856 = vld [vmem:[%s1 + $0x180] sm:$0xff]
  %v857 = vld [vmem:[%s1 + $0x188] sm:$0xff]
  %v858 = vld [vmem:[%s1 + $0x190] sm:$0xff]
  %v859 = vld [vmem:[%s1 + $0x198] sm:$0xff]
  %v860 = vld [vmem:[%s1 + $0x1a0] sm:$0xff]
  %v861 = vld [vmem:[%s1 + $0x1a8] sm:$0xff]
  %v862 = vld [vmem:[%s1 + $0x1b0] sm:$0xff]
  %v863 = vld [vmem:[%s1 + $0x1b8] sm:$0xff]
  %v864 = vld [vmem:[%s1 + $0x1c0] sm:$0xff]
  %v865 = vld [vmem:[%s1 + $0x1c8] sm:$0xff]
  %v866 = vld [vmem:[%s1 + $0x1d0] sm:$0xff]
  %v867 = vld [vmem:[%s1 + $0x1d8] sm:$0xff]
  %v868 = vld [vmem:[%s1 + $0x1e0] sm:$0xff]
  %v869 = vld [vmem:[%s1 + $0x1e8] sm:$0xff]
  %v870 = vld [vmem:[%s1 + $0x1f0] sm:$0xff]
  %v871 = vld [vmem:[%s1 + $0x1f8] sm:$0xff]
  %v872 = vld [vmem:[%s4] sm:$0xff]
  %vm873 = vcmask 64512
  %v875 = vsel %vm873, %v808, 0
  %v878 = vsel %vm873, %v809, 0
  %v881 = vsel %vm873, %v810, 0
  %v884 = vsel %vm873, %v811, 0
  %v887 = vsel %vm873, %v812, 0
  %v890 = vsel %vm873, %v813, 0
  %v893 = vsel %vm873, %v814, 0
  %v896 = vsel %vm873, %v815, 0
  %v899 = vsel %vm873, %v816, 0
  %v902 = vsel %vm873, %v817, 0
  %v905 = vsel %vm873, %v818, 0
  %v908 = vsel %vm873, %v819, 0
  %v911 = vsel %vm873, %v820, 0
  %v914 = vsel %vm873, %v821, 0
  %v917 = vsel %vm873, %v822, 0
  %v920 = vsel %vm873, %v823, 0
  %v923 = vsel %vm873, %v824, 0
  %v926 = vsel %vm873, %v825, 0
  %v929 = vsel %vm873, %v826, 0
  %v932 = vsel %vm873, %v827, 0
  %v935 = vsel %vm873, %v828, 0
  %v938 = vsel %vm873, %v829, 0
  %v941 = vsel %vm873, %v830, 0
  %v944 = vsel %vm873, %v831, 0
  %v947 = vsel %vm873, %v832, 0
  %v950 = vsel %vm873, %v833, 0
  %v953 = vsel %vm873, %v834, 0
  %v956 = vsel %vm873, %v835, 0
  %v959 = vsel %vm873, %v836, 0
  %v962 = vsel %vm873, %v837, 0
  %v965 = vsel %vm873, %v838, 0
  %v968 = vsel %vm873, %v839, 0
  %v971 = vsel %vm873, %v840, 0
  %v974 = vsel %vm873, %v841, 0
  %v977 = vsel %vm873, %v842, 0
  %v980 = vsel %vm873, %v843, 0
  %v983 = vsel %vm873, %v844, 0
  %v986 = vsel %vm873, %v845, 0
  %v989 = vsel %vm873, %v846, 0
  %v992 = vsel %vm873, %v847, 0
  %v995 = vsel %vm873, %v848, 0
  %v998 = vsel %vm873, %v849, 0
  %v1001 = vsel %vm873, %v850, 0
  %v1004 = vsel %vm873, %v851, 0
  %v1007 = vsel %vm873, %v852, 0
  %v1010 = vsel %vm873, %v853, 0
  %v1013 = vsel %vm873, %v854, 0
  %v1016 = vsel %vm873, %v855, 0
  %v1019 = vsel %vm873, %v856, 0
  %v1022 = vsel %vm873, %v857, 0
  %v1025 = vsel %vm873, %v858, 0
  %v1028 = vsel %vm873, %v859, 0
  %v1031 = vsel %vm873, %v860, 0
  %v1034 = vsel %vm873, %v861, 0
  %v1037 = vsel %vm873, %v862, 0
  %v1040 = vsel %vm873, %v863, 0
  %v1043 = vsel %vm873, %v864, 0
  %v1046 = vsel %vm873, %v865, 0
  %v1049 = vsel %vm873, %v866, 0
  %v1052 = vsel %vm873, %v867, 0
  %v1055 = vsel %vm873, %v868, 0
  %v1058 = vsel %vm873, %v869, 0
  %v1061 = vsel %vm873, %v870, 0
  %v1064 = vsel %vm873, %v871, 0
  %1066 = vmatprep.subr.mxu0 0.0
  %1067 = vmatpush1.msra.mxu0 %v872
  %1068 = vmatprep.subr.mxu0 0.0
  %1069 = vmatpush1.msra.mxu0 0.0
  %1070 = vmatprep.subr.mxu0 0.0
  %1071 = vmatpush1.msra.mxu0 0.0
  %1072 = vmatprep.subr.mxu0 0.0
  %1073 = vmatpush1.msra.mxu0 0.0
  %1074 = vmatprep.subr.mxu0 0.0
  %1075 = vmatpush1.msra.mxu0 0.0
  %1076 = vmatprep.subr.mxu0 0.0
  %1077 = vmatpush1.msra.mxu0 0.0
  %1078 = vmatprep.subr.mxu0 0.0
  %1079 = vmatpush1.msra.mxu0 0.0
  %1080 = vmatprep.subr.mxu0 0.0
  %1081 = vmatpush1.msra.mxu0 0.0
  %1082 = vmatprep.subr.mxu0 0.0
  %1083 = vmatpush1.msra.mxu0 0.0
  %1084 = vmatprep.subr.mxu0 0.0
  %1085 = vmatpush1.msra.mxu0 0.0
  %1086 = vmatprep.subr.mxu0 0.0
  %1087 = vmatpush1.msra.mxu0 0.0
  %1088 = vmatprep.subr.mxu0 0.0
  %1089 = vmatpush1.msra.mxu0 0.0
  %1090 = vmatprep.subr.mxu0 0.0
  %1091 = vmatpush1.msra.mxu0 0.0
  %1092 = vmatprep.subr.mxu0 0.0
  %1093 = vmatpush1.msra.mxu0 0.0
  %1094 = vmatprep.subr.mxu0 0.0
  %1095 = vmatpush1.msra.mxu0 0.0
  %1096 = vmatprep.subr.mxu0 0.0
  %1097 = vmatpush1.msra.mxu0 0.0
  %1098 = vmatprep.subr.mxu0 0.0
  %1099 = vmatpush1.msra.mxu0 0.0
  %1100 = vmatprep.subr.mxu0 0.0
  %1101 = vmatpush1.msra.mxu0 0.0
  %1102 = vmatprep.subr.mxu0 0.0
  %1103 = vmatpush1.msra.mxu0 0.0
  %1104 = vmatprep.subr.mxu0 0.0
  %1105 = vmatpush1.msra.mxu0 0.0
  %1106 = vmatprep.subr.mxu0 0.0
  %1107 = vmatpush1.msra.mxu0 0.0
  %1108 = vmatprep.subr.mxu0 0.0
  %1109 = vmatpush1.msra.mxu0 0.0
  %1110 = vmatprep.subr.mxu0 0.0
  %1111 = vmatpush1.msra.mxu0 0.0
  %1112 = vmatprep.subr.mxu0 0.0
  %1113 = vmatpush1.msra.mxu0 0.0
  %1114 = vmatprep.subr.mxu0 0.0
  %1115 = vmatpush1.msra.mxu0 0.0
  %1116 = vmatprep.subr.mxu0 0.0
  %1117 = vmatpush1.msra.mxu0 0.0
  %1118 = vmatprep.subr.mxu0 0.0
  %1119 = vmatpush1.msra.mxu0 0.0
  %1120 = vmatprep.subr.mxu0 0.0
  %1121 = vmatpush1.msra.mxu0 0.0
  %1122 = vmatprep.subr.mxu0 0.0
  %1123 = vmatpush1.msra.mxu0 0.0
  %1124 = vmatprep.subr.mxu0 0.0
  %1125 = vmatpush1.msra.mxu0 0.0
  %1126 = vmatprep.subr.mxu0 0.0
  %1127 = vmatpush1.msra.mxu0 0.0
  %1128 = vmatprep.subr.mxu0 0.0
  %1129 = vmatpush1.msra.mxu0 0.0
  %1130 = vmatprep.mubr.f32.mxu0 0.0
  %1131 = vmatmul.mubr.f32.gmra.mrb[0].mxu0 %v875
  %v1132 = vpop.f32.mrb[0].mxu0
  %v1133 = vadd.f32 0.0, %v1132
  %v1134 = vpop.f32.mrb[0].mxu0
  %1135 = vmatprep.mubr.f32.mxu0 0.0
  %1136 = vmatmul.mubr.f32.gmra.mrb[0].mxu0 %v878
  %v1137 = vpop.f32.mrb[0].mxu0
  %v1138 = vadd.f32 0.0, %v1137
  %v1139 = vpop.f32.mrb[0].mxu0
  %1140 = vmatprep.mubr.f32.mxu0 0.0
  %1141 = vmatmul.mubr.f32.gmra.mrb[0].mxu0 %v881
  %v1142 = vpop.f32.mrb[0].mxu0
  %v1143 = vadd.f32 0.0, %v1142
  %v1144 = vpop.f32.mrb[0].mxu0
  %1145 = vmatprep.mubr.f32.mxu0 0.0
  %1146 = vmatmul.mubr.f32.gmra.mrb[0].mxu0 %v884
  %v1147 = vpop.f32.mrb[0].mxu0
  %v1148 = vadd.f32 0.0, %v1147
  %v1149 = vpop.f32.mrb[0].mxu0
  %1150 = vmatprep.mubr.f32.mxu0 0.0
  %1151 = vmatmul.mubr.f32.gmra.mrb[0].mxu0 %v887
  %v1152 = vpop.f32.mrb[0].mxu0
  %v1153 = vadd.f32 0.0, %v1152
  %v1154 = vpop.f32.mrb[0].mxu0
  %1155 = vmatprep.mubr.f32.mxu0 0.0
  %1156 = vmatmul.mubr.f32.gmra.mrb[0].mxu0 %v890
  %v1157 = vpop.f32.mrb[0].mxu0
  %v1158 = vadd.f32 0.0, %v1157
  %v1159 = vpop.f32.mrb[0].mxu0
  %1160 = vmatprep.mubr.f32.mxu0 0.0
  %1161 = vmatmul.mubr.f32.gmra.mrb[0].mxu0 %v893
  %v1162 = vpop.f32.mrb[0].mxu0
  %v1163 = vadd.f32 0.0, %v1162
  %v1164 = vpop.f32.mrb[0].mxu0
  %1165 = vmatprep.mubr.f32.mxu0 0.0
  %1166 = vmatmul.mubr.f32.gmra.mrb[0].mxu0 %v896
  %v1167 = vpop.f32.mrb[0].mxu0
  %v1168 = vadd.f32 0.0, %v1167
  %v1169 = vpop.f32.mrb[0].mxu0
  %1170 = vmatprep.mubr.f32.mxu0 0.0
  %1171 = vmatmul.mubr.f32.gmra.mrb[0].mxu0 %v899
  %v1172 = vpop.f32.mrb[0].mxu0
  %v1173 = vadd.f32 0.0, %v1172
  %v1174 = vpop.f32.mrb[0].mxu0
  %1175 = vmatprep.mubr.f32.mxu0 0.0
  %1176 = vmatmul.mubr.f32.gmra.mrb[0].mxu0 %v902
  %v1177 = vpop.f32.mrb[0].mxu0
  %v1178 = vadd.f32 0.0, %v1177
  %v1179 = vpop.f32.mrb[0].mxu0
  %1180 = vmatprep.mubr.f32.mxu0 0.0
  %1181 = vmatmul.mubr.f32.gmra.mrb[0].mxu0 %v905
  %v1182 = vpop.f32.mrb[0].mxu0
  %v1183 = vadd.f32 0.0, %v1182
  %v1184 = vpop.f32.mrb[0].mxu0
  %1185 = vmatprep.mubr.f32.mxu0 0.0
  %1186 = vmatmul.mubr.f32.gmra.mrb[0].mxu0 %v908
  %v1187 = vpop.f32.mrb[0].mxu0
  %v1188 = vadd.f32 0.0, %v1187
  %v1189 = vpop.f32.mrb[0].mxu0
  %1190 = vmatprep.mubr.f32.mxu0 0.0
  %1191 = vmatmul.mubr.f32.gmra.mrb[0].mxu0 %v911
  %v1192 = vpop.f32.mrb[0].mxu0
  %v1193 = vadd.f32 0.0, %v1192
  %v1194 = vpop.f32.mrb[0].mxu0
  %1195 = vmatprep.mubr.f32.mxu0 0.0
  %1196 = vmatmul.mubr.f32.gmra.mrb[0].mxu0 %v914
  %v1197 = vpop.f32.mrb[0].mxu0
  %v1198 = vadd.f32 0.0, %v1197
  %v1199 = vpop.f32.mrb[0].mxu0
  %1200 = vmatprep.mubr.f32.mxu0 0.0
  %1201 = vmatmul.mubr.f32.gmra.mrb[0].mxu0 %v917
  %v1202 = vpop.f32.mrb[0].mxu0
  %v1203 = vadd.f32 0.0, %v1202
  %v1204 = vpop.f32.mrb[0].mxu0
  %1205 = vmatprep.mubr.f32.mxu0 0.0
  %1206 = vmatmul.mubr.f32.gmra.mrb[0].mxu0 %v920
  %v1207 = vpop.f32.mrb[0].mxu0
  %v1208 = vadd.f32 0.0, %v1207
  %v1209 = vpop.f32.mrb[0].mxu0
  %1210 = vmatprep.mubr.f32.mxu0 0.0
  %1211 = vmatmul.mubr.f32.gmra.mrb[0].mxu0 %v923
  %v1212 = vpop.f32.mrb[0].mxu0
  %v1213 = vadd.f32 0.0, %v1212
  %v1214 = vpop.f32.mrb[0].mxu0
  %1215 = vmatprep.mubr.f32.mxu0 0.0
  %1216 = vmatmul.mubr.f32.gmra.mrb[0].mxu0 %v926
  %v1217 = vpop.f32.mrb[0].mxu0
  %v1218 = vadd.f32 0.0, %v1217
  %v1219 = vpop.f32.mrb[0].mxu0
  %1220 = vmatprep.mubr.f32.mxu0 0.0
  %1221 = vmatmul.mubr.f32.gmra.mrb[0].mxu0 %v929
  %v1222 = vpop.f32.mrb[0].mxu0
  %v1223 = vadd.f32 0.0, %v1222
  %v1224 = vpop.f32.mrb[0].mxu0
  %1225 = vmatprep.mubr.f32.mxu0 0.0
  %1226 = vmatmul.mubr.f32.gmra.mrb[0].mxu0 %v932
  %v1227 = vpop.f32.mrb[0].mxu0
  %v1228 = vadd.f32 0.0, %v1227
  %v1229 = vpop.f32.mrb[0].mxu0
  %1230 = vmatprep.mubr.f32.mxu0 0.0
  %1231 = vmatmul.mubr.f32.gmra.mrb[0].mxu0 %v935
  %v1232 = vpop.f32.mrb[0].mxu0
  %v1233 = vadd.f32 0.0, %v1232
  %v1234 = vpop.f32.mrb[0].mxu0
  %1235 = vmatprep.mubr.f32.mxu0 0.0
  %1236 = vmatmul.mubr.f32.gmra.mrb[0].mxu0 %v938
  %v1237 = vpop.f32.mrb[0].mxu0
  %v1238 = vadd.f32 0.0, %v1237
  %v1239 = vpop.f32.mrb[0].mxu0
  %1240 = vmatprep.mubr.f32.mxu0 0.0
  %1241 = vmatmul.mubr.f32.gmra.mrb[0].mxu0 %v941
  %v1242 = vpop.f32.mrb[0].mxu0
  %v1243 = vadd.f32 0.0, %v1242
  %v1244 = vpop.f32.mrb[0].mxu0
  %1245 = vmatprep.mubr.f32.mxu0 0.0
  %1246 = vmatmul.mubr.f32.gmra.mrb[0].mxu0 %v944
  %v1247 = vpop.f32.mrb[0].mxu0
  %v1248 = vadd.f32 0.0, %v1247
  %v1249 = vpop.f32.mrb[0].mxu0
  %1250 = vmatprep.mubr.f32.mxu0 0.0
  %1251 = vmatmul.mubr.f32.gmra.mrb[0].mxu0 %v947
  %v1252 = vpop.f32.mrb[0].mxu0
  %v1253 = vadd.f32 0.0, %v1252
  %v1254 = vpop.f32.mrb[0].mxu0
  %1255 = vmatprep.mubr.f32.mxu0 0.0
  %1256 = vmatmul.mubr.f32.gmra.mrb[0].mxu0 %v950
  %v1257 = vpop.f32.mrb[0].mxu0
  %v1258 = vadd.f32 0.0, %v1257
  %v1259 = vpop.f32.mrb[0].mxu0
  %1260 = vmatprep.mubr.f32.mxu0 0.0
  %1261 = vmatmul.mubr.f32.gmra.mrb[0].mxu0 %v953
  %v1262 = vpop.f32.mrb[0].mxu0
  %v1263 = vadd.f32 0.0, %v1262
  %v1264 = vpop.f32.mrb[0].mxu0
  %1265 = vmatprep.mubr.f32.mxu0 0.0
  %1266 = vmatmul.mubr.f32.gmra.mrb[0].mxu0 %v956
  %v1267 = vpop.f32.mrb[0].mxu0
  %v1268 = vadd.f32 0.0, %v1267
  %v1269 = vpop.f32.mrb[0].mxu0
  %1270 = vmatprep.mubr.f32.mxu0 0.0
  %1271 = vmatmul.mubr.f32.gmra.mrb[0].mxu0 %v959
  %v1272 = vpop.f32.mrb[0].mxu0
  %v1273 = vadd.f32 0.0, %v1272
  %v1274 = vpop.f32.mrb[0].mxu0
  %1275 = vmatprep.mubr.f32.mxu0 0.0
  %1276 = vmatmul.mubr.f32.gmra.mrb[0].mxu0 %v962
  %v1277 = vpop.f32.mrb[0].mxu0
  %v1278 = vadd.f32 0.0, %v1277
  %v1279 = vpop.f32.mrb[0].mxu0
  %1280 = vmatprep.mubr.f32.mxu0 0.0
  %1281 = vmatmul.mubr.f32.gmra.mrb[0].mxu0 %v965
  %v1282 = vpop.f32.mrb[0].mxu0
  %v1283 = vadd.f32 0.0, %v1282
  %v1284 = vpop.f32.mrb[0].mxu0
  %1285 = vmatprep.mubr.f32.mxu0 0.0
  %1286 = vmatmul.mubr.f32.gmra.mrb[0].mxu0 %v968
  %v1287 = vpop.f32.mrb[0].mxu0
  %v1288 = vadd.f32 0.0, %v1287
  %v1289 = vpop.f32.mrb[0].mxu0
  %1290 = vmatprep.mubr.f32.mxu0 0.0
  %1291 = vmatmul.mubr.f32.gmra.mrb[0].mxu0 %v971
  %v1292 = vpop.f32.mrb[0].mxu0
  %v1293 = vadd.f32 0.0, %v1292
  %v1294 = vpop.f32.mrb[0].mxu0
  %1295 = vmatprep.mubr.f32.mxu0 0.0
  %1296 = vmatmul.mubr.f32.gmra.mrb[0].mxu0 %v974
  %v1297 = vpop.f32.mrb[0].mxu0
  %v1298 = vadd.f32 0.0, %v1297
  %v1299 = vpop.f32.mrb[0].mxu0
  %1300 = vmatprep.mubr.f32.mxu0 0.0
  %1301 = vmatmul.mubr.f32.gmra.mrb[0].mxu0 %v977
  %v1302 = vpop.f32.mrb[0].mxu0
  %v1303 = vadd.f32 0.0, %v1302
  %v1304 = vpop.f32.mrb[0].mxu0
  %1305 = vmatprep.mubr.f32.mxu0 0.0
  %1306 = vmatmul.mubr.f32.gmra.mrb[0].mxu0 %v980
  %v1307 = vpop.f32.mrb[0].mxu0
  %v1308 = vadd.f32 0.0, %v1307
  %v1309 = vpop.f32.mrb[0].mxu0
  %1310 = vmatprep.mubr.f32.mxu0 0.0
  %1311 = vmatmul.mubr.f32.gmra.mrb[0].mxu0 %v983
  %v1312 = vpop.f32.mrb[0].mxu0
  %v1313 = vadd.f32 0.0, %v1312
  %v1314 = vpop.f32.mrb[0].mxu0
  %1315 = vmatprep.mubr.f32.mxu0 0.0
  %1316 = vmatmul.mubr.f32.gmra.mrb[0].mxu0 %v986
  %v1317 = vpop.f32.mrb[0].mxu0
  %v1318 = vadd.f32 0.0, %v1317
  %v1319 = vpop.f32.mrb[0].mxu0
  %1320 = vmatprep.mubr.f32.mxu0 0.0
  %1321 = vmatmul.mubr.f32.gmra.mrb[0].mxu0 %v989
  %v1322 = vpop.f32.mrb[0].mxu0
  %v1323 = vadd.f32 0.0, %v1322
  %v1324 = vpop.f32.mrb[0].mxu0
  %1325 = vmatprep.mubr.f32.mxu0 0.0
  %1326 = vmatmul.mubr.f32.gmra.mrb[0].mxu0 %v992
  %v1327 = vpop.f32.mrb[0].mxu0
  %v1328 = vadd.f32 0.0, %v1327
  %v1329 = vpop.f32.mrb[0].mxu0
  %1330 = vmatprep.mubr.f32.mxu0 0.0
  %1331 = vmatmul.mubr.f32.gmra.mrb[0].mxu0 %v995
  %v1332 = vpop.f32.mrb[0].mxu0
  %v1333 = vadd.f32 0.0, %v1332
  %v1334 = vpop.f32.mrb[0].mxu0
  %1335 = vmatprep.mubr.f32.mxu0 0.0
  %1336 = vmatmul.mubr.f32.gmra.mrb[0].mxu0 %v998
  %v1337 = vpop.f32.mrb[0].mxu0
  %v1338 = vadd.f32 0.0, %v1337
  %v1339 = vpop.f32.mrb[0].mxu0
  %1340 = vmatprep.mubr.f32.mxu0 0.0
  %1341 = vmatmul.mubr.f32.gmra.mrb[0].mxu0 %v1001
  %v1342 = vpop.f32.mrb[0].mxu0
  %v1343 = vadd.f32 0.0, %v1342
  %v1344 = vpop.f32.mrb[0].mxu0
  %1345 = vmatprep.mubr.f32.mxu0 0.0
  %1346 = vmatmul.mubr.f32.gmra.mrb[0].mxu0 %v1004
  %v1347 = vpop.f32.mrb[0].mxu0
  %v1348 = vadd.f32 0.0, %v1347
  %v1349 = vpop.f32.mrb[0].mxu0
  %1350 = vmatprep.mubr.f32.mxu0 0.0
  %1351 = vmatmul.mubr.f32.gmra.mrb[0].mxu0 %v1007
  %v1352 = vpop.f32.mrb[0].mxu0
  %v1353 = vadd.f32 0.0, %v1352
  %v1354 = vpop.f32.mrb[0].mxu0
  %1355 = vmatprep.mubr.f32.mxu0 0.0
  %1356 = vmatmul.mubr.f32.gmra.mrb[0].mxu0 %v1010
  %v1357 = vpop.f32.mrb[0].mxu0
  %v1358 = vadd.f32 0.0, %v1357
  %v1359 = vpop.f32.mrb[0].mxu0
  %1360 = vmatprep.mubr.f32.mxu0 0.0
  %1361 = vmatmul.mubr.f32.gmra.mrb[0].mxu0 %v1013
  %v1362 = vpop.f32.mrb[0].mxu0
  %v1363 = vadd.f32 0.0, %v1362
  %v1364 = vpop.f32.mrb[0].mxu0
  %1365 = vmatprep.mubr.f32.mxu0 0.0
  %1366 = vmatmul.mubr.f32.gmra.mrb[0].mxu0 %v1016
  %v1367 = vpop.f32.mrb[0].mxu0
  %v1368 = vadd.f32 0.0, %v1367
  %v1369 = vpop.f32.mrb[0].mxu0
  %1370 = vmatprep.mubr.f32.mxu0 0.0
  %1371 = vmatmul.mubr.f32.gmra.mrb[0].mxu0 %v1019
  %v1372 = vpop.f32.mrb[0].mxu0
  %v1373 = vadd.f32 0.0, %v1372
  %v1374 = vpop.f32.mrb[0].mxu0
  %1375 = vmatprep.mubr.f32.mxu0 0.0
  %1376 = vmatmul.mubr.f32.gmra.mrb[0].mxu0 %v1022
  %v1377 = vpop.f32.mrb[0].mxu0
  %v1378 = vadd.f32 0.0, %v1377
  %v1379 = vpop.f32.mrb[0].mxu0
  %1380 = vmatprep.mubr.f32.mxu0 0.0
  %1381 = vmatmul.mubr.f32.gmra.mrb[0].mxu0 %v1025
  %v1382 = vpop.f32.mrb[0].mxu0
  %v1383 = vadd.f32 0.0, %v1382
  %v1384 = vpop.f32.mrb[0].mxu0
  %1385 = vmatprep.mubr.f32.mxu0 0.0
  %1386 = vmatmul.mubr.f32.gmra.mrb[0].mxu0 %v1028
  %v1387 = vpop.f32.mrb[0].mxu0
  %v1388 = vadd.f32 0.0, %v1387
  %v1389 = vpop.f32.mrb[0].mxu0
  %1390 = vmatprep.mubr.f32.mxu0 0.0
  %1391 = vmatmul.mubr.f32.gmra.mrb[0].mxu0 %v1031
  %v1392 = vpop.f32.mrb[0].mxu0
  %v1393 = vadd.f32 0.0, %v1392
  %v1394 = vpop.f32.mrb[0].mxu0
  %1395 = vmatprep.mubr.f32.mxu0 0.0
  %1396 = vmatmul.mubr.f32.gmra.mrb[0].mxu0 %v1034
  %v1397 = vpop.f32.mrb[0].mxu0
  %v1398 = vadd.f32 0.0, %v1397
  %v1399 = vpop.f32.mrb[0].mxu0
  %1400 = vmatprep.mubr.f32.mxu0 0.0
  %1401 = vmatmul.mubr.f32.gmra.mrb[0].mxu0 %v1037
  %v1402 = vpop.f32.mrb[0].mxu0
  %v1403 = vadd.f32 0.0, %v1402
  %v1404 = vpop.f32.mrb[0].mxu0
  %1405 = vmatprep.mubr.f32.mxu0 0.0
  %1406 = vmatmul.mubr.f32.gmra.mrb[0].mxu0 %v1040
  %v1407 = vpop.f32.mrb[0].mxu0
  %v1408 = vadd.f32 0.0, %v1407
  %v1409 = vpop.f32.mrb[0].mxu0
  %1410 = vmatprep.mubr.f32.mxu0 0.0
  %1411 = vmatmul.mubr.f32.gmra.mrb[0].mxu0 %v1043
  %v1412 = vpop.f32.mrb[0].mxu0
  %v1413 = vadd.f32 0.0, %v1412
  %v1414 = vpop.f32.mrb[0].mxu0
  %1415 = vmatprep.mubr.f32.mxu0 0.0
  %1416 = vmatmul.mubr.f32.gmra.mrb[0].mxu0 %v1046
  %v1417 = vpop.f32.mrb[0].mxu0
  %v1418 = vadd.f32 0.0, %v1417
  %v1419 = vpop.f32.mrb[0].mxu0
  %1420 = vmatprep.mubr.f32.mxu0 0.0
  %1421 = vmatmul.mubr.f32.gmra.mrb[0].mxu0 %v1049
  %v1422 = vpop.f32.mrb[0].mxu0
  %v1423 = vadd.f32 0.0, %v1422
  %v1424 = vpop.f32.mrb[0].mxu0
  %1425 = vmatprep.mubr.f32.mxu0 0.0
  %1426 = vmatmul.mubr.f32.gmra.mrb[0].mxu0 %v1052
  %v1427 = vpop.f32.mrb[0].mxu0
  %v1428 = vadd.f32 0.0, %v1427
  %v1429 = vpop.f32.mrb[0].mxu0
  %1430 = vmatprep.mubr.f32.mxu0 0.0
  %1431 = vmatmul.mubr.f32.gmra.mrb[0].mxu0 %v1055
  %v1432 = vpop.f32.mrb[0].mxu0
  %v1433 = vadd.f32 0.0, %v1432
  %v1434 = vpop.f32.mrb[0].mxu0
  %1435 = vmatprep.mubr.f32.mxu0 0.0
  %1436 = vmatmul.mubr.f32.gmra.mrb[0].mxu0 %v1058
  %v1437 = vpop.f32.mrb[0].mxu0
  %v1438 = vadd.f32 0.0, %v1437
  %v1439 = vpop.f32.mrb[0].mxu0
  %1440 = vmatprep.mubr.f32.mxu0 0.0
  %1441 = vmatmul.mubr.f32.gmra.mrb[0].mxu0 %v1061
  %v1442 = vpop.f32.mrb[0].mxu0
  %v1443 = vadd.f32 0.0, %v1442
  %v1444 = vpop.f32.mrb[0].mxu0
  %1445 = vmatprep.mubr.f32.mxu0 0.0
  %1446 = vmatmul.mubr.f32.gmra.mrb[0].mxu0 %v1064
  %v1447 = vpop.f32.mrb[0].mxu0
  %v1448 = vadd.f32 0.0, %v1447
  %v1449 = vpop.f32.mrb[0].mxu0
  %1450 = vdwg.mxu0
  %v1451 = vld [vmem:[%s5] sm:$0x1]
  %v1452 = vlaneseq
  %v1453 = vshrl.u32 %v1452, 7
  %v1454 = vsub.s32 0, %v1453
  %v1455 = vrot.slane %v1451, %v1454
  %v1456 = vmul.f32 %v1133, %v1455
  %v1457 = vmul.f32 %v1138, %v1455
  %v1458 = vmul.f32 %v1143, %v1455
  %v1459 = vmul.f32 %v1148, %v1455
  %v1460 = vmul.f32 %v1153, %v1455
  %v1461 = vmul.f32 %v1158, %v1455
  %v1462 = vmul.f32 %v1163, %v1455
  %v1463 = vmul.f32 %v1168, %v1455
  %v1464 = vmul.f32 %v1173, %v1455
  %v1465 = vmul.f32 %v1178, %v1455
  %v1466 = vmul.f32 %v1183, %v1455
  %v1467 = vmul.f32 %v1188, %v1455
  %v1468 = vmul.f32 %v1193, %v1455
  %v1469 = vmul.f32 %v1198, %v1455
  %v1470 = vmul.f32 %v1203, %v1455
  %v1471 = vmul.f32 %v1208, %v1455
  %v1472 = vmul.f32 %v1213, %v1455
  %v1473 = vmul.f32 %v1218, %v1455
  %v1474 = vmul.f32 %v1223, %v1455
  %v1475 = vmul.f32 %v1228, %v1455
  %v1476 = vmul.f32 %v1233, %v1455
  %v1477 = vmul.f32 %v1238, %v1455
  %v1478 = vmul.f32 %v1243, %v1455
  %v1479 = vmul.f32 %v1248, %v1455
  %v1480 = vmul.f32 %v1253, %v1455
  %v1481 = vmul.f32 %v1258, %v1455
  %v1482 = vmul.f32 %v1263, %v1455
  %v1483 = vmul.f32 %v1268, %v1455
  %v1484 = vmul.f32 %v1273, %v1455
  %v1485 = vmul.f32 %v1278, %v1455
  %v1486 = vmul.f32 %v1283, %v1455
  %v1487 = vmul.f32 %v1288, %v1455
  %v1488 = vmul.f32 %v1293, %v1455
  %v1489 = vmul.f32 %v1298, %v1455
  %v1490 = vmul.f32 %v1303, %v1455
  %v1491 = vmul.f32 %v1308, %v1455
  %v1492 = vmul.f32 %v1313, %v1455
  %v1493 = vmul.f32 %v1318, %v1455
  %v1494 = vmul.f32 %v1323, %v1455
  %v1495 = vmul.f32 %v1328, %v1455
  %v1496 = vmul.f32 %v1333, %v1455
  %v1497 = vmul.f32 %v1338, %v1455
  %v1498 = vmul.f32 %v1343, %v1455
  %v1499 = vmul.f32 %v1348, %v1455
  %v1500 = vmul.f32 %v1353, %v1455
  %v1501 = vmul.f32 %v1358, %v1455
  %v1502 = vmul.f32 %v1363, %v1455
  %v1503 = vmul.f32 %v1368, %v1455
  %v1504 = vmul.f32 %v1373, %v1455
  %v1505 = vmul.f32 %v1378, %v1455
  %v1506 = vmul.f32 %v1383, %v1455
  %v1507 = vmul.f32 %v1388, %v1455
  %v1508 = vmul.f32 %v1393, %v1455
  %v1509 = vmul.f32 %v1398, %v1455
  %v1510 = vmul.f32 %v1403, %v1455
  %v1511 = vmul.f32 %v1408, %v1455
  %v1512 = vmul.f32 %v1413, %v1455
  %v1513 = vmul.f32 %v1418, %v1455
  %v1514 = vmul.f32 %v1423, %v1455
  %v1515 = vmul.f32 %v1428, %v1455
  %v1516 = vmul.f32 %v1433, %v1455
  %v1517 = vmul.f32 %v1438, %v1455
  %v1518 = vmul.f32 %v1443, %v1455
  %v1519 = vmul.f32 %v1448, %v1455
  %v1520 = vadd.f32 %v744, %v1456
  %v1521 = vadd.f32 %v745, %v1457
  %v1522 = vadd.f32 %v746, %v1458
  %v1523 = vadd.f32 %v747, %v1459
  %v1524 = vadd.f32 %v748, %v1460
  %v1525 = vadd.f32 %v749, %v1461
  %v1526 = vadd.f32 %v750, %v1462
  %v1527 = vadd.f32 %v751, %v1463
  %v1528 = vadd.f32 %v752, %v1464
  %v1529 = vadd.f32 %v753, %v1465
  %v1530 = vadd.f32 %v754, %v1466
  %v1531 = vadd.f32 %v755, %v1467
  %v1532 = vadd.f32 %v756, %v1468
  %v1533 = vadd.f32 %v757, %v1469
  %v1534 = vadd.f32 %v758, %v1470
  %v1535 = vadd.f32 %v759, %v1471
  %v1536 = vadd.f32 %v760, %v1472
  %v1537 = vadd.f32 %v761, %v1473
  %v1538 = vadd.f32 %v762, %v1474
  %v1539 = vadd.f32 %v763, %v1475
  %v1540 = vadd.f32 %v764, %v1476
  %v1541 = vadd.f32 %v765, %v1477
  %v1542 = vadd.f32 %v766, %v1478
  %v1543 = vadd.f32 %v767, %v1479
  %v1544 = vadd.f32 %v768, %v1480
  %v1545 = vadd.f32 %v769, %v1481
  %v1546 = vadd.f32 %v770, %v1482
  %v1547 = vadd.f32 %v771, %v1483
  %v1548 = vadd.f32 %v772, %v1484
  %v1549 = vadd.f32 %v773, %v1485
  %v1550 = vadd.f32 %v774, %v1486
  %v1551 = vadd.f32 %v775, %v1487
  %v1552 = vadd.f32 %v776, %v1488
  %v1553 = vadd.f32 %v777, %v1489
  %v1554 = vadd.f32 %v778, %v1490
  %v1555 = vadd.f32 %v779, %v1491
  %v1556 = vadd.f32 %v780, %v1492
  %v1557 = vadd.f32 %v781, %v1493
  %v1558 = vadd.f32 %v782, %v1494
  %v1559 = vadd.f32 %v783, %v1495
  %v1560 = vadd.f32 %v784, %v1496
  %v1561 = vadd.f32 %v785, %v1497
  %v1562 = vadd.f32 %v786, %v1498
  %v1563 = vadd.f32 %v787, %v1499
  %v1564 = vadd.f32 %v788, %v1500
  %v1565 = vadd.f32 %v789, %v1501
  %v1566 = vadd.f32 %v790, %v1502
  %v1567 = vadd.f32 %v791, %v1503
  %v1568 = vadd.f32 %v792, %v1504
  %v1569 = vadd.f32 %v793, %v1505
  %v1570 = vadd.f32 %v794, %v1506
  %v1571 = vadd.f32 %v795, %v1507
  %v1572 = vadd.f32 %v796, %v1508
  %v1573 = vadd.f32 %v797, %v1509
  %v1574 = vadd.f32 %v798, %v1510
  %v1575 = vadd.f32 %v799, %v1511
  %v1576 = vadd.f32 %v800, %v1512
  %v1577 = vadd.f32 %v801, %v1513
  %v1578 = vadd.f32 %v802, %v1514
  %v1579 = vadd.f32 %v803, %v1515
  %v1580 = vadd.f32 %v804, %v1516
  %v1581 = vadd.f32 %v805, %v1517
  %v1582 = vadd.f32 %v806, %v1518
  %v1583 = vadd.f32 %v807, %v1519
  %v1584 = vld [vmem:[%s5 + $0x1] sm:$0x1]
  %v1585 = vlaneseq
  %v1586 = vshrl.u32 %v1585, 7
  %v1587 = vsub.s32 0, %v1586
  %v1588 = vrot.slane %v1584, %v1587
  %v1589 = vadd.f32 %v1520, %v1588
  %v1590 = vadd.f32 %v1521, %v1588
  %v1591 = vadd.f32 %v1522, %v1588
  %v1592 = vadd.f32 %v1523, %v1588
  %v1593 = vadd.f32 %v1524, %v1588
  %v1594 = vadd.f32 %v1525, %v1588
  %v1595 = vadd.f32 %v1526, %v1588
  %v1596 = vadd.f32 %v1527, %v1588
  %v1597 = vadd.f32 %v1528, %v1588
  %v1598 = vadd.f32 %v1529, %v1588
  %v1599 = vadd.f32 %v1530, %v1588
  %v1600 = vadd.f32 %v1531, %v1588
  %v1601 = vadd.f32 %v1532, %v1588
  %v1602 = vadd.f32 %v1533, %v1588
  %v1603 = vadd.f32 %v1534, %v1588
  %v1604 = vadd.f32 %v1535, %v1588
  %v1605 = vadd.f32 %v1536, %v1588
  %v1606 = vadd.f32 %v1537, %v1588
  %v1607 = vadd.f32 %v1538, %v1588
  %v1608 = vadd.f32 %v1539, %v1588
  %v1609 = vadd.f32 %v1540, %v1588
  %v1610 = vadd.f32 %v1541, %v1588
  %v1611 = vadd.f32 %v1542, %v1588
  %v1612 = vadd.f32 %v1543, %v1588
  %v1613 = vadd.f32 %v1544, %v1588
  %v1614 = vadd.f32 %v1545, %v1588
  %v1615 = vadd.f32 %v1546, %v1588
  %v1616 = vadd.f32 %v1547, %v1588
  %v1617 = vadd.f32 %v1548, %v1588
  %v1618 = vadd.f32 %v1549, %v1588
  %v1619 = vadd.f32 %v1550, %v1588
  %v1620 = vadd.f32 %v1551, %v1588
  %v1621 = vadd.f32 %v1552, %v1588
  %v1622 = vadd.f32 %v1553, %v1588
  %v1623 = vadd.f32 %v1554, %v1588
  %v1624 = vadd.f32 %v1555, %v1588
  %v1625 = vadd.f32 %v1556, %v1588
  %v1626 = vadd.f32 %v1557, %v1588
  %v1627 = vadd.f32 %v1558, %v1588
  %v1628 = vadd.f32 %v1559, %v1588
  %v1629 = vadd.f32 %v1560, %v1588
  %v1630 = vadd.f32 %v1561, %v1588
  %v1631 = vadd.f32 %v1562, %v1588
  %v1632 = vadd.f32 %v1563, %v1588
  %v1633 = vadd.f32 %v1564, %v1588
  %v1634 = vadd.f32 %v1565, %v1588
  %v1635 = vadd.f32 %v1566, %v1588
  %v1636 = vadd.f32 %v1567, %v1588
  %v1637 = vadd.f32 %v1568, %v1588
  %v1638 = vadd.f32 %v1569, %v1588
  %v1639 = vadd.f32 %v1570, %v1588
  %v1640 = vadd.f32 %v1571, %v1588
  %v1641 = vadd.f32 %v1572, %v1588
  %v1642 = vadd.f32 %v1573, %v1588
  %v1643 = vadd.f32 %v1574, %v1588
  %v1644 = vadd.f32 %v1575, %v1588
  %v1645 = vadd.f32 %v1576, %v1588
  %v1646 = vadd.f32 %v1577, %v1588
  %v1647 = vadd.f32 %v1578, %v1588
  %v1648 = vadd.f32 %v1579, %v1588
  %v1649 = vadd.f32 %v1580, %v1588
  %v1650 = vadd.f32 %v1581, %v1588
  %v1651 = vadd.f32 %v1582, %v1588
  %v1652 = vadd.f32 %v1583, %v1588
  %v1653 = vmax.f32 %v1589, 0.0
  %v1654 = vmax.f32 %v1590, 0.0
  %v1655 = vmax.f32 %v1591, 0.0
  %v1656 = vmax.f32 %v1592, 0.0
  %v1657 = vmax.f32 %v1593, 0.0
  %v1658 = vmax.f32 %v1594, 0.0
  %v1659 = vmax.f32 %v1595, 0.0
  %v1660 = vmax.f32 %v1596, 0.0
  %v1661 = vmax.f32 %v1597, 0.0
  %v1662 = vmax.f32 %v1598, 0.0
  %v1663 = vmax.f32 %v1599, 0.0
  %v1664 = vmax.f32 %v1600, 0.0
  %v1665 = vmax.f32 %v1601, 0.0
  %v1666 = vmax.f32 %v1602, 0.0
  %v1667 = vmax.f32 %v1603, 0.0
  %v1668 = vmax.f32 %v1604, 0.0
  %v1669 = vmax.f32 %v1605, 0.0
  %v1670 = vmax.f32 %v1606, 0.0
  %v1671 = vmax.f32 %v1607, 0.0
  %v1672 = vmax.f32 %v1608, 0.0
  %v1673 = vmax.f32 %v1609, 0.0
  %v1674 = vmax.f32 %v1610, 0.0
  %v1675 = vmax.f32 %v1611, 0.0
  %v1676 = vmax.f32 %v1612, 0.0
  %v1677 = vmax.f32 %v1613, 0.0
  %v1678 = vmax.f32 %v1614, 0.0
  %v1679 = vmax.f32 %v1615, 0.0
  %v1680 = vmax.f32 %v1616, 0.0
  %v1681 = vmax.f32 %v1617, 0.0
  %v1682 = vmax.f32 %v1618, 0.0
  %v1683 = vmax.f32 %v1619, 0.0
  %v1684 = vmax.f32 %v1620, 0.0
  %v1685 = vmax.f32 %v1621, 0.0
  %v1686 = vmax.f32 %v1622, 0.0
  %v1687 = vmax.f32 %v1623, 0.0
  %v1688 = vmax.f32 %v1624, 0.0
  %v1689 = vmax.f32 %v1625, 0.0
  %v1690 = vmax.f32 %v1626, 0.0
  %v1691 = vmax.f32 %v1627, 0.0
  %v1692 = vmax.f32 %v1628, 0.0
  %v1693 = vmax.f32 %v1629, 0.0
  %v1694 = vmax.f32 %v1630, 0.0
  %v1695 = vmax.f32 %v1631, 0.0
  %v1696 = vmax.f32 %v1632, 0.0
  %v1697 = vmax.f32 %v1633, 0.0
  %v1698 = vmax.f32 %v1634, 0.0
  %v1699 = vmax.f32 %v1635, 0.0
  %v1700 = vmax.f32 %v1636, 0.0
  %v1701 = vmax.f32 %v1637, 0.0
  %v1702 = vmax.f32 %v1638, 0.0
  %v1703 = vmax.f32 %v1639, 0.0
  %v1704 = vmax.f32 %v1640, 0.0
  %v1705 = vmax.f32 %v1641, 0.0
  %v1706 = vmax.f32 %v1642, 0.0
  %v1707 = vmax.f32 %v1643, 0.0
  %v1708 = vmax.f32 %v1644, 0.0
  %v1709 = vmax.f32 %v1645, 0.0
  %v1710 = vmax.f32 %v1646, 0.0
  %v1711 = vmax.f32 %v1647, 0.0
  %v1712 = vmax.f32 %v1648, 0.0
  %v1713 = vmax.f32 %v1649, 0.0
  %v1714 = vmax.f32 %v1650, 0.0
  %v1715 = vmax.f32 %v1651, 0.0
  %v1716 = vmax.f32 %v1652, 0.0
  %vm1717 = vcmask 130048
  %1718 = vst.msk [vmem:[%s6] sm:$0xff] %vm1717, %v1653
  %1719 = vst.msk [vmem:[%s6 + $0x8] sm:$0xff] %vm1717, %v1654
  %1720 = vst.msk [vmem:[%s6 + $0x10] sm:$0xff] %vm1717, %v1655
  %1721 = vst.msk [vmem:[%s6 + $0x18] sm:$0xff] %vm1717, %v1656
  %1722 = vst.msk [vmem:[%s6 + $0x20] sm:$0xff] %vm1717, %v1657
  %1723 = vst.msk [vmem:[%s6 + $0x28] sm:$0xff] %vm1717, %v1658
  %1724 = vst.msk [vmem:[%s6 + $0x30] sm:$0xff] %vm1717, %v1659
  %1725 = vst.msk [vmem:[%s6 + $0x38] sm:$0xff] %vm1717, %v1660
  %1726 = vst.msk [vmem:[%s6 + $0x40] sm:$0xff] %vm1717, %v1661
  %1727 = vst.msk [vmem:[%s6 + $0x48] sm:$0xff] %vm1717, %v1662
  %1728 = vst.msk [vmem:[%s6 + $0x50] sm:$0xff] %vm1717, %v1663
  %1729 = vst.msk [vmem:[%s6 + $0x58] sm:$0xff] %vm1717, %v1664
  %1730 = vst.msk [vmem:[%s6 + $0x60] sm:$0xff] %vm1717, %v1665
  %1731 = vst.msk [vmem:[%s6 + $0x68] sm:$0xff] %vm1717, %v1666
  %1732 = vst.msk [vmem:[%s6 + $0x70] sm:$0xff] %vm1717, %v1667
  %1733 = vst.msk [vmem:[%s6 + $0x78] sm:$0xff] %vm1717, %v1668
  %1734 = vst.msk [vmem:[%s6 + $0x80] sm:$0xff] %vm1717, %v1669
  %1735 = vst.msk [vmem:[%s6 + $0x88] sm:$0xff] %vm1717, %v1670
  %1736 = vst.msk [vmem:[%s6 + $0x90] sm:$0xff] %vm1717, %v1671
  %1737 = vst.msk [vmem:[%s6 + $0x98] sm:$0xff] %vm1717, %v1672
  %1738 = vst.msk [vmem:[%s6 + $0xa0] sm:$0xff] %vm1717, %v1673
  %1739 = vst.msk [vmem:[%s6 + $0xa8] sm:$0xff] %vm1717, %v1674
  %1740 = vst.msk [vmem:[%s6 + $0xb0] sm:$0xff] %vm1717, %v1675
  %1741 = vst.msk [vmem:[%s6 + $0xb8] sm:$0xff] %vm1717, %v1676
  %1742 = vst.msk [vmem:[%s6 + $0xc0] sm:$0xff] %vm1717, %v1677
  %1743 = vst.msk [vmem:[%s6 + $0xc8] sm:$0xff] %vm1717, %v1678
  %1744 = vst.msk [vmem:[%s6 + $0xd0] sm:$0xff] %vm1717, %v1679
  %1745 = vst.msk [vmem:[%s6 + $0xd8] sm:$0xff] %vm1717, %v1680
  %1746 = vst.msk [vmem:[%s6 + $0xe0] sm:$0xff] %vm1717, %v1681
  %1747 = vst.msk [vmem:[%s6 + $0xe8] sm:$0xff] %vm1717, %v1682
  %1748 = vst.msk [vmem:[%s6 + $0xf0] sm:$0xff] %vm1717, %v1683
  %1749 = vst.msk [vmem:[%s6 + $0xf8] sm:$0xff] %vm1717, %v1684
  %1750 = vst.msk [vmem:[%s6 + $0x100] sm:$0xff] %vm1717, %v1685
  %1751 = vst.msk [vmem:[%s6 + $0x108] sm:$0xff] %vm1717, %v1686
  %1752 = vst.msk [vmem:[%s6 + $0x110] sm:$0xff] %vm1717, %v1687
  %1753 = vst.msk [vmem:[%s6 + $0x118] sm:$0xff] %vm1717, %v1688
  %1754 = vst.msk [vmem:[%s6 + $0x120] sm:$0xff] %vm1717, %v1689
  %1755 = vst.msk [vmem:[%s6 + $0x128] sm:$0xff] %vm1717, %v1690
  %1756 = vst.msk [vmem:[%s6 + $0x130] sm:$0xff] %vm1717, %v1691
  %1757 = vst.msk [vmem:[%s6 + $0x138] sm:$0xff] %vm1717, %v1692
  %1758 = vst.msk [vmem:[%s6 + $0x140] sm:$0xff] %vm1717, %v1693
  %1759 = vst.msk [vmem:[%s6 + $0x148] sm:$0xff] %vm1717, %v1694
  %1760 = vst.msk [vmem:[%s6 + $0x150] sm:$0xff] %vm1717, %v1695
  %1761 = vst.msk [vmem:[%s6 + $0x158] sm:$0xff] %vm1717, %v1696
  %1762 = vst.msk [vmem:[%s6 + $0x160] sm:$0xff] %vm1717, %v1697
  %1763 = vst.msk [vmem:[%s6 + $0x168] sm:$0xff] %vm1717, %v1698
  %1764 = vst.msk [vmem:[%s6 + $0x170] sm:$0xff] %vm1717, %v1699
  %1765 = vst.msk [vmem:[%s6 + $0x178] sm:$0xff] %vm1717, %v1700
  %1766 = vst.msk [vmem:[%s6 + $0x180] sm:$0xff] %vm1717, %v1701
  %1767 = vst.msk [vmem:[%s6 + $0x188] sm:$0xff] %vm1717, %v1702
  %1768 = vst.msk [vmem:[%s6 + $0x190] sm:$0xff] %vm1717, %v1703
  %1769 = vst.msk [vmem:[%s6 + $0x198] sm:$0xff] %vm1717, %v1704
  %1770 = vst.msk [vmem:[%s6 + $0x1a0] sm:$0xff] %vm1717, %v1705
  %1771 = vst.msk [vmem:[%s6 + $0x1a8] sm:$0xff] %vm1717, %v1706
  %1772 = vst.msk [vmem:[%s6 + $0x1b0] sm:$0xff] %vm1717, %v1707
  %1773 = vst.msk [vmem:[%s6 + $0x1b8] sm:$0xff] %vm1717, %v1708
  %1774 = vst.msk [vmem:[%s6 + $0x1c0] sm:$0xff] %vm1717, %v1709
  %1775 = vst.msk [vmem:[%s6 + $0x1c8] sm:$0xff] %vm1717, %v1710
  %1776 = vst.msk [vmem:[%s6 + $0x1d0] sm:$0xff] %vm1717, %v1711
  %1777 = vst.msk [vmem:[%s6 + $0x1d8] sm:$0xff] %vm1717, %v1712
  %1778 = vst.msk [vmem:[%s6 + $0x1e0] sm:$0xff] %vm1717, %v1713
  %1779 = vst.msk [vmem:[%s6 + $0x1e8] sm:$0xff] %vm1717, %v1714
  %1780 = vst.msk [vmem:[%s6 + $0x1f0] sm:$0xff] %vm1717, %v1715
  %1781 = vst.msk [vmem:[%s6 + $0x1f8] sm:$0xff] %vm1717, %v1716
  // Predicated region
  $region26: #{bottleneck_forward.3} parent=0 // pred_check
    _
  $region27: #{bottleneck_forward.3} parent=0 // pred_check_branch
    %1783 = sbr.rel (0) target = $region29
  $region28: #{bottleneck_forward.3} parent=0 // pred_region
    _
  $region29: #{bottleneck_forward.3} parent=0 // pred_fallthru
    _
  // Predicated region
  $region30: #{bottleneck_forward.3} parent=0 // pred_check
    _
  $region31: #{bottleneck_forward.3} parent=0 // pred_check_branch
    %1785 = sbr.rel (0) target = $region33
  $region32: #{bottleneck_forward.3} parent=0 // pred_region
    _
  $region33: #{bottleneck_forward.3} parent=0 // pred_fallthru
    _

// kernel: bottleneck_forward.2
$region0: #{bottleneck_forward.2}
  #allocation0 [shape = 'u32[]', space=smem, size = 0x4, offset = 0x4, fixed_abs, tag = 'smem constant byte address 0x4 - core index']
  #allocation1 [shape = 'u32[144,128]{1,0:T(1,128)}', space=vmem, size = 0x12000, scoped, tag = 'internal scratch']
  #allocation2 [shape = 'f32[326,4]{1,0:T(8,128)}', space=vmem, size = 0x29000, scoped, tag = 'scratch operand']
  %s0 = inlined_call_operand.vmem [shape: f32[2,256,8], index: 0, kind: input, shape index: {}]
  %s1 = inlined_call_operand.vmem [shape: f32[8,4], index: 1, kind: input, shape index: {}]
  %s2 = inlined_call_operand.vmem [shape: f32[2,4], index: 2, kind: input, shape index: {}]
  %s3 = inlined_call_operand.vmem [shape: f32[9,4,4], index: 3, kind: input, shape index: {}]
  %s4 = inlined_call_operand.vmem [shape: f32[2,4], index: 4, kind: input, shape index: {}]
  %s5 = inlined_call_operand.vmem [shape: f32[2,256,4], index: 5, kind: output, shape index: {}]
  %s6 = sld [smem:[#allocation0]]
  $region69: #{bottleneck_forward.2} parent=0
    _
  %s8 = ssub.s32 1, %s6
  %s9 = scalar_select 0, %s8, %s6
  loop: start=0, step=1, limit=4
  $region2: #{bottleneck_forward.2} parent=0 // loop_pre_header
    _
  $region3: #{bottleneck_forward.2} parent=0 // loop_header
    %s11 = sphi 0, %s15
    %p12 = scmp.ge.s32.totalorder %s11, 4
    %s18 = sphi 0, %s30
    %s19 = sphi 0, %s26
    %s20 = sphi 0, %s18
    %s21 = sphi 0, %s19
    %s22 = sphi 0, %s20
    %s23 = sphi 0, %s21
    %s33 = sphi 0, %s35
    %s36 = sphi 0, %s33
    %s37 = sphi 0, %s36
    %s53 = sphi 0, %s37
    %s57 = sphi 0, %s57
    %s59 = sphi 0, %s57
    %s60 = sphi 0, %s59
    %s74 = sphi 0, %s60
    %s78 = sphi 0, %s78
    %s80 = sphi 0, %s78
    %s81 = sphi 0, %s80
    %s95 = sphi 0, %s81
    %s99 = sphi 0, %s99
    %s101 = sphi 0, %s99
    %s102 = sphi 0, %s101
    %s116 = sphi 0, %s102
    %s120 = sphi 0, %s120
    %s122 = sphi 0, %s120
    %s123 = sphi 0, %s122
    %s137 = sphi 0, %s123
    %s145 = sphi 0, %s147
    %s148 = sphi 0, %s145
    %s149 = sphi 0, %s148
    %s165 = sphi 0, %s149
  $region4: #{bottleneck_forward.2} parent=0 // loop_header_branch
    %14 = sbr.rel (%p12) target = $region8
  $region5: #{bottleneck_forward.2} parent=0 // loop_body
    %s16 = ssub.s32 %s11, 1
    %s17 = ssub.s32 %s11, 2
    %s24 = sadd.s32 1, %s19
    %p25 = scmp.ge.s32.totalorder %s24, 1
    %s26 = scalar_select %p25, 0, %s24
    %s27 = sadd.s32 1, %s18
    %s28 = scalar_select %p25, %s27, %s18
    %p29 = scmp.ge.s32.totalorder %s28, 2
    %s30 = scalar_select %p29, 0, %s28
    %s31 = ssub.s32 %s18, %s30
    %p32 = scmp.eq.s32.totalorder %s31, 0
    %s34 = sadd.s32 %s33, 1
    %s35 = scalar_select %p32, %s33, %s34
    %p38 = pneg %p32
    %p39 = scmp.eq.s32.totalorder %s11, 1
    %p40 = por %p38, %p39
    %p41 = scmp.ne.s32.totalorder %s33, %s36
    %p42 = scmp.eq.s32.totalorder %s11, 0
    %p43 = por %p41, %p42
    %p44 = scmp.ne.s32.totalorder %s33, %s36
    %p45 = scmp.eq.s32.totalorder %s16, 1
    %p46 = por %p44, %p45
    %p47 = scmp.ne.s32.totalorder %s36, %s37
    %p48 = scmp.eq.s32.totalorder %s16, 0
    %p49 = por %p47, %p48
    %p50 = scmp.ne.s32.totalorder %s36, %s37
    %p51 = scmp.eq.s32.totalorder %s17, 1
    %p52 = por %p50, %p51
    %p54 = scmp.ne.s32.totalorder %s37, %s53
    %p55 = scmp.eq.s32.totalorder %s17, 0
    %p56 = por %p54, %p55
    %s58 = sadd.s32 %s57, 1
    %p61 = scmp.eq.s32.totalorder %s11, 1
    %p62 = scmp.ne.s32.totalorder %s57, %s59
    %p63 = scmp.eq.s32.totalorder %s11, 0
    %p64 = por %p62, %p63
    %p65 = scmp.ne.s32.totalorder %s57, %s59
    %p66 = scmp.eq.s32.totalorder %s16, 1
    %p67 = por %p65, %p66
    %p68 = scmp.ne.s32.totalorder %s59, %s60
    %p69 = scmp.eq.s32.totalorder %s16, 0
    %p70 = por %p68, %p69
    %p71 = scmp.ne.s32.totalorder %s59, %s60
    %p72 = scmp.eq.s32.totalorder %s17, 1
    %p73 = por %p71, %p72
    %p75 = scmp.ne.s32.totalorder %s60, %s74
    %p76 = scmp.eq.s32.totalorder %s17, 0
    %p77 = por %p75, %p76
    %s79 = sadd.s32 %s78, 1
    %p82 = scmp.eq.s32.totalorder %s11, 1
    %p83 = scmp.ne.s32.totalorder %s78, %s80
    %p84 = scmp.eq.s32.totalorder %s11, 0
    %p85 = por %p83, %p84
    %p86 = scmp.ne.s32.totalorder %s78, %s80
    %p87 = scmp.eq.s32.totalorder %s16, 1
    %p88 = por %p86, %p87
    %p89 = scmp.ne.s32.totalorder %s80, %s81
    %p90 = scmp.eq.s32.totalorder %s16, 0
    %p91 = por %p89, %p90
    %p92 = scmp.ne.s32.totalorder %s80, %s81
    %p93 = scmp.eq.s32.totalorder %s17, 1
    %p94 = por %p92, %p93
    %p96 = scmp.ne.s32.totalorder %s81, %s95
    %p97 = scmp.eq.s32.totalorder %s17, 0
    %p98 = por %p96, %p97
    %s100 = sadd.s32 %s99, 1
    %p103 = scmp.eq.s32.totalorder %s11, 1
    %p104 = scmp.ne.s32.totalorder %s99, %s101
    %p105 = scmp.eq.s32.totalorder %s11, 0
    %p106 = por %p104, %p105
    %p107 = scmp.ne.s32.totalorder %s99, %s101
    %p108 = scmp.eq.s32.totalorder %s16, 1
    %p109 = por %p107, %p108
    %p110 = scmp.ne.s32.totalorder %s101, %s102
    %p111 = scmp.eq.s32.totalorder %s16, 0
    %p112 = por %p110, %p111
    %p113 = scmp.ne.s32.totalorder %s101, %s102
    %p114 = scmp.eq.s32.totalorder %s17, 1
    %p115 = por %p113, %p114
    %p117 = scmp.ne.s32.totalorder %s102, %s116
    %p118 = scmp.eq.s32.totalorder %s17, 0
    %p119 = por %p117, %p118
    %s121 = sadd.s32 %s120, 1
    %p124 = scmp.eq.s32.totalorder %s11, 1
    %p125 = scmp.ne.s32.totalorder %s120, %s122
    %p126 = scmp.eq.s32.totalorder %s11, 0
    %p127 = por %p125, %p126
    %p128 = scmp.ne.s32.totalorder %s120, %s122
    %p129 = scmp.eq.s32.totalorder %s16, 1
    %p130 = por %p128, %p129
    %p131 = scmp.ne.s32.totalorder %s122, %s123
    %p132 = scmp.eq.s32.totalorder %s16, 0
    %p133 = por %p131, %p132
    %p134 = scmp.ne.s32.totalorder %s122, %s123
    %p135 = scmp.eq.s32.totalorder %s17, 1
    %p136 = por %p134, %p135
    %p138 = scmp.ne.s32.totalorder %s123, %s137
    %p139 = scmp.eq.s32.totalorder %s17, 0
    %p140 = por %p138, %p139
    %s141 = ssub.s32 %s18, %s30
    %s142 = ssub.s32 %s19, %s26
    %s143 = sor.u32 %s141, %s142
    %p144 = scmp.eq.s32.totalorder %s143, 0
    %s146 = sadd.s32 %s145, 1
    %s147 = scalar_select %p144, %s145, %s146
    %p150 = pneg %p144
    %p151 = scmp.eq.s32.totalorder %s11, 1
    %p152 = por %p150, %p151
    %p153 = scmp.ne.s32.totalorder %s145, %s148
    %p154 = scmp.eq.s32.totalorder %s11, 0
    %p155 = por %p153, %p154
    %p156 = scmp.ne.s32.totalorder %s145, %s148
    %p157 = scmp.eq.s32.totalorder %s16, 1
    %p158 = por %p156, %p157
    %p159 = scmp.ne.s32.totalorder %s148, %s149
    %p160 = scmp.eq.s32.totalorder %s16, 0
    %p161 = por %p159, %p160
    %p162 = scmp.ne.s32.totalorder %s148, %s149
    %p163 = scmp.eq.s32.totalorder %s17, 1
    %p164 = por %p162, %p163
    %p166 = scmp.ne.s32.totalorder %s149, %s165
    %p167 = scmp.eq.s32.totalorder %s17, 0
    %p168 = por %p166, %p167
    %p169 = scmp.le.s32.totalorder 1, %s11
    %p170 = scmp.lt.s32.totalorder %s11, 3
    %p171 = pnand %p169, %p170
    %p172 = pneg %p171
    // Predicated region
    $region9: #{bottleneck_forward.2} parent=5 // pred_check
      _
    $region10: #{bottleneck_forward.2} parent=5 // pred_check_branch
      %174 = sbr.rel (%p171) target = $region12
    $region11: #{bottleneck_forward.2} parent=5 // pred_region
      %s175 = ssub.s32 %s11, 1
      // Predicated region
      $region13: #{bottleneck_forward.2} parent=11 // pred_check
        %p176 = pneg %p70
      $region14: #{bottleneck_forward.2} parent=11 // pred_check_branch
        %178 = sbr.rel (%p176) target = $region16
      $region15: #{bottleneck_forward.2} parent=11 // pred_region
        _
      $region16: #{bottleneck_forward.2} parent=11 // pred_fallthru
        _
      // Predicated region
      $region17: #{bottleneck_forward.2} parent=11 // pred_check
        %p179 = pneg %p91
      $region18: #{bottleneck_forward.2} parent=11 // pred_check_branch
        %181 = sbr.rel (%p179) target = $region20
      $region19: #{bottleneck_forward.2} parent=11 // pred_region
        _
      $region20: #{bottleneck_forward.2} parent=11 // pred_fallthru
        _
      // Predicated region
      $region21: #{bottleneck_forward.2} parent=11 // pred_check
        %p182 = pneg %p112
      $region22: #{bottleneck_forward.2} parent=11 // pred_check_branch
        %184 = sbr.rel (%p182) target = $region24
      $region23: #{bottleneck_forward.2} parent=11 // pred_region
        _
      $region24: #{bottleneck_forward.2} parent=11 // pred_fallthru
        _
      // Predicated region
      $region25: #{bottleneck_forward.2} parent=11 // pred_check
        %p185 = pneg %p133
      $region26: #{bottleneck_forward.2} parent=11 // pred_check_branch
        %187 = sbr.rel (%p185) target = $region28
      $region27: #{bottleneck_forward.2} parent=11 // pred_region
        _
      $region28: #{bottleneck_forward.2} parent=11 // pred_fallthru
        _
    $region12: #{bottleneck_forward.2} parent=5 // pred_fallthru
      _
    %p188 = scmp.lt.s32.totalorder %s11, 2
    // Predicated region
    $region29: #{bottleneck_forward.2} parent=5 // pred_check
      %p189 = pneg %p188
    $region30: #{bottleneck_forward.2} parent=5 // pred_check_branch
      %191 = sbr.rel (%p189) target = $region32
    $region31: #{bottleneck_forward.2} parent=5 // pred_region
      // Predicated region
      $region33: #{bottleneck_forward.2} parent=31 // pred_check
        %p192 = pneg %p43
      $region34: #{bottleneck_forward.2} parent=31 // pred_check_branch
        %194 = sbr.rel (%p192) target = $region36
      $region35: #{bottleneck_forward.2} parent=31 // pred_region
        %p195 = scmp.lt.s32.totalorder %s18, 1
        %s196 = scalar_select %p195, %s18, 1
        %s197 = smul.addr %s196, 32
        %s198 = smul.addr %s197, 8
        %s199 = scalar_lea.vmem %s0, %s198
      $region36: #{bottleneck_forward.2} parent=31 // pred_fallthru
        _
    $region32: #{bottleneck_forward.2} parent=5 // pred_fallthru
      _
    %p200 = scmp.le.s32.totalorder 1, %s11
    %p201 = scmp.lt.s32.totalorder %s11, 3
    %p202 = pnand %p200, %p201
    %p203 = pneg %p202
    // Predicated region
    $region37: #{bottleneck_forward.2} parent=5 // pred_check
      _
    $region38: #{bottleneck_forward.2} parent=5 // pred_check_branch
      %205 = sbr.rel (%p202) target = $region40
    $region39: #{bottleneck_forward.2} parent=5 // pred_region
      %s206 = ssub.s32 %s11, 1
      %p207 = scmp.lt.s32.totalorder %s20, 1
      %s208 = scalar_select %p207, %s20, 1
      %s209 = smul.addr %s208, 32
      %s210 = smul.addr %s209, 8
      %s211 = scalar_lea.vmem %s0, %s210
      %p212 = pneg %p49
      %p213 = pneg %p46
      %p214 = pneg %p70
      %p215 = pneg %p67
      %p216 = pneg %p91
      %p217 = pneg %p88
      %p218 = pneg %p112
      %p219 = pneg %p109
      %p220 = pneg %p133
      %p221 = pneg %p130
      %p222 = pneg %p161
      %p223 = pneg %p158
      %s224 = smul.u32 32, %s21
      %p225 = scmp.lt.s32.totalorder %s20, 1
      %s226 = scalar_select %p225, %s20, 1
      %p227 = scmp.lt.s32.totalorder %s224, 31
      %s228 = scalar_select %p227, %s224, 31
      %s229 = smul.addr %s226, 32
      %s230 = sadd.s32 %s228, %s229
      %s231 = smul.addr %s230, 8
      %s232 = scalar_lea.vmem %s5, %s231
      %p233 = scmp.lt.s32.totalorder %s20, 1
      %s234 = scalar_select %p233, %s20, 1
      %s235 = smul.addr %s234, 32
      %s236 = smul.addr %s235, 8
      %s237 = scalar_lea.vmem %s0, %s236
      %s238 = smul.u32 32, %s21
      %p239 = scmp.lt.s32.totalorder %s20, 1
      %s240 = scalar_select %p239, %s20, 1
      %p241 = scmp.lt.s32.totalorder %s238, 31
      %s242 = scalar_select %p241, %s238, 31
      %s243 = smul.addr %s240, 32
      %s244 = sadd.s32 %s242, %s243
      %s245 = smul.addr %s244, 8
      %s246 = scalar_lea.vmem %s5, %s245
      %s247 = smul.u32 32, %s21
      %s248 = smul.u32 %s21, 16
      %v249 = vld [vmem:[%s2] sm:$0x1]
      %v250 = vld [vmem:[%s2 + $0x1] sm:$0x1]
      %s251 = smul.u32 %s21, 256
      %s252 = scalar_lea.vmem %s237, %s251
      %v253 = vld [vmem:[%s252] sm:$0xff]
      %v254 = vld [vmem:[%s252 + $0x8] sm:$0xff]
      %v255 = vld [vmem:[%s252 + $0x10] sm:$0xff]
      %v256 = vld [vmem:[%s252 + $0x18] sm:$0xff]
      %v257 = vld [vmem:[%s252 + $0x20] sm:$0xff]
      %v258 = vld [vmem:[%s252 + $0x28] sm:$0xff]
      %v259 = vld [vmem:[%s252 + $0x30] sm:$0xff]
      %v260 = vld [vmem:[%s252 + $0x38] sm:$0xff]
      %v261 = vld [vmem:[%s252 + $0x40] sm:$0xff]
      %v262 = vld [vmem:[%s252 + $0x48] sm:$0xff]
      %v263 = vld [vmem:[%s252 + $0x50] sm:$0xff]
      %v264 = vld [vmem:[%s252 + $0x58] sm:$0xff]
      %v265 = vld [vmem:[%s252 + $0x60] sm:$0xff]
      %v266 = vld [vmem:[%s252 + $0x68] sm:$0xff]
      %v267 = vld [vmem:[%s252 + $0x70] sm:$0xff]
      %v268 = vld [vmem:[%s252 + $0x78] sm:$0xff]
      %v269 = vld [vmem:[%s252 + $0x80] sm:$0xff]
      %v270 = vld [vmem:[%s252 + $0x88] sm:$0xff]
      %v271 = vld [vmem:[%s252 + $0x90] sm:$0xff]
      %v272 = vld [vmem:[%s252 + $0x98] sm:$0xff]
      %v273 = vld [vmem:[%s252 + $0xa0] sm:$0xff]
      %v274 = vld [vmem:[%s252 + $0xa8] sm:$0xff]
      %v275 = vld [vmem:[%s252 + $0xb0] sm:$0xff]
      %v276 = vld [vmem:[%s252 + $0xb8] sm:$0xff]
      %v277 = vld [vmem:[%s252 + $0xc0] sm:$0xff]
      %v278 = vld [vmem:[%s252 + $0xc8] sm:$0xff]
      %v279 = vld [vmem:[%s252 + $0xd0] sm:$0xff]
      %v280 = vld [vmem:[%s252 + $0xd8] sm:$0xff]
      %v281 = vld [vmem:[%s252 + $0xe0] sm:$0xff]
      %v282 = vld [vmem:[%s252 + $0xe8] sm:$0xff]
      %v283 = vld [vmem:[%s252 + $0xf0] sm:$0xff]
      %v284 = vld [vmem:[%s252 + $0xf8] sm:$0xff]
      %v285 = vld [vmem:[%s1] sm:$0xff]
      %vm286 = vcmask 64512
      %v288 = vsel %vm286, %v253, 0
      %v291 = vsel %vm286, %v254, 0
      %v294 = vsel %vm286, %v255, 0
      %v297 = vsel %vm286, %v256, 0
      %v300 = vsel %vm286, %v257, 0
      %v303 = vsel %vm286, %v258, 0
      %v306 = vsel %vm286, %v259, 0
      %v309 = vsel %vm286, %v260, 0
      %v312 = vsel %vm286, %v261, 0
      %v315 = vsel %vm286, %v262, 0
      %v318 = vsel %vm286, %v263, 0
      %v321 = vsel %vm286, %v264, 0
      %v324 = vsel %vm286, %v265, 0
      %v327 = vsel %vm286, %v266, 0
      %v330 = vsel %vm286, %v267, 0
      %v333 = vsel %vm286, %v268, 0
      %v336 = vsel %vm286, %v269, 0
      %v339 = vsel %vm286, %v270, 0
      %v342 = vsel %vm286, %v271, 0
      %v345 = vsel %vm286, %v272, 0
      %v348 = vsel %vm286, %v273, 0
      %v351 = vsel %vm286, %v274, 0
      %v354 = vsel %vm286, %v275, 0
      %v357 = vsel %vm286, %v276, 0
      %v360 = vsel %vm286, %v277, 0
      %v363 = vsel %vm286, %v278, 0
      %v366 = vsel %vm286, %v279, 0
      %v369 = vsel %vm286, %v280, 0
      %v372 = vsel %vm286, %v281, 0
      %v375 = vsel %vm286, %v282, 0
      %v378 = vsel %vm286, %v283, 0
      %v381 = vsel %vm286, %v284, 0
      %383 = vmatprep.subr.mxu0 0.0
      %384 = vmatpush1.msra.mxu0 %v285
      %385 = vmatprep.subr.mxu0 0.0
      %386 = vmatpush1.msra.mxu0 0.0
      %387 = vmatprep.subr.mxu0 0.0
      %388 = vmatpush1.msra.mxu0 0.0
      %389 = vmatprep.subr.mxu0 0.0
      %390 = vmatpush1.msra.mxu0 0.0
      %391 = vmatprep.subr.mxu0 0.0
      %392 = vmatpush1.msra.mxu0 0.0
      %393 = vmatprep.subr.mxu0 0.0
      %394 = vmatpush1.msra.mxu0 0.0
      %395 = vmatprep.subr.mxu0 0.0
      %396 = vmatpush1.msra.mxu0 0.0
      %397 = vmatprep.subr.mxu0 0.0
      %398 = vmatpush1.msra.mxu0 0.0
      %399 = vmatprep.subr.mxu0 0.0
      %400 = vmatpush1.msra.mxu0 0.0
      %401 = vmatprep.subr.mxu0 0.0
      %402 = vmatpush1.msra.mxu0 0.0
      %403 = vmatprep.subr.mxu0 0.0
      %404 = vmatpush1.msra.mxu0 0.0
      %405 = vmatprep.subr.mxu0 0.0
      %406 = vmatpush1.msra.mxu0 0.0
      %407 = vmatprep.subr.mxu0 0.0
      %408 = vmatpush1.msra.mxu0 0.0
      %409 = vmatprep.subr.mxu0 0.0
      %410 = vmatpush1.msra.mxu0 0.0
      %411 = vmatprep.subr.mxu0 0.0
      %412 = vmatpush1.msra.mxu0 0.0
      %413 = vmatprep.subr.mxu0 0.0
      %414 = vmatpush1.msra.mxu0 0.0
      %415 = vmatprep.subr.mxu0 0.0
      %416 = vmatpush1.msra.mxu0 0.0
      %417 = vmatprep.subr.mxu0 0.0
      %418 = vmatpush1.msra.mxu0 0.0
      %419 = vmatprep.subr.mxu0 0.0
      %420 = vmatpush1.msra.mxu0 0.0
      %421 = vmatprep.subr.mxu0 0.0
      %422 = vmatpush1.msra.mxu0 0.0
      %423 = vmatprep.subr.mxu0 0.0
      %424 = vmatpush1.msra.mxu0 0.0
      %425 = vmatprep.subr.mxu0 0.0
      %426 = vmatpush1.msra.mxu0 0.0
      %427 = vmatprep.subr.mxu0 0.0
      %428 = vmatpush1.msra.mxu0 0.0
      %429 = vmatprep.subr.mxu0 0.0
      %430 = vmatpush1.msra.mxu0 0.0
      %431 = vmatprep.subr.mxu0 0.0
      %432 = vmatpush1.msra.mxu0 0.0
      %433 = vmatprep.subr.mxu0 0.0
      %434 = vmatpush1.msra.mxu0 0.0
      %435 = vmatprep.subr.mxu0 0.0
      %436 = vmatpush1.msra.mxu0 0.0
      %437 = vmatprep.subr.mxu0 0.0
      %438 = vmatpush1.msra.mxu0 0.0
      %439 = vmatprep.subr.mxu0 0.0
      %440 = vmatpush1.msra.mxu0 0.0
      %441 = vmatprep.subr.mxu0 0.0
      %442 = vmatpush1.msra.mxu0 0.0
      %443 = vmatprep.subr.mxu0 0.0
      %444 = vmatpush1.msra.mxu0 0.0
      %445 = vmatprep.subr.mxu0 0.0
      %446 = vmatpush1.msra.mxu0 0.0
      %447 = vmatprep.mubr.f32.mxu0 0.0
      %448 = vmatmul.mubr.f32.gmra.mrb[0].mxu0 %v288
      %v449 = vpop.f32.mrb[0].mxu0
      %v450 = vadd.f32 0.0, %v449
      %v451 = vpop.f32.mrb[0].mxu0
      %452 = vmatprep.mubr.f32.mxu0 0.0
      %453 = vmatmul.mubr.f32.gmra.mrb[0].mxu0 %v291
      %v454 = vpop.f32.mrb[0].mxu0
      %v455 = vadd.f32 0.0, %v454
      %v456 = vpop.f32.mrb[0].mxu0
      %457 = vmatprep.mubr.f32.mxu0 0.0
      %458 = vmatmul.mubr.f32.gmra.mrb[0].mxu0 %v294
      %v459 = vpop.f32.mrb[0].mxu0
      %v460 = vadd.f32 0.0, %v459
      %v461 = vpop.f32.mrb[0].mxu0
      %462 = vmatprep.mubr.f32.mxu0 0.0
      %463 = vmatmul.mubr.f32.gmra.mrb[0].mxu0 %v297
      %v464 = vpop.f32.mrb[0].mxu0
      %v465 = vadd.f32 0.0, %v464
      %v466 = vpop.f32.mrb[0].mxu0
      %467 = vmatprep.mubr.f32.mxu0 0.0
      %468 = vmatmul.mubr.f32.gmra.mrb[0].mxu0 %v300
      %v469 = vpop.f32.mrb[0].mxu0
      %v470 = vadd.f32 0.0, %v469
      %v471 = vpop.f32.mrb[0].mxu0
      %472 = vmatprep.mubr.f32.mxu0 0.0
      %473 = vmatmul.mubr.f32.gmra.mrb[0].mxu0 %v303
      %v474 = vpop.f32.mrb[0].mxu0
      %v475 = vadd.f32 0.0, %v474
      %v476 = vpop.f32.mrb[0].mxu0
      %477 = vmatprep.mubr.f32.mxu0 0.0
      %478 = vmatmul.mubr.f32.gmra.mrb[0].mxu0 %v306
      %v479 = vpop.f32.mrb[0].mxu0
      %v480 = vadd.f32 0.0, %v479
      %v481 = vpop.f32.mrb[0].mxu0
      %482 = vmatprep.mubr.f32.mxu0 0.0
      %483 = vmatmul.mubr.f32.gmra.mrb[0].mxu0 %v309
      %v484 = vpop.f32.mrb[0].mxu0
      %v485 = vadd.f32 0.0, %v484
      %v486 = vpop.f32.mrb[0].mxu0
      %487 = vmatprep.mubr.f32.mxu0 0.0
      %488 = vmatmul.mubr.f32.gmra.mrb[0].mxu0 %v312
      %v489 = vpop.f32.mrb[0].mxu0
      %v490 = vadd.f32 0.0, %v489
      %v491 = vpop.f32.mrb[0].mxu0
      %492 = vmatprep.mubr.f32.mxu0 0.0
      %493 = vmatmul.mubr.f32.gmra.mrb[0].mxu0 %v315
      %v494 = vpop.f32.mrb[0].mxu0
      %v495 = vadd.f32 0.0, %v494
      %v496 = vpop.f32.mrb[0].mxu0
      %497 = vmatprep.mubr.f32.mxu0 0.0
      %498 = vmatmul.mubr.f32.gmra.mrb[0].mxu0 %v318
      %v499 = vpop.f32.mrb[0].mxu0
      %v500 = vadd.f32 0.0, %v499
      %v501 = vpop.f32.mrb[0].mxu0
      %502 = vmatprep.mubr.f32.mxu0 0.0
      %503 = vmatmul.mubr.f32.gmra.mrb[0].mxu0 %v321
      %v504 = vpop.f32.mrb[0].mxu0
      %v505 = vadd.f32 0.0, %v504
      %v506 = vpop.f32.mrb[0].mxu0
      %507 = vmatprep.mubr.f32.mxu0 0.0
      %508 = vmatmul.mubr.f32.gmra.mrb[0].mxu0 %v324
      %v509 = vpop.f32.mrb[0].mxu0
      %v510 = vadd.f32 0.0, %v509
      %v511 = vpop.f32.mrb[0].mxu0
      %512 = vmatprep.mubr.f32.mxu0 0.0
      %513 = vmatmul.mubr.f32.gmra.mrb[0].mxu0 %v327
      %v514 = vpop.f32.mrb[0].mxu0
      %v515 = vadd.f32 0.0, %v514
      %v516 = vpop.f32.mrb[0].mxu0
      %517 = vmatprep.mubr.f32.mxu0 0.0
      %518 = vmatmul.mubr.f32.gmra.mrb[0].mxu0 %v330
      %v519 = vpop.f32.mrb[0].mxu0
      %v520 = vadd.f32 0.0, %v519
      %v521 = vpop.f32.mrb[0].mxu0
      %522 = vmatprep.mubr.f32.mxu0 0.0
      %523 = vmatmul.mubr.f32.gmra.mrb[0].mxu0 %v333
      %v524 = vpop.f32.mrb[0].mxu0
      %v525 = vadd.f32 0.0, %v524
      %v526 = vpop.f32.mrb[0].mxu0
      %527 = vmatprep.mubr.f32.mxu0 0.0
      %528 = vmatmul.mubr.f32.gmra.mrb[0].mxu0 %v336
      %v529 = vpop.f32.mrb[0].mxu0
      %v530 = vadd.f32 0.0, %v529
      %v531 = vpop.f32.mrb[0].mxu0
      %532 = vmatprep.mubr.f32.mxu0 0.0
      %533 = vmatmul.mubr.f32.gmra.mrb[0].mxu0 %v339
      %v534 = vpop.f32.mrb[0].mxu0
      %v535 = vadd.f32 0.0, %v534
      %v536 = vpop.f32.mrb[0].mxu0
      %537 = vmatprep.mubr.f32.mxu0 0.0
      %538 = vmatmul.mubr.f32.gmra.mrb[0].mxu0 %v342
      %v539 = vpop.f32.mrb[0].mxu0
      %v540 = vadd.f32 0.0, %v539
      %v541 = vpop.f32.mrb[0].mxu0
      %542 = vmatprep.mubr.f32.mxu0 0.0
      %543 = vmatmul.mubr.f32.gmra.mrb[0].mxu0 %v345
      %v544 = vpop.f32.mrb[0].mxu0
      %v545 = vadd.f32 0.0, %v544
      %v546 = vpop.f32.mrb[0].mxu0
      %547 = vmatprep.mubr.f32.mxu0 0.0
      %548 = vmatmul.mubr.f32.gmra.mrb[0].mxu0 %v348
      %v549 = vpop.f32.mrb[0].mxu0
      %v550 = vadd.f32 0.0, %v549
      %v551 = vpop.f32.mrb[0].mxu0
      %552 = vmatprep.mubr.f32.mxu0 0.0
      %553 = vmatmul.mubr.f32.gmra.mrb[0].mxu0 %v351
      %v554 = vpop.f32.mrb[0].mxu0
      %v555 = vadd.f32 0.0, %v554
      %v556 = vpop.f32.mrb[0].mxu0
      %557 = vmatprep.mubr.f32.mxu0 0.0
      %558 = vmatmul.mubr.f32.gmra.mrb[0].mxu0 %v354
      %v559 = vpop.f32.mrb[0].mxu0
      %v560 = vadd.f32 0.0, %v559
      %v561 = vpop.f32.mrb[0].mxu0
      %562 = vmatprep.mubr.f32.mxu0 0.0
      %563 = vmatmul.mubr.f32.gmra.mrb[0].mxu0 %v357
      %v564 = vpop.f32.mrb[0].mxu0
      %v565 = vadd.f32 0.0, %v564
      %v566 = vpop.f32.mrb[0].mxu0
      %567 = vmatprep.mubr.f32.mxu0 0.0
      %568 = vmatmul.mubr.f32.gmra.mrb[0].mxu0 %v360
      %v569 = vpop.f32.mrb[0].mxu0
      %v570 = vadd.f32 0.0, %v569
      %v571 = vpop.f32.mrb[0].mxu0
      %572 = vmatprep.mubr.f32.mxu0 0.0
      %573 = vmatmul.mubr.f32.gmra.mrb[0].mxu0 %v363
      %v574 = vpop.f32.mrb[0].mxu0
      %v575 = vadd.f32 0.0, %v574
      %v576 = vpop.f32.mrb[0].mxu0
      %577 = vmatprep.mubr.f32.mxu0 0.0
      %578 = vmatmul.mubr.f32.gmra.mrb[0].mxu0 %v366
      %v579 = vpop.f32.mrb[0].mxu0
      %v580 = vadd.f32 0.0, %v579
      %v581 = vpop.f32.mrb[0].mxu0
      %582 = vmatprep.mubr.f32.mxu0 0.0
      %583 = vmatmul.mubr.f32.gmra.mrb[0].mxu0 %v369
      %v584 = vpop.f32.mrb[0].mxu0
      %v585 = vadd.f32 0.0, %v584
      %v586 = vpop.f32.mrb[0].mxu0
      %587 = vmatprep.mubr.f32.mxu0 0.0
      %588 = vmatmul.mubr.f32.gmra.mrb[0].mxu0 %v372
      %v589 = vpop.f32.mrb[0].mxu0
      %v590 = vadd.f32 0.0, %v589
      %v591 = vpop.f32.mrb[0].mxu0
      %592 = vmatprep.mubr.f32.mxu0 0.0
      %593 = vmatmul.mubr.f32.gmra.mrb[0].mxu0 %v375
      %v594 = vpop.f32.mrb[0].mxu0
      %v595 = vadd.f32 0.0, %v594
      %v596 = vpop.f32.mrb[0].mxu0
      %597 = vmatprep.mubr.f32.mxu0 0.0
      %598 = vmatmul.mubr.f32.gmra.mrb[0].mxu0 %v378
      %v599 = vpop.f32.mrb[0].mxu0
      %v600 = vadd.f32 0.0, %v599
      %v601 = vpop.f32.mrb[0].mxu0
      %602 = vmatprep.mubr.f32.mxu0 0.0
      %603 = vmatmul.mubr.f32.gmra.mrb[0].mxu0 %v381
      %v604 = vpop.f32.mrb[0].mxu0
      %v605 = vadd.f32 0.0, %v604
      %v606 = vpop.f32.mrb[0].mxu0
      %607 = vdwg.mxu0
      %v608 = vlaneseq
      %v609 = vshrl.u32 %v608, 7
      %v610 = vsub.s32 0, %v609
      %v611 = vrot.slane %v249, %v610
      %v612 = vmul.f32 %v450, %v611
      %v613 = vmul.f32 %v455, %v611
      %v614 = vmul.f32 %v460, %v611
      %v615 = vmul.f32 %v465, %v611
      %v616 = vmul.f32 %v470, %v611
      %v617 = vmul.f32 %v475, %v611
      %v618 = vmul.f32 %v480, %v611
      %v619 = vmul.f32 %v485, %v611
      %v620 = vmul.f32 %v490, %v611
      %v621 = vmul.f32 %v495, %v611
      %v622 = vmul.f32 %v500, %v611
      %v623 = vmul.f32 %v505, %v611
      %v624 = vmul.f32 %v510, %v611
      %v625 = vmul.f32 %v515, %v611
      %v626 = vmul.f32 %v520, %v611
      %v627 = vmul.f32 %v525, %v611
      %v628 = vmul.f32 %v530, %v611
      %v629 = vmul.f32 %v535, %v611
      %v630 = vmul.f32 %v540, %v611
      %v631 = vmul.f32 %v545, %v611
      %v632 = vmul.f32 %v550, %v611
      %v633 = vmul.f32 %v555, %v611
      %v634 = vmul.f32 %v560, %v611
      %v635 = vmul.f32 %v565, %v611
      %v636 = vmul.f32 %v570, %v611
      %v637 = vmul.f32 %v575, %v611
      %v638 = vmul.f32 %v580, %v611
      %v639 = vmul.f32 %v585, %v611
      %v640 = vmul.f32 %v590, %v611
      %v641 = vmul.f32 %v595, %v611
      %v642 = vmul.f32 %v600, %v611
      %v643 = vmul.f32 %v605, %v611
      %v644 = vlaneseq
      %v645 = vshrl.u32 %v644, 7
      %v646 = vsub.s32 0, %v645
      %v647 = vrot.slane %v250, %v646
      %v648 = vadd.f32 %v612, %v647
      %v649 = vadd.f32 %v613, %v647
      %v650 = vadd.f32 %v614, %v647
      %v651 = vadd.f32 %v615, %v647
      %v652 = vadd.f32 %v616, %v647
      %v653 = vadd.f32 %v617, %v647
      %v654 = vadd.f32 %v618, %v647
      %v655 = vadd.f32 %v619, %v647
      %v656 = vadd.f32 %v620, %v647
      %v657 = vadd.f32 %v621, %v647
      %v658 = vadd.f32 %v622, %v647
      %v659 = vadd.f32 %v623, %v647
      %v660 = vadd.f32 %v624, %v647
      %v661 = vadd.f32 %v625, %v647
      %v662 = vadd.f32 %v626, %v647
      %v663 = vadd.f32 %v627, %v647
      %v664 = vadd.f32 %v628, %v647
      %v665 = vadd.f32 %v629, %v647
      %v666 = vadd.f32 %v630, %v647
      %v667 = vadd.f32 %v631, %v647
      %v668 = vadd.f32 %v632, %v647
      %v669 = vadd.f32 %v633, %v647
      %v670 = vadd.f32 %v634, %v647
      %v671 = vadd.f32 %v635, %v647
      %v672 = vadd.f32 %v636, %v647
      %v673 = vadd.f32 %v637, %v647
      %v674 = vadd.f32 %v638, %v647
      %v675 = vadd.f32 %v639, %v647
      %v676 = vadd.f32 %v640, %v647
      %v677 = vadd.f32 %v641, %v647
      %v678 = vadd.f32 %v642, %v647
      %v679 = vadd.f32 %v643, %v647
      %v680 = vmax.f32 %v648, 0.0
      %v681 = vmax.f32 %v649, 0.0
      %v682 = vmax.f32 %v650, 0.0
      %v683 = vmax.f32 %v651, 0.0
      %v684 = vmax.f32 %v652, 0.0
      %v685 = vmax.f32 %v653, 0.0
      %v686 = vmax.f32 %v654, 0.0
      %v687 = vmax.f32 %v655, 0.0
      %v688 = vmax.f32 %v656, 0.0
      %v689 = vmax.f32 %v657, 0.0
      %v690 = vmax.f32 %v658, 0.0
      %v691 = vmax.f32 %v659, 0.0
      %v692 = vmax.f32 %v660, 0.0
      %v693 = vmax.f32 %v661, 0.0
      %v694 = vmax.f32 %v662, 0.0
      %v695 = vmax.f32 %v663, 0.0
      %v696 = vmax.f32 %v664, 0.0
      %v697 = vmax.f32 %v665, 0.0
      %v698 = vmax.f32 %v666, 0.0
      %v699 = vmax.f32 %v667, 0.0
      %v700 = vmax.f32 %v668, 0.0
      %v701 = vmax.f32 %v669, 0.0
      %v702 = vmax.f32 %v670, 0.0
      %v703 = vmax.f32 %v671, 0.0
      %v704 = vmax.f32 %v672, 0.0
      %v705 = vmax.f32 %v673, 0.0
      %v706 = vmax.f32 %v674, 0.0
      %v707 = vmax.f32 %v675, 0.0
      %v708 = vmax.f32 %v676, 0.0
      %v709 = vmax.f32 %v677, 0.0
      %v710 = vmax.f32 %v678, 0.0
      %v711 = vmax.f32 %v679, 0.0
      %vm744 = vcmask 1040384
      %v745 = vrot.slane %v680, 7
      %v746 = vrot.slane %v681, 7
      %v747 = vsel %vm744, %v745, %v746
      %v748 = vrot.slane %v682, 7
      %v749 = vrot.slane %v683, 7
      %v750 = vsel %vm744, %v748, %v749
      %v751 = vrot.slane %v684, 7
      %v752 = vrot.slane %v685, 7
      %v753 = vsel %vm744, %v751, %v752
      %v754 = vrot.slane %v686, 7
      %v755 = vrot.slane %v687, 7
      %v756 = vsel %vm744, %v754, %v755
      %v757 = vrot.slane %v688, 7
      %v758 = vrot.slane %v689, 7
      %v759 = vsel %vm744, %v757, %v758
      %v760 = vrot.slane %v690, 7
      %v761 = vrot.slane %v691, 7
      %v762 = vsel %vm744, %v760, %v761
      %v763 = vrot.slane %v692, 7
      %v764 = vrot.slane %v693, 7
      %v765 = vsel %vm744, %v763, %v764
      %v766 = vrot.slane %v694, 7
      %v767 = vrot.slane %v695, 7
      %v768 = vsel %vm744, %v766, %v767
      %v769 = vrot.slane %v696, 7
      %v770 = vrot.slane %v697, 7
      %v771 = vsel %vm744, %v769, %v770
      %v772 = vrot.slane %v698, 7
      %v773 = vrot.slane %v699, 7
      %v774 = vsel %vm744, %v772, %v773
      %v775 = vrot.slane %v700, 7
      %v776 = vrot.slane %v701, 7
      %v777 = vsel %vm744, %v775, %v776
      %v778 = vrot.slane %v702, 7
      %v779 = vrot.slane %v703, 7
      %v780 = vsel %vm744, %v778, %v779
      %v781 = vrot.slane %v704, 7
      %v782 = vrot.slane %v705, 7
      %v783 = vsel %vm744, %v781, %v782
      %v784 = vrot.slane %v706, 7
      %v785 = vrot.slane %v707, 7
      %v786 = vsel %vm744, %v784, %v785
      %v787 = vrot.slane %v708, 7
      %v788 = vrot.slane %v709, 7
      %v789 = vsel %vm744, %v787, %v788
      %v790 = vrot.slane %v710, 7
      %v791 = vrot.slane %v711, 7
      %v792 = vsel %vm744, %v790, %v791
      %v825 = vsel %vm744, 0.0, %v745
      %v826 = vsel %vm744, 0.0, %v748
      %v827 = vsel %vm744, 0.0, %v751
      %v828 = vsel %vm744, 0.0, %v754
      %v829 = vsel %vm744, 0.0, %v757
      %v830 = vsel %vm744, 0.0, %v760
      %v831 = vsel %vm744, 0.0, %v763
      %v832 = vsel %vm744, 0.0, %v766
      %v833 = vsel %vm744, 0.0, %v769
      %v834 = vsel %vm744, 0.0, %v772
      %v835 = vsel %vm744, 0.0, %v775
      %v836 = vsel %vm744, 0.0, %v778
      %v837 = vsel %vm744, 0.0, %v781
      %v838 = vsel %vm744, 0.0, %v784
      %v839 = vsel %vm744, 0.0, %v787
      %v840 = vsel %vm744, 0.0, %v790
      %v841 = vsel %vm744, %v746, 0.0
      %v842 = vsel %vm744, %v749, 0.0
      %v843 = vsel %vm744, %v752, 0.0
      %v844 = vsel %vm744, %v755, 0.0
      %v845 = vsel %vm744, %v758, 0.0
      %v846 = vsel %vm744, %v761, 0.0
      %v847 = vsel %vm744, %v764, 0.0
      %v848 = vsel %vm744, %v767, 0.0
      %v849 = vsel %vm744, %v770, 0.0
      %v850 = vsel %vm744, %v773, 0.0
      %v851 = vsel %vm744, %v776, 0.0
      %v852 = vsel %vm744, %v779, 0.0
      %v853 = vsel %vm744, %v782, 0.0
      %v854 = vsel %vm744, %v785, 0.0
      %v855 = vsel %vm744, %v788, 0.0
      %v856 = vsel %vm744, %v791, 0.0
      %v889 = vcombine.high %v825, %v825
      %v891 = vunpack.c.l.s4 1983009808
      %v892 = vunpack.c.0.s8 %v891
      %v893 = vlaneseq
      %v894 = vshrl.u32 %v893, 7
      %v895 = vsub.s32 %v892, %v894
      %v896 = vrot.slane %v825, %v895
      %v898 = vunpack.c.l.s4 1983009808
      %v899 = vunpack.c.0.s8 %v898
      %v900 = vlaneseq
      %v901 = vshrl.u32 %v900, 7
      %v902 = vsub.s32 %v899, %v901
      %v903 = vrot.slane %v889, %v902
      %v904 = vcombine.high %v896, %v896
      %v905 = vcombine.high %v903, %v903
      %v906 = vcombine.high %v747, %v747
      %v908 = vunpack.c.l.s4 1983009808
      %v909 = vunpack.c.0.s8 %v908
      %v910 = vlaneseq
      %v911 = vshrl.u32 %v910, 7
      %v912 = vsub.s32 %v909, %v911
      %v913 = vrot.slane %v747, %v912
      %v915 = vunpack.c.l.s4 1983009808
      %v916 = vunpack.c.0.s8 %v915
      %v917 = vlaneseq
      %v918 = vshrl.u32 %v917, 7
      %v919 = vsub.s32 %v916, %v918
      %v920 = vrot.slane %v906, %v919
      %v921 = vcombine.high %v913, %v913
      %v922 = vcombine.high %v920, %v920
      %v924 = vunpack.c.l.s4 1983009808
      %v925 = vunpack.c.0.s8 %v924
      %v926 = vlaneseq
      %v927 = vshrl.u32 %v926, 7
      %v928 = vsub.s32 %v925, %v927
      %v929 = vrot.slane %v841, %v928
      %v930 = vcombine.high %v826, %v826
      %v932 = vunpack.c.l.s4 1983009808
      %v933 = vunpack.c.0.s8 %v932
      %v934 = vlaneseq
      %v935 = vshrl.u32 %v934, 7
      %v936 = vsub.s32 %v933, %v935
      %v937 = vrot.slane %v826, %v936
      %v939 = vunpack.c.l.s4 1983009808
      %v940 = vunpack.c.0.s8 %v939
      %v941 = vlaneseq
      %v942 = vshrl.u32 %v941, 7
      %v943 = vsub.s32 %v940, %v942
      %v944 = vrot.slane %v930, %v943
      %v945 = vcombine.high %v937, %v937
      %v946 = vcombine.high %v944, %v944
      %v947 = vcombine.high %v750, %v750
      %v949 = vunpack.c.l.s4 1983009808
      %v950 = vunpack.c.0.s8 %v949
      %v951 = vlaneseq
      %v952 = vshrl.u32 %v951, 7
      %v953 = vsub.s32 %v950, %v952
      %v954 = vrot.slane %v750, %v953
      %v956 = vunpack.c.l.s4 1983009808
      %v957 = vunpack.c.0.s8 %v956
      %v958 = vlaneseq
      %v959 = vshrl.u32 %v958, 7
      %v960 = vsub.s32 %v957, %v959
      %v961 = vrot.slane %v947, %v960
      %v962 = vcombine.high %v954, %v954
      %v963 = vcombine.high %v961, %v961
      %v965 = vunpack.c.l.s4 1983009808
      %v966 = vunpack.c.0.s8 %v965
      %v967 = vlaneseq
      %v968 = vshrl.u32 %v967, 7
      %v969 = vsub.s32 %v966, %v968
      %v970 = vrot.slane %v842, %v969
      %v971 = vcombine.high %v827, %v827
      %v973 = vunpack.c.l.s4 1983009808
      %v974 = vunpack.c.0.s8 %v973
      %v975 = vlaneseq
      %v976 = vshrl.u32 %v975, 7
      %v977 = vsub.s32 %v974, %v976
      %v978 = vrot.slane %v827, %v977
      %v980 = vunpack.c.l.s4 1983009808
      %v981 = vunpack.c.0.s8 %v980
      %v982 = vlaneseq
      %v983 = vshrl.u32 %v982, 7
      %v984 = vsub.s32 %v981, %v983
      %v985 = vrot.slane %v971, %v984
      %v986 = vcombine.high %v978, %v978
      %v987 = vcombine.high %v985, %v985
      %v988 = vcombine.high %v753, %v753
      %v990 = vunpack.c.l.s4 1983009808
      %v991 = vunpack.c.0.s8 %v990
      %v992 = vlaneseq
      %v993 = vshrl.u32 %v992, 7
      %v994 = vsub.s32 %v991, %v993
      %v995 = vrot.slane %v753, %v994
      %v997 = vunpack.c.l.s4 1983009808
      %v998 = vunpack.c.0.s8 %v997
      %v999 = vlaneseq
      %v1000 = vshrl.u32 %v999, 7
      %v1001 = vsub.s32 %v998, %v1000
      %v1002 = vrot.slane %v988, %v1001
      %v1003 = vcombine.high %v995, %v995
      %v1004 = vcombine.high %v1002, %v1002
      %v1006 = vunpack.c.l.s4 1983009808
      %v1007 = vunpack.c.0.s8 %v1006
      %v1008 = vlaneseq
      %v1009 = vshrl.u32 %v1008, 7
      %v1010 = vsub.s32 %v1007, %v1009
      %v1011 = vrot.slane %v843, %v1010
      %v1012 = vcombine.high %v828, %v828
      %v1014 = vunpack.c.l.s4 1983009808
      %v1015 = vunpack.c.0.s8 %v1014
      %v1016 = vlaneseq
      %v1017 = vshrl.u32 %v1016, 7
      %v1018 = vsub.s32 %v1015, %v1017
      %v1019 = vrot.slane %v828, %v1018
      %v1021 = vunpack.c.l.s4 1983009808
      %v1022 = vunpack.c.0.s8 %v1021
      %v1023 = vlaneseq
      %v1024 = vshrl.u32 %v1023, 7
      %v1025 = vsub.s32 %v1022, %v1024
      %v1026 = vrot.slane %v1012, %v1025
      %v1027 = vcombine.high %v1019, %v1019
      %v1028 = vcombine.high %v1026, %v1026
      %v1029 = vcombine.high %v756, %v756
      %v1031 = vunpack.c.l.s4 1983009808
      %v1032 = vunpack.c.0.s8 %v1031
      %v1033 = vlaneseq
      %v1034 = vshrl.u32 %v1033, 7
      %v1035 = vsub.s32 %v1032, %v1034
      %v1036 = vrot.slane %v756, %v1035
      %v1038 = vunpack.c.l.s4 1983009808
      %v1039 = vunpack.c.0.s8 %v1038
      %v1040 = vlaneseq
      %v1041 = vshrl.u32 %v1040, 7
      %v1042 = vsub.s32 %v1039, %v1041
      %v1043 = vrot.slane %v1029, %v1042
      %v1044 = vcombine.high %v1036, %v1036
      %v1045 = vcombine.high %v1043, %v1043
      %v1047 = vunpack.c.l.s4 1983009808
      %v1048 = vunpack.c.0.s8 %v1047
      %v1049 = vlaneseq
      %v1050 = vshrl.u32 %v1049, 7
      %v1051 = vsub.s32 %v1048, %v1050
      %v1052 = vrot.slane %v844, %v1051
      %v1053 = vcombine.high %v829, %v829
      %v1055 = vunpack.c.l.s4 1983009808
      %v1056 = vunpack.c.0.s8 %v1055
      %v1057 = vlaneseq
      %v1058 = vshrl.u32 %v1057, 7
      %v1059 = vsub.s32 %v1056, %v1058
      %v1060 = vrot.slane %v829, %v1059
      %v1062 = vunpack.c.l.s4 1983009808
      %v1063 = vunpack.c.0.s8 %v1062
      %v1064 = vlaneseq
      %v1065 = vshrl.u32 %v1064, 7
      %v1066 = vsub.s32 %v1063, %v1065
      %v1067 = vrot.slane %v1053, %v1066
      %v1068 = vcombine.high %v1060, %v1060
      %v1069 = vcombine.high %v1067, %v1067
      %v1070 = vcombine.high %v759, %v759
      %v1072 = vunpack.c.l.s4 1983009808
      %v1073 = vunpack.c.0.s8 %v1072
      %v1074 = vlaneseq
      %v1075 = vshrl.u32 %v1074, 7
      %v1076 = vsub.s32 %v1073, %v1075
      %v1077 = vrot.slane %v759, %v1076
      %v1079 = vunpack.c.l.s4 1983009808
      %v1080 = vunpack.c.0.s8 %v1079
      %v1081 = vlaneseq
      %v1082 = vshrl.u32 %v1081, 7
      %v1083 = vsub.s32 %v1080, %v1082
      %v1084 = vrot.slane %v1070, %v1083
      %v1085 = vcombine.high %v1077, %v1077
      %v1086 = vcombine.high %v1084, %v1084
      %v1088 = vunpack.c.l.s4 1983009808
      %v1089 = vunpack.c.0.s8 %v1088
      %v1090 = vlaneseq
      %v1091 = vshrl.u32 %v1090, 7
      %v1092 = vsub.s32 %v1089, %v1091
      %v1093 = vrot.slane %v845, %v1092
      %v1094 = vcombine.high %v830, %v830
      %v1096 = vunpack.c.l.s4 1983009808
      %v1097 = vunpack.c.0.s8 %v1096
      %v1098 = vlaneseq
      %v1099 = vshrl.u32 %v1098, 7
      %v1100 = vsub.s32 %v1097, %v1099
      %v1101 = vrot.slane %v830, %v1100
      %v1103 = vunpack.c.l.s4 1983009808
      %v1104 = vunpack.c.0.s8 %v1103
      %v1105 = vlaneseq
      %v1106 = vshrl.u32 %v1105, 7
      %v1107 = vsub.s32 %v1104, %v1106
      %v1108 = vrot.slane %v1094, %v1107
      %v1109 = vcombine.high %v1101, %v1101
      %v1110 = vcombine.high %v1108, %v1108
      %v1111 = vcombine.high %v762, %v762
      %v1113 = vunpack.c.l.s4 1983009808
      %v1114 = vunpack.c.0.s8 %v1113
      %v1115 = vlaneseq
      %v1116 = vshrl.u32 %v1115, 7
      %v1117 = vsub.s32 %v1114, %v1116
      %v1118 = vrot.slane %v762, %v1117
      %v1120 = vunpack.c.l.s4 1983009808
      %v1121 = vunpack.c.0.s8 %v1120
      %v1122 = vlaneseq
      %v1123 = vshrl.u32 %v1122, 7
      %v1124 = vsub.s32 %v1121, %v1123
      %v1125 = vrot.slane %v1111, %v1124
      %v1126 = vcombine.high %v1118, %v1118
      %v1127 = vcombine.high %v1125, %v1125
      %v1129 = vunpack.c.l.s4 1983009808
      %v1130 = vunpack.c.0.s8 %v1129
      %v1131 = vlaneseq
      %v1132 = vshrl.u32 %v1131, 7
      %v1133 = vsub.s32 %v1130, %v1132
      %v1134 = vrot.slane %v846, %v1133
      %v1135 = vcombine.high %v831, %v831
      %v1137 = vunpack.c.l.s4 1983009808
      %v1138 = vunpack.c.0.s8 %v1137
      %v1139 = vlaneseq
      %v1140 = vshrl.u32 %v1139, 7
      %v1141 = vsub.s32 %v1138, %v1140
      %v1142 = vrot.slane %v831, %v1141
      %v1144 = vunpack.c.l.s4 1983009808
      %v1145 = vunpack.c.0.s8 %v1144
      %v1146 = vlaneseq
      %v1147 = vshrl.u32 %v1146, 7
      %v1148 = vsub.s32 %v1145, %v1147
      %v1149 = vrot.slane %v1135, %v1148
      %v1150 = vcombine.high %v1142, %v1142
      %v1151 = vcombine.high %v1149, %v1149
      %v1152 = vcombine.high %v765, %v765
      %v1154 = vunpack.c.l.s4 1983009808
      %v1155 = vunpack.c.0.s8 %v1154
      %v1156 = vlaneseq
      %v1157 = vshrl.u32 %v1156, 7
      %v1158 = vsub.s32 %v1155, %v1157
      %v1159 = vrot.slane %v765, %v1158
      %v1161 = vunpack.c.l.s4 1983009808
      %v1162 = vunpack.c.0.s8 %v1161
      %v1163 = vlaneseq
      %v1164 = vshrl.u32 %v1163, 7
      %v1165 = vsub.s32 %v1162, %v1164
      %v1166 = vrot.slane %v1152, %v1165
      %v1167 = vcombine.high %v1159, %v1159
      %v1168 = vcombine.high %v1166, %v1166
      %v1170 = vunpack.c.l.s4 1983009808
      %v1171 = vunpack.c.0.s8 %v1170
      %v1172 = vlaneseq
      %v1173 = vshrl.u32 %v1172, 7
      %v1174 = vsub.s32 %v1171, %v1173
      %v1175 = vrot.slane %v847, %v1174
      %v1176 = vcombine.high %v832, %v832
      %v1178 = vunpack.c.l.s4 1983009808
      %v1179 = vunpack.c.0.s8 %v1178
      %v1180 = vlaneseq
      %v1181 = vshrl.u32 %v1180, 7
      %v1182 = vsub.s32 %v1179, %v1181
      %v1183 = vrot.slane %v832, %v1182
      %v1185 = vunpack.c.l.s4 1983009808
      %v1186 = vunpack.c.0.s8 %v1185
      %v1187 = vlaneseq
      %v1188 = vshrl.u32 %v1187, 7
      %v1189 = vsub.s32 %v1186, %v1188
      %v1190 = vrot.slane %v1176, %v1189
      %v1191 = vcombine.high %v1183, %v1183
      %v1192 = vcombine.high %v1190, %v1190
      %v1193 = vcombine.high %v768, %v768
      %v1195 = vunpack.c.l.s4 1983009808
      %v1196 = vunpack.c.0.s8 %v1195
      %v1197 = vlaneseq
      %v1198 = vshrl.u32 %v1197, 7
      %v1199 = vsub.s32 %v1196, %v1198
      %v1200 = vrot.slane %v768, %v1199
      %v1202 = vunpack.c.l.s4 1983009808
      %v1203 = vunpack.c.0.s8 %v1202
      %v1204 = vlaneseq
      %v1205 = vshrl.u32 %v1204, 7
      %v1206 = vsub.s32 %v1203, %v1205
      %v1207 = vrot.slane %v1193, %v1206
      %v1208 = vcombine.high %v1200, %v1200
      %v1209 = vcombine.high %v1207, %v1207
      %v1211 = vunpack.c.l.s4 1983009808
      %v1212 = vunpack.c.0.s8 %v1211
      %v1213 = vlaneseq
      %v1214 = vshrl.u32 %v1213, 7
      %v1215 = vsub.s32 %v1212, %v1214
      %v1216 = vrot.slane %v848, %v1215
      %v1217 = vcombine.high %v833, %v833
      %v1219 = vunpack.c.l.s4 1983009808
      %v1220 = vunpack.c.0.s8 %v1219
      %v1221 = vlaneseq
      %v1222 = vshrl.u32 %v1221, 7
      %v1223 = vsub.s32 %v1220, %v1222
      %v1224 = vrot.slane %v833, %v1223
      %v1226 = vunpack.c.l.s4 1983009808
      %v1227 = vunpack.c.0.s8 %v1226
      %v1228 = vlaneseq
      %v1229 = vshrl.u32 %v1228, 7
      %v1230 = vsub.s32 %v1227, %v1229
      %v1231 = vrot.slane %v1217, %v1230
      %v1232 = vcombine.high %v1224, %v1224
      %v1233 = vcombine.high %v1231, %v1231
      %v1234 = vcombine.high %v771, %v771
      %v1236 = vunpack.c.l.s4 1983009808
      %v1237 = vunpack.c.0.s8 %v1236
      %v1238 = vlaneseq
      %v1239 = vshrl.u32 %v1238, 7
      %v1240 = vsub.s32 %v1237, %v1239
      %v1241 = vrot.slane %v771, %v1240
      %v1243 = vunpack.c.l.s4 1983009808
      %v1244 = vunpack.c.0.s8 %v1243
      %v1245 = vlaneseq
      %v1246 = vshrl.u32 %v1245, 7
      %v1247 = vsub.s32 %v1244, %v1246
      %v1248 = vrot.slane %v1234, %v1247
      %v1249 = vcombine.high %v1241, %v1241
      %v1250 = vcombine.high %v1248, %v1248
      %v1252 = vunpack.c.l.s4 1983009808
      %v1253 = vunpack.c.0.s8 %v1252
      %v1254 = vlaneseq
      %v1255 = vshrl.u32 %v1254, 7
      %v1256 = vsub.s32 %v1253, %v1255
      %v1257 = vrot.slane %v849, %v1256
      %v1258 = vcombine.high %v834, %v834
      %v1260 = vunpack.c.l.s4 1983009808
      %v1261 = vunpack.c.0.s8 %v1260
      %v1262 = vlaneseq
      %v1263 = vshrl.u32 %v1262, 7
      %v1264 = vsub.s32 %v1261, %v1263
      %v1265 = vrot.slane %v834, %v1264
      %v1267 = vunpack.c.l.s4 1983009808
      %v1268 = vunpack.c.0.s8 %v1267
      %v1269 = vlaneseq
      %v1270 = vshrl.u32 %v1269, 7
      %v1271 = vsub.s32 %v1268, %v1270
      %v1272 = vrot.slane %v1258, %v1271
      %v1273 = vcombine.high %v1265, %v1265
      %v1274 = vcombine.high %v1272, %v1272
      %v1275 = vcombine.high %v774, %v774
      %v1277 = vunpack.c.l.s4 1983009808
      %v1278 = vunpack.c.0.s8 %v1277
      %v1279 = vlaneseq
      %v1280 = vshrl.u32 %v1279, 7
      %v1281 = vsub.s32 %v1278, %v1280
      %v1282 = vrot.slane %v774, %v1281
      %v1284 = vunpack.c.l.s4 1983009808
      %v1285 = vunpack.c.0.s8 %v1284
      %v1286 = vlaneseq
      %v1287 = vshrl.u32 %v1286, 7
      %v1288 = vsub.s32 %v1285, %v1287
      %v1289 = vrot.slane %v1275, %v1288
      %v1290 = vcombine.high %v1282, %v1282
      %v1291 = vcombine.high %v1289, %v1289
      %v1293 = vunpack.c.l.s4 1983009808
      %v1294 = vunpack.c.0.s8 %v1293
      %v1295 = vlaneseq
      %v1296 = vshrl.u32 %v1295, 7
      %v1297 = vsub.s32 %v1294, %v1296
      %v1298 = vrot.slane %v850, %v1297
      %v1299 = vcombine.high %v835, %v835
      %v1301 = vunpack.c.l.s4 1983009808
      %v1302 = vunpack.c.0.s8 %v1301
      %v1303 = vlaneseq
      %v1304 = vshrl.u32 %v1303, 7
      %v1305 = vsub.s32 %v1302, %v1304
      %v1306 = vrot.slane %v835, %v1305
      %v1308 = vunpack.c.l.s4 1983009808
      %v1309 = vunpack.c.0.s8 %v1308
      %v1310 = vlaneseq
      %v1311 = vshrl.u32 %v1310, 7
      %v1312 = vsub.s32 %v1309, %v1311
      %v1313 = vrot.slane %v1299, %v1312
      %v1314 = vcombine.high %v1306, %v1306
      %v1315 = vcombine.high %v1313, %v1313
      %v1316 = vcombine.high %v777, %v777
      %v1318 = vunpack.c.l.s4 1983009808
      %v1319 = vunpack.c.0.s8 %v1318
      %v1320 = vlaneseq
      %v1321 = vshrl.u32 %v1320, 7
      %v1322 = vsub.s32 %v1319, %v1321
      %v1323 = vrot.slane %v777, %v1322
      %v1325 = vunpack.c.l.s4 1983009808
      %v1326 = vunpack.c.0.s8 %v1325
      %v1327 = vlaneseq
      %v1328 = vshrl.u32 %v1327, 7
      %v1329 = vsub.s32 %v1326, %v1328
      %v1330 = vrot.slane %v1316, %v1329
      %v1331 = vcombine.high %v1323, %v1323
      %v1332 = vcombine.high %v1330, %v1330
      %v1334 = vunpack.c.l.s4 1983009808
      %v1335 = vunpack.c.0.s8 %v1334
      %v1336 = vlaneseq
      %v1337 = vshrl.u32 %v1336, 7
      %v1338 = vsub.s32 %v1335, %v1337
      %v1339 = vrot.slane %v851, %v1338
      %v1340 = vcombine.high %v836, %v836
      %v1342 = vunpack.c.l.s4 1983009808
      %v1343 = vunpack.c.0.s8 %v1342
      %v1344 = vlaneseq
      %v1345 = vshrl.u32 %v1344, 7
      %v1346 = vsub.s32 %v1343, %v1345
      %v1347 = vrot.slane %v836, %v1346
      %v1349 = vunpack.c.l.s4 1983009808
      %v1350 = vunpack.c.0.s8 %v1349
      %v1351 = vlaneseq
      %v1352 = vshrl.u32 %v1351, 7
      %v1353 = vsub.s32 %v1350, %v1352
      %v1354 = vrot.slane %v1340, %v1353
      %v1355 = vcombine.high %v1347, %v1347
      %v1356 = vcombine.high %v1354, %v1354
      %v1357 = vcombine.high %v780, %v780
      %v1359 = vunpack.c.l.s4 1983009808
      %v1360 = vunpack.c.0.s8 %v1359
      %v1361 = vlaneseq
      %v1362 = vshrl.u32 %v1361, 7
      %v1363 = vsub.s32 %v1360, %v1362
      %v1364 = vrot.slane %v780, %v1363
      %v1366 = vunpack.c.l.s4 1983009808
      %v1367 = vunpack.c.0.s8 %v1366
      %v1368 = vlaneseq
      %v1369 = vshrl.u32 %v1368, 7
      %v1370 = vsub.s32 %v1367, %v1369
      %v1371 = vrot.slane %v1357, %v1370
      %v1372 = vcombine.high %v1364, %v1364
      %v1373 = vcombine.high %v1371, %v1371
      %v1375 = vunpack.c.l.s4 1983009808
      %v1376 = vunpack.c.0.s8 %v1375
      %v1377 = vlaneseq
      %v1378 = vshrl.u32 %v1377, 7
      %v1379 = vsub.s32 %v1376, %v1378
      %v1380 = vrot.slane %v852, %v1379
      %v1381 = vcombine.high %v837, %v837
      %v1383 = vunpack.c.l.s4 1983009808
      %v1384 = vunpack.c.0.s8 %v1383
      %v1385 = vlaneseq
      %v1386 = vshrl.u32 %v1385, 7
      %v1387 = vsub.s32 %v1384, %v1386
      %v1388 = vrot.slane %v837, %v1387
      %v1390 = vunpack.c.l.s4 1983009808
      %v1391 = vunpack.c.0.s8 %v1390
      %v1392 = vlaneseq
      %v1393 = vshrl.u32 %v1392, 7
      %v1394 = vsub.s32 %v1391, %v1393
      %v1395 = vrot.slane %v1381, %v1394
      %v1396 = vcombine.high %v1388, %v1388
      %v1397 = vcombine.high %v1395, %v1395
      %v1398 = vcombine.high %v783, %v783
      %v1400 = vunpack.c.l.s4 1983009808
      %v1401 = vunpack.c.0.s8 %v1400
      %v1402 = vlaneseq
      %v1403 = vshrl.u32 %v1402, 7
      %v1404 = vsub.s32 %v1401, %v1403
      %v1405 = vrot.slane %v783, %v1404
      %v1407 = vunpack.c.l.s4 1983009808
      %v1408 = vunpack.c.0.s8 %v1407
      %v1409 = vlaneseq
      %v1410 = vshrl.u32 %v1409, 7
      %v1411 = vsub.s32 %v1408, %v1410
      %v1412 = vrot.slane %v1398, %v1411
      %v1413 = vcombine.high %v1405, %v1405
      %v1414 = vcombine.high %v1412, %v1412
      %v1416 = vunpack.c.l.s4 1983009808
      %v1417 = vunpack.c.0.s8 %v1416
      %v1418 = vlaneseq
      %v1419 = vshrl.u32 %v1418, 7
      %v1420 = vsub.s32 %v1417, %v1419
      %v1421 = vrot.slane %v853, %v1420
      %v1422 = vcombine.high %v838, %v838
      %v1424 = vunpack.c.l.s4 1983009808
      %v1425 = vunpack.c.0.s8 %v1424
      %v1426 = vlaneseq
      %v1427 = vshrl.u32 %v1426, 7
      %v1428 = vsub.s32 %v1425, %v1427
      %v1429 = vrot.slane %v838, %v1428
      %v1431 = vunpack.c.l.s4 1983009808
      %v1432 = vunpack.c.0.s8 %v1431
      %v1433 = vlaneseq
      %v1434 = vshrl.u32 %v1433, 7
      %v1435 = vsub.s32 %v1432, %v1434
      %v1436 = vrot.slane %v1422, %v1435
      %v1437 = vcombine.high %v1429, %v1429
      %v1438 = vcombine.high %v1436, %v1436
      %v1439 = vcombine.high %v786, %v786
      %v1441 = vunpack.c.l.s4 1983009808
      %v1442 = vunpack.c.0.s8 %v1441
      %v1443 = vlaneseq
      %v1444 = vshrl.u32 %v1443, 7
      %v1445 = vsub.s32 %v1442, %v1444
      %v1446 = vrot.slane %v786, %v1445
      %v1448 = vunpack.c.l.s4 1983009808
      %v1449 = vunpack.c.0.s8 %v1448
      %v1450 = vlaneseq
      %v1451 = vshrl.u32 %v1450, 7
      %v1452 = vsub.s32 %v1449, %v1451
      %v1453 = vrot.slane %v1439, %v1452
      %v1454 = vcombine.high %v1446, %v1446
      %v1455 = vcombine.high %v1453, %v1453
      %v1457 = vunpack.c.l.s4 1983009808
      %v1458 = vunpack.c.0.s8 %v1457
      %v1459 = vlaneseq
      %v1460 = vshrl.u32 %v1459, 7
      %v1461 = vsub.s32 %v1458, %v1460
      %v1462 = vrot.slane %v854, %v1461
      %v1463 = vcombine.high %v839, %v839
      %v1465 = vunpack.c.l.s4 1983009808
      %v1466 = vunpack.c.0.s8 %v1465
      %v1467 = vlaneseq
      %v1468 = vshrl.u32 %v1467, 7
      %v1469 = vsub.s32 %v1466, %v1468
      %v1470 = vrot.slane %v839, %v1469
      %v1472 = vunpack.c.l.s4 1983009808
      %v1473 = vunpack.c.0.s8 %v1472
      %v1474 = vlaneseq
      %v1475 = vshrl.u32 %v1474, 7
      %v1476 = vsub.s32 %v1473, %v1475
      %v1477 = vrot.slane %v1463, %v1476
      %v1478 = vcombine.high %v1470, %v1470
      %v1479 = vcombine.high %v1477, %v1477
      %v1480 = vcombine.high %v789, %v789
      %v1482 = vunpack.c.l.s4 1983009808
      %v1483 = vunpack.c.0.s8 %v1482
      %v1484 = vlaneseq
      %v1485 = vshrl.u32 %v1484, 7
      %v1486 = vsub.s32 %v1483, %v1485
      %v1487 = vrot.slane %v789, %v1486
      %v1489 = vunpack.c.l.s4 1983009808
      %v1490 = vunpack.c.0.s8 %v1489
      %v1491 = vlaneseq
      %v1492 = vshrl.u32 %v1491, 7
      %v1493 = vsub.s32 %v1490, %v1492
      %v1494 = vrot.slane %v1480, %v1493
      %v1495 = vcombine.high %v1487, %v1487
      %v1496 = vcombine.high %v1494, %v1494
      %v1498 = vunpack.c.l.s4 1983009808
      %v1499 = vunpack.c.0.s8 %v1498
      %v1500 = vlaneseq
      %v1501 = vshrl.u32 %v1500, 7
      %v1502 = vsub.s32 %v1499, %v1501
      %v1503 = vrot.slane %v855, %v1502
      %v1504 = vcombine.high %v840, %v840
      %v1506 = vunpack.c.l.s4 1983009808
      %v1507 = vunpack.c.0.s8 %v1506
      %v1508 = vlaneseq
      %v1509 = vshrl.u32 %v1508, 7
      %v1510 = vsub.s32 %v1507, %v1509
      %v1511 = vrot.slane %v840, %v1510
      %v1513 = vunpack.c.l.s4 1983009808
      %v1514 = vunpack.c.0.s8 %v1513
      %v1515 = vlaneseq
      %v1516 = vshrl.u32 %v1515, 7
      %v1517 = vsub.s32 %v1514, %v1516
      %v1518 = vrot.slane %v1504, %v1517
      %v1519 = vcombine.high %v1511, %v1511
      %v1520 = vcombine.high %v1518, %v1518
      %v1521 = vcombine.high %v792, %v792
      %v1523 = vunpack.c.l.s4 1983009808
      %v1524 = vunpack.c.0.s8 %v1523
      %v1525 = vlaneseq
      %v1526 = vshrl.u32 %v1525, 7
      %v1527 = vsub.s32 %v1524, %v1526
      %v1528 = vrot.slane %v792, %v1527
      %v1530 = vunpack.c.l.s4 1983009808
      %v1531 = vunpack.c.0.s8 %v1530
      %v1532 = vlaneseq
      %v1533 = vshrl.u32 %v1532, 7
      %v1534 = vsub.s32 %v1531, %v1533
      %v1535 = vrot.slane %v1521, %v1534
      %v1536 = vcombine.high %v1528, %v1528
      %v1537 = vcombine.high %v1535, %v1535
      %v1539 = vunpack.c.l.s4 1983009808
      %v1540 = vunpack.c.0.s8 %v1539
      %v1541 = vlaneseq
      %v1542 = vshrl.u32 %v1541, 7
      %v1543 = vsub.s32 %v1540, %v1542
      %v1544 = vrot.slane %v856, %v1543
      %v1545 = vcombine.low %v896, %v904
      %v1546 = vcombine.low %v903, %v905
      %v1548 = vunpack.c.l.s4 1983009808
      %v1549 = vunpack.c.0.s8 %v1548
      %v1550 = vlaneseq
      %v1551 = vshrl.u32 %v1550, 7
      %v1552 = vsub.s32 %v1549, %v1551
      %v1553 = vrot.slane %v1545, %v1552
      %v1555 = vunpack.c.l.s4 1983009808
      %v1556 = vunpack.c.0.s8 %v1555
      %v1557 = vlaneseq
      %v1558 = vshrl.u32 %v1557, 7
      %v1559 = vsub.s32 %v1556, %v1558
      %v1560 = vrot.slane %v1546, %v1559
      %v1561 = vcombine.low %v1553, %v1560
      %v1562 = vcombine.low %v913, %v921
      %v1563 = vcombine.low %v920, %v922
      %v1565 = vunpack.c.l.s4 1983009808
      %v1566 = vunpack.c.0.s8 %v1565
      %v1567 = vlaneseq
      %v1568 = vshrl.u32 %v1567, 7
      %v1569 = vsub.s32 %v1566, %v1568
      %v1570 = vrot.slane %v1562, %v1569
      %v1572 = vunpack.c.l.s4 1983009808
      %v1573 = vunpack.c.0.s8 %v1572
      %v1574 = vlaneseq
      %v1575 = vshrl.u32 %v1574, 7
      %v1576 = vsub.s32 %v1573, %v1575
      %v1577 = vrot.slane %v1563, %v1576
      %v1578 = vcombine.low %v1570, %v1577
      %v1579 = vcombine.low %v929, %v937
      %v1580 = vcombine.low %v945, %v944
      %v1582 = vunpack.c.l.s4 1983009808
      %v1583 = vunpack.c.0.s8 %v1582
      %v1584 = vlaneseq
      %v1585 = vshrl.u32 %v1584, 7
      %v1586 = vsub.s32 %v1583, %v1585
      %v1587 = vrot.slane %v1579, %v1586
      %v1589 = vunpack.c.l.s4 1983009808
      %v1590 = vunpack.c.0.s8 %v1589
      %v1591 = vlaneseq
      %v1592 = vshrl.u32 %v1591, 7
      %v1593 = vsub.s32 %v1590, %v1592
      %v1594 = vrot.slane %v1580, %v1593
      %v1595 = vcombine.low %v1587, %v1594
      %v1596 = vcombine.low %v946, %v954
      %v1597 = vcombine.low %v962, %v961
      %v1599 = vunpack.c.l.s4 1983009808
      %v1600 = vunpack.c.0.s8 %v1599
      %v1601 = vlaneseq
      %v1602 = vshrl.u32 %v1601, 7
      %v1603 = vsub.s32 %v1600, %v1602
      %v1604 = vrot.slane %v1596, %v1603
      %v1606 = vunpack.c.l.s4 1983009808
      %v1607 = vunpack.c.0.s8 %v1606
      %v1608 = vlaneseq
      %v1609 = vshrl.u32 %v1608, 7
      %v1610 = vsub.s32 %v1607, %v1609
      %v1611 = vrot.slane %v1597, %v1610
      %v1612 = vcombine.low %v1604, %v1611
      %v1613 = vcombine.low %v963, %v970
      %v1614 = vcombine.low %v978, %v986
      %v1616 = vunpack.c.l.s4 1983009808
      %v1617 = vunpack.c.0.s8 %v1616
      %v1618 = vlaneseq
      %v1619 = vshrl.u32 %v1618, 7
      %v1620 = vsub.s32 %v1617, %v1619
      %v1621 = vrot.slane %v1613, %v1620
      %v1623 = vunpack.c.l.s4 1983009808
      %v1624 = vunpack.c.0.s8 %v1623
      %v1625 = vlaneseq
      %v1626 = vshrl.u32 %v1625, 7
      %v1627 = vsub.s32 %v1624, %v1626
      %v1628 = vrot.slane %v1614, %v1627
      %v1629 = vcombine.low %v1621, %v1628
      %v1630 = vcombine.low %v985, %v987
      %v1631 = vcombine.low %v995, %v1003
      %v1633 = vunpack.c.l.s4 1983009808
      %v1634 = vunpack.c.0.s8 %v1633
      %v1635 = vlaneseq
      %v1636 = vshrl.u32 %v1635, 7
      %v1637 = vsub.s32 %v1634, %v1636
      %v1638 = vrot.slane %v1630, %v1637
      %v1640 = vunpack.c.l.s4 1983009808
      %v1641 = vunpack.c.0.s8 %v1640
      %v1642 = vlaneseq
      %v1643 = vshrl.u32 %v1642, 7
      %v1644 = vsub.s32 %v1641, %v1643
      %v1645 = vrot.slane %v1631, %v1644
      %v1646 = vcombine.low %v1638, %v1645
      %v1647 = vcombine.low %v1002, %v1004
      %v1648 = vcombine.low %v1011, %v1019
      %v1650 = vunpack.c.l.s4 1983009808
      %v1651 = vunpack.c.0.s8 %v1650
      %v1652 = vlaneseq
      %v1653 = vshrl.u32 %v1652, 7
      %v1654 = vsub.s32 %v1651, %v1653
      %v1655 = vrot.slane %v1647, %v1654
      %v1657 = vunpack.c.l.s4 1983009808
      %v1658 = vunpack.c.0.s8 %v1657
      %v1659 = vlaneseq
      %v1660 = vshrl.u32 %v1659, 7
      %v1661 = vsub.s32 %v1658, %v1660
      %v1662 = vrot.slane %v1648, %v1661
      %v1663 = vcombine.low %v1655, %v1662
      %v1664 = vcombine.low %v1027, %v1026
      %v1665 = vcombine.low %v1028, %v1036
      %v1667 = vunpack.c.l.s4 1983009808
      %v1668 = vunpack.c.0.s8 %v1667
      %v1669 = vlaneseq
      %v1670 = vshrl.u32 %v1669, 7
      %v1671 = vsub.s32 %v1668, %v1670
      %v1672 = vrot.slane %v1664, %v1671
      %v1674 = vunpack.c.l.s4 1983009808
      %v1675 = vunpack.c.0.s8 %v1674
      %v1676 = vlaneseq
      %v1677 = vshrl.u32 %v1676, 7
      %v1678 = vsub.s32 %v1675, %v1677
      %v1679 = vrot.slane %v1665, %v1678
      %v1680 = vcombine.low %v1672, %v1679
      %v1681 = vcombine.low %v1044, %v1043
      %v1682 = vcombine.low %v1045, %v1052
      %v1684 = vunpack.c.l.s4 1983009808
      %v1685 = vunpack.c.0.s8 %v1684
      %v1686 = vlaneseq
      %v1687 = vshrl.u32 %v1686, 7
      %v1688 = vsub.s32 %v1685, %v1687
      %v1689 = vrot.slane %v1681, %v1688
      %v1691 = vunpack.c.l.s4 1983009808
      %v1692 = vunpack.c.0.s8 %v1691
      %v1693 = vlaneseq
      %v1694 = vshrl.u32 %v1693, 7
      %v1695 = vsub.s32 %v1692, %v1694
      %v1696 = vrot.slane %v1682, %v1695
      %v1697 = vcombine.low %v1689, %v1696
      %v1698 = vcombine.low %v1060, %v1068
      %v1699 = vcombine.low %v1067, %v1069
      %v1701 = vunpack.c.l.s4 1983009808
      %v1702 = vunpack.c.0.s8 %v1701
      %v1703 = vlaneseq
      %v1704 = vshrl.u32 %v1703, 7
      %v1705 = vsub.s32 %v1702, %v1704
      %v1706 = vrot.slane %v1698, %v1705
      %v1708 = vunpack.c.l.s4 1983009808
      %v1709 = vunpack.c.0.s8 %v1708
      %v1710 = vlaneseq
      %v1711 = vshrl.u32 %v1710, 7
      %v1712 = vsub.s32 %v1709, %v1711
      %v1713 = vrot.slane %v1699, %v1712
      %v1714 = vcombine.low %v1706, %v1713
      %v1715 = vcombine.low %v1077, %v1085
      %v1716 = vcombine.low %v1084, %v1086
      %v1718 = vunpack.c.l.s4 1983009808
      %v1719 = vunpack.c.0.s8 %v1718
      %v1720 = vlaneseq
      %v1721 = vshrl.u32 %v1720, 7
      %v1722 = vsub.s32 %v1719, %v1721
      %v1723 = vrot.slane %v1715, %v1722
      %v1725 = vunpack.c.l.s4 1983009808
      %v1726 = vunpack.c.0.s8 %v1725
      %v1727 = vlaneseq
      %v1728 = vshrl.u32 %v1727, 7
      %v1729 = vsub.s32 %v1726, %v1728
      %v1730 = vrot.slane %v1716, %v1729
      %v1731 = vcombine.low %v1723, %v1730
      %v1732 = vcombine.low %v1093, %v1101
      %v1733 = vcombine.low %v1109, %v1108
      %v1735 = vunpack.c.l.s4 1983009808
      %v1736 = vunpack.c.0.s8 %v1735
      %v1737 = vlaneseq
      %v1738 = vshrl.u32 %v1737, 7
      %v1739 = vsub.s32 %v1736, %v1738
      %v1740 = vrot.slane %v1732, %v1739
      %v1742 = vunpack.c.l.s4 1983009808
      %v1743 = vunpack.c.0.s8 %v1742
      %v1744 = vlaneseq
      %v1745 = vshrl.u32 %v1744, 7
      %v1746 = vsub.s32 %v1743, %v1745
      %v1747 = vrot.slane %v1733, %v1746
      %v1748 = vcombine.low %v1740, %v1747
      %v1749 = vcombine.low %v1110, %v1118
      %v1750 = vcombine.low %v1126, %v1125
      %v1752 = vunpack.c.l.s4 1983009808
      %v1753 = vunpack.c.0.s8 %v1752
      %v1754 = vlaneseq
      %v1755 = vshrl.u32 %v1754, 7
      %v1756 = vsub.s32 %v1753, %v1755
      %v1757 = vrot.slane %v1749, %v1756
      %v1759 = vunpack.c.l.s4 1983009808
      %v1760 = vunpack.c.0.s8 %v1759
      %v1761 = vlaneseq
      %v1762 = vshrl.u32 %v1761, 7
      %v1763 = vsub.s32 %v1760, %v1762
      %v1764 = vrot.slane %v1750, %v1763
      %v1765 = vcombine.low %v1757, %v1764
      %v1766 = vcombine.low %v1127, %v1134
      %v1767 = vcombine.low %v1142, %v1150
      %v1769 = vunpack.c.l.s4 1983009808
      %v1770 = vunpack.c.0.s8 %v1769
      %v1771 = vlaneseq
      %v1772 = vshrl.u32 %v1771, 7
      %v1773 = vsub.s32 %v1770, %v1772
      %v1774 = vrot.slane %v1766, %v1773
      %v1776 = vunpack.c.l.s4 1983009808
      %v1777 = vunpack.c.0.s8 %v1776
      %v1778 = vlaneseq
      %v1779 = vshrl.u32 %v1778, 7
      %v1780 = vsub.s32 %v1777, %v1779
      %v1781 = vrot.slane %v1767, %v1780
      %v1782 = vcombine.low %v1774, %v1781
      %v1783 = vcombine.low %v1149, %v1151
      %v1784 = vcombine.low %v1159, %v1167
      %v1786 = vunpack.c.l.s4 1983009808
      %v1787 = vunpack.c.0.s8 %v1786
      %v1788 = vlaneseq
      %v1789 = vshrl.u32 %v1788, 7
      %v1790 = vsub.s32 %v1787, %v1789
      %v1791 = vrot.slane %v1783, %v1790
      %v1793 = vunpack.c.l.s4 1983009808
      %v1794 = vunpack.c.0.s8 %v1793
      %v1795 = vlaneseq
      %v1796 = vshrl.u32 %v1795, 7
      %v1797 = vsub.s32 %v1794, %v1796
      %v1798 = vrot.slane %v1784, %v1797
      %v1799 = vcombine.low %v1791, %v1798
      %v1800 = vcombine.low %v1166, %v1168
      %v1801 = vcombine.low %v1175, %v1183
      %v1803 = vunpack.c.l.s4 1983009808
      %v1804 = vunpack.c.0.s8 %v1803
      %v1805 = vlaneseq
      %v1806 = vshrl.u32 %v1805, 7
      %v1807 = vsub.s32 %v1804, %v1806
      %v1808 = vrot.slane %v1800, %v1807
      %v1810 = vunpack.c.l.s4 1983009808
      %v1811 = vunpack.c.0.s8 %v1810
      %v1812 = vlaneseq
      %v1813 = vshrl.u32 %v1812, 7
      %v1814 = vsub.s32 %v1811, %v1813
      %v1815 = vrot.slane %v1801, %v1814
      %v1816 = vcombine.low %v1808, %v1815
      %v1817 = vcombine.low %v1191, %v1190
      %v1818 = vcombine.low %v1192, %v1200
      %v1820 = vunpack.c.l.s4 1983009808
      %v1821 = vunpack.c.0.s8 %v1820
      %v1822 = vlaneseq
      %v1823 = vshrl.u32 %v1822, 7
      %v1824 = vsub.s32 %v1821, %v1823
      %v1825 = vrot.slane %v1817, %v1824
      %v1827 = vunpack.c.l.s4 1983009808
      %v1828 = vunpack.c.0.s8 %v1827
      %v1829 = vlaneseq
      %v1830 = vshrl.u32 %v1829, 7
      %v1831 = vsub.s32 %v1828, %v1830
      %v1832 = vrot.slane %v1818, %v1831
      %v1833 = vcombine.low %v1825, %v1832
      %v1834 = vcombine.low %v1208, %v1207
      %v1835 = vcombine.low %v1209, %v1216
      %v1837 = vunpack.c.l.s4 1983009808
      %v1838 = vunpack.c.0.s8 %v1837
      %v1839 = vlaneseq
      %v1840 = vshrl.u32 %v1839, 7
      %v1841 = vsub.s32 %v1838, %v1840
      %v1842 = vrot.slane %v1834, %v1841
      %v1844 = vunpack.c.l.s4 1983009808
      %v1845 = vunpack.c.0.s8 %v1844
      %v1846 = vlaneseq
      %v1847 = vshrl.u32 %v1846, 7
      %v1848 = vsub.s32 %v1845, %v1847
      %v1849 = vrot.slane %v1835, %v1848
      %v1850 = vcombine.low %v1842, %v1849
      %v1851 = vcombine.low %v1224, %v1232
      %v1852 = vcombine.low %v1231, %v1233
      %v1854 = vunpack.c.l.s4 1983009808
      %v1855 = vunpack.c.0.s8 %v1854
      %v1856 = vlaneseq
      %v1857 = vshrl.u32 %v1856, 7
      %v1858 = vsub.s32 %v1855, %v1857
      %v1859 = vrot.slane %v1851, %v1858
      %v1861 = vunpack.c.l.s4 1983009808
      %v1862 = vunpack.c.0.s8 %v1861
      %v1863 = vlaneseq
      %v1864 = vshrl.u32 %v1863, 7
      %v1865 = vsub.s32 %v1862, %v1864
      %v1866 = vrot.slane %v1852, %v1865
      %v1867 = vcombine.low %v1859, %v1866
      %v1868 = vcombine.low %v1241, %v1249
      %v1869 = vcombine.low %v1248, %v1250
      %v1871 = vunpack.c.l.s4 1983009808
      %v1872 = vunpack.c.0.s8 %v1871
      %v1873 = vlaneseq
      %v1874 = vshrl.u32 %v1873, 7
      %v1875 = vsub.s32 %v1872, %v1874
      %v1876 = vrot.slane %v1868, %v1875
      %v1878 = vunpack.c.l.s4 1983009808
      %v1879 = vunpack.c.0.s8 %v1878
      %v1880 = vlaneseq
      %v1881 = vshrl.u32 %v1880, 7
      %v1882 = vsub.s32 %v1879, %v1881
      %v1883 = vrot.slane %v1869, %v1882
      %v1884 = vcombine.low %v1876, %v1883
      %v1885 = vcombine.low %v1257, %v1265
      %v1886 = vcombine.low %v1273, %v1272
      %v1888 = vunpack.c.l.s4 1983009808
      %v1889 = vunpack.c.0.s8 %v1888
      %v1890 = vlaneseq
      %v1891 = vshrl.u32 %v1890, 7
      %v1892 = vsub.s32 %v1889, %v1891
      %v1893 = vrot.slane %v1885, %v1892
      %v1895 = vunpack.c.l.s4 1983009808
      %v1896 = vunpack.c.0.s8 %v1895
      %v1897 = vlaneseq
      %v1898 = vshrl.u32 %v1897, 7
      %v1899 = vsub.s32 %v1896, %v1898
      %v1900 = vrot.slane %v1886, %v1899
      %v1901 = vcombine.low %v1893, %v1900
      %v1902 = vcombine.low %v1274, %v1282
      %v1903 = vcombine.low %v1290, %v1289
      %v1905 = vunpack.c.l.s4 1983009808
      %v1906 = vunpack.c.0.s8 %v1905
      %v1907 = vlaneseq
      %v1908 = vshrl.u32 %v1907, 7
      %v1909 = vsub.s32 %v1906, %v1908
      %v1910 = vrot.slane %v1902, %v1909
      %v1912 = vunpack.c.l.s4 1983009808
      %v1913 = vunpack.c.0.s8 %v1912
      %v1914 = vlaneseq
      %v1915 = vshrl.u32 %v1914, 7
      %v1916 = vsub.s32 %v1913, %v1915
      %v1917 = vrot.slane %v1903, %v1916
      %v1918 = vcombine.low %v1910, %v1917
      %v1919 = vcombine.low %v1291, %v1298
      %v1920 = vcombine.low %v1306, %v1314
      %v1922 = vunpack.c.l.s4 1983009808
      %v1923 = vunpack.c.0.s8 %v1922
      %v1924 = vlaneseq
      %v1925 = vshrl.u32 %v1924, 7
      %v1926 = vsub.s32 %v1923, %v1925
      %v1927 = vrot.slane %v1919, %v1926
      %v1929 = vunpack.c.l.s4 1983009808
      %v1930 = vunpack.c.0.s8 %v1929
      %v1931 = vlaneseq
      %v1932 = vshrl.u32 %v1931, 7
      %v1933 = vsub.s32 %v1930, %v1932
      %v1934 = vrot.slane %v1920, %v1933
      %v1935 = vcombine.low %v1927, %v1934
      %v1936 = vcombine.low %v1313, %v1315
      %v1937 = vcombine.low %v1323, %v1331
      %v1939 = vunpack.c.l.s4 1983009808
      %v1940 = vunpack.c.0.s8 %v1939
      %v1941 = vlaneseq
      %v1942 = vshrl.u32 %v1941, 7
      %v1943 = vsub.s32 %v1940, %v1942
      %v1944 = vrot.slane %v1936, %v1943
      %v1946 = vunpack.c.l.s4 1983009808
      %v1947 = vunpack.c.0.s8 %v1946
      %v1948 = vlaneseq
      %v1949 = vshrl.u32 %v1948, 7
      %v1950 = vsub.s32 %v1947, %v1949
      %v1951 = vrot.slane %v1937, %v1950
      %v1952 = vcombine.low %v1944, %v1951
      %v1953 = vcombine.low %v1330, %v1332
      %v1954 = vcombine.low %v1339, %v1347
      %v1956 = vunpack.c.l.s4 1983009808
      %v1957 = vunpack.c.0.s8 %v1956
      %v1958 = vlaneseq
      %v1959 = vshrl.u32 %v1958, 7
      %v1960 = vsub.s32 %v1957, %v1959
      %v1961 = vrot.slane %v1953, %v1960
      %v1963 = vunpack.c.l.s4 1983009808
      %v1964 = vunpack.c.0.s8 %v1963
      %v1965 = vlaneseq
      %v1966 = vshrl.u32 %v1965, 7
      %v1967 = vsub.s32 %v1964, %v1966
      %v1968 = vrot.slane %v1954, %v1967
      %v1969 = vcombine.low %v1961, %v1968
      %v1970 = vcombine.low %v1355, %v1354
      %v1971 = vcombine.low %v1356, %v1364
      %v1973 = vunpack.c.l.s4 1983009808
      %v1974 = vunpack.c.0.s8 %v1973
      %v1975 = vlaneseq
      %v1976 = vshrl.u32 %v1975, 7
      %v1977 = vsub.s32 %v1974, %v1976
      %v1978 = vrot.slane %v1970, %v1977
      %v1980 = vunpack.c.l.s4 1983009808
      %v1981 = vunpack.c.0.s8 %v1980
      %v1982 = vlaneseq
      %v1983 = vshrl.u32 %v1982, 7
      %v1984 = vsub.s32 %v1981, %v1983
      %v1985 = vrot.slane %v1971, %v1984
      %v1986 = vcombine.low %v1978, %v1985
      %v1987 = vcombine.low %v1372, %v1371
      %v1988 = vcombine.low %v1373, %v1380
      %v1990 = vunpack.c.l.s4 1983009808
      %v1991 = vunpack.c.0.s8 %v1990
      %v1992 = vlaneseq
      %v1993 = vshrl.u32 %v1992, 7
      %v1994 = vsub.s32 %v1991, %v1993
      %v1995 = vrot.slane %v1987, %v1994
      %v1997 = vunpack.c.l.s4 1983009808
      %v1998 = vunpack.c.0.s8 %v1997
      %v1999 = vlaneseq
      %v2000 = vshrl.u32 %v1999, 7
      %v2001 = vsub.s32 %v1998, %v2000
      %v2002 = vrot.slane %v1988, %v2001
      %v2003 = vcombine.low %v1995, %v2002
      %v2004 = vcombine.low %v1388, %v1396
      %v2005 = vcombine.low %v1395, %v1397
      %v2007 = vunpack.c.l.s4 1983009808
      %v2008 = vunpack.c.0.s8 %v2007
      %v2009 = vlaneseq
      %v2010 = vshrl.u32 %v2009, 7
      %v2011 = vsub.s32 %v2008, %v2010
      %v2012 = vrot.slane %v2004, %v2011
      %v2014 = vunpack.c.l.s4 1983009808
      %v2015 = vunpack.c.0.s8 %v2014
      %v2016 = vlaneseq
      %v2017 = vshrl.u32 %v2016, 7
      %v2018 = vsub.s32 %v2015, %v2017
      %v2019 = vrot.slane %v2005, %v2018
      %v2020 = vcombine.low %v2012, %v2019
      %v2021 = vcombine.low %v1405, %v1413
      %v2022 = vcombine.low %v1412, %v1414
      %v2024 = vunpack.c.l.s4 1983009808
      %v2025 = vunpack.c.0.s8 %v2024
      %v2026 = vlaneseq
      %v2027 = vshrl.u32 %v2026, 7
      %v2028 = vsub.s32 %v2025, %v2027
      %v2029 = vrot.slane %v2021, %v2028
      %v2031 = vunpack.c.l.s4 1983009808
      %v2032 = vunpack.c.0.s8 %v2031
      %v2033 = vlaneseq
      %v2034 = vshrl.u32 %v2033, 7
      %v2035 = vsub.s32 %v2032, %v2034
      %v2036 = vrot.slane %v2022, %v2035
      %v2037 = vcombine.low %v2029, %v2036
      %v2038 = vcombine.low %v1421, %v1429
      %v2039 = vcombine.low %v1437, %v1436
      %v2041 = vunpack.c.l.s4 1983009808
      %v2042 = vunpack.c.0.s8 %v2041
      %v2043 = vlaneseq
      %v2044 = vshrl.u32 %v2043, 7
      %v2045 = vsub.s32 %v2042, %v2044
      %v2046 = vrot.slane %v2038, %v2045
      %v2048 = vunpack.c.l.s4 1983009808
      %v2049 = vunpack.c.0.s8 %v2048
      %v2050 = vlaneseq
      %v2051 = vshrl.u32 %v2050, 7
      %v2052 = vsub.s32 %v2049, %v2051
      %v2053 = vrot.slane %v2039, %v2052
      %v2054 = vcombine.low %v2046, %v2053
      %v2055 = vcombine.low %v1438, %v1446
      %v2056 = vcombine.low %v1454, %v1453
      %v2058 = vunpack.c.l.s4 1983009808
      %v2059 = vunpack.c.0.s8 %v2058
      %v2060 = vlaneseq
      %v2061 = vshrl.u32 %v2060, 7
      %v2062 = vsub.s32 %v2059, %v2061
      %v2063 = vrot.slane %v2055, %v2062
      %v2065 = vunpack.c.l.s4 1983009808
      %v2066 = vunpack.c.0.s8 %v2065
      %v2067 = vlaneseq
      %v2068 = vshrl.u32 %v2067, 7
      %v2069 = vsub.s32 %v2066, %v2068
      %v2070 = vrot.slane %v2056, %v2069
      %v2071 = vcombine.low %v2063, %v2070
      %v2072 = vcombine.low %v1455, %v1462
      %v2073 = vcombine.low %v1470, %v1478
      %v2075 = vunpack.c.l.s4 1983009808
      %v2076 = vunpack.c.0.s8 %v2075
      %v2077 = vlaneseq
      %v2078 = vshrl.u32 %v2077, 7
      %v2079 = vsub.s32 %v2076, %v2078
      %v2080 = vrot.slane %v2072, %v2079
      %v2082 = vunpack.c.l.s4 1983009808
      %v2083 = vunpack.c.0.s8 %v2082
      %v2084 = vlaneseq
      %v2085 = vshrl.u32 %v2084, 7
      %v2086 = vsub.s32 %v2083, %v2085
      %v2087 = vrot.slane %v2073, %v2086
      %v2088 = vcombine.low %v2080, %v2087
      %v2089 = vcombine.low %v1477, %v1479
      %v2090 = vcombine.low %v1487, %v1495
      %v2092 = vunpack.c.l.s4 1983009808
      %v2093 = vunpack.c.0.s8 %v2092
      %v2094 = vlaneseq
      %v2095 = vshrl.u32 %v2094, 7
      %v2096 = vsub.s32 %v2093, %v2095
      %v2097 = vrot.slane %v2089, %v2096
      %v2099 = vunpack.c.l.s4 1983009808
      %v2100 = vunpack.c.0.s8 %v2099
      %v2101 = vlaneseq
      %v2102 = vshrl.u32 %v2101, 7
      %v2103 = vsub.s32 %v2100, %v2102
      %v2104 = vrot.slane %v2090, %v2103
      %v2105 = vcombine.low %v2097, %v2104
      %v2106 = vcombine.low %v1494, %v1496
      %v2107 = vcombine.low %v1503, %v1511
      %v2109 = vunpack.c.l.s4 1983009808
      %v2110 = vunpack.c.0.s8 %v2109
      %v2111 = vlaneseq
      %v2112 = vshrl.u32 %v2111, 7
      %v2113 = vsub.s32 %v2110, %v2112
      %v2114 = vrot.slane %v2106, %v2113
      %v2116 = vunpack.c.l.s4 1983009808
      %v2117 = vunpack.c.0.s8 %v2116
      %v2118 = vlaneseq
      %v2119 = vshrl.u32 %v2118, 7
      %v2120 = vsub.s32 %v2117, %v2119
      %v2121 = vrot.slane %v2107, %v2120
      %v2122 = vcombine.low %v2114, %v2121
      %v2123 = vcombine.low %v1519, %v1518
      %v2124 = vcombine.low %v1520, %v1528
      %v2126 = vunpack.c.l.s4 1983009808
      %v2127 = vunpack.c.0.s8 %v2126
      %v2128 = vlaneseq
      %v2129 = vshrl.u32 %v2128, 7
      %v2130 = vsub.s32 %v2127, %v2129
      %v2131 = vrot.slane %v2123, %v2130
      %v2133 = vunpack.c.l.s4 1983009808
      %v2134 = vunpack.c.0.s8 %v2133
      %v2135 = vlaneseq
      %v2136 = vshrl.u32 %v2135, 7
      %v2137 = vsub.s32 %v2134, %v2136
      %v2138 = vrot.slane %v2124, %v2137
      %v2139 = vcombine.low %v2131, %v2138
      %v2140 = vcombine.low %v1536, %v1535
      %v2141 = vcombine.low %v1537, %v1544
      %v2143 = vunpack.c.l.s4 1983009808
      %v2144 = vunpack.c.0.s8 %v2143
      %v2145 = vlaneseq
      %v2146 = vshrl.u32 %v2145, 7
      %v2147 = vsub.s32 %v2144, %v2146
      %v2148 = vrot.slane %v2140, %v2147
      %v2150 = vunpack.c.l.s4 1983009808
      %v2151 = vunpack.c.0.s8 %v2150
      %v2152 = vlaneseq
      %v2153 = vshrl.u32 %v2152, 7
      %v2154 = vsub.s32 %v2151, %v2153
      %v2155 = vrot.slane %v2141, %v2154
      %v2156 = vcombine.low %v2148, %v2155
      %vm2193 = vcmask 31744
      %2194 = vst.msk [vmem:[#allocation2 + $0x12] sm:$0xff] %vm2193, %v1561
      %2195 = vst.msk [vmem:[#allocation2 + $0x1a] sm:$0xff] %vm2193, %v1578
      %2196 = vst.msk [vmem:[#allocation2 + $0x22] sm:$0xff] %vm2193, %v1595
      %2197 = vst.msk [vmem:[#allocation2 + $0x2a] sm:$0xff] %vm2193, %v1612
      %2198 = vst.msk [vmem:[#allocation2 + $0x32] sm:$0xff] %vm2193, %v1629
      %2199 = vst.msk [vmem:[#allocation2 + $0x3a] sm:$0xff] %vm2193, %v1646
      %2200 = vst.msk [vmem:[#allocation2 + $0x42] sm:$0xff] %vm2193, %v1663
      %2201 = vst.msk [vmem:[#allocation2 + $0x4a] sm:$0xff] %vm2193, %v1680
      %2202 = vst.msk [vmem:[#allocation2 + $0x52] sm:$0xff] %vm2193, %v1697
      %2203 = vst.msk [vmem:[#allocation2 + $0x5a] sm:$0xff] %vm2193, %v1714
      %2204 = vst.msk [vmem:[#allocation2 + $0x62] sm:$0xff] %vm2193, %v1731
      %2205 = vst.msk [vmem:[#allocation2 + $0x6a] sm:$0xff] %vm2193, %v1748
      %2206 = vst.msk [vmem:[#allocation2 + $0x72] sm:$0xff] %vm2193, %v1765
      %2207 = vst.msk [vmem:[#allocation2 + $0x7a] sm:$0xff] %vm2193, %v1782
      %2208 = vst.msk [vmem:[#allocation2 + $0x82] sm:$0xff] %vm2193, %v1799
      %2209 = vst.msk [vmem:[#allocation2 + $0x8a] sm:$0xff] %vm2193, %v1816
      %2210 = vst.msk [vmem:[#allocation2 + $0x92] sm:$0xff] %vm2193, %v1833
      %2211 = vst.msk [vmem:[#allocation2 + $0x9a] sm:$0xff] %vm2193, %v1850
      %2212 = vst.msk [vmem:[#allocation2 + $0xa2] sm:$0xff] %vm2193, %v1867
      %2213 = vst.msk [vmem:[#allocation2 + $0xaa] sm:$0xff] %vm2193, %v1884
      %2214 = vst.msk [vmem:[#allocation2 + $0xb2] sm:$0xff] %vm2193, %v1901
      %2215 = vst.msk [vmem:[#allocation2 + $0xba] sm:$0xff] %vm2193, %v1918
      %2216 = vst.msk [vmem:[#allocation2 + $0xc2] sm:$0xff] %vm2193, %v1935
      %2217 = vst.msk [vmem:[#allocation2 + $0xca] sm:$0xff] %vm2193, %v1952
      %2218 = vst.msk [vmem:[#allocation2 + $0xd2] sm:$0xff] %vm2193, %v1969
      %2219 = vst.msk [vmem:[#allocation2 + $0xda] sm:$0xff] %vm2193, %v1986
      %2220 = vst.msk [vmem:[#allocation2 + $0xe2] sm:$0xff] %vm2193, %v2003
      %2221 = vst.msk [vmem:[#allocation2 + $0xea] sm:$0xff] %vm2193, %v2020
      %2222 = vst.msk [vmem:[#allocation2 + $0xf2] sm:$0xff] %vm2193, %v2037
      %2223 = vst.msk [vmem:[#allocation2 + $0xfa] sm:$0xff] %vm2193, %v2054
      %2224 = vst.msk [vmem:[#allocation2 + $0x102] sm:$0xff] %vm2193, %v2071
      %2225 = vst.msk [vmem:[#allocation2 + $0x10a] sm:$0xff] %vm2193, %v2088
      %2226 = vst.msk [vmem:[#allocation2 + $0x112] sm:$0xff] %vm2193, %v2105
      %2227 = vst.msk [vmem:[#allocation2 + $0x11a] sm:$0xff] %vm2193, %v2122
      %2228 = vst.msk [vmem:[#allocation2 + $0x122] sm:$0xff] %vm2193, %v2139
      %2229 = vst.msk [vmem:[#allocation2 + $0x12a] sm:$0xff] %vm2193, %v2156
      %p2230 = scmp.eq.s32.totalorder %s21, 0
      // Predicated region
      $region41: #{bottleneck_forward.2} parent=39 // pred_check
        %p2231 = pneg %p2230
      $region42: #{bottleneck_forward.2} parent=39 // pred_check_branch
        %2233 = sbr.rel (%p2231) target = $region44
      $region43: #{bottleneck_forward.2} parent=39 // pred_region
        %2234 = vst.msk [vmem:[#allocation2] sm:$0xff] %vm2193, 0.0
        %2235 = vst.msk [vmem:[#allocation2 + $0x8] sm:$0xff] %vm2193, 0.0
        %vm2236 = vcmask 25600
        %2237 = vst.msk [vmem:[#allocation2 + $0x10] sm:$0x3] %vm2236, 0.0
      $region44: #{bottleneck_forward.2} parent=39 // pred_fallthru
        _
      %p2238 = scmp.gt.s32.totalorder %s21, 0
      // Predicated region
      $region45: #{bottleneck_forward.2} parent=39 // pred_check
        %p2239 = pneg %p2238
      $region46: #{bottleneck_forward.2} parent=39 // pred_check_branch
        %2241 = sbr.rel (%p2239) target = $region48
      $region47: #{bottleneck_forward.2} parent=39 // pred_region
        %s2242 = ssub.s32 %s248, 1
        %s2243 = smul.u32 %s2242, 16
        %s2244 = scalar_lea.vmem %s237, %s2243
        %v2245 = vld [vmem:[%s2244] sm:$0xff]
        %v2246 = vld [vmem:[%s2244 + $0x8] sm:$0xff]
        %v2247 = vld [vmem:[%s1] sm:$0xff]
        %v2249 = vsel %vm286, %v2245, 0
        %v2252 = vsel %vm286, %v2246, 0
        %2254 = vmatprep.subr.mxu0 0.0
        %2255 = vmatpush1.msra.mxu0 %v2247
        %2256 = vmatprep.subr.mxu0 0.0
        %2257 = vmatpush1.msra.mxu0 0.0
        %2258 = vmatprep.subr.mxu0 0.0
        %2259 = vmatpush1.msra.mxu0 0.0
        %2260 = vmatprep.subr.mxu0 0.0
        %2261 = vmatpush1.msra.mxu0 0.0
        %2262 = vmatprep.subr.mxu0 0.0
        %2263 = vmatpush1.msra.mxu0 0.0
        %2264 = vmatprep.subr.mxu0 0.0
        %2265 = vmatpush1.msra.mxu0 0.0
        %2266 = vmatprep.subr.mxu0 0.0
        %2267 = vmatpush1.msra.mxu0 0.0
        %2268 = vmatprep.subr.mxu0 0.0
        %2269 = vmatpush1.msra.mxu0 0.0
        %2270 = vmatprep.subr.mxu0 0.0
        %2271 = vmatpush1.msra.mxu0 0.0
        %2272 = vmatprep.subr.mxu0 0.0
        %2273 = vmatpush1.msra.mxu0 0.0
        %2274 = vmatprep.subr.mxu0 0.0
        %2275 = vmatpush1.msra.mxu0 0.0
        %2276 = vmatprep.subr.mxu0 0.0
        %2277 = vmatpush1.msra.mxu0 0.0
        %2278 = vmatprep.subr.mxu0 0.0
        %2279 = vmatpush1.msra.mxu0 0.0
        %2280 = vmatprep.subr.mxu0 0.0
        %2281 = vmatpush1.msra.mxu0 0.0
        %2282 = vmatprep.subr.mxu0 0.0
        %2283 = vmatpush1.msra.mxu0 0.0
        %2284 = vmatprep.subr.mxu0 0.0
        %2285 = vmatpush1.msra.mxu0 0.0
        %2286 = vmatprep.subr.mxu0 0.0
        %2287 = vmatpush1.msra.mxu0 0.0
        %2288 = vmatprep.subr.mxu0 0.0
        %2289 = vmatpush1.msra.mxu0 0.0
        %2290 = vmatprep.subr.mxu0 0.0
        %2291 = vmatpush1.msra.mxu0 0.0
        %2292 = vmatprep.subr.mxu0 0.0
        %2293 = vmatpush1.msra.mxu0 0.0
        %2294 = vmatprep.subr.mxu0 0.0
        %2295 = vmatpush1.msra.mxu0 0.0
        %2296 = vmatprep.subr.mxu0 0.0
        %2297 = vmatpush1.msra.mxu0 0.0
        %2298 = vmatprep.subr.mxu0 0.0
        %2299 = vmatpush1.msra.mxu0 0.0
        %2300 = vmatprep.subr.mxu0 0.0
        %2301 = vmatpush1.msra.mxu0 0.0
        %2302 = vmatprep.subr.mxu0 0.0
        %2303 = vmatpush1.msra.mxu0 0.0
        %2304 = vmatprep.subr.mxu0 0.0
        %2305 = vmatpush1.msra.mxu0 0.0
        %2306 = vmatprep.subr.mxu0 0.0
        %2307 = vmatpush1.msra.mxu0 0.0
        %2308 = vmatprep.subr.mxu0 0.0
        %2309 = vmatpush1.msra.mxu0 0.0
        %2310 = vmatprep.subr.mxu0 0.0
        %2311 = vmatpush1.msra.mxu0 0.0
        %2312 = vmatprep.subr.mxu0 0.0
        %2313 = vmatpush1.msra.mxu0 0.0
        %2314 = vmatprep.subr.mxu0 0.0
        %2315 = vmatpush1.msra.mxu0 0.0
        %2316 = vmatprep.subr.mxu0 0.0
        %2317 = vmatpush1.msra.mxu0 0.0
        %2318 = vmatprep.mubr.f32.mxu0 0.0
        %2319 = vmatmul.mubr.f32.gmra.mrb[0].mxu0 %v2249
        %v2320 = vpop.f32.mrb[0].mxu0
        %v2321 = vadd.f32 0.0, %v2320
        %v2322 = vpop.f32.mrb[0].mxu0
        %2323 = vmatprep.mubr.f32.mxu0 0.0
        %2324 = vmatmul.mubr.f32.gmra.mrb[0].mxu0 %v2252
        %v2325 = vpop.f32.mrb[0].mxu0
        %v2326 = vadd.f32 0.0, %v2325
        %v2327 = vpop.f32.mrb[0].mxu0
        %2328 = vdwg.mxu0
        %v2329 = vmul.f32 %v2321, %v611
        %v2330 = vmul.f32 %v2326, %v611
        %v2331 = vadd.f32 %v2329, %v647
        %v2332 = vadd.f32 %v2330, %v647
        %v2333 = vmax.f32 %v2331, 0.0
        %v2334 = vmax.f32 %v2332, 0.0
        %v2337 = vrot.slane %v2333, 7
        %v2338 = vrot.slane %v2334, 7
        %v2339 = vsel %vm744, %v2337, %v2338
        %v2343 = vsel %vm744, 0.0, %v2337
        %v2344 = vsel %vm744, %v2338, 0.0
        %2345 = vst.msk [vmem:[#allocation2] sm:$0xff] %vm2193, %v2343
        %2346 = vst.msk [vmem:[#allocation2 + $0x8] sm:$0xff] %vm2193, %v2339
        %vm2347 = vcmask 25600
        %2348 = vst.msk [vmem:[#allocation2 + $0x10] sm:$0x3] %vm2347, %v2344
      $region48: #{bottleneck_forward.2} parent=39 // pred_fallthru
        _
      // Predicated region
      $region49: #{bottleneck_forward.2} parent=39 // pred_check
        %p2349 = pneg %p2230
      $region50: #{bottleneck_forward.2} parent=39 // pred_check_branch
        %2351 = sbr.rel (%p2349) target = $region52
      $region51: #{bottleneck_forward.2} parent=39 // pred_region
        %2352 = vst.msk [vmem:[#allocation2 + $0x132] sm:$0xff] %vm2193, 0.0
        %2353 = vst.msk [vmem:[#allocation2 + $0x13a] sm:$0xff] %vm2193, 0.0
        %vm2354 = vcmask 25600
        %2355 = vst.msk [vmem:[#allocation2 + $0x142] sm:$0x3] %vm2354, 0.0
      $region52: #{bottleneck_forward.2} parent=39 // pred_fallthru
        _
      %p2356 = scmp.lt.s32.totalorder %s21, 0
      // Predicated region
      $region53: #{bottleneck_forward.2} parent=39 // pred_check
        %p2357 = pneg %p2356
      $region54: #{bottleneck_forward.2} parent=39 // pred_check_branch
        %2359 = sbr.rel (%p2357) target = $region56
      $region55: #{bottleneck_forward.2} parent=39 // pred_region
        %s2360 = sadd.s32 %s248, 16
        %s2361 = smul.u32 %s2360, 16
        %s2362 = scalar_lea.vmem %s237, %s2361
        %v2363 = vld [vmem:[%s2362] sm:$0xff]
        %v2364 = vld [vmem:[%s2362 + $0x8] sm:$0xff]
        %v2365 = vld [vmem:[%s1] sm:$0xff]
        %v2367 = vsel %vm286, %v2363, 0
        %v2370 = vsel %vm286, %v2364, 0
        %2372 = vmatprep.subr.mxu0 0.0
        %2373 = vmatpush1.msra.mxu0 %v2365
        %2374 = vmatprep.subr.mxu0 0.0
        %2375 = vmatpush1.msra.mxu0 0.0
        %2376 = vmatprep.subr.mxu0 0.0
        %2377 = vmatpush1.msra.mxu0 0.0
        %2378 = vmatprep.subr.mxu0 0.0
        %2379 = vmatpush1.msra.mxu0 0.0
        %2380 = vmatprep.subr.mxu0 0.0
        %2381 = vmatpush1.msra.mxu0 0.0
        %2382 = vmatprep.subr.mxu0 0.0
        %2383 = vmatpush1.msra.mxu0 0.0
        %2384 = vmatprep.subr.mxu0 0.0
        %2385 = vmatpush1.msra.mxu0 0.0
        %2386 = vmatprep.subr.mxu0 0.0
        %2387 = vmatpush1.msra.mxu0 0.0
        %2388 = vmatprep.subr.mxu0 0.0
        %2389 = vmatpush1.msra.mxu0 0.0
        %2390 = vmatprep.subr.mxu0 0.0
        %2391 = vmatpush1.msra.mxu0 0.0
        %2392 = vmatprep.subr.mxu0 0.0
        %2393 = vmatpush1.msra.mxu0 0.0
        %2394 = vmatprep.subr.mxu0 0.0
        %2395 = vmatpush1.msra.mxu0 0.0
        %2396 = vmatprep.subr.mxu0 0.0
        %2397 = vmatpush1.msra.mxu0 0.0
        %2398 = vmatprep.subr.mxu0 0.0
        %2399 = vmatpush1.msra.mxu0 0.0
        %2400 = vmatprep.subr.mxu0 0.0
        %2401 = vmatpush1.msra.mxu0 0.0
        %2402 = vmatprep.subr.mxu0 0.0
        %2403 = vmatpush1.msra.mxu0 0.0
        %2404 = vmatprep.subr.mxu0 0.0
        %2405 = vmatpush1.msra.mxu0 0.0
        %2406 = vmatprep.subr.mxu0 0.0
        %2407 = vmatpush1.msra.mxu0 0.0
        %2408 = vmatprep.subr.mxu0 0.0
        %2409 = vmatpush1.msra.mxu0 0.0
        %2410 = vmatprep.subr.mxu0 0.0
        %2411 = vmatpush1.msra.mxu0 0.0
        %2412 = vmatprep.subr.mxu0 0.0
        %2413 = vmatpush1.msra.mxu0 0.0
        %2414 = vmatprep.subr.mxu0 0.0
        %2415 = vmatpush1.msra.mxu0 0.0
        %2416 = vmatprep.subr.mxu0 0.0
        %2417 = vmatpush1.msra.mxu0 0.0
        %2418 = vmatprep.subr.mxu0 0.0
        %2419 = vmatpush1.msra.mxu0 0.0
        %2420 = vmatprep.subr.mxu0 0.0
        %2421 = vmatpush1.msra.mxu0 0.0
        %2422 = vmatprep.subr.mxu0 0.0
        %2423 = vmatpush1.msra.mxu0 0.0
        %2424 = vmatprep.subr.mxu0 0.0
        %2425 = vmatpush1.msra.mxu0 0.0
        %2426 = vmatprep.subr.mxu0 0.0
        %2427 = vmatpush1.msra.mxu0 0.0
        %2428 = vmatprep.subr.mxu0 0.0
        %2429 = vmatpush1.msra.mxu0 0.0
        %2430 = vmatprep.subr.mxu0 0.0
        %2431 = vmatpush1.msra.mxu0 0.0
        %2432 = vmatprep.subr.mxu0 0.0
        %2433 = vmatpush1.msra.mxu0 0.0
        %2434 = vmatprep.subr.mxu0 0.0
        %2435 = vmatpush1.msra.mxu0 0.0
        %2436 = vmatprep.mubr.f32.mxu0 0.0
        %2437 = vmatmul.mubr.f32.gmra.mrb[0].mxu0 %v2367
        %v2438 = vpop.f32.mrb[0].mxu0
        %v2439 = vadd.f32 0.0, %v2438
        %v2440 = vpop.f32.mrb[0].mxu0
        %2441 = vmatprep.mubr.f32.mxu0 0.0
        %2442 = vmatmul.mubr.f32.gmra.mrb[0].mxu0 %v2370
        %v2443 = vpop.f32.mrb[0].mxu0
        %v2444 = vadd.f32 0.0, %v2443
        %v2445 = vpop.f32.mrb[0].mxu0
        %2446 = vdwg.mxu0
        %v2447 = vmul.f32 %v2439, %v611
        %v2448 = vmul.f32 %v2444, %v611
        %v2449 = vadd.f32 %v2447, %v647
        %v2450 = vadd.f32 %v2448, %v647
        %v2451 = vmax.f32 %v2449, 0.0
        %v2452 = vmax.f32 %v2450, 0.0
        %v2455 = vrot.slane %v2451, 7
        %v2456 = vrot.slane %v2452, 7
        %v2457 = vsel %vm744, %v2455, %v2456
        %v2461 = vsel %vm744, 0.0, %v2455
        %v2462 = vsel %vm744, %v2456, 0.0
        %2463 = vst.msk [vmem:[#allocation2 + $0x132] sm:$0xff] %vm2193, %v2461
        %2464 = vst.msk [vmem:[#allocation2 + $0x13a] sm:$0xff] %vm2193, %v2457
        %vm2465 = vcmask 25600
        %2466 = vst.msk [vmem:[#allocation2 + $0x142] sm:$0x3] %vm2465, %v2462
      $region56: #{bottleneck_forward.2} parent=39 // pred_fallthru
        _
      %v2467 = vld [vmem:[#allocation2] sm:$0xff]
      %v2468 = vld [vmem:[#allocation2 + $0x8] sm:$0xff]
      %v2469 = vld [vmem:[#allocation2 + $0x10] sm:$0xff]
      %v2470 = vld [vmem:[#allocation2 + $0x18] sm:$0xff]
      %v2471 = vld [vmem:[#allocation2 + $0x20] sm:$0xff]
      %v2472 = vld [vmem:[#allocation2 + $0x28] sm:$0xff]
      %v2473 = vld [vmem:[#allocation2 + $0x30] sm:$0xff]
      %v2474 = vld [vmem:[#allocation2 + $0x38] sm:$0xff]
      %v2475 = vld [vmem:[#allocation2 + $0x40] sm:$0xff]
      %v2476 = vld [vmem:[#allocation2 + $0x48] sm:$0xff]
      %v2477 = vld [vmem:[#allocation2 + $0x50] sm:$0xff]
      %v2478 = vld [vmem:[#allocation2 + $0x58] sm:$0xff]
      %v2479 = vld [vmem:[#allocation2 + $0x60] sm:$0xff]
      %v2480 = vld [vmem:[#allocation2 + $0x68] sm:$0xff]
      %v2481 = vld [vmem:[#allocation2 + $0x70] sm:$0xff]
      %v2482 = vld [vmem:[#allocation2 + $0x78] sm:$0xff]
      %v2483 = vld [vmem:[#allocation2 + $0x80] sm:$0xff]
      %v2484 = vld [vmem:[#allocation2 + $0x88] sm:$0xff]
      %v2485 = vld [vmem:[#allocation2 + $0x90] sm:$0xff]
      %v2486 = vld [vmem:[#allocation2 + $0x98] sm:$0xff]
      %v2487 = vld [vmem:[#allocation2 + $0xa0] sm:$0xff]
      %v2488 = vld [vmem:[#allocation2 + $0xa8] sm:$0xff]
      %v2489 = vld [vmem:[#allocation2 + $0xb0] sm:$0xff]
      %v2490 = vld [vmem:[#allocation2 + $0xb8] sm:$0xff]
      %v2491 = vld [vmem:[#allocation2 + $0xc0] sm:$0xff]
      %v2492 = vld [vmem:[#allocation2 + $0xc8] sm:$0xff]
      %v2493 = vld [vmem:[#allocation2 + $0xd0] sm:$0xff]
      %v2494 = vld [vmem:[#allocation2 + $0xd8] sm:$0xff]
      %v2495 = vld [vmem:[#allocation2 + $0xe0] sm:$0xff]
      %v2496 = vld [vmem:[#allocation2 + $0xe8] sm:$0xff]
      %v2497 = vld [vmem:[#allocation2 + $0xf0] sm:$0xff]
      %v2498 = vld [vmem:[#allocation2 + $0xf8] sm:$0xff]
      %v2499 = vld [vmem:[#allocation2 + $0x100] sm:$0xff]
      %v2500 = vld [vmem:[#allocation2 + $0x108] sm:$0xff]
      %v2501 = vld [vmem:[#allocation2 + $0x110] sm:$0xff]
      %v2502 = vld [vmem:[#allocation2 + $0x118] sm:$0xff]
      %v2503 = vld [vmem:[%s3] sm:$0xf]
      %v2504 = vld [vmem:[#allocation2 + $0x1] sm:$0xff]
      %v2505 = vld [vmem:[#allocation2 + $0x9] sm:$0xff]
      %v2506 = vld [vmem:[#allocation2 + $0x11] sm:$0xff]
      %v2507 = vld [vmem:[#allocation2 + $0x19] sm:$0xff]
      %v2508 = vld [vmem:[#allocation2 + $0x21] sm:$0xff]
      %v2509 = vld [vmem:[#allocation2 + $0x29] sm:$0xff]
      %v2510 = vld [vmem:[#allocation2 + $0x31] sm:$0xff]
      %v2511 = vld [vmem:[#allocation2 + $0x39] sm:$0xff]
      %v2512 = vld [vmem:[#allocation2 + $0x41] sm:$0xff]
      %v2513 = vld [vmem:[#allocation2 + $0x49] sm:$0xff]
      %v2514 = vld [vmem:[#allocation2 + $0x51] sm:$0xff]
      %v2515 = vld [vmem:[#allocation2 + $0x59] sm:$0xff]
      %v2516 = vld [vmem:[#allocation2 + $0x61] sm:$0xff]
      %v2517 = vld [vmem:[#allocation2 + $0x69] sm:$0xff]
      %v2518 = vld [vmem:[#allocation2 + $0x71] sm:$0xff]
      %v2519 = vld [vmem:[#allocation2 + $0x79] sm:$0xff]
      %v2520 = vld [vmem:[#allocation2 + $0x81] sm:$0xff]
      %v2521 = vld [vmem:[#allocation2 + $0x89] sm:$0xff]
      %v2522 = vld [vmem:[#allocation2 + $0x91] sm:$0xff]
      %v2523 = vld [vmem:[#allocation2 + $0x99] sm:$0xff]
      %v2524 = vld [vmem:[#allocation2 + $0xa1] sm:$0xff]
      %v2525 = vld [vmem:[#allocation2 + $0xa9] sm:$0xff]
      %v2526 = vld [vmem:[#allocation2 + $0xb1] sm:$0xff]
      %v2527 = vld [vmem:[#allocation2 + $0xb9] sm:$0xff]
      %v2528 = vld [vmem:[#allocation2 + $0xc1] sm:$0xff]
      %v2529 = vld [vmem:[#allocation2 + $0xc9] sm:$0xff]
      %v2530 = vld [vmem:[#allocation2 + $0xd1] sm:$0xff]
      %v2531 = vld [vmem:[#allocation2 + $0xd9] sm:$0xff]
      %v2532 = vld [vmem:[#allocation2 + $0xe1] sm:$0xff]
      %v2533 = vld [vmem:[#allocation2 + $0xe9] sm:$0xff]
      %v2534 = vld [vmem:[#allocation2 + $0xf1] sm:$0xff]
      %v2535 = vld [vmem:[#allocation2 + $0xf9] sm:$0xff]
      %v2536 = vld [vmem:[#allocation2 + $0x101] sm:$0xff]
      %v2537 = vld [vmem:[#allocation2 + $0x109] sm:$0xff]
      %v2538 = vld [vmem:[#allocation2 + $0x111] sm:$0xff]
      %v2539 = vld [vmem:[#allocation2 + $0x119] sm:$0xff]
      %s2540 = scalar_lea.vmem %s3, 4
      %v2541 = vld [vmem:[%s2540] sm:$0xf]
      %v2543 = vsel %vm2193, %v2504, 0
      %v2546 = vsel %vm2193, %v2505, 0
      %v2549 = vsel %vm2193, %v2506, 0
      %v2552 = vsel %vm2193, %v2507, 0
      %v2555 = vsel %vm2193, %v2508, 0
      %v2558 = vsel %vm2193, %v2509, 0
      %v2561 = vsel %vm2193, %v2510, 0
      %v2564 = vsel %vm2193, %v2511, 0
      %v2567 = vsel %vm2193, %v2512, 0
      %v2570 = vsel %vm2193, %v2513, 0
      %v2573 = vsel %vm2193, %v2514, 0
      %v2576 = vsel %vm2193, %v2515, 0
      %v2579 = vsel %vm2193, %v2516, 0
      %v2582 = vsel %vm2193, %v2517, 0
      %v2585 = vsel %vm2193, %v2518, 0
      %v2588 = vsel %vm2193, %v2519, 0
      %v2591 = vsel %vm2193, %v2520, 0
      %v2594 = vsel %vm2193, %v2521, 0
      %v2597 = vsel %vm2193, %v2522, 0
      %v2600 = vsel %vm2193, %v2523, 0
      %v2603 = vsel %vm2193, %v2524, 0
      %v2606 = vsel %vm2193, %v2525, 0
      %v2609 = vsel %vm2193, %v2526, 0
      %v2612 = vsel %vm2193, %v2527, 0
      %v2615 = vsel %vm2193, %v2528, 0
      %v2618 = vsel %vm2193, %v2529, 0
      %v2621 = vsel %vm2193, %v2530, 0
      %v2624 = vsel %vm2193, %v2531, 0
      %v2627 = vsel %vm2193, %v2532, 0
      %v2630 = vsel %vm2193, %v2533, 0
      %v2633 = vsel %vm2193, %v2534, 0
      %v2636 = vsel %vm2193, %v2535, 0
      %v2639 = vsel %vm2193, %v2536, 0
      %v2642 = vsel %vm2193, %v2537, 0
      %v2645 = vsel %vm2193, %v2538, 0
      %v2648 = vsel %vm2193, %v2539, 0
      %vm2650 = vcmask 1043456
      %v2652 = vsel %vm2650, %v2541, 0
      %2654 = vmatprep.subr.mxu0 0.0
      %2655 = vmatpush1.msra.mxu0 %v2652
      %2656 = vmatprep.subr.mxu0 0.0
      %2657 = vmatpush1.msra.mxu0 0.0
      %2658 = vmatprep.subr.mxu0 0.0
      %2659 = vmatpush1.msra.mxu0 0.0
      %2660 = vmatprep.subr.mxu0 0.0
      %2661 = vmatpush1.msra.mxu0 0.0
      %2662 = vmatprep.subr.mxu0 0.0
      %2663 = vmatpush1.msra.mxu0 0.0
      %2664 = vmatprep.subr.mxu0 0.0
      %2665 = vmatpush1.msra.mxu0 0.0
      %2666 = vmatprep.subr.mxu0 0.0
      %2667 = vmatpush1.msra.mxu0 0.0
      %2668 = vmatprep.subr.mxu0 0.0
      %2669 = vmatpush1.msra.mxu0 0.0
      %2670 = vmatprep.subr.mxu0 0.0
      %2671 = vmatpush1.msra.mxu0 0.0
      %2672 = vmatprep.subr.mxu0 0.0
      %2673 = vmatpush1.msra.mxu0 0.0
      %2674 = vmatprep.subr.mxu0 0.0
      %2675 = vmatpush1.msra.mxu0 0.0
      %2676 = vmatprep.subr.mxu0 0.0
      %2677 = vmatpush1.msra.mxu0 0.0
      %2678 = vmatprep.subr.mxu0 0.0
      %2679 = vmatpush1.msra.mxu0 0.0
      %2680 = vmatprep.subr.mxu0 0.0
      %2681 = vmatpush1.msra.mxu0 0.0
      %2682 = vmatprep.subr.mxu0 0.0
      %2683 = vmatpush1.msra.mxu0 0.0
      %2684 = vmatprep.subr.mxu0 0.0
      %2685 = vmatpush1.msra.mxu0 0.0
      %2686 = vmatprep.subr.mxu0 0.0
      %2687 = vmatpush1.msra.mxu0 0.0
      %2688 = vmatprep.subr.mxu0 0.0
      %2689 = vmatpush1.msra.mxu0 0.0
      %2690 = vmatprep.subr.mxu0 0.0
      %2691 = vmatpush1.msra.mxu0 0.0
      %2692 = vmatprep.subr.mxu0 0.0
      %2693 = vmatpush1.msra.mxu0 0.0
      %2694 = vmatprep.subr.mxu0 0.0
      %2695 = vmatpush1.msra.mxu0 0.0
      %2696 = vmatprep.subr.mxu0 0.0
      %2697 = vmatpush1.msra.mxu0 0.0
      %2698 = vmatprep.subr.mxu0 0.0
      %2699 = vmatpush1.msra.mxu0 0.0
      %2700 = vmatprep.subr.mxu0 0.0
      %2701 = vmatpush1.msra.mxu0 0.0
      %2702 = vmatprep.subr.mxu0 0.0
      %2703 = vmatpush1.msra.mxu0 0.0
      %2704 = vmatprep.subr.mxu0 0.0
      %2705 = vmatpush1.msra.mxu0 0.0
      %2706 = vmatprep.subr.mxu0 0.0
      %2707 = vmatpush1.msra.mxu0 0.0
      %2708 = vmatprep.subr.mxu0 0.0
      %2709 = vmatpush1.msra.mxu0 0.0
      %2710 = vmatprep.subr.mxu0 0.0
      %2711 = vmatpush1.msra.mxu0 0.0
      %2712 = vmatprep.subr.mxu0 0.0
      %2713 = vmatpush1.msra.mxu0 0.0
      %2714 = vmatprep.subr.mxu0 0.0
      %2715 = vmatpush1.msra.mxu0 0.0
      %2716 = vmatprep.subr.mxu0 0.0
      %2717 = vmatpush1.msra.mxu0 0.0
      %2718 = vmatprep.mubr.f32.mxu0 0.0
      %2719 = vmatmul.mubr.f32.gmra.mrb[0].mxu0 %v2543
      %v2720 = vpop.f32.mrb[0].mxu0
      %v2721 = vadd.f32 0.0, %v2720
      %v2722 = vpop.f32.mrb[0].mxu0
      %2723 = vmatprep.mubr.f32.mxu0 0.0
      %2724 = vmatmul.mubr.f32.gmra.mrb[0].mxu0 %v2546
      %v2725 = vpop.f32.mrb[0].mxu0
      %v2726 = vadd.f32 0.0, %v2725
      %v2727 = vpop.f32.mrb[0].mxu0
      %2728 = vmatprep.mubr.f32.mxu0 0.0
      %2729 = vmatmul.mubr.f32.gmra.mrb[0].mxu0 %v2549
      %v2730 = vpop.f32.mrb[0].mxu0
      %v2731 = vadd.f32 0.0, %v2730
      %v2732 = vpop.f32.mrb[0].mxu0
      %2733 = vmatprep.mubr.f32.mxu0 0.0
      %2734 = vmatmul.mubr.f32.gmra.mrb[0].mxu0 %v2552
      %v2735 = vpop.f32.mrb[0].mxu0
      %v2736 = vadd.f32 0.0, %v2735
      %v2737 = vpop.f32.mrb[0].mxu0
      %2738 = vmatprep.mubr.f32.mxu0 0.0
      %2739 = vmatmul.mubr.f32.gmra.mrb[0].mxu0 %v2555
      %v2740 = vpop.f32.mrb[0].mxu0
      %v2741 = vadd.f32 0.0, %v2740
      %v2742 = vpop.f32.mrb[0].mxu0
      %2743 = vmatprep.mubr.f32.mxu0 0.0
      %2744 = vmatmul.mubr.f32.gmra.mrb[0].mxu0 %v2558
      %v2745 = vpop.f32.mrb[0].mxu0
      %v2746 = vadd.f32 0.0, %v2745
      %v2747 = vpop.f32.mrb[0].mxu0
      %2748 = vmatprep.mubr.f32.mxu0 0.0
      %2749 = vmatmul.mubr.f32.gmra.mrb[0].mxu0 %v2561
      %v2750 = vpop.f32.mrb[0].mxu0
      %v2751 = vadd.f32 0.0, %v2750
      %v2752 = vpop.f32.mrb[0].mxu0
      %2753 = vmatprep.mubr.f32.mxu0 0.0
      %2754 = vmatmul.mubr.f32.gmra.mrb[0].mxu0 %v2564
      %v2755 = vpop.f32.mrb[0].mxu0
      %v2756 = vadd.f32 0.0, %v2755
      %v2757 = vpop.f32.mrb[0].mxu0
      %2758 = vmatprep.mubr.f32.mxu0 0.0
      %2759 = vmatmul.mubr.f32.gmra.mrb[0].mxu0 %v2567
      %v2760 = vpop.f32.mrb[0].mxu0
      %v2761 = vadd.f32 0.0, %v2760
      %v2762 = vpop.f32.mrb[0].mxu0
      %2763 = vmatprep.mubr.f32.mxu0 0.0
      %2764 = vmatmul.mubr.f32.gmra.mrb[0].mxu0 %v2570
      %v2765 = vpop.f32.mrb[0].mxu0
      %v2766 = vadd.f32 0.0, %v2765
      %v2767 = vpop.f32.mrb[0].mxu0
      %2768 = vmatprep.mubr.f32.mxu0 0.0
      %2769 = vmatmul.mubr.f32.gmra.mrb[0].mxu0 %v2573
      %v2770 = vpop.f32.mrb[0].mxu0
      %v2771 = vadd.f32 0.0, %v2770
      %v2772 = vpop.f32.mrb[0].mxu0
      %2773 = vmatprep.mubr.f32.mxu0 0.0
      %2774 = vmatmul.mubr.f32.gmra.mrb[0].mxu0 %v2576
      %v2775 = vpop.f32.mrb[0].mxu0
      %v2776 = vadd.f32 0.0, %v2775
      %v2777 = vpop.f32.mrb[0].mxu0
      %2778 = vmatprep.mubr.f32.mxu0 0.0
      %2779 = vmatmul.mubr.f32.gmra.mrb[0].mxu0 %v2579
      %v2780 = vpop.f32.mrb[0].mxu0
      %v2781 = vadd.f32 0.0, %v2780
      %v2782 = vpop.f32.mrb[0].mxu0
      %2783 = vmatprep.mubr.f32.mxu0 0.0
      %2784 = vmatmul.mubr.f32.gmra.mrb[0].mxu0 %v2582
      %v2785 = vpop.f32.mrb[0].mxu0
      %v2786 = vadd.f32 0.0, %v2785
      %v2787 = vpop.f32.mrb[0].mxu0
      %2788 = vmatprep.mubr.f32.mxu0 0.0
      %2789 = vmatmul.mubr.f32.gmra.mrb[0].mxu0 %v2585
      %v2790 = vpop.f32.mrb[0].mxu0
      %v2791 = vadd.f32 0.0, %v2790
      %v2792 = vpop.f32.mrb[0].mxu0
      %2793 = vmatprep.mubr.f32.mxu0 0.0
      %2794 = vmatmul.mubr.f32.gmra.mrb[0].mxu0 %v2588
      %v2795 = vpop.f32.mrb[0].mxu0
      %v2796 = vadd.f32 0.0, %v2795
      %v2797 = vpop.f32.mrb[0].mxu0
      %2798 = vmatprep.mubr.f32.mxu0 0.0
      %2799 = vmatmul.mubr.f32.gmra.mrb[0].mxu0 %v2591
      %v2800 = vpop.f32.mrb[0].mxu0
      %v2801 = vadd.f32 0.0, %v2800
      %v2802 = vpop.f32.mrb[0].mxu0
      %2803 = vmatprep.mubr.f32.mxu0 0.0
      %2804 = vmatmul.mubr.f32.gmra.mrb[0].mxu0 %v2594
      %v2805 = vpop.f32.mrb[0].mxu0
      %v2806 = vadd.f32 0.0, %v2805
      %v2807 = vpop.f32.mrb[0].mxu0
      %2808 = vmatprep.mubr.f32.mxu0 0.0
      %2809 = vmatmul.mubr.f32.gmra.mrb[0].mxu0 %v2597
      %v2810 = vpop.f32.mrb[0].mxu0
      %v2811 = vadd.f32 0.0, %v2810
      %v2812 = vpop.f32.mrb[0].mxu0
      %2813 = vmatprep.mubr.f32.mxu0 0.0
      %2814 = vmatmul.mubr.f32.gmra.mrb[0].mxu0 %v2600
      %v2815 = vpop.f32.mrb[0].mxu0
      %v2816 = vadd.f32 0.0, %v2815
      %v2817 = vpop.f32.mrb[0].mxu0
      %2818 = vmatprep.mubr.f32.mxu0 0.0
      %2819 = vmatmul.mubr.f32.gmra.mrb[0].mxu0 %v2603
      %v2820 = vpop.f32.mrb[0].mxu0
      %v2821 = vadd.f32 0.0, %v2820
      %v2822 = vpop.f32.mrb[0].mxu0
      %2823 = vmatprep.mubr.f32.mxu0 0.0
      %2824 = vmatmul.mubr.f32.gmra.mrb[0].mxu0 %v2606
      %v2825 = vpop.f32.mrb[0].mxu0
      %v2826 = vadd.f32 0.0, %v2825
      %v2827 = vpop.f32.mrb[0].mxu0
      %2828 = vmatprep.mubr.f32.mxu0 0.0
      %2829 = vmatmul.mubr.f32.gmra.mrb[0].mxu0 %v2609
      %v2830 = vpop.f32.mrb[0].mxu0
      %v2831 = vadd.f32 0.0, %v2830
      %v2832 = vpop.f32.mrb[0].mxu0
      %2833 = vmatprep.mubr.f32.mxu0 0.0
      %2834 = vmatmul.mubr.f32.gmra.mrb[0].mxu0 %v2612
      %v2835 = vpop.f32.mrb[0].mxu0
      %v2836 = vadd.f32 0.0, %v2835
      %v2837 = vpop.f32.mrb[0].mxu0
      %2838 = vmatprep.mubr.f32.mxu0 0.0
      %2839 = vmatmul.mubr.f32.gmra.mrb[0].mxu0 %v2615
      %v2840 = vpop.f32.mrb[0].mxu0
      %v2841 = vadd.f32 0.0, %v2840
      %v2842 = vpop.f32.mrb[0].mxu0
      %2843 = vmatprep.mubr.f32.mxu0 0.0
      %2844 = vmatmul.mubr.f32.gmra.mrb[0].mxu0 %v2618
      %v2845 = vpop.f32.mrb[0].mxu0
      %v2846 = vadd.f32 0.0, %v2845
      %v2847 = vpop.f32.mrb[0].mxu0
      %2848 = vmatprep.mubr.f32.mxu0 0.0
      %2849 = vmatmul.mubr.f32.gmra.mrb[0].mxu0 %v2621
      %v2850 = vpop.f32.mrb[0].mxu0
      %v2851 = vadd.f32 0.0, %v2850
      %v2852 = vpop.f32.mrb[0].mxu0
      %2853 = vmatprep.mubr.f32.mxu0 0.0
      %2854 = vmatmul.mubr.f32.gmra.mrb[0].mxu0 %v2624
      %v2855 = vpop.f32.mrb[0].mxu0
      %v2856 = vadd.f32 0.0, %v2855
      %v2857 = vpop.f32.mrb[0].mxu0
      %2858 = vmatprep.mubr.f32.mxu0 0.0
      %2859 = vmatmul.mubr.f32.gmra.mrb[0].mxu0 %v2627
      %v2860 = vpop.f32.mrb[0].mxu0
      %v2861 = vadd.f32 0.0, %v2860
      %v2862 = vpop.f32.mrb[0].mxu0
      %2863 = vmatprep.mubr.f32.mxu0 0.0
      %2864 = vmatmul.mubr.f32.gmra.mrb[0].mxu0 %v2630
      %v2865 = vpop.f32.mrb[0].mxu0
      %v2866 = vadd.f32 0.0, %v2865
      %v2867 = vpop.f32.mrb[0].mxu0
      %2868 = vmatprep.mubr.f32.mxu0 0.0
      %2869 = vmatmul.mubr.f32.gmra.mrb[0].mxu0 %v2633
      %v2870 = vpop.f32.mrb[0].mxu0
      %v2871 = vadd.f32 0.0, %v2870
      %v2872 = vpop.f32.mrb[0].mxu0
      %2873 = vmatprep.mubr.f32.mxu0 0.0
      %2874 = vmatmul.mubr.f32.gmra.mrb[0].mxu0 %v2636
      %v2875 = vpop.f32.mrb[0].mxu0
      %v2876 = vadd.f32 0.0, %v2875
      %v2877 = vpop.f32.mrb[0].mxu0
      %2878 = vmatprep.mubr.f32.mxu0 0.0
      %2879 = vmatmul.mubr.f32.gmra.mrb[0].mxu0 %v2639
      %v2880 = vpop.f32.mrb[0].mxu0
      %v2881 = vadd.f32 0.0, %v2880
      %v2882 = vpop.f32.mrb[0].mxu0
      %2883 = vmatprep.mubr.f32.mxu0 0.0
      %2884 = vmatmul.mubr.f32.gmra.mrb[0].mxu0 %v2642
      %v2885 = vpop.f32.mrb[0].mxu0
      %v2886 = vadd.f32 0.0, %v2885
      %v2887 = vpop.f32.mrb[0].mxu0
      %2888 = vmatprep.mubr.f32.mxu0 0.0
      %2889 = vmatmul.mubr.f32.gmra.mrb[0].mxu0 %v2645
      %v2890 = vpop.f32.mrb[0].mxu0
      %v2891 = vadd.f32 0.0, %v2890
      %v2892 = vpop.f32.mrb[0].mxu0
      %2893 = vmatprep.mubr.f32.mxu0 0.0
      %2894 = vmatmul.mubr.f32.gmra.mrb[0].mxu0 %v2648
      %v2895 = vpop.f32.mrb[0].mxu0
      %v2896 = vadd.f32 0.0, %v2895
      %v2897 = vpop.f32.mrb[0].mxu0
      %2898 = vdwg.mxu0
      %v2900 = vsel %vm2193, %v2467, 0
      %v2903 = vsel %vm2193, %v2468, 0
      %v2906 = vsel %vm2193, %v2469, 0
      %v2909 = vsel %vm2193, %v2470, 0
      %v2912 = vsel %vm2193, %v2471, 0
      %v2915 = vsel %vm2193, %v2472, 0
      %v2918 = vsel %vm2193, %v2473, 0
      %v2921 = vsel %vm2193, %v2474, 0
      %v2924 = vsel %vm2193, %v2475, 0
      %v2927 = vsel %vm2193, %v2476, 0
      %v2930 = vsel %vm2193, %v2477, 0
      %v2933 = vsel %vm2193, %v2478, 0
      %v2936 = vsel %vm2193, %v2479, 0
      %v2939 = vsel %vm2193, %v2480, 0
      %v2942 = vsel %vm2193, %v2481, 0
      %v2945 = vsel %vm2193, %v2482, 0
      %v2948 = vsel %vm2193, %v2483, 0
      %v2951 = vsel %vm2193, %v2484, 0
      %v2954 = vsel %vm2193, %v2485, 0
      %v2957 = vsel %vm2193, %v2486, 0
      %v2960 = vsel %vm2193, %v2487, 0
      %v2963 = vsel %vm2193, %v2488, 0
      %v2966 = vsel %vm2193, %v2489, 0
      %v2969 = vsel %vm2193, %v2490, 0
      %v2972 = vsel %vm2193, %v2491, 0
      %v2975 = vsel %vm2193, %v2492, 0
      %v2978 = vsel %vm2193, %v2493, 0
      %v2981 = vsel %vm2193, %v2494, 0
      %v2984 = vsel %vm2193, %v2495, 0
      %v2987 = vsel %vm2193, %v2496, 0
      %v2990 = vsel %vm2193, %v2497, 0
      %v2993 = vsel %vm2193, %v2498, 0
      %v2996 = vsel %vm2193, %v2499, 0
      %v2999 = vsel %vm2193, %v2500, 0
      %v3002 = vsel %vm2193, %v2501, 0
      %v3005 = vsel %vm2193, %v2502, 0
      %v3008 = vsel %vm2650, %v2503, 0
      %3010 = vmatprep.subr.mxu0 0.0
      %3011 = vmatpush1.msra.mxu0 %v3008
      %3012 = vmatprep.subr.mxu0 0.0
      %3013 = vmatpush1.msra.mxu0 0.0
      %3014 = vmatprep.subr.mxu0 0.0
      %3015 = vmatpush1.msra.mxu0 0.0
      %3016 = vmatprep.subr.mxu0 0.0
      %3017 = vmatpush1.msra.mxu0 0.0
      %3018 = vmatprep.subr.mxu0 0.0
      %3019 = vmatpush1.msra.mxu0 0.0
      %3020 = vmatprep.subr.mxu0 0.0
      %3021 = vmatpush1.msra.mxu0 0.0
      %3022 = vmatprep.subr.mxu0 0.0
      %3023 = vmatpush1.msra.mxu0 0.0
      %3024 = vmatprep.subr.mxu0 0.0
      %3025 = vmatpush1.msra.mxu0 0.0
      %3026 = vmatprep.subr.mxu0 0.0
      %3027 = vmatpush1.msra.mxu0 0.0
      %3028 = vmatprep.subr.mxu0 0.0
      %3029 = vmatpush1.msra.mxu0 0.0
      %3030 = vmatprep.subr.mxu0 0.0
      %3031 = vmatpush1.msra.mxu0 0.0
      %3032 = vmatprep.subr.mxu0 0.0
      %3033 = vmatpush1.msra.mxu0 0.0
      %3034 = vmatprep.subr.mxu0 0.0
      %3035 = vmatpush1.msra.mxu0 0.0
      %3036 = vmatprep.subr.mxu0 0.0
      %3037 = vmatpush1.msra.mxu0 0.0
      %3038 = vmatprep.subr.mxu0 0.0
      %3039 = vmatpush1.msra.mxu0 0.0
      %3040 = vmatprep.subr.mxu0 0.0
      %3041 = vmatpush1.msra.mxu0 0.0
      %3042 = vmatprep.subr.mxu0 0.0
      %3043 = vmatpush1.msra.mxu0 0.0
      %3044 = vmatprep.subr.mxu0 0.0
      %3045 = vmatpush1.msra.mxu0 0.0
      %3046 = vmatprep.subr.mxu0 0.0
      %3047 = vmatpush1.msra.mxu0 0.0
      %3048 = vmatprep.subr.mxu0 0.0
      %3049 = vmatpush1.msra.mxu0 0.0
      %3050 = vmatprep.subr.mxu0 0.0
      %3051 = vmatpush1.msra.mxu0 0.0
      %3052 = vmatprep.subr.mxu0 0.0
      %3053 = vmatpush1.msra.mxu0 0.0
      %3054 = vmatprep.subr.mxu0 0.0
      %3055 = vmatpush1.msra.mxu0 0.0
      %3056 = vmatprep.subr.mxu0 0.0
      %3057 = vmatpush1.msra.mxu0 0.0
      %3058 = vmatprep.subr.mxu0 0.0
      %3059 = vmatpush1.msra.mxu0 0.0
      %3060 = vmatprep.subr.mxu0 0.0
      %3061 = vmatpush1.msra.mxu0 0.0
      %3062 = vmatprep.subr.mxu0 0.0
      %3063 = vmatpush1.msra.mxu0 0.0
      %3064 = vmatprep.subr.mxu0 0.0
      %3065 = vmatpush1.msra.mxu0 0.0
      %3066 = vmatprep.subr.mxu0 0.0
      %3067 = vmatpush1.msra.mxu0 0.0
      %3068 = vmatprep.subr.mxu0 0.0
      %3069 = vmatpush1.msra.mxu0 0.0
      %3070 = vmatprep.subr.mxu0 0.0
      %3071 = vmatpush1.msra.mxu0 0.0
      %3072 = vmatprep.subr.mxu0 0.0
      %3073 = vmatpush1.msra.mxu0 0.0
      %3074 = vmatprep.mubr.f32.mxu0 0.0
      %3075 = vmatmul.mubr.f32.gmra.mrb[0].mxu0 %v2900
      %v3076 = vpop.f32.mrb[0].mxu0
      %v3077 = vadd.f32 %v2721, %v3076
      %v3078 = vpop.f32.mrb[0].mxu0
      %3079 = vmatprep.mubr.f32.mxu0 0.0
      %3080 = vmatmul.mubr.f32.gmra.mrb[0].mxu0 %v2903
      %v3081 = vpop.f32.mrb[0].mxu0
      %v3082 = vadd.f32 %v2726, %v3081
      %v3083 = vpop.f32.mrb[0].mxu0
      %3084 = vmatprep.mubr.f32.mxu0 0.0
      %3085 = vmatmul.mubr.f32.gmra.mrb[0].mxu0 %v2906
      %v3086 = vpop.f32.mrb[0].mxu0
      %v3087 = vadd.f32 %v2731, %v3086
      %v3088 = vpop.f32.mrb[0].mxu0
      %3089 = vmatprep.mubr.f32.mxu0 0.0
      %3090 = vmatmul.mubr.f32.gmra.mrb[0].mxu0 %v2909
      %v3091 = vpop.f32.mrb[0].mxu0
      %v3092 = vadd.f32 %v2736, %v3091
      %v3093 = vpop.f32.mrb[0].mxu0
      %3094 = vmatprep.mubr.f32.mxu0 0.0
      %3095 = vmatmul.mubr.f32.gmra.mrb[0].mxu0 %v2912
      %v3096 = vpop.f32.mrb[0].mxu0
      %v3097 = vadd.f32 %v2741, %v3096
      %v3098 = vpop.f32.mrb[0].mxu0
      %3099 = vmatprep.mubr.f32.mxu0 0.0
      %3100 = vmatmul.mubr.f32.gmra.mrb[0].mxu0 %v2915
      %v3101 = vpop.f32.mrb[0].mxu0
      %v3102 = vadd.f32 %v2746, %v3101
      %v3103 = vpop.f32.mrb[0].mxu0
      %3104 = vmatprep.mubr.f32.mxu0 0.0
      %3105 = vmatmul.mubr.f32.gmra.mrb[0].mxu0 %v2918
      %v3106 = vpop.f32.mrb[0].mxu0
      %v3107 = vadd.f32 %v2751, %v3106
      %v3108 = vpop.f32.mrb[0].mxu0
      %3109 = vmatprep.mubr.f32.mxu0 0.0
      %3110 = vmatmul.mubr.f32.gmra.mrb[0].mxu0 %v2921
      %v3111 = vpop.f32.mrb[0].mxu0
      %v3112 = vadd.f32 %v2756, %v3111
      %v3113 = vpop.f32.mrb[0].mxu0
      %3114 = vmatprep.mubr.f32.mxu0 0.0
      %3115 = vmatmul.mubr.f32.gmra.mrb[0].mxu0 %v2924
      %v3116 = vpop.f32.mrb[0].mxu0
      %v3117 = vadd.f32 %v2761, %v3116
      %v3118 = vpop.f32.mrb[0].mxu0
      %3119 = vmatprep.mubr.f32.mxu0 0.0
      %3120 = vmatmul.mubr.f32.gmra.mrb[0].mxu0 %v2927
      %v3121 = vpop.f32.mrb[0].mxu0
      %v3122 = vadd.f32 %v2766, %v3121
      %v3123 = vpop.f32.mrb[0].mxu0
      %3124 = vmatprep.mubr.f32.mxu0 0.0
      %3125 = vmatmul.mubr.f32.gmra.mrb[0].mxu0 %v2930
      %v3126 = vpop.f32.mrb[0].mxu0
      %v3127 = vadd.f32 %v2771, %v3126
      %v3128 = vpop.f32.mrb[0].mxu0
      %3129 = vmatprep.mubr.f32.mxu0 0.0
      %3130 = vmatmul.mubr.f32.gmra.mrb[0].mxu0 %v2933
      %v3131 = vpop.f32.mrb[0].mxu0
      %v3132 = vadd.f32 %v2776, %v3131
      %v3133 = vpop.f32.mrb[0].mxu0
      %3134 = vmatprep.mubr.f32.mxu0 0.0
      %3135 = vmatmul.mubr.f32.gmra.mrb[0].mxu0 %v2936
      %v3136 = vpop.f32.mrb[0].mxu0
      %v3137 = vadd.f32 %v2781, %v3136
      %v3138 = vpop.f32.mrb[0].mxu0
      %3139 = vmatprep.mubr.f32.mxu0 0.0
      %3140 = vmatmul.mubr.f32.gmra.mrb[0].mxu0 %v2939
      %v3141 = vpop.f32.mrb[0].mxu0
      %v3142 = vadd.f32 %v2786, %v3141
      %v3143 = vpop.f32.mrb[0].mxu0
      %3144 = vmatprep.mubr.f32.mxu0 0.0
      %3145 = vmatmul.mubr.f32.gmra.mrb[0].mxu0 %v2942
      %v3146 = vpop.f32.mrb[0].mxu0
      %v3147 = vadd.f32 %v2791, %v3146
      %v3148 = vpop.f32.mrb[0].mxu0
      %3149 = vmatprep.mubr.f32.mxu0 0.0
      %3150 = vmatmul.mubr.f32.gmra.mrb[0].mxu0 %v2945
      %v3151 = vpop.f32.mrb[0].mxu0
      %v3152 = vadd.f32 %v2796, %v3151
      %v3153 = vpop.f32.mrb[0].mxu0
      %3154 = vmatprep.mubr.f32.mxu0 0.0
      %3155 = vmatmul.mubr.f32.gmra.mrb[0].mxu0 %v2948
      %v3156 = vpop.f32.mrb[0].mxu0
      %v3157 = vadd.f32 %v2801, %v3156
      %v3158 = vpop.f32.mrb[0].mxu0
      %3159 = vmatprep.mubr.f32.mxu0 0.0
      %3160 = vmatmul.mubr.f32.gmra.mrb[0].mxu0 %v2951
      %v3161 = vpop.f32.mrb[0].mxu0
      %v3162 = vadd.f32 %v2806, %v3161
      %v3163 = vpop.f32.mrb[0].mxu0
      %3164 = vmatprep.mubr.f32.mxu0 0.0
      %3165 = vmatmul.mubr.f32.gmra.mrb[0].mxu0 %v2954
      %v3166 = vpop.f32.mrb[0].mxu0
      %v3167 = vadd.f32 %v2811, %v3166
      %v3168 = vpop.f32.mrb[0].mxu0
      %3169 = vmatprep.mubr.f32.mxu0 0.0
      %3170 = vmatmul.mubr.f32.gmra.mrb[0].mxu0 %v2957
      %v3171 = vpop.f32.mrb[0].mxu0
      %v3172 = vadd.f32 %v2816, %v3171
      %v3173 = vpop.f32.mrb[0].mxu0
      %3174 = vmatprep.mubr.f32.mxu0 0.0
      %3175 = vmatmul.mubr.f32.gmra.mrb[0].mxu0 %v2960
      %v3176 = vpop.f32.mrb[0].mxu0
      %v3177 = vadd.f32 %v2821, %v3176
      %v3178 = vpop.f32.mrb[0].mxu0
      %3179 = vmatprep.mubr.f32.mxu0 0.0
      %3180 = vmatmul.mubr.f32.gmra.mrb[0].mxu0 %v2963
      %v3181 = vpop.f32.mrb[0].mxu0
      %v3182 = vadd.f32 %v2826, %v3181
      %v3183 = vpop.f32.mrb[0].mxu0
      %3184 = vmatprep.mubr.f32.mxu0 0.0
      %3185 = vmatmul.mubr.f32.gmra.mrb[0].mxu0 %v2966
      %v3186 = vpop.f32.mrb[0].mxu0
      %v3187 = vadd.f32 %v2831, %v3186
      %v3188 = vpop.f32.mrb[0].mxu0
      %3189 = vmatprep.mubr.f32.mxu0 0.0
      %3190 = vmatmul.mubr.f32.gmra.mrb[0].mxu0 %v2969
      %v3191 = vpop.f32.mrb[0].mxu0
      %v3192 = vadd.f32 %v2836, %v3191
      %v3193 = vpop.f32.mrb[0].mxu0
      %3194 = vmatprep.mubr.f32.mxu0 0.0
      %3195 = vmatmul.mubr.f32.gmra.mrb[0].mxu0 %v2972
      %v3196 = vpop.f32.mrb[0].mxu0
      %v3197 = vadd.f32 %v2841, %v3196
      %v3198 = vpop.f32.mrb[0].mxu0
      %3199 = vmatprep.mubr.f32.mxu0 0.0
      %3200 = vmatmul.mubr.f32.gmra.mrb[0].mxu0 %v2975
      %v3201 = vpop.f32.mrb[0].mxu0
      %v3202 = vadd.f32 %v2846, %v3201
      %v3203 = vpop.f32.mrb[0].mxu0
      %3204 = vmatprep.mubr.f32.mxu0 0.0
      %3205 = vmatmul.mubr.f32.gmra.mrb[0].mxu0 %v2978
      %v3206 = vpop.f32.mrb[0].mxu0
      %v3207 = vadd.f32 %v2851, %v3206
      %v3208 = vpop.f32.mrb[0].mxu0
      %3209 = vmatprep.mubr.f32.mxu0 0.0
      %3210 = vmatmul.mubr.f32.gmra.mrb[0].mxu0 %v2981
      %v3211 = vpop.f32.mrb[0].mxu0
      %v3212 = vadd.f32 %v2856, %v3211
      %v3213 = vpop.f32.mrb[0].mxu0
      %3214 = vmatprep.mubr.f32.mxu0 0.0
      %3215 = vmatmul.mubr.f32.gmra.mrb[0].mxu0 %v2984
      %v3216 = vpop.f32.mrb[0].mxu0
      %v3217 = vadd.f32 %v2861, %v3216
      %v3218 = vpop.f32.mrb[0].mxu0
      %3219 = vmatprep.mubr.f32.mxu0 0.0
      %3220 = vmatmul.mubr.f32.gmra.mrb[0].mxu0 %v2987
      %v3221 = vpop.f32.mrb[0].mxu0
      %v3222 = vadd.f32 %v2866, %v3221
      %v3223 = vpop.f32.mrb[0].mxu0
      %3224 = vmatprep.mubr.f32.mxu0 0.0
      %3225 = vmatmul.mubr.f32.gmra.mrb[0].mxu0 %v2990
      %v3226 = vpop.f32.mrb[0].mxu0
      %v3227 = vadd.f32 %v2871, %v3226
      %v3228 = vpop.f32.mrb[0].mxu0
      %3229 = vmatprep.mubr.f32.mxu0 0.0
      %3230 = vmatmul.mubr.f32.gmra.mrb[0].mxu0 %v2993
      %v3231 = vpop.f32.mrb[0].mxu0
      %v3232 = vadd.f32 %v2876, %v3231
      %v3233 = vpop.f32.mrb[0].mxu0
      %3234 = vmatprep.mubr.f32.mxu0 0.0
      %3235 = vmatmul.mubr.f32.gmra.mrb[0].mxu0 %v2996
      %v3236 = vpop.f32.mrb[0].mxu0
      %v3237 = vadd.f32 %v2881, %v3236
      %v3238 = vpop.f32.mrb[0].mxu0
      %3239 = vmatprep.mubr.f32.mxu0 0.0
      %3240 = vmatmul.mubr.f32.gmra.mrb[0].mxu0 %v2999
      %v3241 = vpop.f32.mrb[0].mxu0
      %v3242 = vadd.f32 %v2886, %v3241
      %v3243 = vpop.f32.mrb[0].mxu0
      %3244 = vmatprep.mubr.f32.mxu0 0.0
      %3245 = vmatmul.mubr.f32.gmra.mrb[0].mxu0 %v3002
      %v3246 = vpop.f32.mrb[0].mxu0
      %v3247 = vadd.f32 %v2891, %v3246
      %v3248 = vpop.f32.mrb[0].mxu0
      %3249 = vmatprep.mubr.f32.mxu0 0.0
      %3250 = vmatmul.mubr.f32.gmra.mrb[0].mxu0 %v3005
      %v3251 = vpop.f32.mrb[0].mxu0
      %v3252 = vadd.f32 %v2896, %v3251
      %v3253 = vpop.f32.mrb[0].mxu0
      %3254 = vdwg.mxu0
      %v3255 = vld [vmem:[#allocation2 + $0x2] sm:$0xff]
      %v3256 = vld [vmem:[#allocation2 + $0xa] sm:$0xff]
      %v3257 = vld [vmem:[#allocation2 + $0x12] sm:$0xff]
      %v3258 = vld [vmem:[#allocation2 + $0x1a] sm:$0xff]
      %v3259 = vld [vmem:[#allocation2 + $0x22] sm:$0xff]
      %v3260 = vld [vmem:[#allocation2 + $0x2a] sm:$0xff]
      %v3261 = vld [vmem:[#allocation2 + $0x32] sm:$0xff]
      %v3262 = vld [vmem:[#allocation2 + $0x3a] sm:$0xff]
      %v3263 = vld [vmem:[#allocation2 + $0x42] sm:$0xff]
      %v3264 = vld [vmem:[#allocation2 + $0x4a] sm:$0xff]
      %v3265 = vld [vmem:[#allocation2 + $0x52] sm:$0xff]
      %v3266 = vld [vmem:[#allocation2 + $0x5a] sm:$0xff]
      %v3267 = vld [vmem:[#allocation2 + $0x62] sm:$0xff]
      %v3268 = vld [vmem:[#allocation2 + $0x6a] sm:$0xff]
      %v3269 = vld [vmem:[#allocation2 + $0x72] sm:$0xff]
      %v3270 = vld [vmem:[#allocation2 + $0x7a] sm:$0xff]
      %v3271 = vld [vmem:[#allocation2 + $0x82] sm:$0xff]
      %v3272 = vld [vmem:[#allocation2 + $0x8a] sm:$0xff]
      %v3273 = vld [vmem:[#allocation2 + $0x92] sm:$0xff]
      %v3274 = vld [vmem:[#allocation2 + $0x9a] sm:$0xff]
      %v3275 = vld [vmem:[#allocation2 + $0xa2] sm:$0xff]
      %v3276 = vld [vmem:[#allocation2 + $0xaa] sm:$0xff]
      %v3277 = vld [vmem:[#allocation2 + $0xb2] sm:$0xff]
      %v3278 = vld [vmem:[#allocation2 + $0xba] sm:$0xff]
      %v3279 = vld [vmem:[#allocation2 + $0xc2] sm:$0xff]
      %v3280 = vld [vmem:[#allocation2 + $0xca] sm:$0xff]
      %v3281 = vld [vmem:[#allocation2 + $0xd2] sm:$0xff]
      %v3282 = vld [vmem:[#allocation2 + $0xda] sm:$0xff]
      %v3283 = vld [vmem:[#allocation2 + $0xe2] sm:$0xff]
      %v3284 = vld [vmem:[#allocation2 + $0xea] sm:$0xff]
      %v3285 = vld [vmem:[#allocation2 + $0xf2] sm:$0xff]
      %v3286 = vld [vmem:[#allocation2 + $0xfa] sm:$0xff]
      %v3287 = vld [vmem:[#allocation2 + $0x102] sm:$0xff]
      %v3288 = vld [vmem:[#allocation2 + $0x10a] sm:$0xff]
      %v3289 = vld [vmem:[#allocation2 + $0x112] sm:$0xff]
      %v3290 = vld [vmem:[#allocation2 + $0x11a] sm:$0xff]
      %s3291 = scalar_lea.vmem %s3, 8
      %v3292 = vld [vmem:[%s3291] sm:$0xf]
      %v3294 = vsel %vm2193, %v3255, 0
      %v3297 = vsel %vm2193, %v3256, 0
      %v3300 = vsel %vm2193, %v3257, 0
      %v3303 = vsel %vm2193, %v3258, 0
      %v3306 = vsel %vm2193, %v3259, 0
      %v3309 = vsel %vm2193, %v3260, 0
      %v3312 = vsel %vm2193, %v3261, 0
      %v3315 = vsel %vm2193, %v3262, 0
      %v3318 = vsel %vm2193, %v3263, 0
      %v3321 = vsel %vm2193, %v3264, 0
      %v3324 = vsel %vm2193, %v3265, 0
      %v3327 = vsel %vm2193, %v3266, 0
      %v3330 = vsel %vm2193, %v3267, 0
      %v3333 = vsel %vm2193, %v3268, 0
      %v3336 = vsel %vm2193, %v3269, 0
      %v3339 = vsel %vm2193, %v3270, 0
      %v3342 = vsel %vm2193, %v3271, 0
      %v3345 = vsel %vm2193, %v3272, 0
      %v3348 = vsel %vm2193, %v3273, 0
      %v3351 = vsel %vm2193, %v3274, 0
      %v3354 = vsel %vm2193, %v3275, 0
      %v3357 = vsel %vm2193, %v3276, 0
      %v3360 = vsel %vm2193, %v3277, 0
      %v3363 = vsel %vm2193, %v3278, 0
      %v3366 = vsel %vm2193, %v3279, 0
      %v3369 = vsel %vm2193, %v3280, 0
      %v3372 = vsel %vm2193, %v3281, 0
      %v3375 = vsel %vm2193, %v3282, 0
      %v3378 = vsel %vm2193, %v3283, 0
      %v3381 = vsel %vm2193, %v3284, 0
      %v3384 = vsel %vm2193, %v3285, 0
      %v3387 = vsel %vm2193, %v3286, 0
      %v3390 = vsel %vm2193, %v3287, 0
      %v3393 = vsel %vm2193, %v3288, 0
      %v3396 = vsel %vm2193, %v3289, 0
      %v3399 = vsel %vm2193, %v3290, 0
      %v3402 = vsel %vm2650, %v3292, 0
      %3404 = vmatprep.subr.mxu0 0.0
      %3405 = vmatpush1.msra.mxu0 %v3402
      %3406 = vmatprep.subr.mxu0 0.0
      %3407 = vmatpush1.msra.mxu0 0.0
      %3408 = vmatprep.subr.mxu0 0.0
      %3409 = vmatpush1.msra.mxu0 0.0
      %3410 = vmatprep.subr.mxu0 0.0
      %3411 = vmatpush1.msra.mxu0 0.0
      %3412 = vmatprep.subr.mxu0 0.0
      %3413 = vmatpush1.msra.mxu0 0.0
      %3414 = vmatprep.subr.mxu0 0.0
      %3415 = vmatpush1.msra.mxu0 0.0
      %3416 = vmatprep.subr.mxu0 0.0
      %3417 = vmatpush1.msra.mxu0 0.0
      %3418 = vmatprep.subr.mxu0 0.0
      %3419 = vmatpush1.msra.mxu0 0.0
      %3420 = vmatprep.subr.mxu0 0.0
      %3421 = vmatpush1.msra.mxu0 0.0
      %3422 = vmatprep.subr.mxu0 0.0
      %3423 = vmatpush1.msra.mxu0 0.0
      %3424 = vmatprep.subr.mxu0 0.0
      %3425 = vmatpush1.msra.mxu0 0.0
      %3426 = vmatprep.subr.mxu0 0.0
      %3427 = vmatpush1.msra.mxu0 0.0
      %3428 = vmatprep.subr.mxu0 0.0
      %3429 = vmatpush1.msra.mxu0 0.0
      %3430 = vmatprep.subr.mxu0 0.0
      %3431 = vmatpush1.msra.mxu0 0.0
      %3432 = vmatprep.subr.mxu0 0.0
      %3433 = vmatpush1.msra.mxu0 0.0
      %3434 = vmatprep.subr.mxu0 0.0
      %3435 = vmatpush1.msra.mxu0 0.0
      %3436 = vmatprep.subr.mxu0 0.0
      %3437 = vmatpush1.msra.mxu0 0.0
      %3438 = vmatprep.subr.mxu0 0.0
      %3439 = vmatpush1.msra.mxu0 0.0
      %3440 = vmatprep.subr.mxu0 0.0
      %3441 = vmatpush1.msra.mxu0 0.0
      %3442 = vmatprep.subr.mxu0 0.0
      %3443 = vmatpush1.msra.mxu0 0.0
      %3444 = vmatprep.subr.mxu0 0.0
      %3445 = vmatpush1.msra.mxu0 0.0
      %3446 = vmatprep.subr.mxu0 0.0
      %3447 = vmatpush1.msra.mxu0 0.0
      %3448 = vmatprep.subr.mxu0 0.0
      %3449 = vmatpush1.msra.mxu0 0.0
      %3450 = vmatprep.subr.mxu0 0.0
      %3451 = vmatpush1.msra.mxu0 0.0
      %3452 = vmatprep.subr.mxu0 0.0
      %3453 = vmatpush1.msra.mxu0 0.0
      %3454 = vmatprep.subr.mxu0 0.0
      %3455 = vmatpush1.msra.mxu0 0.0
      %3456 = vmatprep.subr.mxu0 0.0
      %3457 = vmatpush1.msra.mxu0 0.0
      %3458 = vmatprep.subr.mxu0 0.0
      %3459 = vmatpush1.msra.mxu0 0.0
      %3460 = vmatprep.subr.mxu0 0.0
      %3461 = vmatpush1.msra.mxu0 0.0
      %3462 = vmatprep.subr.mxu0 0.0
      %3463 = vmatpush1.msra.mxu0 0.0
      %3464 = vmatprep.subr.mxu0 0.0
      %3465 = vmatpush1.msra.mxu0 0.0
      %3466 = vmatprep.subr.mxu0 0.0
      %3467 = vmatpush1.msra.mxu0 0.0
      %3468 = vmatprep.mubr.f32.mxu0 0.0
      %3469 = vmatmul.mubr.f32.gmra.mrb[0].mxu0 %v3294
      %v3470 = vpop.f32.mrb[0].mxu0
      %v3471 = vadd.f32 0.0, %v3470
      %v3472 = vpop.f32.mrb[0].mxu0
      %3473 = vmatprep.mubr.f32.mxu0 0.0
      %3474 = vmatmul.mubr.f32.gmra.mrb[0].mxu0 %v3297
      %v3475 = vpop.f32.mrb[0].mxu0
      %v3476 = vadd.f32 0.0, %v3475
      %v3477 = vpop.f32.mrb[0].mxu0
      %3478 = vmatprep.mubr.f32.mxu0 0.0
      %3479 = vmatmul.mubr.f32.gmra.mrb[0].mxu0 %v3300
      %v3480 = vpop.f32.mrb[0].mxu0
      %v3481 = vadd.f32 0.0, %v3480
      %v3482 = vpop.f32.mrb[0].mxu0
      %3483 = vmatprep.mubr.f32.mxu0 0.0
      %3484 = vmatmul.mubr.f32.gmra.mrb[0].mxu0 %v3303
      %v3485 = vpop.f32.mrb[0].mxu0
      %v3486 = vadd.f32 0.0, %v3485
      %v3487 = vpop.f32.mrb[0].mxu0
      %3488 = vmatprep.mubr.f32.mxu0 0.0
      %3489 = vmatmul.mubr.f32.gmra.mrb[0].mxu0 %v3306
      %v3490 = vpop.f32.mrb[0].mxu0
      %v3491 = vadd.f32 0.0, %v3490
      %v3492 = vpop.f32.mrb[0].mxu0
      %3493 = vmatprep.mubr.f32.mxu0 0.0
      %3494 = vmatmul.mubr.f32.gmra.mrb[0].mxu0 %v3309
      %v3495 = vpop.f32.mrb[0].mxu0
      %v3496 = vadd.f32 0.0, %v3495
      %v3497 = vpop.f32.mrb[0].mxu0
      %3498 = vmatprep.mubr.f32.mxu0 0.0
      %3499 = vmatmul.mubr.f32.gmra.mrb[0].mxu0 %v3312
      %v3500 = vpop.f32.mrb[0].mxu0
      %v3501 = vadd.f32 0.0, %v3500
      %v3502 = vpop.f32.mrb[0].mxu0
      %3503 = vmatprep.mubr.f32.mxu0 0.0
      %3504 = vmatmul.mubr.f32.gmra.mrb[0].mxu0 %v3315
      %v3505 = vpop.f32.mrb[0].mxu0
      %v3506 = vadd.f32 0.0, %v3505
      %v3507 = vpop.f32.mrb[0].mxu0
      %3508 = vmatprep.mubr.f32.mxu0 0.0
      %3509 = vmatmul.mubr.f32.gmra.mrb[0].mxu0 %v3318
      %v3510 = vpop.f32.mrb[0].mxu0
      %v3511 = vadd.f32 0.0, %v3510
      %v3512 = vpop.f32.mrb[0].mxu0
      %3513 = vmatprep.mubr.f32.mxu0 0.0
      %3514 = vmatmul.mubr.f32.gmra.mrb[0].mxu0 %v3321
      %v3515 = vpop.f32.mrb[0].mxu0
      %v3516 = vadd.f32 0.0, %v3515
      %v3517 = vpop.f32.mrb[0].mxu0
      %3518 = vmatprep.mubr.f32.mxu0 0.0
      %3519 = vmatmul.mubr.f32.gmra.mrb[0].mxu0 %v3324
      %v3520 = vpop.f32.mrb[0].mxu0
      %v3521 = vadd.f32 0.0, %v3520
      %v3522 = vpop.f32.mrb[0].mxu0
      %3523 = vmatprep.mubr.f32.mxu0 0.0
      %3524 = vmatmul.mubr.f32.gmra.mrb[0].mxu0 %v3327
      %v3525 = vpop.f32.mrb[0].mxu0
      %v3526 = vadd.f32 0.0, %v3525
      %v3527 = vpop.f32.mrb[0].mxu0
      %3528 = vmatprep.mubr.f32.mxu0 0.0
      %3529 = vmatmul.mubr.f32.gmra.mrb[0].mxu0 %v3330
      %v3530 = vpop.f32.mrb[0].mxu0
      %v3531 = vadd.f32 0.0, %v3530
      %v3532 = vpop.f32.mrb[0].mxu0
      %3533 = vmatprep.mubr.f32.mxu0 0.0
      %3534 = vmatmul.mubr.f32.gmra.mrb[0].mxu0 %v3333
      %v3535 = vpop.f32.mrb[0].mxu0
      %v3536 = vadd.f32 0.0, %v3535
      %v3537 = vpop.f32.mrb[0].mxu0
      %3538 = vmatprep.mubr.f32.mxu0 0.0
      %3539 = vmatmul.mubr.f32.gmra.mrb[0].mxu0 %v3336
      %v3540 = vpop.f32.mrb[0].mxu0
      %v3541 = vadd.f32 0.0, %v3540
      %v3542 = vpop.f32.mrb[0].mxu0
      %3543 = vmatprep.mubr.f32.mxu0 0.0
      %3544 = vmatmul.mubr.f32.gmra.mrb[0].mxu0 %v3339
      %v3545 = vpop.f32.mrb[0].mxu0
      %v3546 = vadd.f32 0.0, %v3545
      %v3547 = vpop.f32.mrb[0].mxu0
      %3548 = vmatprep.mubr.f32.mxu0 0.0
      %3549 = vmatmul.mubr.f32.gmra.mrb[0].mxu0 %v3342
      %v3550 = vpop.f32.mrb[0].mxu0
      %v3551 = vadd.f32 0.0, %v3550
      %v3552 = vpop.f32.mrb[0].mxu0
      %3553 = vmatprep.mubr.f32.mxu0 0.0
      %3554 = vmatmul.mubr.f32.gmra.mrb[0].mxu0 %v3345
      %v3555 = vpop.f32.mrb[0].mxu0
      %v3556 = vadd.f32 0.0, %v3555
      %v3557 = vpop.f32.mrb[0].mxu0
      %3558 = vmatprep.mubr.f32.mxu0 0.0
      %3559 = vmatmul.mubr.f32.gmra.mrb[0].mxu0 %v3348
      %v3560 = vpop.f32.mrb[0].mxu0
      %v3561 = vadd.f32 0.0, %v3560
      %v3562 = vpop.f32.mrb[0].mxu0
      %3563 = vmatprep.mubr.f32.mxu0 0.0
      %3564 = vmatmul.mubr.f32.gmra.mrb[0].mxu0 %v3351
      %v3565 = vpop.f32.mrb[0].mxu0
      %v3566 = vadd.f32 0.0, %v3565
      %v3567 = vpop.f32.mrb[0].mxu0
      %3568 = vmatprep.mubr.f32.mxu0 0.0
      %3569 = vmatmul.mubr.f32.gmra.mrb[0].mxu0 %v3354
      %v3570 = vpop.f32.mrb[0].mxu0
      %v3571 = vadd.f32 0.0, %v3570
      %v3572 = vpop.f32.mrb[0].mxu0
      %3573 = vmatprep.mubr.f32.mxu0 0.0
      %3574 = vmatmul.mubr.f32.gmra.mrb[0].mxu0 %v3357
      %v3575 = vpop.f32.mrb[0].mxu0
      %v3576 = vadd.f32 0.0, %v3575
      %v3577 = vpop.f32.mrb[0].mxu0
      %3578 = vmatprep.mubr.f32.mxu0 0.0
      %3579 = vmatmul.mubr.f32.gmra.mrb[0].mxu0 %v3360
      %v3580 = vpop.f32.mrb[0].mxu0
      %v3581 = vadd.f32 0.0, %v3580
      %v3582 = vpop.f32.mrb[0].mxu0
      %3583 = vmatprep.mubr.f32.mxu0 0.0
      %3584 = vmatmul.mubr.f32.gmra.mrb[0].mxu0 %v3363
      %v3585 = vpop.f32.mrb[0].mxu0
      %v3586 = vadd.f32 0.0, %v3585
      %v3587 = vpop.f32.mrb[0].mxu0
      %3588 = vmatprep.mubr.f32.mxu0 0.0
      %3589 = vmatmul.mubr.f32.gmra.mrb[0].mxu0 %v3366
      %v3590 = vpop.f32.mrb[0].mxu0
      %v3591 = vadd.f32 0.0, %v3590
      %v3592 = vpop.f32.mrb[0].mxu0
      %3593 = vmatprep.mubr.f32.mxu0 0.0
      %3594 = vmatmul.mubr.f32.gmra.mrb[0].mxu0 %v3369
      %v3595 = vpop.f32.mrb[0].mxu0
      %v3596 = vadd.f32 0.0, %v3595
      %v3597 = vpop.f32.mrb[0].mxu0
      %3598 = vmatprep.mubr.f32.mxu0 0.0
      %3599 = vmatmul.mubr.f32.gmra.mrb[0].mxu0 %v3372
      %v3600 = vpop.f32.mrb[0].mxu0
      %v3601 = vadd.f32 0.0, %v3600
      %v3602 = vpop.f32.mrb[0].mxu0
      %3603 = vmatprep.mubr.f32.mxu0 0.0
      %3604 = vmatmul.mubr.f32.gmra.mrb[0].mxu0 %v3375
      %v3605 = vpop.f32.mrb[0].mxu0
      %v3606 = vadd.f32 0.0, %v3605
      %v3607 = vpop.f32.mrb[0].mxu0
      %3608 = vmatprep.mubr.f32.mxu0 0.0
      %3609 = vmatmul.mubr.f32.gmra.mrb[0].mxu0 %v3378
      %v3610 = vpop.f32.mrb[0].mxu0
      %v3611 = vadd.f32 0.0, %v3610
      %v3612 = vpop.f32.mrb[0].mxu0
      %3613 = vmatprep.mubr.f32.mxu0 0.0
      %3614 = vmatmul.mubr.f32.gmra.mrb[0].mxu0 %v3381
      %v3615 = vpop.f32.mrb[0].mxu0
      %v3616 = vadd.f32 0.0, %v3615
      %v3617 = vpop.f32.mrb[0].mxu0
      %3618 = vmatprep.mubr.f32.mxu0 0.0
      %3619 = vmatmul.mubr.f32.gmra.mrb[0].mxu0 %v3384
      %v3620 = vpop.f32.mrb[0].mxu0
      %v3621 = vadd.f32 0.0, %v3620
      %v3622 = vpop.f32.mrb[0].mxu0
      %3623 = vmatprep.mubr.f32.mxu0 0.0
      %3624 = vmatmul.mubr.f32.gmra.mrb[0].mxu0 %v3387
      %v3625 = vpop.f32.mrb[0].mxu0
      %v3626 = vadd.f32 0.0, %v3625
      %v3627 = vpop.f32.mrb[0].mxu0
      %3628 = vmatprep.mubr.f32.mxu0 0.0
      %3629 = vmatmul.mubr.f32.gmra.mrb[0].mxu0 %v3390
      %v3630 = vpop.f32.mrb[0].mxu0
      %v3631 = vadd.f32 0.0, %v3630
      %v3632 = vpop.f32.mrb[0].mxu0
      %3633 = vmatprep.mubr.f32.mxu0 0.0
      %3634 = vmatmul.mubr.f32.gmra.mrb[0].mxu0 %v3393
      %v3635 = vpop.f32.mrb[0].mxu0
      %v3636 = vadd.f32 0.0, %v3635
      %v3637 = vpop.f32.mrb[0].mxu0
      %3638 = vmatprep.mubr.f32.mxu0 0.0
      %3639 = vmatmul.mubr.f32.gmra.mrb[0].mxu0 %v3396
      %v3640 = vpop.f32.mrb[0].mxu0
      %v3641 = vadd.f32 0.0, %v3640
      %v3642 = vpop.f32.mrb[0].mxu0
      %3643 = vmatprep.mubr.f32.mxu0 0.0
      %3644 = vmatmul.mubr.f32.gmra.mrb[0].mxu0 %v3399
      %v3645 = vpop.f32.mrb[0].mxu0
      %v3646 = vadd.f32 0.0, %v3645
      %v3647 = vpop.f32.mrb[0].mxu0
      %3648 = vdwg.mxu0
      %v3649 = vadd.f32 %v3077, %v3471
      %v3650 = vadd.f32 %v3082, %v3476
      %v3651 = vadd.f32 %v3087, %v3481
      %v3652 = vadd.f32 %v3092, %v3486
      %v3653 = vadd.f32 %v3097, %v3491
      %v3654 = vadd.f32 %v3102, %v3496
      %v3655 = vadd.f32 %v3107, %v3501
      %v3656 = vadd.f32 %v3112, %v3506
      %v3657 = vadd.f32 %v3117, %v3511
      %v3658 = vadd.f32 %v3122, %v3516
      %v3659 = vadd.f32 %v3127, %v3521
      %v3660 = vadd.f32 %v3132, %v3526
      %v3661 = vadd.f32 %v3137, %v3531
      %v3662 = vadd.f32 %v3142, %v3536
      %v3663 = vadd.f32 %v3147, %v3541
      %v3664 = vadd.f32 %v3152, %v3546
      %v3665 = vadd.f32 %v3157, %v3551
      %v3666 = vadd.f32 %v3162, %v3556
      %v3667 = vadd.f32 %v3167, %v3561
      %v3668 = vadd.f32 %v3172, %v3566
      %v3669 = vadd.f32 %v3177, %v3571
      %v3670 = vadd.f32 %v3182, %v3576
      %v3671 = vadd.f32 %v3187, %v3581
      %v3672 = vadd.f32 %v3192, %v3586
      %v3673 = vadd.f32 %v3197, %v3591
      %v3674 = vadd.f32 %v3202, %v3596
      %v3675 = vadd.f32 %v3207, %v3601
      %v3676 = vadd.f32 %v3212, %v3606
      %v3677 = vadd.f32 %v3217, %v3611
      %v3678 = vadd.f32 %v3222, %v3616
      %v3679 = vadd.f32 %v3227, %v3621
      %v3680 = vadd.f32 %v3232, %v3626
      %v3681 = vadd.f32 %v3237, %v3631
      %v3682 = vadd.f32 %v3242, %v3636
      %v3683 = vadd.f32 %v3247, %v3641
      %v3684 = vadd.f32 %v3252, %v3646
      %v3685 = vld [vmem:[#allocation2 + $0x12] sm:$0xff]
      %v3686 = vld [vmem:[#allocation2 + $0x1a] sm:$0xff]
      %v3687 = vld [vmem:[#allocation2 + $0x22] sm:$0xff]
      %v3688 = vld [vmem:[#allocation2 + $0x2a] sm:$0xff]
      %v3689 = vld [vmem:[#allocation2 + $0x32] sm:$0xff]
      %v3690 = vld [vmem:[#allocation2 + $0x3a] sm:$0xff]
      %v3691 = vld [vmem:[#allocation2 + $0x42] sm:$0xff]
      %v3692 = vld [vmem:[#allocation2 + $0x4a] sm:$0xff]
      %v3693 = vld [vmem:[#allocation2 + $0x52] sm:$0xff]
      %v3694 = vld [vmem:[#allocation2 + $0x5a] sm:$0xff]
      %v3695 = vld [vmem:[#allocation2 + $0x62] sm:$0xff]
      %v3696 = vld [vmem:[#allocation2 + $0x6a] sm:$0xff]
      %v3697 = vld [vmem:[#allocation2 + $0x72] sm:$0xff]
      %v3698 = vld [vmem:[#allocation2 + $0x7a] sm:$0xff]
      %v3699 = vld [vmem:[#allocation2 + $0x82] sm:$0xff]
      %v3700 = vld [vmem:[#allocation2 + $0x8a] sm:$0xff]
      %v3701 = vld [vmem:[#allocation2 + $0x92] sm:$0xff]
      %v3702 = vld [vmem:[#allocation2 + $0x9a] sm:$0xff]
      %v3703 = vld [vmem:[#allocation2 + $0xa2] sm:$0xff]
      %v3704 = vld [vmem:[#allocation2 + $0xaa] sm:$0xff]
      %v3705 = vld [vmem:[#allocation2 + $0xb2] sm:$0xff]
      %v3706 = vld [vmem:[#allocation2 + $0xba] sm:$0xff]
      %v3707 = vld [vmem:[#allocation2 + $0xc2] sm:$0xff]
      %v3708 = vld [vmem:[#allocation2 + $0xca] sm:$0xff]
      %v3709 = vld [vmem:[#allocation2 + $0xd2] sm:$0xff]
      %v3710 = vld [vmem:[#allocation2 + $0xda] sm:$0xff]
      %v3711 = vld [vmem:[#allocation2 + $0xe2] sm:$0xff]
      %v3712 = vld [vmem:[#allocation2 + $0xea] sm:$0xff]
      %v3713 = vld [vmem:[#allocation2 + $0xf2] sm:$0xff]
      %v3714 = vld [vmem:[#allocation2 + $0xfa] sm:$0xff]
      %v3715 = vld [vmem:[#allocation2 + $0x102] sm:$0xff]
      %v3716 = vld [vmem:[#allocation2 + $0x10a] sm:$0xff]
      %v3717 = vld [vmem:[#allocation2 + $0x112] sm:$0xff]
      %v3718 = vld [vmem:[#allocation2 + $0x11a] sm:$0xff]
      %v3719 = vld [vmem:[#allocation2 + $0x122] sm:$0xff]
      %v3720 = vld [vmem:[#allocation2 + $0x12a] sm:$0xff]
      %s3721 = scalar_lea.vmem %s3, 12
      %v3722 = vld [vmem:[%s3721] sm:$0xf]
      %v3724 = vsel %vm2193, %v3685, 0
      %v3727 = vsel %vm2193, %v3686, 0
      %v3730 = vsel %vm2193, %v3687, 0
      %v3733 = vsel %vm2193, %v3688, 0
      %v3736 = vsel %vm2193, %v3689, 0
      %v3739 = vsel %vm2193, %v3690, 0
      %v3742 = vsel %vm2193, %v3691, 0
      %v3745 = vsel %vm2193, %v3692, 0
      %v3748 = vsel %vm2193, %v3693, 0
      %v3751 = vsel %vm2193, %v3694, 0
      %v3754 = vsel %vm2193, %v3695, 0
      %v3757 = vsel %vm2193, %v3696, 0
      %v3760 = vsel %vm2193, %v3697, 0
      %v3763 = vsel %vm2193, %v3698, 0
      %v3766 = vsel %vm2193, %v3699, 0
      %v3769 = vsel %vm2193, %v3700, 0
      %v3772 = vsel %vm2193, %v3701, 0
      %v3775 = vsel %vm2193, %v3702, 0
      %v3778 = vsel %vm2193, %v3703, 0
      %v3781 = vsel %vm2193, %v3704, 0
      %v3784 = vsel %vm2193, %v3705, 0
      %v3787 = vsel %vm2193, %v3706, 0
      %v3790 = vsel %vm2193, %v3707, 0
      %v3793 = vsel %vm2193, %v3708, 0
      %v3796 = vsel %vm2193, %v3709, 0
      %v3799 = vsel %vm2193, %v3710, 0
      %v3802 = vsel %vm2193, %v3711, 0
      %v3805 = vsel %vm2193, %v3712, 0
      %v3808 = vsel %vm2193, %v3713, 0
      %v3811 = vsel %vm2193, %v3714, 0
      %v3814 = vsel %vm2193, %v3715, 0
      %v3817 = vsel %vm2193, %v3716, 0
      %v3820 = vsel %vm2193, %v3717, 0
      %v3823 = vsel %vm2193, %v3718, 0
      %v3826 = vsel %vm2193, %v3719, 0
      %v3829 = vsel %vm2193, %v3720, 0
      %v3832 = vsel %vm2650, %v3722, 0
      %3834 = vmatprep.subr.mxu0 0.0
      %3835 = vmatpush1.msra.mxu0 %v3832
      %3836 = vmatprep.subr.mxu0 0.0
      %3837 = vmatpush1.msra.mxu0 0.0
      %3838 = vmatprep.subr.mxu0 0.0
      %3839 = vmatpush1.msra.mxu0 0.0
      %3840 = vmatprep.subr.mxu0 0.0
      %3841 = vmatpush1.msra.mxu0 0.0
      %3842 = vmatprep.subr.mxu0 0.0
      %3843 = vmatpush1.msra.mxu0 0.0
      %3844 = vmatprep.subr.mxu0 0.0
      %3845 = vmatpush1.msra.mxu0 0.0
      %3846 = vmatprep.subr.mxu0 0.0
      %3847 = vmatpush1.msra.mxu0 0.0
      %3848 = vmatprep.subr.mxu0 0.0
      %3849 = vmatpush1.msra.mxu0 0.0
      %3850 = vmatprep.subr.mxu0 0.0
      %3851 = vmatpush1.msra.mxu0 0.0
      %3852 = vmatprep.subr.mxu0 0.0
      %3853 = vmatpush1.msra.mxu0 0.0
      %3854 = vmatprep.subr.mxu0 0.0
      %3855 = vmatpush1.msra.mxu0 0.0
      %3856 = vmatprep.subr.mxu0 0.0
      %3857 = vmatpush1.msra.mxu0 0.0
      %3858 = vmatprep.subr.mxu0 0.0
      %3859 = vmatpush1.msra.mxu0 0.0
      %3860 = vmatprep.subr.mxu0 0.0
      %3861 = vmatpush1.msra.mxu0 0.0
      %3862 = vmatprep.subr.mxu0 0.0
      %3863 = vmatpush1.msra.mxu0 0.0
      %3864 = vmatprep.subr.mxu0 0.0
      %3865 = vmatpush1.msra.mxu0 0.0
      %3866 = vmatprep.subr.mxu0 0.0
      %3867 = vmatpush1.msra.mxu0 0.0
      %3868 = vmatprep.subr.mxu0 0.0
      %3869 = vmatpush1.msra.mxu0 0.0
      %3870 = vmatprep.subr.mxu0 0.0
      %3871 = vmatpush1.msra.mxu0 0.0
      %3872 = vmatprep.subr.mxu0 0.0
      %3873 = vmatpush1.msra.mxu0 0.0
      %3874 = vmatprep.subr.mxu0 0.0
      %3875 = vmatpush1.msra.mxu0 0.0
      %3876 = vmatprep.subr.mxu0 0.0
      %3877 = vmatpush1.msra.mxu0 0.0
      %3878 = vmatprep.subr.mxu0 0.0
      %3879 = vmatpush1.msra.mxu0 0.0
      %3880 = vmatprep.subr.mxu0 0.0
      %3881 = vmatpush1.msra.mxu0 0.0
      %3882 = vmatprep.subr.mxu0 0.0
      %3883 = vmatpush1.msra.mxu0 0.0
      %3884 = vmatprep.subr.mxu0 0.0
      %3885 = vmatpush1.msra.mxu0 0.0
      %3886 = vmatprep.subr.mxu0 0.0
      %3887 = vmatpush1.msra.mxu0 0.0
      %3888 = vmatprep.subr.mxu0 0.0
      %3889 = vmatpush1.msra.mxu0 0.0
      %3890 = vmatprep.subr.mxu0 0.0
      %3891 = vmatpush1.msra.mxu0 0.0
      %3892 = vmatprep.subr.mxu0 0.0
      %3893 = vmatpush1.msra.mxu0 0.0
      %3894 = vmatprep.subr.mxu0 0.0
      %3895 = vmatpush1.msra.mxu0 0.0
      %3896 = vmatprep.subr.mxu0 0.0
      %3897 = vmatpush1.msra.mxu0 0.0
      %3898 = vmatprep.mubr.f32.mxu0 0.0
      %3899 = vmatmul.mubr.f32.gmra.mrb[0].mxu0 %v3724
      %v3900 = vpop.f32.mrb[0].mxu0
      %v3901 = vadd.f32 0.0, %v3900
      %v3902 = vpop.f32.mrb[0].mxu0
      %3903 = vmatprep.mubr.f32.mxu0 0.0
      %3904 = vmatmul.mubr.f32.gmra.mrb[0].mxu0 %v3727
      %v3905 = vpop.f32.mrb[0].mxu0
      %v3906 = vadd.f32 0.0, %v3905
      %v3907 = vpop.f32.mrb[0].mxu0
      %3908 = vmatprep.mubr.f32.mxu0 0.0
      %3909 = vmatmul.mubr.f32.gmra.mrb[0].mxu0 %v3730
      %v3910 = vpop.f32.mrb[0].mxu0
      %v3911 = vadd.f32 0.0, %v3910
      %v3912 = vpop.f32.mrb[0].mxu0
      %3913 = vmatprep.mubr.f32.mxu0 0.0
      %3914 = vmatmul.mubr.f32.gmra.mrb[0].mxu0 %v3733
      %v3915 = vpop.f32.mrb[0].mxu0
      %v3916 = vadd.f32 0.0, %v3915
      %v3917 = vpop.f32.mrb[0].mxu0
      %3918 = vmatprep.mubr.f32.mxu0 0.0
      %3919 = vmatmul.mubr.f32.gmra.mrb[0].mxu0 %v3736
      %v3920 = vpop.f32.mrb[0].mxu0
      %v3921 = vadd.f32 0.0, %v3920
      %v3922 = vpop.f32.mrb[0].mxu0
      %3923 = vmatprep.mubr.f32.mxu0 0.0
      %3924 = vmatmul.mubr.f32.gmra.mrb[0].mxu0 %v3739
      %v3925 = vpop.f32.mrb[0].mxu0
      %v3926 = vadd.f32 0.0, %v3925
      %v3927 = vpop.f32.mrb[0].mxu0
      %3928 = vmatprep.mubr.f32.mxu0 0.0
      %3929 = vmatmul.mubr.f32.gmra.mrb[0].mxu0 %v3742
      %v3930 = vpop.f32.mrb[0].mxu0
      %v3931 = vadd.f32 0.0, %v3930
      %v3932 = vpop.f32.mrb[0].mxu0
      %3933 = vmatprep.mubr.f32.mxu0 0.0
      %3934 = vmatmul.mubr.f32.gmra.mrb[0].mxu0 %v3745
      %v3935 = vpop.f32.mrb[0].mxu0
      %v3936 = vadd.f32 0.0, %v3935
      %v3937 = vpop.f32.mrb[0].mxu0
      %3938 = vmatprep.mubr.f32.mxu0 0.0
      %3939 = vmatmul.mubr.f32.gmra.mrb[0].mxu0 %v3748
      %v3940 = vpop.f32.mrb[0].mxu0
      %v3941 = vadd.f32 0.0, %v3940
      %v3942 = vpop.f32.mrb[0].mxu0
      %3943 = vmatprep.mubr.f32.mxu0 0.0
      %3944 = vmatmul.mubr.f32.gmra.mrb[0].mxu0 %v3751
      %v3945 = vpop.f32.mrb[0].mxu0
      %v3946 = vadd.f32 0.0, %v3945
      %v3947 = vpop.f32.mrb[0].mxu0
      %3948 = vmatprep.mubr.f32.mxu0 0.0
      %3949 = vmatmul.mubr.f32.gmra.mrb[0].mxu0 %v3754
      %v3950 = vpop.f32.mrb[0].mxu0
      %v3951 = vadd.f32 0.0, %v3950
      %v3952 = vpop.f32.mrb[0].mxu0
      %3953 = vmatprep.mubr.f32.mxu0 0.0
      %3954 = vmatmul.mubr.f32.gmra.mrb[0].mxu0 %v3757
      %v3955 = vpop.f32.mrb[0].mxu0
      %v3956 = vadd.f32 0.0, %v3955
      %v3957 = vpop.f32.mrb[0].mxu0
      %3958 = vmatprep.mubr.f32.mxu0 0.0
      %3959 = vmatmul.mubr.f32.gmra.mrb[0].mxu0 %v3760
      %v3960 = vpop.f32.mrb[0].mxu0
      %v3961 = vadd.f32 0.0, %v3960
      %v3962 = vpop.f32.mrb[0].mxu0
      %3963 = vmatprep.mubr.f32.mxu0 0.0
      %3964 = vmatmul.mubr.f32.gmra.mrb[0].mxu0 %v3763
      %v3965 = vpop.f32.mrb[0].mxu0
      %v3966 = vadd.f32 0.0, %v3965
      %v3967 = vpop.f32.mrb[0].mxu0
      %3968 = vmatprep.mubr.f32.mxu0 0.0
      %3969 = vmatmul.mubr.f32.gmra.mrb[0].mxu0 %v3766
      %v3970 = vpop.f32.mrb[0].mxu0
      %v3971 = vadd.f32 0.0, %v3970
      %v3972 = vpop.f32.mrb[0].mxu0
      %3973 = vmatprep.mubr.f32.mxu0 0.0
      %3974 = vmatmul.mubr.f32.gmra.mrb[0].mxu0 %v3769
      %v3975 = vpop.f32.mrb[0].mxu0
      %v3976 = vadd.f32 0.0, %v3975
      %v3977 = vpop.f32.mrb[0].mxu0
      %3978 = vmatprep.mubr.f32.mxu0 0.0
      %3979 = vmatmul.mubr.f32.gmra.mrb[0].mxu0 %v3772
      %v3980 = vpop.f32.mrb[0].mxu0
      %v3981 = vadd.f32 0.0, %v3980
      %v3982 = vpop.f32.mrb[0].mxu0
      %3983 = vmatprep.mubr.f32.mxu0 0.0
      %3984 = vmatmul.mubr.f32.gmra.mrb[0].mxu0 %v3775
      %v3985 = vpop.f32.mrb[0].mxu0
      %v3986 = vadd.f32 0.0, %v3985
      %v3987 = vpop.f32.mrb[0].mxu0
      %3988 = vmatprep.mubr.f32.mxu0 0.0
      %3989 = vmatmul.mubr.f32.gmra.mrb[0].mxu0 %v3778
      %v3990 = vpop.f32.mrb[0].mxu0
      %v3991 = vadd.f32 0.0, %v3990
      %v3992 = vpop.f32.mrb[0].mxu0
      %3993 = vmatprep.mubr.f32.mxu0 0.0
      %3994 = vmatmul.mubr.f32.gmra.mrb[0].mxu0 %v3781
      %v3995 = vpop.f32.mrb[0].mxu0
      %v3996 = vadd.f32 0.0, %v3995
      %v3997 = vpop.f32.mrb[0].mxu0
      %3998 = vmatprep.mubr.f32.mxu0 0.0
      %3999 = vmatmul.mubr.f32.gmra.mrb[0].mxu0 %v3784
      %v4000 = vpop.f32.mrb[0].mxu0
      %v4001 = vadd.f32 0.0, %v4000
      %v4002 = vpop.f32.mrb[0].mxu0
      %4003 = vmatprep.mubr.f32.mxu0 0.0
      %4004 = vmatmul.mubr.f32.gmra.mrb[0].mxu0 %v3787
      %v4005 = vpop.f32.mrb[0].mxu0
      %v4006 = vadd.f32 0.0, %v4005
      %v4007 = vpop.f32.mrb[0].mxu0
      %4008 = vmatprep.mubr.f32.mxu0 0.0
      %4009 = vmatmul.mubr.f32.gmra.mrb[0].mxu0 %v3790
      %v4010 = vpop.f32.mrb[0].mxu0
      %v4011 = vadd.f32 0.0, %v4010
      %v4012 = vpop.f32.mrb[0].mxu0
      %4013 = vmatprep.mubr.f32.mxu0 0.0
      %4014 = vmatmul.mubr.f32.gmra.mrb[0].mxu0 %v3793
      %v4015 = vpop.f32.mrb[0].mxu0
      %v4016 = vadd.f32 0.0, %v4015
      %v4017 = vpop.f32.mrb[0].mxu0
      %4018 = vmatprep.mubr.f32.mxu0 0.0
      %4019 = vmatmul.mubr.f32.gmra.mrb[0].mxu0 %v3796
      %v4020 = vpop.f32.mrb[0].mxu0
      %v4021 = vadd.f32 0.0, %v4020
      %v4022 = vpop.f32.mrb[0].mxu0
      %4023 = vmatprep.mubr.f32.mxu0 0.0
      %4024 = vmatmul.mubr.f32.gmra.mrb[0].mxu0 %v3799
      %v4025 = vpop.f32.mrb[0].mxu0
      %v4026 = vadd.f32 0.0, %v4025
      %v4027 = vpop.f32.mrb[0].mxu0
      %4028 = vmatprep.mubr.f32.mxu0 0.0
      %4029 = vmatmul.mubr.f32.gmra.mrb[0].mxu0 %v3802
      %v4030 = vpop.f32.mrb[0].mxu0
      %v4031 = vadd.f32 0.0, %v4030
      %v4032 = vpop.f32.mrb[0].mxu0
      %4033 = vmatprep.mubr.f32.mxu0 0.0
      %4034 = vmatmul.mubr.f32.gmra.mrb[0].mxu0 %v3805
      %v4035 = vpop.f32.mrb[0].mxu0
      %v4036 = vadd.f32 0.0, %v4035
      %v4037 = vpop.f32.mrb[0].mxu0
      %4038 = vmatprep.mubr.f32.mxu0 0.0
      %4039 = vmatmul.mubr.f32.gmra.mrb[0].mxu0 %v3808
      %v4040 = vpop.f32.mrb[0].mxu0
      %v4041 = vadd.f32 0.0, %v4040
      %v4042 = vpop.f32.mrb[0].mxu0
      %4043 = vmatprep.mubr.f32.mxu0 0.0
      %4044 = vmatmul.mubr.f32.gmra.mrb[0].mxu0 %v3811
      %v4045 = vpop.f32.mrb[0].mxu0
      %v4046 = vadd.f32 0.0, %v4045
      %v4047 = vpop.f32.mrb[0].mxu0
      %4048 = vmatprep.mubr.f32.mxu0 0.0
      %4049 = vmatmul.mubr.f32.gmra.mrb[0].mxu0 %v3814
      %v4050 = vpop.f32.mrb[0].mxu0
      %v4051 = vadd.f32 0.0, %v4050
      %v4052 = vpop.f32.mrb[0].mxu0
      %4053 = vmatprep.mubr.f32.mxu0 0.0
      %4054 = vmatmul.mubr.f32.gmra.mrb[0].mxu0 %v3817
      %v4055 = vpop.f32.mrb[0].mxu0
      %v4056 = vadd.f32 0.0, %v4055
      %v4057 = vpop.f32.mrb[0].mxu0
      %4058 = vmatprep.mubr.f32.mxu0 0.0
      %4059 = vmatmul.mubr.f32.gmra.mrb[0].mxu0 %v3820
      %v4060 = vpop.f32.mrb[0].mxu0
      %v4061 = vadd.f32 0.0, %v4060
      %v4062 = vpop.f32.mrb[0].mxu0
      %4063 = vmatprep.mubr.f32.mxu0 0.0
      %4064 = vmatmul.mubr.f32.gmra.mrb[0].mxu0 %v3823
      %v4065 = vpop.f32.mrb[0].mxu0
      %v4066 = vadd.f32 0.0, %v4065
      %v4067 = vpop.f32.mrb[0].mxu0
      %4068 = vmatprep.mubr.f32.mxu0 0.0
      %4069 = vmatmul.mubr.f32.gmra.mrb[0].mxu0 %v3826
      %v4070 = vpop.f32.mrb[0].mxu0
      %v4071 = vadd.f32 0.0, %v4070
      %v4072 = vpop.f32.mrb[0].mxu0
      %4073 = vmatprep.mubr.f32.mxu0 0.0
      %4074 = vmatmul.mubr.f32.gmra.mrb[0].mxu0 %v3829
      %v4075 = vpop.f32.mrb[0].mxu0
      %v4076 = vadd.f32 0.0, %v4075
      %v4077 = vpop.f32.mrb[0].mxu0
      %4078 = vdwg.mxu0
      %v4079 = vadd.f32 %v3649, %v3901
      %v4080 = vadd.f32 %v3650, %v3906
      %v4081 = vadd.f32 %v3651, %v3911
      %v4082 = vadd.f32 %v3652, %v3916
      %v4083 = vadd.f32 %v3653, %v3921
      %v4084 = vadd.f32 %v3654, %v3926
      %v4085 = vadd.f32 %v3655, %v3931
      %v4086 = vadd.f32 %v3656, %v3936
      %v4087 = vadd.f32 %v3657, %v3941
      %v4088 = vadd.f32 %v3658, %v3946
      %v4089 = vadd.f32 %v3659, %v3951
      %v4090 = vadd.f32 %v3660, %v3956
      %v4091 = vadd.f32 %v3661, %v3961
      %v4092 = vadd.f32 %v3662, %v3966
      %v4093 = vadd.f32 %v3663, %v3971
      %v4094 = vadd.f32 %v3664, %v3976
      %v4095 = vadd.f32 %v3665, %v3981
      %v4096 = vadd.f32 %v3666, %v3986
      %v4097 = vadd.f32 %v3667, %v3991
      %v4098 = vadd.f32 %v3668, %v3996
      %v4099 = vadd.f32 %v3669, %v4001
      %v4100 = vadd.f32 %v3670, %v4006
      %v4101 = vadd.f32 %v3671, %v4011
      %v4102 = vadd.f32 %v3672, %v4016
      %v4103 = vadd.f32 %v3673, %v4021
      %v4104 = vadd.f32 %v3674, %v4026
      %v4105 = vadd.f32 %v3675, %v4031
      %v4106 = vadd.f32 %v3676, %v4036
      %v4107 = vadd.f32 %v3677, %v4041
      %v4108 = vadd.f32 %v3678, %v4046
      %v4109 = vadd.f32 %v3679, %v4051
      %v4110 = vadd.f32 %v3680, %v4056
      %v4111 = vadd.f32 %v3681, %v4061
      %v4112 = vadd.f32 %v3682, %v4066
      %v4113 = vadd.f32 %v3683, %v4071
      %v4114 = vadd.f32 %v3684, %v4076
      %v4115 = vld [vmem:[#allocation2 + $0x13] sm:$0xff]
      %v4116 = vld [vmem:[#allocation2 + $0x1b] sm:$0xff]
      %v4117 = vld [vmem:[#allocation2 + $0x23] sm:$0xff]
      %v4118 = vld [vmem:[#allocation2 + $0x2b] sm:$0xff]
      %v4119 = vld [vmem:[#allocation2 + $0x33] sm:$0xff]
      %v4120 = vld [vmem:[#allocation2 + $0x3b] sm:$0xff]
      %v4121 = vld [vmem:[#allocation2 + $0x43] sm:$0xff]
      %v4122 = vld [vmem:[#allocation2 + $0x4b] sm:$0xff]
      %v4123 = vld [vmem:[#allocation2 + $0x53] sm:$0xff]
      %v4124 = vld [vmem:[#allocation2 + $0x5b] sm:$0xff]
      %v4125 = vld [vmem:[#allocation2 + $0x63] sm:$0xff]
      %v4126 = vld [vmem:[#allocation2 + $0x6b] sm:$0xff]
      %v4127 = vld [vmem:[#allocation2 + $0x73] sm:$0xff]
      %v4128 = vld [vmem:[#allocation2 + $0x7b] sm:$0xff]
      %v4129 = vld [vmem:[#allocation2 + $0x83] sm:$0xff]
      %v4130 = vld [vmem:[#allocation2 + $0x8b] sm:$0xff]
      %v4131 = vld [vmem:[#allocation2 + $0x93] sm:$0xff]
      %v4132 = vld [vmem:[#allocation2 + $0x9b] sm:$0xff]
      %v4133 = vld [vmem:[#allocation2 + $0xa3] sm:$0xff]
      %v4134 = vld [vmem:[#allocation2 + $0xab] sm:$0xff]
      %v4135 = vld [vmem:[#allocation2 + $0xb3] sm:$0xff]
      %v4136 = vld [vmem:[#allocation2 + $0xbb] sm:$0xff]
      %v4137 = vld [vmem:[#allocation2 + $0xc3] sm:$0xff]
      %v4138 = vld [vmem:[#allocation2 + $0xcb] sm:$0xff]
      %v4139 = vld [vmem:[#allocation2 + $0xd3] sm:$0xff]
      %v4140 = vld [vmem:[#allocation2 + $0xdb] sm:$0xff]
      %v4141 = vld [vmem:[#allocation2 + $0xe3] sm:$0xff]
      %v4142 = vld [vmem:[#allocation2 + $0xeb] sm:$0xff]
      %v4143 = vld [vmem:[#allocation2 + $0xf3] sm:$0xff]
      %v4144 = vld [vmem:[#allocation2 + $0xfb] sm:$0xff]
      %v4145 = vld [vmem:[#allocation2 + $0x103] sm:$0xff]
      %v4146 = vld [vmem:[#allocation2 + $0x10b] sm:$0xff]
      %v4147 = vld [vmem:[#allocation2 + $0x113] sm:$0xff]
      %v4148 = vld [vmem:[#allocation2 + $0x11b] sm:$0xff]
      %v4149 = vld [vmem:[#allocation2 + $0x123] sm:$0xff]
      %v4150 = vld [vmem:[#allocation2 + $0x12b] sm:$0xff]
      %s4151 = scalar_lea.vmem %s3, 16
      %v4152 = vld [vmem:[%s4151] sm:$0xf]
      %v4154 = vsel %vm2193, %v4115, 0
      %v4157 = vsel %vm2193, %v4116, 0
      %v4160 = vsel %vm2193, %v4117, 0
      %v4163 = vsel %vm2193, %v4118, 0
      %v4166 = vsel %vm2193, %v4119, 0
      %v4169 = vsel %vm2193, %v4120, 0
      %v4172 = vsel %vm2193, %v4121, 0
      %v4175 = vsel %vm2193, %v4122, 0
      %v4178 = vsel %vm2193, %v4123, 0
      %v4181 = vsel %vm2193, %v4124, 0
      %v4184 = vsel %vm2193, %v4125, 0
      %v4187 = vsel %vm2193, %v4126, 0
      %v4190 = vsel %vm2193, %v4127, 0
      %v4193 = vsel %vm2193, %v4128, 0
      %v4196 = vsel %vm2193, %v4129, 0
      %v4199 = vsel %vm2193, %v4130, 0
      %v4202 = vsel %vm2193, %v4131, 0
      %v4205 = vsel %vm2193, %v4132, 0
      %v4208 = vsel %vm2193, %v4133, 0
      %v4211 = vsel %vm2193, %v4134, 0
      %v4214 = vsel %vm2193, %v4135, 0
      %v4217 = vsel %vm2193, %v4136, 0
      %v4220 = vsel %vm2193, %v4137, 0
      %v4223 = vsel %vm2193, %v4138, 0
      %v4226 = vsel %vm2193, %v4139, 0
      %v4229 = vsel %vm2193, %v4140, 0
      %v4232 = vsel %vm2193, %v4141, 0
      %v4235 = vsel %vm2193, %v4142, 0
      %v4238 = vsel %vm2193, %v4143, 0
      %v4241 = vsel %vm2193, %v4144, 0
      %v4244 = vsel %vm2193, %v4145, 0
      %v4247 = vsel %vm2193, %v4146, 0
      %v4250 = vsel %vm2193, %v4147, 0
      %v4253 = vsel %vm2193, %v4148, 0
      %v4256 = vsel %vm2193, %v4149, 0
      %v4259 = vsel %vm2193, %v4150, 0
      %v4262 = vsel %vm2650, %v4152, 0
      %4264 = vmatprep.subr.mxu0 0.0
      %4265 = vmatpush1.msra.mxu0 %v4262
      %4266 = vmatprep.subr.mxu0 0.0
      %4267 = vmatpush1.msra.mxu0 0.0
      %4268 = vmatprep.subr.mxu0 0.0
      %4269 = vmatpush1.msra.mxu0 0.0
      %4270 = vmatprep.subr.mxu0 0.0
      %4271 = vmatpush1.msra.mxu0 0.0
      %4272 = vmatprep.subr.mxu0 0.0
      %4273 = vmatpush1.msra.mxu0 0.0
      %4274 = vmatprep.subr.mxu0 0.0
      %4275 = vmatpush1.msra.mxu0 0.0
      %4276 = vmatprep.subr.mxu0 0.0
      %4277 = vmatpush1.msra.mxu0 0.0
      %4278 = vmatprep.subr.mxu0 0.0
      %4279 = vmatpush1.msra.mxu0 0.0
      %4280 = vmatprep.subr.mxu0 0.0
      %4281 = vmatpush1.msra.mxu0 0.0
      %4282 = vmatprep.subr.mxu0 0.0
      %4283 = vmatpush1.msra.mxu0 0.0
      %4284 = vmatprep.subr.mxu0 0.0
      %4285 = vmatpush1.msra.mxu0 0.0
      %4286 = vmatprep.subr.mxu0 0.0
      %4287 = vmatpush1.msra.mxu0 0.0
      %4288 = vmatprep.subr.mxu0 0.0
      %4289 = vmatpush1.msra.mxu0 0.0
      %4290 = vmatprep.subr.mxu0 0.0
      %4291 = vmatpush1.msra.mxu0 0.0
      %4292 = vmatprep.subr.mxu0 0.0
      %4293 = vmatpush1.msra.mxu0 0.0
      %4294 = vmatprep.subr.mxu0 0.0
      %4295 = vmatpush1.msra.mxu0 0.0
      %4296 = vmatprep.subr.mxu0 0.0
      %4297 = vmatpush1.msra.mxu0 0.0
      %4298 = vmatprep.subr.mxu0 0.0
      %4299 = vmatpush1.msra.mxu0 0.0
      %4300 = vmatprep.subr.mxu0 0.0
      %4301 = vmatpush1.msra.mxu0 0.0
      %4302 = vmatprep.subr.mxu0 0.0
      %4303 = vmatpush1.msra.mxu0 0.0
      %4304 = vmatprep.subr.mxu0 0.0
      %4305 = vmatpush1.msra.mxu0 0.0
      %4306 = vmatprep.subr.mxu0 0.0
      %4307 = vmatpush1.msra.mxu0 0.0
      %4308 = vmatprep.subr.mxu0 0.0
      %4309 = vmatpush1.msra.mxu0 0.0
      %4310 = vmatprep.subr.mxu0 0.0
      %4311 = vmatpush1.msra.mxu0 0.0
      %4312 = vmatprep.subr.mxu0 0.0
      %4313 = vmatpush1.msra.mxu0 0.0
      %4314 = vmatprep.subr.mxu0 0.0
      %4315 = vmatpush1.msra.mxu0 0.0
      %4316 = vmatprep.subr.mxu0 0.0
      %4317 = vmatpush1.msra.mxu0 0.0
      %4318 = vmatprep.subr.mxu0 0.0
      %4319 = vmatpush1.msra.mxu0 0.0
      %4320 = vmatprep.subr.mxu0 0.0
      %4321 = vmatpush1.msra.mxu0 0.0
      %4322 = vmatprep.subr.mxu0 0.0
      %4323 = vmatpush1.msra.mxu0 0.0
      %4324 = vmatprep.subr.mxu0 0.0
      %4325 = vmatpush1.msra.mxu0 0.0
      %4326 = vmatprep.subr.mxu0 0.0
      %4327 = vmatpush1.msra.mxu0 0.0
      %4328 = vmatprep.mubr.f32.mxu0 0.0
      %4329 = vmatmul.mubr.f32.gmra.mrb[0].mxu0 %v4154
      %v4330 = vpop.f32.mrb[0].mxu0
      %v4331 = vadd.f32 0.0, %v4330
      %v4332 = vpop.f32.mrb[0].mxu0
      %4333 = vmatprep.mubr.f32.mxu0 0.0
      %4334 = vmatmul.mubr.f32.gmra.mrb[0].mxu0 %v4157
      %v4335 = vpop.f32.mrb[0].mxu0
      %v4336 = vadd.f32 0.0, %v4335
      %v4337 = vpop.f32.mrb[0].mxu0
      %4338 = vmatprep.mubr.f32.mxu0 0.0
      %4339 = vmatmul.mubr.f32.gmra.mrb[0].mxu0 %v4160
      %v4340 = vpop.f32.mrb[0].mxu0
      %v4341 = vadd.f32 0.0, %v4340
      %v4342 = vpop.f32.mrb[0].mxu0
      %4343 = vmatprep.mubr.f32.mxu0 0.0
      %4344 = vmatmul.mubr.f32.gmra.mrb[0].mxu0 %v4163
      %v4345 = vpop.f32.mrb[0].mxu0
      %v4346 = vadd.f32 0.0, %v4345
      %v4347 = vpop.f32.mrb[0].mxu0
      %4348 = vmatprep.mubr.f32.mxu0 0.0
      %4349 = vmatmul.mubr.f32.gmra.mrb[0].mxu0 %v4166
      %v4350 = vpop.f32.mrb[0].mxu0
      %v4351 = vadd.f32 0.0, %v4350
      %v4352 = vpop.f32.mrb[0].mxu0
      %4353 = vmatprep.mubr.f32.mxu0 0.0
      %4354 = vmatmul.mubr.f32.gmra.mrb[0].mxu0 %v4169
      %v4355 = vpop.f32.mrb[0].mxu0
      %v4356 = vadd.f32 0.0, %v4355
      %v4357 = vpop.f32.mrb[0].mxu0
      %4358 = vmatprep.mubr.f32.mxu0 0.0
      %4359 = vmatmul.mubr.f32.gmra.mrb[0].mxu0 %v4172
      %v4360 = vpop.f32.mrb[0].mxu0
      %v4361 = vadd.f32 0.0, %v4360
      %v4362 = vpop.f32.mrb[0].mxu0
      %4363 = vmatprep.mubr.f32.mxu0 0.0
      %4364 = vmatmul.mubr.f32.gmra.mrb[0].mxu0 %v4175
      %v4365 = vpop.f32.mrb[0].mxu0
      %v4366 = vadd.f32 0.0, %v4365
      %v4367 = vpop.f32.mrb[0].mxu0
      %4368 = vmatprep.mubr.f32.mxu0 0.0
      %4369 = vmatmul.mubr.f32.gmra.mrb[0].mxu0 %v4178
      %v4370 = vpop.f32.mrb[0].mxu0
      %v4371 = vadd.f32 0.0, %v4370
      %v4372 = vpop.f32.mrb[0].mxu0
      %4373 = vmatprep.mubr.f32.mxu0 0.0
      %4374 = vmatmul.mubr.f32.gmra.mrb[0].mxu0 %v4181
      %v4375 = vpop.f32.mrb[0].mxu0
      %v4376 = vadd.f32 0.0, %v4375
      %v4377 = vpop.f32.mrb[0].mxu0
      %4378 = vmatprep.mubr.f32.mxu0 0.0
      %4379 = vmatmul.mubr.f32.gmra.mrb[0].mxu0 %v4184
      %v4380 = vpop.f32.mrb[0].mxu0
      %v4381 = vadd.f32 0.0, %v4380
      %v4382 = vpop.f32.mrb[0].mxu0
      %4383 = vmatprep.mubr.f32.mxu0 0.0
      %4384 = vmatmul.mubr.f32.gmra.mrb[0].mxu0 %v4187
      %v4385 = vpop.f32.mrb[0].mxu0
      %v4386 = vadd.f32 0.0, %v4385
      %v4387 = vpop.f32.mrb[0].mxu0
      %4388 = vmatprep.mubr.f32.mxu0 0.0
      %4389 = vmatmul.mubr.f32.gmra.mrb[0].mxu0 %v4190
      %v4390 = vpop.f32.mrb[0].mxu0
      %v4391 = vadd.f32 0.0, %v4390
      %v4392 = vpop.f32.mrb[0].mxu0
      %4393 = vmatprep.mubr.f32.mxu0 0.0
      %4394 = vmatmul.mubr.f32.gmra.mrb[0].mxu0 %v4193
      %v4395 = vpop.f32.mrb[0].mxu0
      %v4396 = vadd.f32 0.0, %v4395
      %v4397 = vpop.f32.mrb[0].mxu0
      %4398 = vmatprep.mubr.f32.mxu0 0.0
      %4399 = vmatmul.mubr.f32.gmra.mrb[0].mxu0 %v4196
      %v4400 = vpop.f32.mrb[0].mxu0
      %v4401 = vadd.f32 0.0, %v4400
      %v4402 = vpop.f32.mrb[0].mxu0
      %4403 = vmatprep.mubr.f32.mxu0 0.0
      %4404 = vmatmul.mubr.f32.gmra.mrb[0].mxu0 %v4199
      %v4405 = vpop.f32.mrb[0].mxu0
      %v4406 = vadd.f32 0.0, %v4405
      %v4407 = vpop.f32.mrb[0].mxu0
      %4408 = vmatprep.mubr.f32.mxu0 0.0
      %4409 = vmatmul.mubr.f32.gmra.mrb[0].mxu0 %v4202
      %v4410 = vpop.f32.mrb[0].mxu0
      %v4411 = vadd.f32 0.0, %v4410
      %v4412 = vpop.f32.mrb[0].mxu0
      %4413 = vmatprep.mubr.f32.mxu0 0.0
      %4414 = vmatmul.mubr.f32.gmra.mrb[0].mxu0 %v4205
      %v4415 = vpop.f32.mrb[0].mxu0
      %v4416 = vadd.f32 0.0, %v4415
      %v4417 = vpop.f32.mrb[0].mxu0
      %4418 = vmatprep.mubr.f32.mxu0 0.0
      %4419 = vmatmul.mubr.f32.gmra.mrb[0].mxu0 %v4208
      %v4420 = vpop.f32.mrb[0].mxu0
      %v4421 = vadd.f32 0.0, %v4420
      %v4422 = vpop.f32.mrb[0].mxu0
      %4423 = vmatprep.mubr.f32.mxu0 0.0
      %4424 = vmatmul.mubr.f32.gmra.mrb[0].mxu0 %v4211
      %v4425 = vpop.f32.mrb[0].mxu0
      %v4426 = vadd.f32 0.0, %v4425
      %v4427 = vpop.f32.mrb[0].mxu0
      %4428 = vmatprep.mubr.f32.mxu0 0.0
      %4429 = vmatmul.mubr.f32.gmra.mrb[0].mxu0 %v4214
      %v4430 = vpop.f32.mrb[0].mxu0
      %v4431 = vadd.f32 0.0, %v4430
      %v4432 = vpop.f32.mrb[0].mxu0
      %4433 = vmatprep.mubr.f32.mxu0 0.0
      %4434 = vmatmul.mubr.f32.gmra.mrb[0].mxu0 %v4217
      %v4435 = vpop.f32.mrb[0].mxu0
      %v4436 = vadd.f32 0.0, %v4435
      %v4437 = vpop.f32.mrb[0].mxu0
      %4438 = vmatprep.mubr.f32.mxu0 0.0
      %4439 = vmatmul.mubr.f32.gmra.mrb[0].mxu0 %v4220
      %v4440 = vpop.f32.mrb[0].mxu0
      %v4441 = vadd.f32 0.0, %v4440
      %v4442 = vpop.f32.mrb[0].mxu0
      %4443 = vmatprep.mubr.f32.mxu0 0.0
      %4444 = vmatmul.mubr.f32.gmra.mrb[0].mxu0 %v4223
      %v4445 = vpop.f32.mrb[0].mxu0
      %v4446 = vadd.f32 0.0, %v4445
      %v4447 = vpop.f32.mrb[0].mxu0
      %4448 = vmatprep.mubr.f32.mxu0 0.0
      %4449 = vmatmul.mubr.f32.gmra.mrb[0].mxu0 %v4226
      %v4450 = vpop.f32.mrb[0].mxu0
      %v4451 = vadd.f32 0.0, %v4450
      %v4452 = vpop.f32.mrb[0].mxu0
      %4453 = vmatprep.mubr.f32.mxu0 0.0
      %4454 = vmatmul.mubr.f32.gmra.mrb[0].mxu0 %v4229
      %v4455 = vpop.f32.mrb[0].mxu0
      %v4456 = vadd.f32 0.0, %v4455
      %v4457 = vpop.f32.mrb[0].mxu0
      %4458 = vmatprep.mubr.f32.mxu0 0.0
      %4459 = vmatmul.mubr.f32.gmra.mrb[0].mxu0 %v4232
      %v4460 = vpop.f32.mrb[0].mxu0
      %v4461 = vadd.f32 0.0, %v4460
      %v4462 = vpop.f32.mrb[0].mxu0
      %4463 = vmatprep.mubr.f32.mxu0 0.0
      %4464 = vmatmul.mubr.f32.gmra.mrb[0].mxu0 %v4235
      %v4465 = vpop.f32.mrb[0].mxu0
      %v4466 = vadd.f32 0.0, %v4465
      %v4467 = vpop.f32.mrb[0].mxu0
      %4468 = vmatprep.mubr.f32.mxu0 0.0
      %4469 = vmatmul.mubr.f32.gmra.mrb[0].mxu0 %v4238
      %v4470 = vpop.f32.mrb[0].mxu0
      %v4471 = vadd.f32 0.0, %v4470
      %v4472 = vpop.f32.mrb[0].mxu0
      %4473 = vmatprep.mubr.f32.mxu0 0.0
      %4474 = vmatmul.mubr.f32.gmra.mrb[0].mxu0 %v4241
      %v4475 = vpop.f32.mrb[0].mxu0
      %v4476 = vadd.f32 0.0, %v4475
      %v4477 = vpop.f32.mrb[0].mxu0
      %4478 = vmatprep.mubr.f32.mxu0 0.0
      %4479 = vmatmul.mubr.f32.gmra.mrb[0].mxu0 %v4244
      %v4480 = vpop.f32.mrb[0].mxu0
      %v4481 = vadd.f32 0.0, %v4480
      %v4482 = vpop.f32.mrb[0].mxu0
      %4483 = vmatprep.mubr.f32.mxu0 0.0
      %4484 = vmatmul.mubr.f32.gmra.mrb[0].mxu0 %v4247
      %v4485 = vpop.f32.mrb[0].mxu0
      %v4486 = vadd.f32 0.0, %v4485
      %v4487 = vpop.f32.mrb[0].mxu0
      %4488 = vmatprep.mubr.f32.mxu0 0.0
      %4489 = vmatmul.mubr.f32.gmra.mrb[0].mxu0 %v4250
      %v4490 = vpop.f32.mrb[0].mxu0
      %v4491 = vadd.f32 0.0, %v4490
      %v4492 = vpop.f32.mrb[0].mxu0
      %4493 = vmatprep.mubr.f32.mxu0 0.0
      %4494 = vmatmul.mubr.f32.gmra.mrb[0].mxu0 %v4253
      %v4495 = vpop.f32.mrb[0].mxu0
      %v4496 = vadd.f32 0.0, %v4495
      %v4497 = vpop.f32.mrb[0].mxu0
      %4498 = vmatprep.mubr.f32.mxu0 0.0
      %4499 = vmatmul.mubr.f32.gmra.mrb[0].mxu0 %v4256
      %v4500 = vpop.f32.mrb[0].mxu0
      %v4501 = vadd.f32 0.0, %v4500
      %v4502 = vpop.f32.mrb[0].mxu0
      %4503 = vmatprep.mubr.f32.mxu0 0.0
      %4504 = vmatmul.mubr.f32.gmra.mrb[0].mxu0 %v4259
      %v4505 = vpop.f32.mrb[0].mxu0
      %v4506 = vadd.f32 0.0, %v4505
      %v4507 = vpop.f32.mrb[0].mxu0
      %4508 = vdwg.mxu0
      %v4509 = vadd.f32 %v4079, %v4331
      %v4510 = vadd.f32 %v4080, %v4336
      %v4511 = vadd.f32 %v4081, %v4341
      %v4512 = vadd.f32 %v4082, %v4346
      %v4513 = vadd.f32 %v4083, %v4351
      %v4514 = vadd.f32 %v4084, %v4356
      %v4515 = vadd.f32 %v4085, %v4361
      %v4516 = vadd.f32 %v4086, %v4366
      %v4517 = vadd.f32 %v4087, %v4371
      %v4518 = vadd.f32 %v4088, %v4376
      %v4519 = vadd.f32 %v4089, %v4381
      %v4520 = vadd.f32 %v4090, %v4386
      %v4521 = vadd.f32 %v4091, %v4391
      %v4522 = vadd.f32 %v4092, %v4396
      %v4523 = vadd.f32 %v4093, %v4401
      %v4524 = vadd.f32 %v4094, %v4406
      %v4525 = vadd.f32 %v4095, %v4411
      %v4526 = vadd.f32 %v4096, %v4416
      %v4527 = vadd.f32 %v4097, %v4421
      %v4528 = vadd.f32 %v4098, %v4426
      %v4529 = vadd.f32 %v4099, %v4431
      %v4530 = vadd.f32 %v4100, %v4436
      %v4531 = vadd.f32 %v4101, %v4441
      %v4532 = vadd.f32 %v4102, %v4446
      %v4533 = vadd.f32 %v4103, %v4451
      %v4534 = vadd.f32 %v4104, %v4456
      %v4535 = vadd.f32 %v4105, %v4461
      %v4536 = vadd.f32 %v4106, %v4466
      %v4537 = vadd.f32 %v4107, %v4471
      %v4538 = vadd.f32 %v4108, %v4476
      %v4539 = vadd.f32 %v4109, %v4481
      %v4540 = vadd.f32 %v4110, %v4486
      %v4541 = vadd.f32 %v4111, %v4491
      %v4542 = vadd.f32 %v4112, %v4496
      %v4543 = vadd.f32 %v4113, %v4501
      %v4544 = vadd.f32 %v4114, %v4506
      %v4545 = vld [vmem:[#allocation2 + $0x14] sm:$0xff]
      %v4546 = vld [vmem:[#allocation2 + $0x1c] sm:$0xff]
      %v4547 = vld [vmem:[#allocation2 + $0x24] sm:$0xff]
      %v4548 = vld [vmem:[#allocation2 + $0x2c] sm:$0xff]
      %v4549 = vld [vmem:[#allocation2 + $0x34] sm:$0xff]
      %v4550 = vld [vmem:[#allocation2 + $0x3c] sm:$0xff]
      %v4551 = vld [vmem:[#allocation2 + $0x44] sm:$0xff]
      %v4552 = vld [vmem:[#allocation2 + $0x4c] sm:$0xff]
      %v4553 = vld [vmem:[#allocation2 + $0x54] sm:$0xff]
      %v4554 = vld [vmem:[#allocation2 + $0x5c] sm:$0xff]
      %v4555 = vld [vmem:[#allocation2 + $0x64] sm:$0xff]
      %v4556 = vld [vmem:[#allocation2 + $0x6c] sm:$0xff]
      %v4557 = vld [vmem:[#allocation2 + $0x74] sm:$0xff]
      %v4558 = vld [vmem:[#allocation2 + $0x7c] sm:$0xff]
      %v4559 = vld [vmem:[#allocation2 + $0x84] sm:$0xff]
      %v4560 = vld [vmem:[#allocation2 + $0x8c] sm:$0xff]
      %v4561 = vld [vmem:[#allocation2 + $0x94] sm:$0xff]
      %v4562 = vld [vmem:[#allocation2 + $0x9c] sm:$0xff]
      %v4563 = vld [vmem:[#allocation2 + $0xa4] sm:$0xff]
      %v4564 = vld [vmem:[#allocation2 + $0xac] sm:$0xff]
      %v4565 = vld [vmem:[#allocation2 + $0xb4] sm:$0xff]
      %v4566 = vld [vmem:[#allocation2 + $0xbc] sm:$0xff]
      %v4567 = vld [vmem:[#allocation2 + $0xc4] sm:$0xff]
      %v4568 = vld [vmem:[#allocation2 + $0xcc] sm:$0xff]
      %v4569 = vld [vmem:[#allocation2 + $0xd4] sm:$0xff]
      %v4570 = vld [vmem:[#allocation2 + $0xdc] sm:$0xff]
      %v4571 = vld [vmem:[#allocation2 + $0xe4] sm:$0xff]
      %v4572 = vld [vmem:[#allocation2 + $0xec] sm:$0xff]
      %v4573 = vld [vmem:[#allocation2 + $0xf4] sm:$0xff]
      %v4574 = vld [vmem:[#allocation2 + $0xfc] sm:$0xff]
      %v4575 = vld [vmem:[#allocation2 + $0x104] sm:$0xff]
      %v4576 = vld [vmem:[#allocation2 + $0x10c] sm:$0xff]
      %v4577 = vld [vmem:[#allocation2 + $0x114] sm:$0xff]
      %v4578 = vld [vmem:[#allocation2 + $0x11c] sm:$0xff]
      %v4579 = vld [vmem:[#allocation2 + $0x124] sm:$0xff]
      %v4580 = vld [vmem:[#allocation2 + $0x12c] sm:$0xff]
      %s4581 = scalar_lea.vmem %s3, 20
      %v4582 = vld [vmem:[%s4581] sm:$0xf]
      %v4584 = vsel %vm2193, %v4545, 0
      %v4587 = vsel %vm2193, %v4546, 0
      %v4590 = vsel %vm2193, %v4547, 0
      %v4593 = vsel %vm2193, %v4548, 0
      %v4596 = vsel %vm2193, %v4549, 0
      %v4599 = vsel %vm2193, %v4550, 0
      %v4602 = vsel %vm2193, %v4551, 0
      %v4605 = vsel %vm2193, %v4552, 0
      %v4608 = vsel %vm2193, %v4553, 0
      %v4611 = vsel %vm2193, %v4554, 0
      %v4614 = vsel %vm2193, %v4555, 0
      %v4617 = vsel %vm2193, %v4556, 0
      %v4620 = vsel %vm2193, %v4557, 0
      %v4623 = vsel %vm2193, %v4558, 0
      %v4626 = vsel %vm2193, %v4559, 0
      %v4629 = vsel %vm2193, %v4560, 0
      %v4632 = vsel %vm2193, %v4561, 0
      %v4635 = vsel %vm2193, %v4562, 0
      %v4638 = vsel %vm2193, %v4563, 0
      %v4641 = vsel %vm2193, %v4564, 0
      %v4644 = vsel %vm2193, %v4565, 0
      %v4647 = vsel %vm2193, %v4566, 0
      %v4650 = vsel %vm2193, %v4567, 0
      %v4653 = vsel %vm2193, %v4568, 0
      %v4656 = vsel %vm2193, %v4569, 0
      %v4659 = vsel %vm2193, %v4570, 0
      %v4662 = vsel %vm2193, %v4571, 0
      %v4665 = vsel %vm2193, %v4572, 0
      %v4668 = vsel %vm2193, %v4573, 0
      %v4671 = vsel %vm2193, %v4574, 0
      %v4674 = vsel %vm2193, %v4575, 0
      %v4677 = vsel %vm2193, %v4576, 0
      %v4680 = vsel %vm2193, %v4577, 0
      %v4683 = vsel %vm2193, %v4578, 0
      %v4686 = vsel %vm2193, %v4579, 0
      %v4689 = vsel %vm2193, %v4580, 0
      %v4692 = vsel %vm2650, %v4582, 0
      %4694 = vmatprep.subr.mxu0 0.0
      %4695 = vmatpush1.msra.mxu0 %v4692
      %4696 = vmatprep.subr.mxu0 0.0
      %4697 = vmatpush1.msra.mxu0 0.0
      %4698 = vmatprep.subr.mxu0 0.0
      %4699 = vmatpush1.msra.mxu0 0.0
      %4700 = vmatprep.subr.mxu0 0.0
      %4701 = vmatpush1.msra.mxu0 0.0
      %4702 = vmatprep.subr.mxu0 0.0
      %4703 = vmatpush1.msra.mxu0 0.0
      %4704 = vmatprep.subr.mxu0 0.0
      %4705 = vmatpush1.msra.mxu0 0.0
      %4706 = vmatprep.subr.mxu0 0.0
      %4707 = vmatpush1.msra.mxu0 0.0
      %4708 = vmatprep.subr.mxu0 0.0
      %4709 = vmatpush1.msra.mxu0 0.0
      %4710 = vmatprep.subr.mxu0 0.0
      %4711 = vmatpush1.msra.mxu0 0.0
      %4712 = vmatprep.subr.mxu0 0.0
      %4713 = vmatpush1.msra.mxu0 0.0
      %4714 = vmatprep.subr.mxu0 0.0
      %4715 = vmatpush1.msra.mxu0 0.0
      %4716 = vmatprep.subr.mxu0 0.0
      %4717 = vmatpush1.msra.mxu0 0.0
      %4718 = vmatprep.subr.mxu0 0.0
      %4719 = vmatpush1.msra.mxu0 0.0
      %4720 = vmatprep.subr.mxu0 0.0
      %4721 = vmatpush1.msra.mxu0 0.0
      %4722 = vmatprep.subr.mxu0 0.0
      %4723 = vmatpush1.msra.mxu0 0.0
      %4724 = vmatprep.subr.mxu0 0.0
      %4725 = vmatpush1.msra.mxu0 0.0
      %4726 = vmatprep.subr.mxu0 0.0
      %4727 = vmatpush1.msra.mxu0 0.0
      %4728 = vmatprep.subr.mxu0 0.0
      %4729 = vmatpush1.msra.mxu0 0.0
      %4730 = vmatprep.subr.mxu0 0.0
      %4731 = vmatpush1.msra.mxu0 0.0
      %4732 = vmatprep.subr.mxu0 0.0
      %4733 = vmatpush1.msra.mxu0 0.0
      %4734 = vmatprep.subr.mxu0 0.0
      %4735 = vmatpush1.msra.mxu0 0.0
      %4736 = vmatprep.subr.mxu0 0.0
      %4737 = vmatpush1.msra.mxu0 0.0
      %4738 = vmatprep.subr.mxu0 0.0
      %4739 = vmatpush1.msra.mxu0 0.0
      %4740 = vmatprep.subr.mxu0 0.0
      %4741 = vmatpush1.msra.mxu0 0.0
      %4742 = vmatprep.subr.mxu0 0.0
      %4743 = vmatpush1.msra.mxu0 0.0
      %4744 = vmatprep.subr.mxu0 0.0
      %4745 = vmatpush1.msra.mxu0 0.0
      %4746 = vmatprep.subr.mxu0 0.0
      %4747 = vmatpush1.msra.mxu0 0.0
      %4748 = vmatprep.subr.mxu0 0.0
      %4749 = vmatpush1.msra.mxu0 0.0
      %4750 = vmatprep.subr.mxu0 0.0
      %4751 = vmatpush1.msra.mxu0 0.0
      %4752 = vmatprep.subr.mxu0 0.0
      %4753 = vmatpush1.msra.mxu0 0.0
      %4754 = vmatprep.subr.mxu0 0.0
      %4755 = vmatpush1.msra.mxu0 0.0
      %4756 = vmatprep.subr.mxu0 0.0
      %4757 = vmatpush1.msra.mxu0 0.0
      %4758 = vmatprep.mubr.f32.mxu0 0.0
      %4759 = vmatmul.mubr.f32.gmra.mrb[0].mxu0 %v4584
      %v4760 = vpop.f32.mrb[0].mxu0
      %v4761 = vadd.f32 0.0, %v4760
      %v4762 = vpop.f32.mrb[0].mxu0
      %4763 = vmatprep.mubr.f32.mxu0 0.0
      %4764 = vmatmul.mubr.f32.gmra.mrb[0].mxu0 %v4587
      %v4765 = vpop.f32.mrb[0].mxu0
      %v4766 = vadd.f32 0.0, %v4765
      %v4767 = vpop.f32.mrb[0].mxu0
      %4768 = vmatprep.mubr.f32.mxu0 0.0
      %4769 = vmatmul.mubr.f32.gmra.mrb[0].mxu0 %v4590
      %v4770 = vpop.f32.mrb[0].mxu0
      %v4771 = vadd.f32 0.0, %v4770
      %v4772 = vpop.f32.mrb[0].mxu0
      %4773 = vmatprep.mubr.f32.mxu0 0.0
      %4774 = vmatmul.mubr.f32.gmra.mrb[0].mxu0 %v4593
      %v4775 = vpop.f32.mrb[0].mxu0
      %v4776 = vadd.f32 0.0, %v4775
      %v4777 = vpop.f32.mrb[0].mxu0
      %4778 = vmatprep.mubr.f32.mxu0 0.0
      %4779 = vmatmul.mubr.f32.gmra.mrb[0].mxu0 %v4596
      %v4780 = vpop.f32.mrb[0].mxu0
      %v4781 = vadd.f32 0.0, %v4780
      %v4782 = vpop.f32.mrb[0].mxu0
      %4783 = vmatprep.mubr.f32.mxu0 0.0
      %4784 = vmatmul.mubr.f32.gmra.mrb[0].mxu0 %v4599
      %v4785 = vpop.f32.mrb[0].mxu0
      %v4786 = vadd.f32 0.0, %v4785
      %v4787 = vpop.f32.mrb[0].mxu0
      %4788 = vmatprep.mubr.f32.mxu0 0.0
      %4789 = vmatmul.mubr.f32.gmra.mrb[0].mxu0 %v4602
      %v4790 = vpop.f32.mrb[0].mxu0
      %v4791 = vadd.f32 0.0, %v4790
      %v4792 = vpop.f32.mrb[0].mxu0
      %4793 = vmatprep.mubr.f32.mxu0 0.0
      %4794 = vmatmul.mubr.f32.gmra.mrb[0].mxu0 %v4605
      %v4795 = vpop.f32.mrb[0].mxu0
      %v4796 = vadd.f32 0.0, %v4795
      %v4797 = vpop.f32.mrb[0].mxu0
      %4798 = vmatprep.mubr.f32.mxu0 0.0
      %4799 = vmatmul.mubr.f32.gmra.mrb[0].mxu0 %v4608
      %v4800 = vpop.f32.mrb[0].mxu0
      %v4801 = vadd.f32 0.0, %v4800
      %v4802 = vpop.f32.mrb[0].mxu0
      %4803 = vmatprep.mubr.f32.mxu0 0.0
      %4804 = vmatmul.mubr.f32.gmra.mrb[0].mxu0 %v4611
      %v4805 = vpop.f32.mrb[0].mxu0
      %v4806 = vadd.f32 0.0, %v4805
      %v4807 = vpop.f32.mrb[0].mxu0
      %4808 = vmatprep.mubr.f32.mxu0 0.0
      %4809 = vmatmul.mubr.f32.gmra.mrb[0].mxu0 %v4614
      %v4810 = vpop.f32.mrb[0].mxu0
      %v4811 = vadd.f32 0.0, %v4810
      %v4812 = vpop.f32.mrb[0].mxu0
      %4813 = vmatprep.mubr.f32.mxu0 0.0
      %4814 = vmatmul.mubr.f32.gmra.mrb[0].mxu0 %v4617
      %v4815 = vpop.f32.mrb[0].mxu0
      %v4816 = vadd.f32 0.0, %v4815
      %v4817 = vpop.f32.mrb[0].mxu0
      %4818 = vmatprep.mubr.f32.mxu0 0.0
      %4819 = vmatmul.mubr.f32.gmra.mrb[0].mxu0 %v4620
      %v4820 = vpop.f32.mrb[0].mxu0
      %v4821 = vadd.f32 0.0, %v4820
      %v4822 = vpop.f32.mrb[0].mxu0
      %4823 = vmatprep.mubr.f32.mxu0 0.0
      %4824 = vmatmul.mubr.f32.gmra.mrb[0].mxu0 %v4623
      %v4825 = vpop.f32.mrb[0].mxu0
      %v4826 = vadd.f32 0.0, %v4825
      %v4827 = vpop.f32.mrb[0].mxu0
      %4828 = vmatprep.mubr.f32.mxu0 0.0
      %4829 = vmatmul.mubr.f32.gmra.mrb[0].mxu0 %v4626
      %v4830 = vpop.f32.mrb[0].mxu0
      %v4831 = vadd.f32 0.0, %v4830
      %v4832 = vpop.f32.mrb[0].mxu0
      %4833 = vmatprep.mubr.f32.mxu0 0.0
      %4834 = vmatmul.mubr.f32.gmra.mrb[0].mxu0 %v4629
      %v4835 = vpop.f32.mrb[0].mxu0
      %v4836 = vadd.f32 0.0, %v4835
      %v4837 = vpop.f32.mrb[0].mxu0
      %4838 = vmatprep.mubr.f32.mxu0 0.0
      %4839 = vmatmul.mubr.f32.gmra.mrb[0].mxu0 %v4632
      %v4840 = vpop.f32.mrb[0].mxu0
      %v4841 = vadd.f32 0.0, %v4840
      %v4842 = vpop.f32.mrb[0].mxu0
      %4843 = vmatprep.mubr.f32.mxu0 0.0
      %4844 = vmatmul.mubr.f32.gmra.mrb[0].mxu0 %v4635
      %v4845 = vpop.f32.mrb[0].mxu0
      %v4846 = vadd.f32 0.0, %v4845
      %v4847 = vpop.f32.mrb[0].mxu0
      %4848 = vmatprep.mubr.f32.mxu0 0.0
      %4849 = vmatmul.mubr.f32.gmra.mrb[0].mxu0 %v4638
      %v4850 = vpop.f32.mrb[0].mxu0
      %v4851 = vadd.f32 0.0, %v4850
      %v4852 = vpop.f32.mrb[0].mxu0
      %4853 = vmatprep.mubr.f32.mxu0 0.0
      %4854 = vmatmul.mubr.f32.gmra.mrb[0].mxu0 %v4641
      %v4855 = vpop.f32.mrb[0].mxu0
      %v4856 = vadd.f32 0.0, %v4855
      %v4857 = vpop.f32.mrb[0].mxu0
      %4858 = vmatprep.mubr.f32.mxu0 0.0
      %4859 = vmatmul.mubr.f32.gmra.mrb[0].mxu0 %v4644
      %v4860 = vpop.f32.mrb[0].mxu0
      %v4861 = vadd.f32 0.0, %v4860
      %v4862 = vpop.f32.mrb[0].mxu0
      %4863 = vmatprep.mubr.f32.mxu0 0.0
      %4864 = vmatmul.mubr.f32.gmra.mrb[0].mxu0 %v4647
      %v4865 = vpop.f32.mrb[0].mxu0
      %v4866 = vadd.f32 0.0, %v4865
      %v4867 = vpop.f32.mrb[0].mxu0
      %4868 = vmatprep.mubr.f32.mxu0 0.0
      %4869 = vmatmul.mubr.f32.gmra.mrb[0].mxu0 %v4650
      %v4870 = vpop.f32.mrb[0].mxu0
      %v4871 = vadd.f32 0.0, %v4870
      %v4872 = vpop.f32.mrb[0].mxu0
      %4873 = vmatprep.mubr.f32.mxu0 0.0
      %4874 = vmatmul.mubr.f32.gmra.mrb[0].mxu0 %v4653
      %v4875 = vpop.f32.mrb[0].mxu0
      %v4876 = vadd.f32 0.0, %v4875
      %v4877 = vpop.f32.mrb[0].mxu0
      %4878 = vmatprep.mubr.f32.mxu0 0.0
      %4879 = vmatmul.mubr.f32.gmra.mrb[0].mxu0 %v4656
      %v4880 = vpop.f32.mrb[0].mxu0
      %v4881 = vadd.f32 0.0, %v4880
      %v4882 = vpop.f32.mrb[0].mxu0
      %4883 = vmatprep.mubr.f32.mxu0 0.0
      %4884 = vmatmul.mubr.f32.gmra.mrb[0].mxu0 %v4659
      %v4885 = vpop.f32.mrb[0].mxu0
      %v4886 = vadd.f32 0.0, %v4885
      %v4887 = vpop.f32.mrb[0].mxu0
      %4888 = vmatprep.mubr.f32.mxu0 0.0
      %4889 = vmatmul.mubr.f32.gmra.mrb[0].mxu0 %v4662
      %v4890 = vpop.f32.mrb[0].mxu0
      %v4891 = vadd.f32 0.0, %v4890
      %v4892 = vpop.f32.mrb[0].mxu0
      %4893 = vmatprep.mubr.f32.mxu0 0.0
      %4894 = vmatmul.mubr.f32.gmra.mrb[0].mxu0 %v4665
      %v4895 = vpop.f32.mrb[0].mxu0
      %v4896 = vadd.f32 0.0, %v4895
      %v4897 = vpop.f32.mrb[0].mxu0
      %4898 = vmatprep.mubr.f32.mxu0 0.0
      %4899 = vmatmul.mubr.f32.gmra.mrb[0].mxu0 %v4668
      %v4900 = vpop.f32.mrb[0].mxu0
      %v4901 = vadd.f32 0.0, %v4900
      %v4902 = vpop.f32.mrb[0].mxu0
      %4903 = vmatprep.mubr.f32.mxu0 0.0
      %4904 = vmatmul.mubr.f32.gmra.mrb[0].mxu0 %v4671
      %v4905 = vpop.f32.mrb[0].mxu0
      %v4906 = vadd.f32 0.0, %v4905
      %v4907 = vpop.f32.mrb[0].mxu0
      %4908 = vmatprep.mubr.f32.mxu0 0.0
      %4909 = vmatmul.mubr.f32.gmra.mrb[0].mxu0 %v4674
      %v4910 = vpop.f32.mrb[0].mxu0
      %v4911 = vadd.f32 0.0, %v4910
      %v4912 = vpop.f32.mrb[0].mxu0
      %4913 = vmatprep.mubr.f32.mxu0 0.0
      %4914 = vmatmul.mubr.f32.gmra.mrb[0].mxu0 %v4677
      %v4915 = vpop.f32.mrb[0].mxu0
      %v4916 = vadd.f32 0.0, %v4915
      %v4917 = vpop.f32.mrb[0].mxu0
      %4918 = vmatprep.mubr.f32.mxu0 0.0
      %4919 = vmatmul.mubr.f32.gmra.mrb[0].mxu0 %v4680
      %v4920 = vpop.f32.mrb[0].mxu0
      %v4921 = vadd.f32 0.0, %v4920
      %v4922 = vpop.f32.mrb[0].mxu0
      %4923 = vmatprep.mubr.f32.mxu0 0.0
      %4924 = vmatmul.mubr.f32.gmra.mrb[0].mxu0 %v4683
      %v4925 = vpop.f32.mrb[0].mxu0
      %v4926 = vadd.f32 0.0, %v4925
      %v4927 = vpop.f32.mrb[0].mxu0
      %4928 = vmatprep.mubr.f32.mxu0 0.0
      %4929 = vmatmul.mubr.f32.gmra.mrb[0].mxu0 %v4686
      %v4930 = vpop.f32.mrb[0].mxu0
      %v4931 = vadd.f32 0.0, %v4930
      %v4932 = vpop.f32.mrb[0].mxu0
      %4933 = vmatprep.mubr.f32.mxu0 0.0
      %4934 = vmatmul.mubr.f32.gmra.mrb[0].mxu0 %v4689
      %v4935 = vpop.f32.mrb[0].mxu0
      %v4936 = vadd.f32 0.0, %v4935
      %v4937 = vpop.f32.mrb[0].mxu0
      %4938 = vdwg.mxu0
      %v4939 = vadd.f32 %v4509, %v4761
      %v4940 = vadd.f32 %v4510, %v4766
      %v4941 = vadd.f32 %v4511, %v4771
      %v4942 = vadd.f32 %v4512, %v4776
      %v4943 = vadd.f32 %v4513, %v4781
      %v4944 = vadd.f32 %v4514, %v4786
      %v4945 = vadd.f32 %v4515, %v4791
      %v4946 = vadd.f32 %v4516, %v4796
      %v4947 = vadd.f32 %v4517, %v4801
      %v4948 = vadd.f32 %v4518, %v4806
      %v4949 = vadd.f32 %v4519, %v4811
      %v4950 = vadd.f32 %v4520, %v4816
      %v4951 = vadd.f32 %v4521, %v4821
      %v4952 = vadd.f32 %v4522, %v4826
      %v4953 = vadd.f32 %v4523, %v4831
      %v4954 = vadd.f32 %v4524, %v4836
      %v4955 = vadd.f32 %v4525, %v4841
      %v4956 = vadd.f32 %v4526, %v4846
      %v4957 = vadd.f32 %v4527, %v4851
      %v4958 = vadd.f32 %v4528, %v4856
      %v4959 = vadd.f32 %v4529, %v4861
      %v4960 = vadd.f32 %v4530, %v4866
      %v4961 = vadd.f32 %v4531, %v4871
      %v4962 = vadd.f32 %v4532, %v4876
      %v4963 = vadd.f32 %v4533, %v4881
      %v4964 = vadd.f32 %v4534, %v4886
      %v4965 = vadd.f32 %v4535, %v4891
      %v4966 = vadd.f32 %v4536, %v4896
      %v4967 = vadd.f32 %v4537, %v4901
      %v4968 = vadd.f32 %v4538, %v4906
      %v4969 = vadd.f32 %v4539, %v4911
      %v4970 = vadd.f32 %v4540, %v4916
      %v4971 = vadd.f32 %v4541, %v4921
      %v4972 = vadd.f32 %v4542, %v4926
      %v4973 = vadd.f32 %v4543, %v4931
      %v4974 = vadd.f32 %v4544, %v4936
      %v4975 = vld [vmem:[#allocation2 + $0x24] sm:$0xff]
      %v4976 = vld [vmem:[#allocation2 + $0x2c] sm:$0xff]
      %v4977 = vld [vmem:[#allocation2 + $0x34] sm:$0xff]
      %v4978 = vld [vmem:[#allocation2 + $0x3c] sm:$0xff]
      %v4979 = vld [vmem:[#allocation2 + $0x44] sm:$0xff]
      %v4980 = vld [vmem:[#allocation2 + $0x4c] sm:$0xff]
      %v4981 = vld [vmem:[#allocation2 + $0x54] sm:$0xff]
      %v4982 = vld [vmem:[#allocation2 + $0x5c] sm:$0xff]
      %v4983 = vld [vmem:[#allocation2 + $0x64] sm:$0xff]
      %v4984 = vld [vmem:[#allocation2 + $0x6c] sm:$0xff]
      %v4985 = vld [vmem:[#allocation2 + $0x74] sm:$0xff]
      %v4986 = vld [vmem:[#allocation2 + $0x7c] sm:$0xff]
      %v4987 = vld [vmem:[#allocation2 + $0x84] sm:$0xff]
      %v4988 = vld [vmem:[#allocation2 + $0x8c] sm:$0xff]
      %v4989 = vld [vmem:[#allocation2 + $0x94] sm:$0xff]
      %v4990 = vld [vmem:[#allocation2 + $0x9c] sm:$0xff]
      %v4991 = vld [vmem:[#allocation2 + $0xa4] sm:$0xff]
      %v4992 = vld [vmem:[#allocation2 + $0xac] sm:$0xff]
      %v4993 = vld [vmem:[#allocation2 + $0xb4] sm:$0xff]
      %v4994 = vld [vmem:[#allocation2 + $0xbc] sm:$0xff]
      %v4995 = vld [vmem:[#allocation2 + $0xc4] sm:$0xff]
      %v4996 = vld [vmem:[#allocation2 + $0xcc] sm:$0xff]
      %v4997 = vld [vmem:[#allocation2 + $0xd4] sm:$0xff]
      %v4998 = vld [vmem:[#allocation2 + $0xdc] sm:$0xff]
      %v4999 = vld [vmem:[#allocation2 + $0xe4] sm:$0xff]
      %v5000 = vld [vmem:[#allocation2 + $0xec] sm:$0xff]
      %v5001 = vld [vmem:[#allocation2 + $0xf4] sm:$0xff]
      %v5002 = vld [vmem:[#allocation2 + $0xfc] sm:$0xff]
      %v5003 = vld [vmem:[#allocation2 + $0x104] sm:$0xff]
      %v5004 = vld [vmem:[#allocation2 + $0x10c] sm:$0xff]
      %v5005 = vld [vmem:[#allocation2 + $0x114] sm:$0xff]
      %v5006 = vld [vmem:[#allocation2 + $0x11c] sm:$0xff]
      %v5007 = vld [vmem:[#allocation2 + $0x124] sm:$0xff]
      %v5008 = vld [vmem:[#allocation2 + $0x12c] sm:$0xff]
      %v5009 = vld [vmem:[#allocation2 + $0x134] sm:$0xff]
      %v5010 = vld [vmem:[#allocation2 + $0x13c] sm:$0xff]
      %s5011 = scalar_lea.vmem %s3, 24
      %v5012 = vld [vmem:[%s5011] sm:$0xf]
      %v5014 = vsel %vm2193, %v4975, 0
      %v5017 = vsel %vm2193, %v4976, 0
      %v5020 = vsel %vm2193, %v4977, 0
      %v5023 = vsel %vm2193, %v4978, 0
      %v5026 = vsel %vm2193, %v4979, 0
      %v5029 = vsel %vm2193, %v4980, 0
      %v5032 = vsel %vm2193, %v4981, 0
      %v5035 = vsel %vm2193, %v4982, 0
      %v5038 = vsel %vm2193, %v4983, 0
      %v5041 = vsel %vm2193, %v4984, 0
      %v5044 = vsel %vm2193, %v4985, 0
      %v5047 = vsel %vm2193, %v4986, 0
      %v5050 = vsel %vm2193, %v4987, 0
      %v5053 = vsel %vm2193, %v4988, 0
      %v5056 = vsel %vm2193, %v4989, 0
      %v5059 = vsel %vm2193, %v4990, 0
      %v5062 = vsel %vm2193, %v4991, 0
      %v5065 = vsel %vm2193, %v4992, 0
      %v5068 = vsel %vm2193, %v4993, 0
      %v5071 = vsel %vm2193, %v4994, 0
      %v5074 = vsel %vm2193, %v4995, 0
      %v5077 = vsel %vm2193, %v4996, 0
      %v5080 = vsel %vm2193, %v4997, 0
      %v5083 = vsel %vm2193, %v4998, 0
      %v5086 = vsel %vm2193, %v4999, 0
      %v5089 = vsel %vm2193, %v5000, 0
      %v5092 = vsel %vm2193, %v5001, 0
      %v5095 = vsel %vm2193, %v5002, 0
      %v5098 = vsel %vm2193, %v5003, 0
      %v5101 = vsel %vm2193, %v5004, 0
      %v5104 = vsel %vm2193, %v5005, 0
      %v5107 = vsel %vm2193, %v5006, 0
      %v5110 = vsel %vm2193, %v5007, 0
      %v5113 = vsel %vm2193, %v5008, 0
      %v5116 = vsel %vm2193, %v5009, 0
      %v5119 = vsel %vm2193, %v5010, 0
      %v5122 = vsel %vm2650, %v5012, 0
      %5124 = vmatprep.subr.mxu0 0.0
      %5125 = vmatpush1.msra.mxu0 %v5122
      %5126 = vmatprep.subr.mxu0 0.0
      %5127 = vmatpush1.msra.mxu0 0.0
      %5128 = vmatprep.subr.mxu0 0.0
      %5129 = vmatpush1.msra.mxu0 0.0
      %5130 = vmatprep.subr.mxu0 0.0
      %5131 = vmatpush1.msra.mxu0 0.0
      %5132 = vmatprep.subr.mxu0 0.0
      %5133 = vmatpush1.msra.mxu0 0.0
      %5134 = vmatprep.subr.mxu0 0.0
      %5135 = vmatpush1.msra.mxu0 0.0
      %5136 = vmatprep.subr.mxu0 0.0
      %5137 = vmatpush1.msra.mxu0 0.0
      %5138 = vmatprep.subr.mxu0 0.0
      %5139 = vmatpush1.msra.mxu0 0.0
      %5140 = vmatprep.subr.mxu0 0.0
      %5141 = vmatpush1.msra.mxu0 0.0
      %5142 = vmatprep.subr.mxu0 0.0
      %5143 = vmatpush1.msra.mxu0 0.0
      %5144 = vmatprep.subr.mxu0 0.0
      %5145 = vmatpush1.msra.mxu0 0.0
      %5146 = vmatprep.subr.mxu0 0.0
      %5147 = vmatpush1.msra.mxu0 0.0
      %5148 = vmatprep.subr.mxu0 0.0
      %5149 = vmatpush1.msra.mxu0 0.0
      %5150 = vmatprep.subr.mxu0 0.0
      %5151 = vmatpush1.msra.mxu0 0.0
      %5152 = vmatprep.subr.mxu0 0.0
      %5153 = vmatpush1.msra.mxu0 0.0
      %5154 = vmatprep.subr.mxu0 0.0
      %5155 = vmatpush1.msra.mxu0 0.0
      %5156 = vmatprep.subr.mxu0 0.0
      %5157 = vmatpush1.msra.mxu0 0.0
      %5158 = vmatprep.subr.mxu0 0.0
      %5159 = vmatpush1.msra.mxu0 0.0
      %5160 = vmatprep.subr.mxu0 0.0
      %5161 = vmatpush1.msra.mxu0 0.0
      %5162 = vmatprep.subr.mxu0 0.0
      %5163 = vmatpush1.msra.mxu0 0.0
      %5164 = vmatprep.subr.mxu0 0.0
      %5165 = vmatpush1.msra.mxu0 0.0
      %5166 = vmatprep.subr.mxu0 0.0
      %5167 = vmatpush1.msra.mxu0 0.0
      %5168 = vmatprep.subr.mxu0 0.0
      %5169 = vmatpush1.msra.mxu0 0.0
      %5170 = vmatprep.subr.mxu0 0.0
      %5171 = vmatpush1.msra.mxu0 0.0
      %5172 = vmatprep.subr.mxu0 0.0
      %5173 = vmatpush1.msra.mxu0 0.0
      %5174 = vmatprep.subr.mxu0 0.0
      %5175 = vmatpush1.msra.mxu0 0.0
      %5176 = vmatprep.subr.mxu0 0.0
      %5177 = vmatpush1.msra.mxu0 0.0
      %5178 = vmatprep.subr.mxu0 0.0
      %5179 = vmatpush1.msra.mxu0 0.0
      %5180 = vmatprep.subr.mxu0 0.0
      %5181 = vmatpush1.msra.mxu0 0.0
      %5182 = vmatprep.subr.mxu0 0.0
      %5183 = vmatpush1.msra.mxu0 0.0
      %5184 = vmatprep.subr.mxu0 0.0
      %5185 = vmatpush1.msra.mxu0 0.0
      %5186 = vmatprep.subr.mxu0 0.0
      %5187 = vmatpush1.msra.mxu0 0.0
      %5188 = vmatprep.mubr.f32.mxu0 0.0
      %5189 = vmatmul.mubr.f32.gmra.mrb[0].mxu0 %v5014
      %v5190 = vpop.f32.mrb[0].mxu0
      %v5191 = vadd.f32 0.0, %v5190
      %v5192 = vpop.f32.mrb[0].mxu0
      %5193 = vmatprep.mubr.f32.mxu0 0.0
      %5194 = vmatmul.mubr.f32.gmra.mrb[0].mxu0 %v5017
      %v5195 = vpop.f32.mrb[0].mxu0
      %v5196 = vadd.f32 0.0, %v5195
      %v5197 = vpop.f32.mrb[0].mxu0
      %5198 = vmatprep.mubr.f32.mxu0 0.0
      %5199 = vmatmul.mubr.f32.gmra.mrb[0].mxu0 %v5020
      %v5200 = vpop.f32.mrb[0].mxu0
      %v5201 = vadd.f32 0.0, %v5200
      %v5202 = vpop.f32.mrb[0].mxu0
      %5203 = vmatprep.mubr.f32.mxu0 0.0
      %5204 = vmatmul.mubr.f32.gmra.mrb[0].mxu0 %v5023
      %v5205 = vpop.f32.mrb[0].mxu0
      %v5206 = vadd.f32 0.0, %v5205
      %v5207 = vpop.f32.mrb[0].mxu0
      %5208 = vmatprep.mubr.f32.mxu0 0.0
      %5209 = vmatmul.mubr.f32.gmra.mrb[0].mxu0 %v5026
      %v5210 = vpop.f32.mrb[0].mxu0
      %v5211 = vadd.f32 0.0, %v5210
      %v5212 = vpop.f32.mrb[0].mxu0
      %5213 = vmatprep.mubr.f32.mxu0 0.0
      %5214 = vmatmul.mubr.f32.gmra.mrb[0].mxu0 %v5029
      %v5215 = vpop.f32.mrb[0].mxu0
      %v5216 = vadd.f32 0.0, %v5215
      %v5217 = vpop.f32.mrb[0].mxu0
      %5218 = vmatprep.mubr.f32.mxu0 0.0
      %5219 = vmatmul.mubr.f32.gmra.mrb[0].mxu0 %v5032
      %v5220 = vpop.f32.mrb[0].mxu0
      %v5221 = vadd.f32 0.0, %v5220
      %v5222 = vpop.f32.mrb[0].mxu0
      %5223 = vmatprep.mubr.f32.mxu0 0.0
      %5224 = vmatmul.mubr.f32.gmra.mrb[0].mxu0 %v5035
      %v5225 = vpop.f32.mrb[0].mxu0
      %v5226 = vadd.f32 0.0, %v5225
      %v5227 = vpop.f32.mrb[0].mxu0
      %5228 = vmatprep.mubr.f32.mxu0 0.0
      %5229 = vmatmul.mubr.f32.gmra.mrb[0].mxu0 %v5038
      %v5230 = vpop.f32.mrb[0].mxu0
      %v5231 = vadd.f32 0.0, %v5230
      %v5232 = vpop.f32.mrb[0].mxu0
      %5233 = vmatprep.mubr.f32.mxu0 0.0
      %5234 = vmatmul.mubr.f32.gmra.mrb[0].mxu0 %v5041
      %v5235 = vpop.f32.mrb[0].mxu0
      %v5236 = vadd.f32 0.0, %v5235
      %v5237 = vpop.f32.mrb[0].mxu0
      %5238 = vmatprep.mubr.f32.mxu0 0.0
      %5239 = vmatmul.mubr.f32.gmra.mrb[0].mxu0 %v5044
      %v5240 = vpop.f32.mrb[0].mxu0
      %v5241 = vadd.f32 0.0, %v5240
      %v5242 = vpop.f32.mrb[0].mxu0
      %5243 = vmatprep.mubr.f32.mxu0 0.0
      %5244 = vmatmul.mubr.f32.gmra.mrb[0].mxu0 %v5047
      %v5245 = vpop.f32.mrb[0].mxu0
      %v5246 = vadd.f32 0.0, %v5245
      %v5247 = vpop.f32.mrb[0].mxu0
      %5248 = vmatprep.mubr.f32.mxu0 0.0
      %5249 = vmatmul.mubr.f32.gmra.mrb[0].mxu0 %v5050
      %v5250 = vpop.f32.mrb[0].mxu0
      %v5251 = vadd.f32 0.0, %v5250
      %v5252 = vpop.f32.mrb[0].mxu0
      %5253 = vmatprep.mubr.f32.mxu0 0.0
      %5254 = vmatmul.mubr.f32.gmra.mrb[0].mxu0 %v5053
      %v5255 = vpop.f32.mrb[0].mxu0
      %v5256 = vadd.f32 0.0, %v5255
      %v5257 = vpop.f32.mrb[0].mxu0
      %5258 = vmatprep.mubr.f32.mxu0 0.0
      %5259 = vmatmul.mubr.f32.gmra.mrb[0].mxu0 %v5056
      %v5260 = vpop.f32.mrb[0].mxu0
      %v5261 = vadd.f32 0.0, %v5260
      %v5262 = vpop.f32.mrb[0].mxu0
      %5263 = vmatprep.mubr.f32.mxu0 0.0
      %5264 = vmatmul.mubr.f32.gmra.mrb[0].mxu0 %v5059
      %v5265 = vpop.f32.mrb[0].mxu0
      %v5266 = vadd.f32 0.0, %v5265
      %v5267 = vpop.f32.mrb[0].mxu0
      %5268 = vmatprep.mubr.f32.mxu0 0.0
      %5269 = vmatmul.mubr.f32.gmra.mrb[0].mxu0 %v5062
      %v5270 = vpop.f32.mrb[0].mxu0
      %v5271 = vadd.f32 0.0, %v5270
      %v5272 = vpop.f32.mrb[0].mxu0
      %5273 = vmatprep.mubr.f32.mxu0 0.0
      %5274 = vmatmul.mubr.f32.gmra.mrb[0].mxu0 %v5065
      %v5275 = vpop.f32.mrb[0].mxu0
      %v5276 = vadd.f32 0.0, %v5275
      %v5277 = vpop.f32.mrb[0].mxu0
      %5278 = vmatprep.mubr.f32.mxu0 0.0
      %5279 = vmatmul.mubr.f32.gmra.mrb[0].mxu0 %v5068
      %v5280 = vpop.f32.mrb[0].mxu0
      %v5281 = vadd.f32 0.0, %v5280
      %v5282 = vpop.f32.mrb[0].mxu0
      %5283 = vmatprep.mubr.f32.mxu0 0.0
      %5284 = vmatmul.mubr.f32.gmra.mrb[0].mxu0 %v5071
      %v5285 = vpop.f32.mrb[0].mxu0
      %v5286 = vadd.f32 0.0, %v5285
      %v5287 = vpop.f32.mrb[0].mxu0
      %5288 = vmatprep.mubr.f32.mxu0 0.0
      %5289 = vmatmul.mubr.f32.gmra.mrb[0].mxu0 %v5074
      %v5290 = vpop.f32.mrb[0].mxu0
      %v5291 = vadd.f32 0.0, %v5290
      %v5292 = vpop.f32.mrb[0].mxu0
      %5293 = vmatprep.mubr.f32.mxu0 0.0
      %5294 = vmatmul.mubr.f32.gmra.mrb[0].mxu0 %v5077
      %v5295 = vpop.f32.mrb[0].mxu0
      %v5296 = vadd.f32 0.0, %v5295
      %v5297 = vpop.f32.mrb[0].mxu0
      %5298 = vmatprep.mubr.f32.mxu0 0.0
      %5299 = vmatmul.mubr.f32.gmra.mrb[0].mxu0 %v5080
      %v5300 = vpop.f32.mrb[0].mxu0
      %v5301 = vadd.f32 0.0, %v5300
      %v5302 = vpop.f32.mrb[0].mxu0
      %5303 = vmatprep.mubr.f32.mxu0 0.0
      %5304 = vmatmul.mubr.f32.gmra.mrb[0].mxu0 %v5083
      %v5305 = vpop.f32.mrb[0].mxu0
      %v5306 = vadd.f32 0.0, %v5305
      %v5307 = vpop.f32.mrb[0].mxu0
      %5308 = vmatprep.mubr.f32.mxu0 0.0
      %5309 = vmatmul.mubr.f32.gmra.mrb[0].mxu0 %v5086
      %v5310 = vpop.f32.mrb[0].mxu0
      %v5311 = vadd.f32 0.0, %v5310
      %v5312 = vpop.f32.mrb[0].mxu0
      %5313 = vmatprep.mubr.f32.mxu0 0.0
      %5314 = vmatmul.mubr.f32.gmra.mrb[0].mxu0 %v5089
      %v5315 = vpop.f32.mrb[0].mxu0
      %v5316 = vadd.f32 0.0, %v5315
      %v5317 = vpop.f32.mrb[0].mxu0
      %5318 = vmatprep.mubr.f32.mxu0 0.0
      %5319 = vmatmul.mubr.f32.gmra.mrb[0].mxu0 %v5092
      %v5320 = vpop.f32.mrb[0].mxu0
      %v5321 = vadd.f32 0.0, %v5320
      %v5322 = vpop.f32.mrb[0].mxu0
      %5323 = vmatprep.mubr.f32.mxu0 0.0
      %5324 = vmatmul.mubr.f32.gmra.mrb[0].mxu0 %v5095
      %v5325 = vpop.f32.mrb[0].mxu0
      %v5326 = vadd.f32 0.0, %v5325
      %v5327 = vpop.f32.mrb[0].mxu0
      %5328 = vmatprep.mubr.f32.mxu0 0.0
      %5329 = vmatmul.mubr.f32.gmra.mrb[0].mxu0 %v5098
      %v5330 = vpop.f32.mrb[0].mxu0
      %v5331 = vadd.f32 0.0, %v5330
      %v5332 = vpop.f32.mrb[0].mxu0
      %5333 = vmatprep.mubr.f32.mxu0 0.0
      %5334 = vmatmul.mubr.f32.gmra.mrb[0].mxu0 %v5101
      %v5335 = vpop.f32.mrb[0].mxu0
      %v5336 = vadd.f32 0.0, %v5335
      %v5337 = vpop.f32.mrb[0].mxu0
      %5338 = vmatprep.mubr.f32.mxu0 0.0
      %5339 = vmatmul.mubr.f32.gmra.mrb[0].mxu0 %v5104
      %v5340 = vpop.f32.mrb[0].mxu0
      %v5341 = vadd.f32 0.0, %v5340
      %v5342 = vpop.f32.mrb[0].mxu0
      %5343 = vmatprep.mubr.f32.mxu0 0.0
      %5344 = vmatmul.mubr.f32.gmra.mrb[0].mxu0 %v5107
      %v5345 = vpop.f32.mrb[0].mxu0
      %v5346 = vadd.f32 0.0, %v5345
      %v5347 = vpop.f32.mrb[0].mxu0
      %5348 = vmatprep.mubr.f32.mxu0 0.0
      %5349 = vmatmul.mubr.f32.gmra.mrb[0].mxu0 %v5110
      %v5350 = vpop.f32.mrb[0].mxu0
      %v5351 = vadd.f32 0.0, %v5350
      %v5352 = vpop.f32.mrb[0].mxu0
      %5353 = vmatprep.mubr.f32.mxu0 0.0
      %5354 = vmatmul.mubr.f32.gmra.mrb[0].mxu0 %v5113
      %v5355 = vpop.f32.mrb[0].mxu0
      %v5356 = vadd.f32 0.0, %v5355
      %v5357 = vpop.f32.mrb[0].mxu0
      %5358 = vmatprep.mubr.f32.mxu0 0.0
      %5359 = vmatmul.mubr.f32.gmra.mrb[0].mxu0 %v5116
      %v5360 = vpop.f32.mrb[0].mxu0
      %v5361 = vadd.f32 0.0, %v5360
      %v5362 = vpop.f32.mrb[0].mxu0
      %5363 = vmatprep.mubr.f32.mxu0 0.0
      %5364 = vmatmul.mubr.f32.gmra.mrb[0].mxu0 %v5119
      %v5365 = vpop.f32.mrb[0].mxu0
      %v5366 = vadd.f32 0.0, %v5365
      %v5367 = vpop.f32.mrb[0].mxu0
      %5368 = vdwg.mxu0
      %v5369 = vadd.f32 %v4939, %v5191
      %v5370 = vadd.f32 %v4940, %v5196
      %v5371 = vadd.f32 %v4941, %v5201
      %v5372 = vadd.f32 %v4942, %v5206
      %v5373 = vadd.f32 %v4943, %v5211
      %v5374 = vadd.f32 %v4944, %v5216
      %v5375 = vadd.f32 %v4945, %v5221
      %v5376 = vadd.f32 %v4946, %v5226
      %v5377 = vadd.f32 %v4947, %v5231
      %v5378 = vadd.f32 %v4948, %v5236
      %v5379 = vadd.f32 %v4949, %v5241
      %v5380 = vadd.f32 %v4950, %v5246
      %v5381 = vadd.f32 %v4951, %v5251
      %v5382 = vadd.f32 %v4952, %v5256
      %v5383 = vadd.f32 %v4953, %v5261
      %v5384 = vadd.f32 %v4954, %v5266
      %v5385 = vadd.f32 %v4955, %v5271
      %v5386 = vadd.f32 %v4956, %v5276
      %v5387 = vadd.f32 %v4957, %v5281
      %v5388 = vadd.f32 %v4958, %v5286
      %v5389 = vadd.f32 %v4959, %v5291
      %v5390 = vadd.f32 %v4960, %v5296
      %v5391 = vadd.f32 %v4961, %v5301
      %v5392 = vadd.f32 %v4962, %v5306
      %v5393 = vadd.f32 %v4963, %v5311
      %v5394 = vadd.f32 %v4964, %v5316
      %v5395 = vadd.f32 %v4965, %v5321
      %v5396 = vadd.f32 %v4966, %v5326
      %v5397 = vadd.f32 %v4967, %v5331
      %v5398 = vadd.f32 %v4968, %v5336
      %v5399 = vadd.f32 %v4969, %v5341
      %v5400 = vadd.f32 %v4970, %v5346
      %v5401 = vadd.f32 %v4971, %v5351
      %v5402 = vadd.f32 %v4972, %v5356
      %v5403 = vadd.f32 %v4973, %v5361
      %v5404 = vadd.f32 %v4974, %v5366
      %v5405 = vld [vmem:[#allocation2 + $0x25] sm:$0xff]
      %v5406 = vld [vmem:[#allocation2 + $0x2d] sm:$0xff]
      %v5407 = vld [vmem:[#allocation2 + $0x35] sm:$0xff]
      %v5408 = vld [vmem:[#allocation2 + $0x3d] sm:$0xff]
      %v5409 = vld [vmem:[#allocation2 + $0x45] sm:$0xff]
      %v5410 = vld [vmem:[#allocation2 + $0x4d] sm:$0xff]
      %v5411 = vld [vmem:[#allocation2 + $0x55] sm:$0xff]
      %v5412 = vld [vmem:[#allocation2 + $0x5d] sm:$0xff]
      %v5413 = vld [vmem:[#allocation2 + $0x65] sm:$0xff]
      %v5414 = vld [vmem:[#allocation2 + $0x6d] sm:$0xff]
      %v5415 = vld [vmem:[#allocation2 + $0x75] sm:$0xff]
      %v5416 = vld [vmem:[#allocation2 + $0x7d] sm:$0xff]
      %v5417 = vld [vmem:[#allocation2 + $0x85] sm:$0xff]
      %v5418 = vld [vmem:[#allocation2 + $0x8d] sm:$0xff]
      %v5419 = vld [vmem:[#allocation2 + $0x95] sm:$0xff]
      %v5420 = vld [vmem:[#allocation2 + $0x9d] sm:$0xff]
      %v5421 = vld [vmem:[#allocation2 + $0xa5] sm:$0xff]
      %v5422 = vld [vmem:[#allocation2 + $0xad] sm:$0xff]
      %v5423 = vld [vmem:[#allocation2 + $0xb5] sm:$0xff]
      %v5424 = vld [vmem:[#allocation2 + $0xbd] sm:$0xff]
      %v5425 = vld [vmem:[#allocation2 + $0xc5] sm:$0xff]
      %v5426 = vld [vmem:[#allocation2 + $0xcd] sm:$0xff]
      %v5427 = vld [vmem:[#allocation2 + $0xd5] sm:$0xff]
      %v5428 = vld [vmem:[#allocation2 + $0xdd] sm:$0xff]
      %v5429 = vld [vmem:[#allocation2 + $0xe5] sm:$0xff]
      %v5430 = vld [vmem:[#allocation2 + $0xed] sm:$0xff]
      %v5431 = vld [vmem:[#allocation2 + $0xf5] sm:$0xff]
      %v5432 = vld [vmem:[#allocation2 + $0xfd] sm:$0xff]
      %v5433 = vld [vmem:[#allocation2 + $0x105] sm:$0xff]
      %v5434 = vld [vmem:[#allocation2 + $0x10d] sm:$0xff]
      %v5435 = vld [vmem:[#allocation2 + $0x115] sm:$0xff]
      %v5436 = vld [vmem:[#allocation2 + $0x11d] sm:$0xff]
      %v5437 = vld [vmem:[#allocation2 + $0x125] sm:$0xff]
      %v5438 = vld [vmem:[#allocation2 + $0x12d] sm:$0xff]
      %v5439 = vld [vmem:[#allocation2 + $0x135] sm:$0xff]
      %v5440 = vld [vmem:[#allocation2 + $0x13d] sm:$0xff]
      %s5441 = scalar_lea.vmem %s3, 28
      %v5442 = vld [vmem:[%s5441] sm:$0xf]
      %v5444 = vsel %vm2193, %v5405, 0
      %v5447 = vsel %vm2193, %v5406, 0
      %v5450 = vsel %vm2193, %v5407, 0
      %v5453 = vsel %vm2193, %v5408, 0
      %v5456 = vsel %vm2193, %v5409, 0
      %v5459 = vsel %vm2193, %v5410, 0
      %v5462 = vsel %vm2193, %v5411, 0
      %v5465 = vsel %vm2193, %v5412, 0
      %v5468 = vsel %vm2193, %v5413, 0
      %v5471 = vsel %vm2193, %v5414, 0
      %v5474 = vsel %vm2193, %v5415, 0
      %v5477 = vsel %vm2193, %v5416, 0
      %v5480 = vsel %vm2193, %v5417, 0
      %v5483 = vsel %vm2193, %v5418, 0
      %v5486 = vsel %vm2193, %v5419, 0
      %v5489 = vsel %vm2193, %v5420, 0
      %v5492 = vsel %vm2193, %v5421, 0
      %v5495 = vsel %vm2193, %v5422, 0
      %v5498 = vsel %vm2193, %v5423, 0
      %v5501 = vsel %vm2193, %v5424, 0
      %v5504 = vsel %vm2193, %v5425, 0
      %v5507 = vsel %vm2193, %v5426, 0
      %v5510 = vsel %vm2193, %v5427, 0
      %v5513 = vsel %vm2193, %v5428, 0
      %v5516 = vsel %vm2193, %v5429, 0
      %v5519 = vsel %vm2193, %v5430, 0
      %v5522 = vsel %vm2193, %v5431, 0
      %v5525 = vsel %vm2193, %v5432, 0
      %v5528 = vsel %vm2193, %v5433, 0
      %v5531 = vsel %vm2193, %v5434, 0
      %v5534 = vsel %vm2193, %v5435, 0
      %v5537 = vsel %vm2193, %v5436, 0
      %v5540 = vsel %vm2193, %v5437, 0
      %v5543 = vsel %vm2193, %v5438, 0
      %v5546 = vsel %vm2193, %v5439, 0
      %v5549 = vsel %vm2193, %v5440, 0
      %v5552 = vsel %vm2650, %v5442, 0
      %5554 = vmatprep.subr.mxu0 0.0
      %5555 = vmatpush1.msra.mxu0 %v5552
      %5556 = vmatprep.subr.mxu0 0.0
      %5557 = vmatpush1.msra.mxu0 0.0
      %5558 = vmatprep.subr.mxu0 0.0
      %5559 = vmatpush1.msra.mxu0 0.0
      %5560 = vmatprep.subr.mxu0 0.0
      %5561 = vmatpush1.msra.mxu0 0.0
      %5562 = vmatprep.subr.mxu0 0.0
      %5563 = vmatpush1.msra.mxu0 0.0
      %5564 = vmatprep.subr.mxu0 0.0
      %5565 = vmatpush1.msra.mxu0 0.0
      %5566 = vmatprep.subr.mxu0 0.0
      %5567 = vmatpush1.msra.mxu0 0.0
      %5568 = vmatprep.subr.mxu0 0.0
      %5569 = vmatpush1.msra.mxu0 0.0
      %5570 = vmatprep.subr.mxu0 0.0
      %5571 = vmatpush1.msra.mxu0 0.0
      %5572 = vmatprep.subr.mxu0 0.0
      %5573 = vmatpush1.msra.mxu0 0.0
      %5574 = vmatprep.subr.mxu0 0.0
      %5575 = vmatpush1.msra.mxu0 0.0
      %5576 = vmatprep.subr.mxu0 0.0
      %5577 = vmatpush1.msra.mxu0 0.0
      %5578 = vmatprep.subr.mxu0 0.0
      %5579 = vmatpush1.msra.mxu0 0.0
      %5580 = vmatprep.subr.mxu0 0.0
      %5581 = vmatpush1.msra.mxu0 0.0
      %5582 = vmatprep.subr.mxu0 0.0
      %5583 = vmatpush1.msra.mxu0 0.0
      %5584 = vmatprep.subr.mxu0 0.0
      %5585 = vmatpush1.msra.mxu0 0.0
      %5586 = vmatprep.subr.mxu0 0.0
      %5587 = vmatpush1.msra.mxu0 0.0
      %5588 = vmatprep.subr.mxu0 0.0
      %5589 = vmatpush1.msra.mxu0 0.0
      %5590 = vmatprep.subr.mxu0 0.0
      %5591 = vmatpush1.msra.mxu0 0.0
      %5592 = vmatprep.subr.mxu0 0.0
      %5593 = vmatpush1.msra.mxu0 0.0
      %5594 = vmatprep.subr.mxu0 0.0
      %5595 = vmatpush1.msra.mxu0 0.0
      %5596 = vmatprep.subr.mxu0 0.0
      %5597 = vmatpush1.msra.mxu0 0.0
      %5598 = vmatprep.subr.mxu0 0.0
      %5599 = vmatpush1.msra.mxu0 0.0
      %5600 = vmatprep.subr.mxu0 0.0
      %5601 = vmatpush1.msra.mxu0 0.0
      %5602 = vmatprep.subr.mxu0 0.0
      %5603 = vmatpush1.msra.mxu0 0.0
      %5604 = vmatprep.subr.mxu0 0.0
      %5605 = vmatpush1.msra.mxu0 0.0
      %5606 = vmatprep.subr.mxu0 0.0
      %5607 = vmatpush1.msra.mxu0 0.0
      %5608 = vmatprep.subr.mxu0 0.0
      %5609 = vmatpush1.msra.mxu0 0.0
      %5610 = vmatprep.subr.mxu0 0.0
      %5611 = vmatpush1.msra.mxu0 0.0
      %5612 = vmatprep.subr.mxu0 0.0
      %5613 = vmatpush1.msra.mxu0 0.0
      %5614 = vmatprep.subr.mxu0 0.0
      %5615 = vmatpush1.msra.mxu0 0.0
      %5616 = vmatprep.subr.mxu0 0.0
      %5617 = vmatpush1.msra.mxu0 0.0
      %5618 = vmatprep.mubr.f32.mxu0 0.0
      %5619 = vmatmul.mubr.f32.gmra.mrb[0].mxu0 %v5444
      %v5620 = vpop.f32.mrb[0].mxu0
      %v5621 = vadd.f32 0.0, %v5620
      %v5622 = vpop.f32.mrb[0].mxu0
      %5623 = vmatprep.mubr.f32.mxu0 0.0
      %5624 = vmatmul.mubr.f32.gmra.mrb[0].mxu0 %v5447
      %v5625 = vpop.f32.mrb[0].mxu0
      %v5626 = vadd.f32 0.0, %v5625
      %v5627 = vpop.f32.mrb[0].mxu0
      %5628 = vmatprep.mubr.f32.mxu0 0.0
      %5629 = vmatmul.mubr.f32.gmra.mrb[0].mxu0 %v5450
      %v5630 = vpop.f32.mrb[0].mxu0
      %v5631 = vadd.f32 0.0, %v5630
      %v5632 = vpop.f32.mrb[0].mxu0
      %5633 = vmatprep.mubr.f32.mxu0 0.0
      %5634 = vmatmul.mubr.f32.gmra.mrb[0].mxu0 %v5453
      %v5635 = vpop.f32.mrb[0].mxu0
      %v5636 = vadd.f32 0.0, %v5635
      %v5637 = vpop.f32.mrb[0].mxu0
      %5638 = vmatprep.mubr.f32.mxu0 0.0
      %5639 = vmatmul.mubr.f32.gmra.mrb[0].mxu0 %v5456
      %v5640 = vpop.f32.mrb[0].mxu0
      %v5641 = vadd.f32 0.0, %v5640
      %v5642 = vpop.f32.mrb[0].mxu0
      %5643 = vmatprep.mubr.f32.mxu0 0.0
      %5644 = vmatmul.mubr.f32.gmra.mrb[0].mxu0 %v5459
      %v5645 = vpop.f32.mrb[0].mxu0
      %v5646 = vadd.f32 0.0, %v5645
      %v5647 = vpop.f32.mrb[0].mxu0
      %5648 = vmatprep.mubr.f32.mxu0 0.0
      %5649 = vmatmul.mubr.f32.gmra.mrb[0].mxu0 %v5462
      %v5650 = vpop.f32.mrb[0].mxu0
      %v5651 = vadd.f32 0.0, %v5650
      %v5652 = vpop.f32.mrb[0].mxu0
      %5653 = vmatprep.mubr.f32.mxu0 0.0
      %5654 = vmatmul.mubr.f32.gmra.mrb[0].mxu0 %v5465
      %v5655 = vpop.f32.mrb[0].mxu0
      %v5656 = vadd.f32 0.0, %v5655
      %v5657 = vpop.f32.mrb[0].mxu0
      %5658 = vmatprep.mubr.f32.mxu0 0.0
      %5659 = vmatmul.mubr.f32.gmra.mrb[0].mxu0 %v5468
      %v5660 = vpop.f32.mrb[0].mxu0
      %v5661 = vadd.f32 0.0, %v5660
      %v5662 = vpop.f32.mrb[0].mxu0
      %5663 = vmatprep.mubr.f32.mxu0 0.0
      %5664 = vmatmul.mubr.f32.gmra.mrb[0].mxu0 %v5471
      %v5665 = vpop.f32.mrb[0].mxu0
      %v5666 = vadd.f32 0.0, %v5665
      %v5667 = vpop.f32.mrb[0].mxu0
      %5668 = vmatprep.mubr.f32.mxu0 0.0
      %5669 = vmatmul.mubr.f32.gmra.mrb[0].mxu0 %v5474
      %v5670 = vpop.f32.mrb[0].mxu0
      %v5671 = vadd.f32 0.0, %v5670
      %v5672 = vpop.f32.mrb[0].mxu0
      %5673 = vmatprep.mubr.f32.mxu0 0.0
      %5674 = vmatmul.mubr.f32.gmra.mrb[0].mxu0 %v5477
      %v5675 = vpop.f32.mrb[0].mxu0
      %v5676 = vadd.f32 0.0, %v5675
      %v5677 = vpop.f32.mrb[0].mxu0
      %5678 = vmatprep.mubr.f32.mxu0 0.0
      %5679 = vmatmul.mubr.f32.gmra.mrb[0].mxu0 %v5480
      %v5680 = vpop.f32.mrb[0].mxu0
      %v5681 = vadd.f32 0.0, %v5680
      %v5682 = vpop.f32.mrb[0].mxu0
      %5683 = vmatprep.mubr.f32.mxu0 0.0
      %5684 = vmatmul.mubr.f32.gmra.mrb[0].mxu0 %v5483
      %v5685 = vpop.f32.mrb[0].mxu0
      %v5686 = vadd.f32 0.0, %v5685
      %v5687 = vpop.f32.mrb[0].mxu0
      %5688 = vmatprep.mubr.f32.mxu0 0.0
      %5689 = vmatmul.mubr.f32.gmra.mrb[0].mxu0 %v5486
      %v5690 = vpop.f32.mrb[0].mxu0
      %v5691 = vadd.f32 0.0, %v5690
      %v5692 = vpop.f32.mrb[0].mxu0
      %5693 = vmatprep.mubr.f32.mxu0 0.0
      %5694 = vmatmul.mubr.f32.gmra.mrb[0].mxu0 %v5489
      %v5695 = vpop.f32.mrb[0].mxu0
      %v5696 = vadd.f32 0.0, %v5695
      %v5697 = vpop.f32.mrb[0].mxu0
      %5698 = vmatprep.mubr.f32.mxu0 0.0
      %5699 = vmatmul.mubr.f32.gmra.mrb[0].mxu0 %v5492
      %v5700 = vpop.f32.mrb[0].mxu0
      %v5701 = vadd.f32 0.0, %v5700
      %v5702 = vpop.f32.mrb[0].mxu0
      %5703 = vmatprep.mubr.f32.mxu0 0.0
      %5704 = vmatmul.mubr.f32.gmra.mrb[0].mxu0 %v5495
      %v5705 = vpop.f32.mrb[0].mxu0
      %v5706 = vadd.f32 0.0, %v5705
      %v5707 = vpop.f32.mrb[0].mxu0
      %5708 = vmatprep.mubr.f32.mxu0 0.0
      %5709 = vmatmul.mubr.f32.gmra.mrb[0].mxu0 %v5498
      %v5710 = vpop.f32.mrb[0].mxu0
      %v5711 = vadd.f32 0.0, %v5710
      %v5712 = vpop.f32.mrb[0].mxu0
      %5713 = vmatprep.mubr.f32.mxu0 0.0
      %5714 = vmatmul.mubr.f32.gmra.mrb[0].mxu0 %v5501
      %v5715 = vpop.f32.mrb[0].mxu0
      %v5716 = vadd.f32 0.0, %v5715
      %v5717 = vpop.f32.mrb[0].mxu0
      %5718 = vmatprep.mubr.f32.mxu0 0.0
      %5719 = vmatmul.mubr.f32.gmra.mrb[0].mxu0 %v5504
      %v5720 = vpop.f32.mrb[0].mxu0
      %v5721 = vadd.f32 0.0, %v5720
      %v5722 = vpop.f32.mrb[0].mxu0
      %5723 = vmatprep.mubr.f32.mxu0 0.0
      %5724 = vmatmul.mubr.f32.gmra.mrb[0].mxu0 %v5507
      %v5725 = vpop.f32.mrb[0].mxu0
      %v5726 = vadd.f32 0.0, %v5725
      %v5727 = vpop.f32.mrb[0].mxu0
      %5728 = vmatprep.mubr.f32.mxu0 0.0
      %5729 = vmatmul.mubr.f32.gmra.mrb[0].mxu0 %v5510
      %v5730 = vpop.f32.mrb[0].mxu0
      %v5731 = vadd.f32 0.0, %v5730
      %v5732 = vpop.f32.mrb[0].mxu0
      %5733 = vmatprep.mubr.f32.mxu0 0.0
      %5734 = vmatmul.mubr.f32.gmra.mrb[0].mxu0 %v5513
      %v5735 = vpop.f32.mrb[0].mxu0
      %v5736 = vadd.f32 0.0, %v5735
      %v5737 = vpop.f32.mrb[0].mxu0
      %5738 = vmatprep.mubr.f32.mxu0 0.0
      %5739 = vmatmul.mubr.f32.gmra.mrb[0].mxu0 %v5516
      %v5740 = vpop.f32.mrb[0].mxu0
      %v5741 = vadd.f32 0.0, %v5740
      %v5742 = vpop.f32.mrb[0].mxu0
      %5743 = vmatprep.mubr.f32.mxu0 0.0
      %5744 = vmatmul.mubr.f32.gmra.mrb[0].mxu0 %v5519
      %v5745 = vpop.f32.mrb[0].mxu0
      %v5746 = vadd.f32 0.0, %v5745
      %v5747 = vpop.f32.mrb[0].mxu0
      %5748 = vmatprep.mubr.f32.mxu0 0.0
      %5749 = vmatmul.mubr.f32.gmra.mrb[0].mxu0 %v5522
      %v5750 = vpop.f32.mrb[0].mxu0
      %v5751 = vadd.f32 0.0, %v5750
      %v5752 = vpop.f32.mrb[0].mxu0
      %5753 = vmatprep.mubr.f32.mxu0 0.0
      %5754 = vmatmul.mubr.f32.gmra.mrb[0].mxu0 %v5525
      %v5755 = vpop.f32.mrb[0].mxu0
      %v5756 = vadd.f32 0.0, %v5755
      %v5757 = vpop.f32.mrb[0].mxu0
      %5758 = vmatprep.mubr.f32.mxu0 0.0
      %5759 = vmatmul.mubr.f32.gmra.mrb[0].mxu0 %v5528
      %v5760 = vpop.f32.mrb[0].mxu0
      %v5761 = vadd.f32 0.0, %v5760
      %v5762 = vpop.f32.mrb[0].mxu0
      %5763 = vmatprep.mubr.f32.mxu0 0.0
      %5764 = vmatmul.mubr.f32.gmra.mrb[0].mxu0 %v5531
      %v5765 = vpop.f32.mrb[0].mxu0
      %v5766 = vadd.f32 0.0, %v5765
      %v5767 = vpop.f32.mrb[0].mxu0
      %5768 = vmatprep.mubr.f32.mxu0 0.0
      %5769 = vmatmul.mubr.f32.gmra.mrb[0].mxu0 %v5534
      %v5770 = vpop.f32.mrb[0].mxu0
      %v5771 = vadd.f32 0.0, %v5770
      %v5772 = vpop.f32.mrb[0].mxu0
      %5773 = vmatprep.mubr.f32.mxu0 0.0
      %5774 = vmatmul.mubr.f32.gmra.mrb[0].mxu0 %v5537
      %v5775 = vpop.f32.mrb[0].mxu0
      %v5776 = vadd.f32 0.0, %v5775
      %v5777 = vpop.f32.mrb[0].mxu0
      %5778 = vmatprep.mubr.f32.mxu0 0.0
      %5779 = vmatmul.mubr.f32.gmra.mrb[0].mxu0 %v5540
      %v5780 = vpop.f32.mrb[0].mxu0
      %v5781 = vadd.f32 0.0, %v5780
      %v5782 = vpop.f32.mrb[0].mxu0
      %5783 = vmatprep.mubr.f32.mxu0 0.0
      %5784 = vmatmul.mubr.f32.gmra.mrb[0].mxu0 %v5543
      %v5785 = vpop.f32.mrb[0].mxu0
      %v5786 = vadd.f32 0.0, %v5785
      %v5787 = vpop.f32.mrb[0].mxu0
      %5788 = vmatprep.mubr.f32.mxu0 0.0
      %5789 = vmatmul.mubr.f32.gmra.mrb[0].mxu0 %v5546
      %v5790 = vpop.f32.mrb[0].mxu0
      %v5791 = vadd.f32 0.0, %v5790
      %v5792 = vpop.f32.mrb[0].mxu0
      %5793 = vmatprep.mubr.f32.mxu0 0.0
      %5794 = vmatmul.mubr.f32.gmra.mrb[0].mxu0 %v5549
      %v5795 = vpop.f32.mrb[0].mxu0
      %v5796 = vadd.f32 0.0, %v5795
      %v5797 = vpop.f32.mrb[0].mxu0
      %5798 = vdwg.mxu0
      %v5799 = vadd.f32 %v5369, %v5621
      %v5800 = vadd.f32 %v5370, %v5626
      %v5801 = vadd.f32 %v5371, %v5631
      %v5802 = vadd.f32 %v5372, %v5636
      %v5803 = vadd.f32 %v5373, %v5641
      %v5804 = vadd.f32 %v5374, %v5646
      %v5805 = vadd.f32 %v5375, %v5651
      %v5806 = vadd.f32 %v5376, %v5656
      %v5807 = vadd.f32 %v5377, %v5661
      %v5808 = vadd.f32 %v5378, %v5666
      %v5809 = vadd.f32 %v5379, %v5671
      %v5810 = vadd.f32 %v5380, %v5676
      %v5811 = vadd.f32 %v5381, %v5681
      %v5812 = vadd.f32 %v5382, %v5686
      %v5813 = vadd.f32 %v5383, %v5691
      %v5814 = vadd.f32 %v5384, %v5696
      %v5815 = vadd.f32 %v5385, %v5701
      %v5816 = vadd.f32 %v5386, %v5706
      %v5817 = vadd.f32 %v5387, %v5711
      %v5818 = vadd.f32 %v5388, %v5716
      %v5819 = vadd.f32 %v5389, %v5721
      %v5820 = vadd.f32 %v5390, %v5726
      %v5821 = vadd.f32 %v5391, %v5731
      %v5822 = vadd.f32 %v5392, %v5736
      %v5823 = vadd.f32 %v5393, %v5741
      %v5824 = vadd.f32 %v5394, %v5746
      %v5825 = vadd.f32 %v5395, %v5751
      %v5826 = vadd.f32 %v5396, %v5756
      %v5827 = vadd.f32 %v5397, %v5761
      %v5828 = vadd.f32 %v5398, %v5766
      %v5829 = vadd.f32 %v5399, %v5771
      %v5830 = vadd.f32 %v5400, %v5776
      %v5831 = vadd.f32 %v5401, %v5781
      %v5832 = vadd.f32 %v5402, %v5786
      %v5833 = vadd.f32 %v5403, %v5791
      %v5834 = vadd.f32 %v5404, %v5796
      %v5835 = vld [vmem:[#allocation2 + $0x26] sm:$0xff]
      %v5836 = vld [vmem:[#allocation2 + $0x2e] sm:$0xff]
      %v5837 = vld [vmem:[#allocation2 + $0x36] sm:$0xff]
      %v5838 = vld [vmem:[#allocation2 + $0x3e] sm:$0xff]
      %v5839 = vld [vmem:[#allocation2 + $0x46] sm:$0xff]
      %v5840 = vld [vmem:[#allocation2 + $0x4e] sm:$0xff]
      %v5841 = vld [vmem:[#allocation2 + $0x56] sm:$0xff]
      %v5842 = vld [vmem:[#allocation2 + $0x5e] sm:$0xff]
      %v5843 = vld [vmem:[#allocation2 + $0x66] sm:$0xff]
      %v5844 = vld [vmem:[#allocation2 + $0x6e] sm:$0xff]
      %v5845 = vld [vmem:[#allocation2 + $0x76] sm:$0xff]
      %v5846 = vld [vmem:[#allocation2 + $0x7e] sm:$0xff]
      %v5847 = vld [vmem:[#allocation2 + $0x86] sm:$0xff]
      %v5848 = vld [vmem:[#allocation2 + $0x8e] sm:$0xff]
      %v5849 = vld [vmem:[#allocation2 + $0x96] sm:$0xff]
      %v5850 = vld [vmem:[#allocation2 + $0x9e] sm:$0xff]
      %v5851 = vld [vmem:[#allocation2 + $0xa6] sm:$0xff]
      %v5852 = vld [vmem:[#allocation2 + $0xae] sm:$0xff]
      %v5853 = vld [vmem:[#allocation2 + $0xb6] sm:$0xff]
      %v5854 = vld [vmem:[#allocation2 + $0xbe] sm:$0xff]
      %v5855 = vld [vmem:[#allocation2 + $0xc6] sm:$0xff]
      %v5856 = vld [vmem:[#allocation2 + $0xce] sm:$0xff]
      %v5857 = vld [vmem:[#allocation2 + $0xd6] sm:$0xff]
      %v5858 = vld [vmem:[#allocation2 + $0xde] sm:$0xff]
      %v5859 = vld [vmem:[#allocation2 + $0xe6] sm:$0xff]
      %v5860 = vld [vmem:[#allocation2 + $0xee] sm:$0xff]
      %v5861 = vld [vmem:[#allocation2 + $0xf6] sm:$0xff]
      %v5862 = vld [vmem:[#allocation2 + $0xfe] sm:$0xff]
      %v5863 = vld [vmem:[#allocation2 + $0x106] sm:$0xff]
      %v5864 = vld [vmem:[#allocation2 + $0x10e] sm:$0xff]
      %v5865 = vld [vmem:[#allocation2 + $0x116] sm:$0xff]
      %v5866 = vld [vmem:[#allocation2 + $0x11e] sm:$0xff]
      %v5867 = vld [vmem:[#allocation2 + $0x126] sm:$0xff]
      %v5868 = vld [vmem:[#allocation2 + $0x12e] sm:$0xff]
      %v5869 = vld [vmem:[#allocation2 + $0x136] sm:$0xff]
      %v5870 = vld [vmem:[#allocation2 + $0x13e] sm:$0xff]
      %s5871 = scalar_lea.vmem %s3, 32
      %v5872 = vld [vmem:[%s5871] sm:$0xf]
      %v5874 = vsel %vm2193, %v5835, 0
      %v5877 = vsel %vm2193, %v5836, 0
      %v5880 = vsel %vm2193, %v5837, 0
      %v5883 = vsel %vm2193, %v5838, 0
      %v5886 = vsel %vm2193, %v5839, 0
      %v5889 = vsel %vm2193, %v5840, 0
      %v5892 = vsel %vm2193, %v5841, 0
      %v5895 = vsel %vm2193, %v5842, 0
      %v5898 = vsel %vm2193, %v5843, 0
      %v5901 = vsel %vm2193, %v5844, 0
      %v5904 = vsel %vm2193, %v5845, 0
      %v5907 = vsel %vm2193, %v5846, 0
      %v5910 = vsel %vm2193, %v5847, 0
      %v5913 = vsel %vm2193, %v5848, 0
      %v5916 = vsel %vm2193, %v5849, 0
      %v5919 = vsel %vm2193, %v5850, 0
      %v5922 = vsel %vm2193, %v5851, 0
      %v5925 = vsel %vm2193, %v5852, 0
      %v5928 = vsel %vm2193, %v5853, 0
      %v5931 = vsel %vm2193, %v5854, 0
      %v5934 = vsel %vm2193, %v5855, 0
      %v5937 = vsel %vm2193, %v5856, 0
      %v5940 = vsel %vm2193, %v5857, 0
      %v5943 = vsel %vm2193, %v5858, 0
      %v5946 = vsel %vm2193, %v5859, 0
      %v5949 = vsel %vm2193, %v5860, 0
      %v5952 = vsel %vm2193, %v5861, 0
      %v5955 = vsel %vm2193, %v5862, 0
      %v5958 = vsel %vm2193, %v5863, 0
      %v5961 = vsel %vm2193, %v5864, 0
      %v5964 = vsel %vm2193, %v5865, 0
      %v5967 = vsel %vm2193, %v5866, 0
      %v5970 = vsel %vm2193, %v5867, 0
      %v5973 = vsel %vm2193, %v5868, 0
      %v5976 = vsel %vm2193, %v5869, 0
      %v5979 = vsel %vm2193, %v5870, 0
      %v5982 = vsel %vm2650, %v5872, 0
      %5984 = vmatprep.subr.mxu0 0.0
      %5985 = vmatpush1.msra.mxu0 %v5982
      %5986 = vmatprep.subr.mxu0 0.0
      %5987 = vmatpush1.msra.mxu0 0.0
      %5988 = vmatprep.subr.mxu0 0.0
      %5989 = vmatpush1.msra.mxu0 0.0
      %5990 = vmatprep.subr.mxu0 0.0
      %5991 = vmatpush1.msra.mxu0 0.0
      %5992 = vmatprep.subr.mxu0 0.0
      %5993 = vmatpush1.msra.mxu0 0.0
      %5994 = vmatprep.subr.mxu0 0.0
      %5995 = vmatpush1.msra.mxu0 0.0
      %5996 = vmatprep.subr.mxu0 0.0
      %5997 = vmatpush1.msra.mxu0 0.0
      %5998 = vmatprep.subr.mxu0 0.0
      %5999 = vmatpush1.msra.mxu0 0.0
      %6000 = vmatprep.subr.mxu0 0.0
      %6001 = vmatpush1.msra.mxu0 0.0
      %6002 = vmatprep.subr.mxu0 0.0
      %6003 = vmatpush1.msra.mxu0 0.0
      %6004 = vmatprep.subr.mxu0 0.0
      %6005 = vmatpush1.msra.mxu0 0.0
      %6006 = vmatprep.subr.mxu0 0.0
      %6007 = vmatpush1.msra.mxu0 0.0
      %6008 = vmatprep.subr.mxu0 0.0
      %6009 = vmatpush1.msra.mxu0 0.0
      %6010 = vmatprep.subr.mxu0 0.0
      %6011 = vmatpush1.msra.mxu0 0.0
      %6012 = vmatprep.subr.mxu0 0.0
      %6013 = vmatpush1.msra.mxu0 0.0
      %6014 = vmatprep.subr.mxu0 0.0
      %6015 = vmatpush1.msra.mxu0 0.0
      %6016 = vmatprep.subr.mxu0 0.0
      %6017 = vmatpush1.msra.mxu0 0.0
      %6018 = vmatprep.subr.mxu0 0.0
      %6019 = vmatpush1.msra.mxu0 0.0
      %6020 = vmatprep.subr.mxu0 0.0
      %6021 = vmatpush1.msra.mxu0 0.0
      %6022 = vmatprep.subr.mxu0 0.0
      %6023 = vmatpush1.msra.mxu0 0.0
      %6024 = vmatprep.subr.mxu0 0.0
      %6025 = vmatpush1.msra.mxu0 0.0
      %6026 = vmatprep.subr.mxu0 0.0
      %6027 = vmatpush1.msra.mxu0 0.0
      %6028 = vmatprep.subr.mxu0 0.0
      %6029 = vmatpush1.msra.mxu0 0.0
      %6030 = vmatprep.subr.mxu0 0.0
      %6031 = vmatpush1.msra.mxu0 0.0
      %6032 = vmatprep.subr.mxu0 0.0
      %6033 = vmatpush1.msra.mxu0 0.0
      %6034 = vmatprep.subr.mxu0 0.0
      %6035 = vmatpush1.msra.mxu0 0.0
      %6036 = vmatprep.subr.mxu0 0.0
      %6037 = vmatpush1.msra.mxu0 0.0
      %6038 = vmatprep.subr.mxu0 0.0
      %6039 = vmatpush1.msra.mxu0 0.0
      %6040 = vmatprep.subr.mxu0 0.0
      %6041 = vmatpush1.msra.mxu0 0.0
      %6042 = vmatprep.subr.mxu0 0.0
      %6043 = vmatpush1.msra.mxu0 0.0
      %6044 = vmatprep.subr.mxu0 0.0
      %6045 = vmatpush1.msra.mxu0 0.0
      %6046 = vmatprep.subr.mxu0 0.0
      %6047 = vmatpush1.msra.mxu0 0.0
      %6048 = vmatprep.mubr.f32.mxu0 0.0
      %6049 = vmatmul.mubr.f32.gmra.mrb[0].mxu0 %v5874
      %v6050 = vpop.f32.mrb[0].mxu0
      %v6051 = vadd.f32 0.0, %v6050
      %v6052 = vpop.f32.mrb[0].mxu0
      %6053 = vmatprep.mubr.f32.mxu0 0.0
      %6054 = vmatmul.mubr.f32.gmra.mrb[0].mxu0 %v5877
      %v6055 = vpop.f32.mrb[0].mxu0
      %v6056 = vadd.f32 0.0, %v6055
      %v6057 = vpop.f32.mrb[0].mxu0
      %6058 = vmatprep.mubr.f32.mxu0 0.0
      %6059 = vmatmul.mubr.f32.gmra.mrb[0].mxu0 %v5880
      %v6060 = vpop.f32.mrb[0].mxu0
      %v6061 = vadd.f32 0.0, %v6060
      %v6062 = vpop.f32.mrb[0].mxu0
      %6063 = vmatprep.mubr.f32.mxu0 0.0
      %6064 = vmatmul.mubr.f32.gmra.mrb[0].mxu0 %v5883
      %v6065 = vpop.f32.mrb[0].mxu0
      %v6066 = vadd.f32 0.0, %v6065
      %v6067 = vpop.f32.mrb[0].mxu0
      %6068 = vmatprep.mubr.f32.mxu0 0.0
      %6069 = vmatmul.mubr.f32.gmra.mrb[0].mxu0 %v5886
      %v6070 = vpop.f32.mrb[0].mxu0
      %v6071 = vadd.f32 0.0, %v6070
      %v6072 = vpop.f32.mrb[0].mxu0
      %6073 = vmatprep.mubr.f32.mxu0 0.0
      %6074 = vmatmul.mubr.f32.gmra.mrb[0].mxu0 %v5889
      %v6075 = vpop.f32.mrb[0].mxu0
      %v6076 = vadd.f32 0.0, %v6075
      %v6077 = vpop.f32.mrb[0].mxu0
      %6078 = vmatprep.mubr.f32.mxu0 0.0
      %6079 = vmatmul.mubr.f32.gmra.mrb[0].mxu0 %v5892
      %v6080 = vpop.f32.mrb[0].mxu0
      %v6081 = vadd.f32 0.0, %v6080
      %v6082 = vpop.f32.mrb[0].mxu0
      %6083 = vmatprep.mubr.f32.mxu0 0.0
      %6084 = vmatmul.mubr.f32.gmra.mrb[0].mxu0 %v5895
      %v6085 = vpop.f32.mrb[0].mxu0
      %v6086 = vadd.f32 0.0, %v6085
      %v6087 = vpop.f32.mrb[0].mxu0
      %6088 = vmatprep.mubr.f32.mxu0 0.0
      %6089 = vmatmul.mubr.f32.gmra.mrb[0].mxu0 %v5898
      %v6090 = vpop.f32.mrb[0].mxu0
      %v6091 = vadd.f32 0.0, %v6090
      %v6092 = vpop.f32.mrb[0].mxu0
      %6093 = vmatprep.mubr.f32.mxu0 0.0
      %6094 = vmatmul.mubr.f32.gmra.mrb[0].mxu0 %v5901
      %v6095 = vpop.f32.mrb[0].mxu0
      %v6096 = vadd.f32 0.0, %v6095
      %v6097 = vpop.f32.mrb[0].mxu0
      %6098 = vmatprep.mubr.f32.mxu0 0.0
      %6099 = vmatmul.mubr.f32.gmra.mrb[0].mxu0 %v5904
      %v6100 = vpop.f32.mrb[0].mxu0
      %v6101 = vadd.f32 0.0, %v6100
      %v6102 = vpop.f32.mrb[0].mxu0
      %6103 = vmatprep.mubr.f32.mxu0 0.0
      %6104 = vmatmul.mubr.f32.gmra.mrb[0].mxu0 %v5907
      %v6105 = vpop.f32.mrb[0].mxu0
      %v6106 = vadd.f32 0.0, %v6105
      %v6107 = vpop.f32.mrb[0].mxu0
      %6108 = vmatprep.mubr.f32.mxu0 0.0
      %6109 = vmatmul.mubr.f32.gmra.mrb[0].mxu0 %v5910
      %v6110 = vpop.f32.mrb[0].mxu0
      %v6111 = vadd.f32 0.0, %v6110
      %v6112 = vpop.f32.mrb[0].mxu0
      %6113 = vmatprep.mubr.f32.mxu0 0.0
      %6114 = vmatmul.mubr.f32.gmra.mrb[0].mxu0 %v5913
      %v6115 = vpop.f32.mrb[0].mxu0
      %v6116 = vadd.f32 0.0, %v6115
      %v6117 = vpop.f32.mrb[0].mxu0
      %6118 = vmatprep.mubr.f32.mxu0 0.0
      %6119 = vmatmul.mubr.f32.gmra.mrb[0].mxu0 %v5916
      %v6120 = vpop.f32.mrb[0].mxu0
      %v6121 = vadd.f32 0.0, %v6120
      %v6122 = vpop.f32.mrb[0].mxu0
      %6123 = vmatprep.mubr.f32.mxu0 0.0
      %6124 = vmatmul.mubr.f32.gmra.mrb[0].mxu0 %v5919
      %v6125 = vpop.f32.mrb[0].mxu0
      %v6126 = vadd.f32 0.0, %v6125
      %v6127 = vpop.f32.mrb[0].mxu0
      %6128 = vmatprep.mubr.f32.mxu0 0.0
      %6129 = vmatmul.mubr.f32.gmra.mrb[0].mxu0 %v5922
      %v6130 = vpop.f32.mrb[0].mxu0
      %v6131 = vadd.f32 0.0, %v6130
      %v6132 = vpop.f32.mrb[0].mxu0
      %6133 = vmatprep.mubr.f32.mxu0 0.0
      %6134 = vmatmul.mubr.f32.gmra.mrb[0].mxu0 %v5925
      %v6135 = vpop.f32.mrb[0].mxu0
      %v6136 = vadd.f32 0.0, %v6135
      %v6137 = vpop.f32.mrb[0].mxu0
      %6138 = vmatprep.mubr.f32.mxu0 0.0
      %6139 = vmatmul.mubr.f32.gmra.mrb[0].mxu0 %v5928
      %v6140 = vpop.f32.mrb[0].mxu0
      %v6141 = vadd.f32 0.0, %v6140
      %v6142 = vpop.f32.mrb[0].mxu0
      %6143 = vmatprep.mubr.f32.mxu0 0.0
      %6144 = vmatmul.mubr.f32.gmra.mrb[0].mxu0 %v5931
      %v6145 = vpop.f32.mrb[0].mxu0
      %v6146 = vadd.f32 0.0, %v6145
      %v6147 = vpop.f32.mrb[0].mxu0
      %6148 = vmatprep.mubr.f32.mxu0 0.0
      %6149 = vmatmul.mubr.f32.gmra.mrb[0].mxu0 %v5934
      %v6150 = vpop.f32.mrb[0].mxu0
      %v6151 = vadd.f32 0.0, %v6150
      %v6152 = vpop.f32.mrb[0].mxu0
      %6153 = vmatprep.mubr.f32.mxu0 0.0
      %6154 = vmatmul.mubr.f32.gmra.mrb[0].mxu0 %v5937
      %v6155 = vpop.f32.mrb[0].mxu0
      %v6156 = vadd.f32 0.0, %v6155
      %v6157 = vpop.f32.mrb[0].mxu0
      %6158 = vmatprep.mubr.f32.mxu0 0.0
      %6159 = vmatmul.mubr.f32.gmra.mrb[0].mxu0 %v5940
      %v6160 = vpop.f32.mrb[0].mxu0
      %v6161 = vadd.f32 0.0, %v6160
      %v6162 = vpop.f32.mrb[0].mxu0
      %6163 = vmatprep.mubr.f32.mxu0 0.0
      %6164 = vmatmul.mubr.f32.gmra.mrb[0].mxu0 %v5943
      %v6165 = vpop.f32.mrb[0].mxu0
      %v6166 = vadd.f32 0.0, %v6165
      %v6167 = vpop.f32.mrb[0].mxu0
      %6168 = vmatprep.mubr.f32.mxu0 0.0
      %6169 = vmatmul.mubr.f32.gmra.mrb[0].mxu0 %v5946
      %v6170 = vpop.f32.mrb[0].mxu0
      %v6171 = vadd.f32 0.0, %v6170
      %v6172 = vpop.f32.mrb[0].mxu0
      %6173 = vmatprep.mubr.f32.mxu0 0.0
      %6174 = vmatmul.mubr.f32.gmra.mrb[0].mxu0 %v5949
      %v6175 = vpop.f32.mrb[0].mxu0
      %v6176 = vadd.f32 0.0, %v6175
      %v6177 = vpop.f32.mrb[0].mxu0
      %6178 = vmatprep.mubr.f32.mxu0 0.0
      %6179 = vmatmul.mubr.f32.gmra.mrb[0].mxu0 %v5952
      %v6180 = vpop.f32.mrb[0].mxu0
      %v6181 = vadd.f32 0.0, %v6180
      %v6182 = vpop.f32.mrb[0].mxu0
      %6183 = vmatprep.mubr.f32.mxu0 0.0
      %6184 = vmatmul.mubr.f32.gmra.mrb[0].mxu0 %v5955
      %v6185 = vpop.f32.mrb[0].mxu0
      %v6186 = vadd.f32 0.0, %v6185
      %v6187 = vpop.f32.mrb[0].mxu0
      %6188 = vmatprep.mubr.f32.mxu0 0.0
      %6189 = vmatmul.mubr.f32.gmra.mrb[0].mxu0 %v5958
      %v6190 = vpop.f32.mrb[0].mxu0
      %v6191 = vadd.f32 0.0, %v6190
      %v6192 = vpop.f32.mrb[0].mxu0
      %6193 = vmatprep.mubr.f32.mxu0 0.0
      %6194 = vmatmul.mubr.f32.gmra.mrb[0].mxu0 %v5961
      %v6195 = vpop.f32.mrb[0].mxu0
      %v6196 = vadd.f32 0.0, %v6195
      %v6197 = vpop.f32.mrb[0].mxu0
      %6198 = vmatprep.mubr.f32.mxu0 0.0
      %6199 = vmatmul.mubr.f32.gmra.mrb[0].mxu0 %v5964
      %v6200 = vpop.f32.mrb[0].mxu0
      %v6201 = vadd.f32 0.0, %v6200
      %v6202 = vpop.f32.mrb[0].mxu0
      %6203 = vmatprep.mubr.f32.mxu0 0.0
      %6204 = vmatmul.mubr.f32.gmra.mrb[0].mxu0 %v5967
      %v6205 = vpop.f32.mrb[0].mxu0
      %v6206 = vadd.f32 0.0, %v6205
      %v6207 = vpop.f32.mrb[0].mxu0
      %6208 = vmatprep.mubr.f32.mxu0 0.0
      %6209 = vmatmul.mubr.f32.gmra.mrb[0].mxu0 %v5970
      %v6210 = vpop.f32.mrb[0].mxu0
      %v6211 = vadd.f32 0.0, %v6210
      %v6212 = vpop.f32.mrb[0].mxu0
      %6213 = vmatprep.mubr.f32.mxu0 0.0
      %6214 = vmatmul.mubr.f32.gmra.mrb[0].mxu0 %v5973
      %v6215 = vpop.f32.mrb[0].mxu0
      %v6216 = vadd.f32 0.0, %v6215
      %v6217 = vpop.f32.mrb[0].mxu0
      %6218 = vmatprep.mubr.f32.mxu0 0.0
      %6219 = vmatmul.mubr.f32.gmra.mrb[0].mxu0 %v5976
      %v6220 = vpop.f32.mrb[0].mxu0
      %v6221 = vadd.f32 0.0, %v6220
      %v6222 = vpop.f32.mrb[0].mxu0
      %6223 = vmatprep.mubr.f32.mxu0 0.0
      %6224 = vmatmul.mubr.f32.gmra.mrb[0].mxu0 %v5979
      %v6225 = vpop.f32.mrb[0].mxu0
      %v6226 = vadd.f32 0.0, %v6225
      %v6227 = vpop.f32.mrb[0].mxu0
      %6228 = vdwg.mxu0
      %v6229 = vadd.f32 %v5799, %v6051
      %v6230 = vadd.f32 %v5800, %v6056
      %v6231 = vadd.f32 %v5801, %v6061
      %v6232 = vadd.f32 %v5802, %v6066
      %v6233 = vadd.f32 %v5803, %v6071
      %v6234 = vadd.f32 %v5804, %v6076
      %v6235 = vadd.f32 %v5805, %v6081
      %v6236 = vadd.f32 %v5806, %v6086
      %v6237 = vadd.f32 %v5807, %v6091
      %v6238 = vadd.f32 %v5808, %v6096
      %v6239 = vadd.f32 %v5809, %v6101
      %v6240 = vadd.f32 %v5810, %v6106
      %v6241 = vadd.f32 %v5811, %v6111
      %v6242 = vadd.f32 %v5812, %v6116
      %v6243 = vadd.f32 %v5813, %v6121
      %v6244 = vadd.f32 %v5814, %v6126
      %v6245 = vadd.f32 %v5815, %v6131
      %v6246 = vadd.f32 %v5816, %v6136
      %v6247 = vadd.f32 %v5817, %v6141
      %v6248 = vadd.f32 %v5818, %v6146
      %v6249 = vadd.f32 %v5819, %v6151
      %v6250 = vadd.f32 %v5820, %v6156
      %v6251 = vadd.f32 %v5821, %v6161
      %v6252 = vadd.f32 %v5822, %v6166
      %v6253 = vadd.f32 %v5823, %v6171
      %v6254 = vadd.f32 %v5824, %v6176
      %v6255 = vadd.f32 %v5825, %v6181
      %v6256 = vadd.f32 %v5826, %v6186
      %v6257 = vadd.f32 %v5827, %v6191
      %v6258 = vadd.f32 %v5828, %v6196
      %v6259 = vadd.f32 %v5829, %v6201
      %v6260 = vadd.f32 %v5830, %v6206
      %v6261 = vadd.f32 %v5831, %v6211
      %v6262 = vadd.f32 %v5832, %v6216
      %v6263 = vadd.f32 %v5833, %v6221
      %v6264 = vadd.f32 %v5834, %v6226
      %v6265 = vld [vmem:[%s4] sm:$0x1]
      %v6266 = vlaneseq
      %v6267 = vshrl.u32 %v6266, 7
      %v6268 = vsub.s32 0, %v6267
      %v6269 = vrot.slane %v6265, %v6268
      %v6270 = vmul.f32 %v6229, %v6269
      %v6271 = vmul.f32 %v6230, %v6269
      %v6272 = vmul.f32 %v6231, %v6269
      %v6273 = vmul.f32 %v6232, %v6269
      %v6274 = vmul.f32 %v6233, %v6269
      %v6275 = vmul.f32 %v6234, %v6269
      %v6276 = vmul.f32 %v6235, %v6269
      %v6277 = vmul.f32 %v6236, %v6269
      %v6278 = vmul.f32 %v6237, %v6269
      %v6279 = vmul.f32 %v6238, %v6269
      %v6280 = vmul.f32 %v6239, %v6269
      %v6281 = vmul.f32 %v6240, %v6269
      %v6282 = vmul.f32 %v6241, %v6269
      %v6283 = vmul.f32 %v6242, %v6269
      %v6284 = vmul.f32 %v6243, %v6269
      %v6285 = vmul.f32 %v6244, %v6269
      %v6286 = vmul.f32 %v6245, %v6269
      %v6287 = vmul.f32 %v6246, %v6269
      %v6288 = vmul.f32 %v6247, %v6269
      %v6289 = vmul.f32 %v6248, %v6269
      %v6290 = vmul.f32 %v6249, %v6269
      %v6291 = vmul.f32 %v6250, %v6269
      %v6292 = vmul.f32 %v6251, %v6269
      %v6293 = vmul.f32 %v6252, %v6269
      %v6294 = vmul.f32 %v6253, %v6269
      %v6295 = vmul.f32 %v6254, %v6269
      %v6296 = vmul.f32 %v6255, %v6269
      %v6297 = vmul.f32 %v6256, %v6269
      %v6298 = vmul.f32 %v6257, %v6269
      %v6299 = vmul.f32 %v6258, %v6269
      %v6300 = vmul.f32 %v6259, %v6269
      %v6301 = vmul.f32 %v6260, %v6269
      %v6302 = vmul.f32 %v6261, %v6269
      %v6303 = vmul.f32 %v6262, %v6269
      %v6304 = vmul.f32 %v6263, %v6269
      %v6305 = vmul.f32 %v6264, %v6269
      %v6306 = vld [vmem:[%s4 + $0x1] sm:$0x1]
      %v6307 = vlaneseq
      %v6308 = vshrl.u32 %v6307, 7
      %v6309 = vsub.s32 0, %v6308
      %v6310 = vrot.slane %v6306, %v6309
      %v6311 = vadd.f32 %v6270, %v6310
      %v6312 = vadd.f32 %v6271, %v6310
      %v6313 = vadd.f32 %v6272, %v6310
      %v6314 = vadd.f32 %v6273, %v6310
      %v6315 = vadd.f32 %v6274, %v6310
      %v6316 = vadd.f32 %v6275, %v6310
      %v6317 = vadd.f32 %v6276, %v6310
      %v6318 = vadd.f32 %v6277, %v6310
      %v6319 = vadd.f32 %v6278, %v6310
      %v6320 = vadd.f32 %v6279, %v6310
      %v6321 = vadd.f32 %v6280, %v6310
      %v6322 = vadd.f32 %v6281, %v6310
      %v6323 = vadd.f32 %v6282, %v6310
      %v6324 = vadd.f32 %v6283, %v6310
      %v6325 = vadd.f32 %v6284, %v6310
      %v6326 = vadd.f32 %v6285, %v6310
      %v6327 = vadd.f32 %v6286, %v6310
      %v6328 = vadd.f32 %v6287, %v6310
      %v6329 = vadd.f32 %v6288, %v6310
      %v6330 = vadd.f32 %v6289, %v6310
      %v6331 = vadd.f32 %v6290, %v6310
      %v6332 = vadd.f32 %v6291, %v6310
      %v6333 = vadd.f32 %v6292, %v6310
      %v6334 = vadd.f32 %v6293, %v6310
      %v6335 = vadd.f32 %v6294, %v6310
      %v6336 = vadd.f32 %v6295, %v6310
      %v6337 = vadd.f32 %v6296, %v6310
      %v6338 = vadd.f32 %v6297, %v6310
      %v6339 = vadd.f32 %v6298, %v6310
      %v6340 = vadd.f32 %v6299, %v6310
      %v6341 = vadd.f32 %v6300, %v6310
      %v6342 = vadd.f32 %v6301, %v6310
      %v6343 = vadd.f32 %v6302, %v6310
      %v6344 = vadd.f32 %v6303, %v6310
      %v6345 = vadd.f32 %v6304, %v6310
      %v6346 = vadd.f32 %v6305, %v6310
      %v6347 = vmax.f32 %v6311, 0.0
      %v6348 = vmax.f32 %v6312, 0.0
      %v6349 = vmax.f32 %v6313, 0.0
      %v6350 = vmax.f32 %v6314, 0.0
      %v6351 = vmax.f32 %v6315, 0.0
      %v6352 = vmax.f32 %v6316, 0.0
      %v6353 = vmax.f32 %v6317, 0.0
      %v6354 = vmax.f32 %v6318, 0.0
      %v6355 = vmax.f32 %v6319, 0.0
      %v6356 = vmax.f32 %v6320, 0.0
      %v6357 = vmax.f32 %v6321, 0.0
      %v6358 = vmax.f32 %v6322, 0.0
      %v6359 = vmax.f32 %v6323, 0.0
      %v6360 = vmax.f32 %v6324, 0.0
      %v6361 = vmax.f32 %v6325, 0.0
      %v6362 = vmax.f32 %v6326, 0.0
      %v6363 = vmax.f32 %v6327, 0.0
      %v6364 = vmax.f32 %v6328, 0.0
      %v6365 = vmax.f32 %v6329, 0.0
      %v6366 = vmax.f32 %v6330, 0.0
      %v6367 = vmax.f32 %v6331, 0.0
      %v6368 = vmax.f32 %v6332, 0.0
      %v6369 = vmax.f32 %v6333, 0.0
      %v6370 = vmax.f32 %v6334, 0.0
      %v6371 = vmax.f32 %v6335, 0.0
      %v6372 = vmax.f32 %v6336, 0.0
      %v6373 = vmax.f32 %v6337, 0.0
      %v6374 = vmax.f32 %v6338, 0.0
      %v6375 = vmax.f32 %v6339, 0.0
      %v6376 = vmax.f32 %v6340, 0.0
      %v6377 = vmax.f32 %v6341, 0.0
      %v6378 = vmax.f32 %v6342, 0.0
      %v6379 = vmax.f32 %v6343, 0.0
      %v6380 = vmax.f32 %v6344, 0.0
      %v6381 = vmax.f32 %v6345, 0.0
      %v6382 = vmax.f32 %v6346, 0.0
      %v6419 = vcombine.high %v6347, %v6347
      %v6421 = vunpack.c.l.s4 1983009808
      %v6422 = vunpack.c.0.s8 %v6421
      %v6423 = vlaneseq
      %v6424 = vshrl.u32 %v6423, 7
      %v6425 = vsub.s32 %v6422, %v6424
      %v6426 = vrot.slane %v6347, %v6425
      %v6428 = vunpack.c.l.s4 1983009808
      %v6429 = vunpack.c.0.s8 %v6428
      %v6430 = vlaneseq
      %v6431 = vshrl.u32 %v6430, 7
      %v6432 = vsub.s32 %v6429, %v6431
      %v6433 = vrot.slane %v6419, %v6432
      %v6434 = vcombine.high %v6426, %v6426
      %v6435 = vcombine.high %v6433, %v6433
      %v6436 = vcombine.high %v6348, %v6348
      %v6438 = vunpack.c.l.s4 1983009808
      %v6439 = vunpack.c.0.s8 %v6438
      %v6440 = vlaneseq
      %v6441 = vshrl.u32 %v6440, 7
      %v6442 = vsub.s32 %v6439, %v6441
      %v6443 = vrot.slane %v6348, %v6442
      %v6445 = vunpack.c.l.s4 1983009808
      %v6446 = vunpack.c.0.s8 %v6445
      %v6447 = vlaneseq
      %v6448 = vshrl.u32 %v6447, 7
      %v6449 = vsub.s32 %v6446, %v6448
      %v6450 = vrot.slane %v6436, %v6449
      %v6451 = vcombine.high %v6443, %v6443
      %v6452 = vcombine.high %v6450, %v6450
      %v6453 = vcombine.high %v6349, %v6349
      %v6455 = vunpack.c.l.s4 1983009808
      %v6456 = vunpack.c.0.s8 %v6455
      %v6457 = vlaneseq
      %v6458 = vshrl.u32 %v6457, 7
      %v6459 = vsub.s32 %v6456, %v6458
      %v6460 = vrot.slane %v6349, %v6459
      %v6462 = vunpack.c.l.s4 1983009808
      %v6463 = vunpack.c.0.s8 %v6462
      %v6464 = vlaneseq
      %v6465 = vshrl.u32 %v6464, 7
      %v6466 = vsub.s32 %v6463, %v6465
      %v6467 = vrot.slane %v6453, %v6466
      %v6468 = vcombine.high %v6460, %v6460
      %v6469 = vcombine.high %v6467, %v6467
      %v6470 = vcombine.high %v6350, %v6350
      %v6472 = vunpack.c.l.s4 1983009808
      %v6473 = vunpack.c.0.s8 %v6472
      %v6474 = vlaneseq
      %v6475 = vshrl.u32 %v6474, 7
      %v6476 = vsub.s32 %v6473, %v6475
      %v6477 = vrot.slane %v6350, %v6476
      %v6479 = vunpack.c.l.s4 1983009808
      %v6480 = vunpack.c.0.s8 %v6479
      %v6481 = vlaneseq
      %v6482 = vshrl.u32 %v6481, 7
      %v6483 = vsub.s32 %v6480, %v6482
      %v6484 = vrot.slane %v6470, %v6483
      %v6485 = vcombine.high %v6477, %v6477
      %v6486 = vcombine.high %v6484, %v6484
      %v6487 = vcombine.high %v6351, %v6351
      %v6489 = vunpack.c.l.s4 1983009808
      %v6490 = vunpack.c.0.s8 %v6489
      %v6491 = vlaneseq
      %v6492 = vshrl.u32 %v6491, 7
      %v6493 = vsub.s32 %v6490, %v6492
      %v6494 = vrot.slane %v6351, %v6493
      %v6496 = vunpack.c.l.s4 1983009808
      %v6497 = vunpack.c.0.s8 %v6496
      %v6498 = vlaneseq
      %v6499 = vshrl.u32 %v6498, 7
      %v6500 = vsub.s32 %v6497, %v6499
      %v6501 = vrot.slane %v6487, %v6500
      %v6502 = vcombine.high %v6501, %v6501
      %v6503 = vcombine.high %v6352, %v6352
      %v6505 = vunpack.c.l.s4 1983009808
      %v6506 = vunpack.c.0.s8 %v6505
      %v6507 = vlaneseq
      %v6508 = vshrl.u32 %v6507, 7
      %v6509 = vsub.s32 %v6506, %v6508
      %v6510 = vrot.slane %v6352, %v6509
      %v6512 = vunpack.c.l.s4 1983009808
      %v6513 = vunpack.c.0.s8 %v6512
      %v6514 = vlaneseq
      %v6515 = vshrl.u32 %v6514, 7
      %v6516 = vsub.s32 %v6513, %v6515
      %v6517 = vrot.slane %v6503, %v6516
      %v6518 = vcombine.high %v6510, %v6510
      %v6519 = vcombine.high %v6517, %v6517
      %v6520 = vcombine.high %v6353, %v6353
      %v6522 = vunpack.c.l.s4 1983009808
      %v6523 = vunpack.c.0.s8 %v6522
      %v6524 = vlaneseq
      %v6525 = vshrl.u32 %v6524, 7
      %v6526 = vsub.s32 %v6523, %v6525
      %v6527 = vrot.slane %v6353, %v6526
      %v6529 = vunpack.c.l.s4 1983009808
      %v6530 = vunpack.c.0.s8 %v6529
      %v6531 = vlaneseq
      %v6532 = vshrl.u32 %v6531, 7
      %v6533 = vsub.s32 %v6530, %v6532
      %v6534 = vrot.slane %v6520, %v6533
      %v6535 = vcombine.high %v6527, %v6527
      %v6536 = vcombine.high %v6534, %v6534
      %v6537 = vcombine.high %v6354, %v6354
      %v6539 = vunpack.c.l.s4 1983009808
      %v6540 = vunpack.c.0.s8 %v6539
      %v6541 = vlaneseq
      %v6542 = vshrl.u32 %v6541, 7
      %v6543 = vsub.s32 %v6540, %v6542
      %v6544 = vrot.slane %v6354, %v6543
      %v6546 = vunpack.c.l.s4 1983009808
      %v6547 = vunpack.c.0.s8 %v6546
      %v6548 = vlaneseq
      %v6549 = vshrl.u32 %v6548, 7
      %v6550 = vsub.s32 %v6547, %v6549
      %v6551 = vrot.slane %v6537, %v6550
      %v6552 = vcombine.high %v6544, %v6544
      %v6553 = vcombine.high %v6551, %v6551
      %v6554 = vcombine.high %v6355, %v6355
      %v6556 = vunpack.c.l.s4 1983009808
      %v6557 = vunpack.c.0.s8 %v6556
      %v6558 = vlaneseq
      %v6559 = vshrl.u32 %v6558, 7
      %v6560 = vsub.s32 %v6557, %v6559
      %v6561 = vrot.slane %v6355, %v6560
      %v6563 = vunpack.c.l.s4 1983009808
      %v6564 = vunpack.c.0.s8 %v6563
      %v6565 = vlaneseq
      %v6566 = vshrl.u32 %v6565, 7
      %v6567 = vsub.s32 %v6564, %v6566
      %v6568 = vrot.slane %v6554, %v6567
      %v6569 = vcombine.high %v6561, %v6561
      %v6570 = vcombine.high %v6356, %v6356
      %v6572 = vunpack.c.l.s4 1983009808
      %v6573 = vunpack.c.0.s8 %v6572
      %v6574 = vlaneseq
      %v6575 = vshrl.u32 %v6574, 7
      %v6576 = vsub.s32 %v6573, %v6575
      %v6577 = vrot.slane %v6356, %v6576
      %v6579 = vunpack.c.l.s4 1983009808
      %v6580 = vunpack.c.0.s8 %v6579
      %v6581 = vlaneseq
      %v6582 = vshrl.u32 %v6581, 7
      %v6583 = vsub.s32 %v6580, %v6582
      %v6584 = vrot.slane %v6570, %v6583
      %v6585 = vcombine.high %v6577, %v6577
      %v6586 = vcombine.high %v6584, %v6584
      %v6587 = vcombine.high %v6357, %v6357
      %v6589 = vunpack.c.l.s4 1983009808
      %v6590 = vunpack.c.0.s8 %v6589
      %v6591 = vlaneseq
      %v6592 = vshrl.u32 %v6591, 7
      %v6593 = vsub.s32 %v6590, %v6592
      %v6594 = vrot.slane %v6357, %v6593
      %v6596 = vunpack.c.l.s4 1983009808
      %v6597 = vunpack.c.0.s8 %v6596
      %v6598 = vlaneseq
      %v6599 = vshrl.u32 %v6598, 7
      %v6600 = vsub.s32 %v6597, %v6599
      %v6601 = vrot.slane %v6587, %v6600
      %v6602 = vcombine.high %v6594, %v6594
      %v6603 = vcombine.high %v6601, %v6601
      %v6604 = vcombine.high %v6358, %v6358
      %v6606 = vunpack.c.l.s4 1983009808
      %v6607 = vunpack.c.0.s8 %v6606
      %v6608 = vlaneseq
      %v6609 = vshrl.u32 %v6608, 7
      %v6610 = vsub.s32 %v6607, %v6609
      %v6611 = vrot.slane %v6358, %v6610
      %v6613 = vunpack.c.l.s4 1983009808
      %v6614 = vunpack.c.0.s8 %v6613
      %v6615 = vlaneseq
      %v6616 = vshrl.u32 %v6615, 7
      %v6617 = vsub.s32 %v6614, %v6616
      %v6618 = vrot.slane %v6604, %v6617
      %v6619 = vcombine.high %v6611, %v6611
      %v6620 = vcombine.high %v6618, %v6618
      %v6621 = vcombine.high %v6359, %v6359
      %v6623 = vunpack.c.l.s4 1983009808
      %v6624 = vunpack.c.0.s8 %v6623
      %v6625 = vlaneseq
      %v6626 = vshrl.u32 %v6625, 7
      %v6627 = vsub.s32 %v6624, %v6626
      %v6628 = vrot.slane %v6359, %v6627
      %v6630 = vunpack.c.l.s4 1983009808
      %v6631 = vunpack.c.0.s8 %v6630
      %v6632 = vlaneseq
      %v6633 = vshrl.u32 %v6632, 7
      %v6634 = vsub.s32 %v6631, %v6633
      %v6635 = vrot.slane %v6621, %v6634
      %v6636 = vcombine.high %v6628, %v6628
      %v6637 = vcombine.high %v6635, %v6635
      %v6638 = vcombine.high %v6360, %v6360
      %v6640 = vunpack.c.l.s4 1983009808
      %v6641 = vunpack.c.0.s8 %v6640
      %v6642 = vlaneseq
      %v6643 = vshrl.u32 %v6642, 7
      %v6644 = vsub.s32 %v6641, %v6643
      %v6645 = vrot.slane %v6360, %v6644
      %v6647 = vunpack.c.l.s4 1983009808
      %v6648 = vunpack.c.0.s8 %v6647
      %v6649 = vlaneseq
      %v6650 = vshrl.u32 %v6649, 7
      %v6651 = vsub.s32 %v6648, %v6650
      %v6652 = vrot.slane %v6638, %v6651
      %v6653 = vcombine.high %v6652, %v6652
      %v6654 = vcombine.high %v6361, %v6361
      %v6656 = vunpack.c.l.s4 1983009808
      %v6657 = vunpack.c.0.s8 %v6656
      %v6658 = vlaneseq
      %v6659 = vshrl.u32 %v6658, 7
      %v6660 = vsub.s32 %v6657, %v6659
      %v6661 = vrot.slane %v6361, %v6660
      %v6663 = vunpack.c.l.s4 1983009808
      %v6664 = vunpack.c.0.s8 %v6663
      %v6665 = vlaneseq
      %v6666 = vshrl.u32 %v6665, 7
      %v6667 = vsub.s32 %v6664, %v6666
      %v6668 = vrot.slane %v6654, %v6667
      %v6669 = vcombine.high %v6661, %v6661
      %v6670 = vcombine.high %v6668, %v6668
      %v6671 = vcombine.high %v6362, %v6362
      %v6673 = vunpack.c.l.s4 1983009808
      %v6674 = vunpack.c.0.s8 %v6673
      %v6675 = vlaneseq
      %v6676 = vshrl.u32 %v6675, 7
      %v6677 = vsub.s32 %v6674, %v6676
      %v6678 = vrot.slane %v6362, %v6677
      %v6680 = vunpack.c.l.s4 1983009808
      %v6681 = vunpack.c.0.s8 %v6680
      %v6682 = vlaneseq
      %v6683 = vshrl.u32 %v6682, 7
      %v6684 = vsub.s32 %v6681, %v6683
      %v6685 = vrot.slane %v6671, %v6684
      %v6686 = vcombine.high %v6678, %v6678
      %v6687 = vcombine.high %v6685, %v6685
      %v6688 = vcombine.high %v6363, %v6363
      %v6690 = vunpack.c.l.s4 1983009808
      %v6691 = vunpack.c.0.s8 %v6690
      %v6692 = vlaneseq
      %v6693 = vshrl.u32 %v6692, 7
      %v6694 = vsub.s32 %v6691, %v6693
      %v6695 = vrot.slane %v6363, %v6694
      %v6697 = vunpack.c.l.s4 1983009808
      %v6698 = vunpack.c.0.s8 %v6697
      %v6699 = vlaneseq
      %v6700 = vshrl.u32 %v6699, 7
      %v6701 = vsub.s32 %v6698, %v6700
      %v6702 = vrot.slane %v6688, %v6701
      %v6703 = vcombine.high %v6695, %v6695
      %v6704 = vcombine.high %v6702, %v6702
      %v6705 = vcombine.high %v6364, %v6364
      %v6707 = vunpack.c.l.s4 1983009808
      %v6708 = vunpack.c.0.s8 %v6707
      %v6709 = vlaneseq
      %v6710 = vshrl.u32 %v6709, 7
      %v6711 = vsub.s32 %v6708, %v6710
      %v6712 = vrot.slane %v6364, %v6711
      %v6714 = vunpack.c.l.s4 1983009808
      %v6715 = vunpack.c.0.s8 %v6714
      %v6716 = vlaneseq
      %v6717 = vshrl.u32 %v6716, 7
      %v6718 = vsub.s32 %v6715, %v6717
      %v6719 = vrot.slane %v6705, %v6718
      %v6720 = vcombine.high %v6712, %v6712
      %v6721 = vcombine.high %v6365, %v6365
      %v6723 = vunpack.c.l.s4 1983009808
      %v6724 = vunpack.c.0.s8 %v6723
      %v6725 = vlaneseq
      %v6726 = vshrl.u32 %v6725, 7
      %v6727 = vsub.s32 %v6724, %v6726
      %v6728 = vrot.slane %v6365, %v6727
      %v6730 = vunpack.c.l.s4 1983009808
      %v6731 = vunpack.c.0.s8 %v6730
      %v6732 = vlaneseq
      %v6733 = vshrl.u32 %v6732, 7
      %v6734 = vsub.s32 %v6731, %v6733
      %v6735 = vrot.slane %v6721, %v6734
      %v6736 = vcombine.high %v6728, %v6728
      %v6737 = vcombine.high %v6735, %v6735
      %v6738 = vcombine.high %v6366, %v6366
      %v6740 = vunpack.c.l.s4 1983009808
      %v6741 = vunpack.c.0.s8 %v6740
      %v6742 = vlaneseq
      %v6743 = vshrl.u32 %v6742, 7
      %v6744 = vsub.s32 %v6741, %v6743
      %v6745 = vrot.slane %v6366, %v6744
      %v6747 = vunpack.c.l.s4 1983009808
      %v6748 = vunpack.c.0.s8 %v6747
      %v6749 = vlaneseq
      %v6750 = vshrl.u32 %v6749, 7
      %v6751 = vsub.s32 %v6748, %v6750
      %v6752 = vrot.slane %v6738, %v6751
      %v6753 = vcombine.high %v6745, %v6745
      %v6754 = vcombine.high %v6752, %v6752
      %v6755 = vcombine.high %v6367, %v6367
      %v6757 = vunpack.c.l.s4 1983009808
      %v6758 = vunpack.c.0.s8 %v6757
      %v6759 = vlaneseq
      %v6760 = vshrl.u32 %v6759, 7
      %v6761 = vsub.s32 %v6758, %v6760
      %v6762 = vrot.slane %v6367, %v6761
      %v6764 = vunpack.c.l.s4 1983009808
      %v6765 = vunpack.c.0.s8 %v6764
      %v6766 = vlaneseq
      %v6767 = vshrl.u32 %v6766, 7
      %v6768 = vsub.s32 %v6765, %v6767
      %v6769 = vrot.slane %v6755, %v6768
      %v6770 = vcombine.high %v6762, %v6762
      %v6771 = vcombine.high %v6769, %v6769
      %v6772 = vcombine.high %v6368, %v6368
      %v6774 = vunpack.c.l.s4 1983009808
      %v6775 = vunpack.c.0.s8 %v6774
      %v6776 = vlaneseq
      %v6777 = vshrl.u32 %v6776, 7
      %v6778 = vsub.s32 %v6775, %v6777
      %v6779 = vrot.slane %v6368, %v6778
      %v6781 = vunpack.c.l.s4 1983009808
      %v6782 = vunpack.c.0.s8 %v6781
      %v6783 = vlaneseq
      %v6784 = vshrl.u32 %v6783, 7
      %v6785 = vsub.s32 %v6782, %v6784
      %v6786 = vrot.slane %v6772, %v6785
      %v6787 = vcombine.high %v6779, %v6779
      %v6788 = vcombine.high %v6786, %v6786
      %v6789 = vcombine.high %v6369, %v6369
      %v6791 = vunpack.c.l.s4 1983009808
      %v6792 = vunpack.c.0.s8 %v6791
      %v6793 = vlaneseq
      %v6794 = vshrl.u32 %v6793, 7
      %v6795 = vsub.s32 %v6792, %v6794
      %v6796 = vrot.slane %v6369, %v6795
      %v6798 = vunpack.c.l.s4 1983009808
      %v6799 = vunpack.c.0.s8 %v6798
      %v6800 = vlaneseq
      %v6801 = vshrl.u32 %v6800, 7
      %v6802 = vsub.s32 %v6799, %v6801
      %v6803 = vrot.slane %v6789, %v6802
      %v6804 = vcombine.high %v6803, %v6803
      %v6805 = vcombine.high %v6370, %v6370
      %v6807 = vunpack.c.l.s4 1983009808
      %v6808 = vunpack.c.0.s8 %v6807
      %v6809 = vlaneseq
      %v6810 = vshrl.u32 %v6809, 7
      %v6811 = vsub.s32 %v6808, %v6810
      %v6812 = vrot.slane %v6370, %v6811
      %v6814 = vunpack.c.l.s4 1983009808
      %v6815 = vunpack.c.0.s8 %v6814
      %v6816 = vlaneseq
      %v6817 = vshrl.u32 %v6816, 7
      %v6818 = vsub.s32 %v6815, %v6817
      %v6819 = vrot.slane %v6805, %v6818
      %v6820 = vcombine.high %v6812, %v6812
      %v6821 = vcombine.high %v6819, %v6819
      %v6822 = vcombine.high %v6371, %v6371
      %v6824 = vunpack.c.l.s4 1983009808
      %v6825 = vunpack.c.0.s8 %v6824
      %v6826 = vlaneseq
      %v6827 = vshrl.u32 %v6826, 7
      %v6828 = vsub.s32 %v6825, %v6827
      %v6829 = vrot.slane %v6371, %v6828
      %v6831 = vunpack.c.l.s4 1983009808
      %v6832 = vunpack.c.0.s8 %v6831
      %v6833 = vlaneseq
      %v6834 = vshrl.u32 %v6833, 7
      %v6835 = vsub.s32 %v6832, %v6834
      %v6836 = vrot.slane %v6822, %v6835
      %v6837 = vcombine.high %v6829, %v6829
      %v6838 = vcombine.high %v6836, %v6836
      %v6839 = vcombine.high %v6372, %v6372
      %v6841 = vunpack.c.l.s4 1983009808
      %v6842 = vunpack.c.0.s8 %v6841
      %v6843 = vlaneseq
      %v6844 = vshrl.u32 %v6843, 7
      %v6845 = vsub.s32 %v6842, %v6844
      %v6846 = vrot.slane %v6372, %v6845
      %v6848 = vunpack.c.l.s4 1983009808
      %v6849 = vunpack.c.0.s8 %v6848
      %v6850 = vlaneseq
      %v6851 = vshrl.u32 %v6850, 7
      %v6852 = vsub.s32 %v6849, %v6851
      %v6853 = vrot.slane %v6839, %v6852
      %v6854 = vcombine.high %v6846, %v6846
      %v6855 = vcombine.high %v6853, %v6853
      %v6856 = vcombine.high %v6373, %v6373
      %v6858 = vunpack.c.l.s4 1983009808
      %v6859 = vunpack.c.0.s8 %v6858
      %v6860 = vlaneseq
      %v6861 = vshrl.u32 %v6860, 7
      %v6862 = vsub.s32 %v6859, %v6861
      %v6863 = vrot.slane %v6373, %v6862
      %v6865 = vunpack.c.l.s4 1983009808
      %v6866 = vunpack.c.0.s8 %v6865
      %v6867 = vlaneseq
      %v6868 = vshrl.u32 %v6867, 7
      %v6869 = vsub.s32 %v6866, %v6868
      %v6870 = vrot.slane %v6856, %v6869
      %v6871 = vcombine.high %v6863, %v6863
      %v6872 = vcombine.high %v6374, %v6374
      %v6874 = vunpack.c.l.s4 1983009808
      %v6875 = vunpack.c.0.s8 %v6874
      %v6876 = vlaneseq
      %v6877 = vshrl.u32 %v6876, 7
      %v6878 = vsub.s32 %v6875, %v6877
      %v6879 = vrot.slane %v6374, %v6878
      %v6881 = vunpack.c.l.s4 1983009808
      %v6882 = vunpack.c.0.s8 %v6881
      %v6883 = vlaneseq
      %v6884 = vshrl.u32 %v6883, 7
      %v6885 = vsub.s32 %v6882, %v6884
      %v6886 = vrot.slane %v6872, %v6885
      %v6887 = vcombine.high %v6879, %v6879
      %v6888 = vcombine.high %v6886, %v6886
      %v6889 = vcombine.high %v6375, %v6375
      %v6891 = vunpack.c.l.s4 1983009808
      %v6892 = vunpack.c.0.s8 %v6891
      %v6893 = vlaneseq
      %v6894 = vshrl.u32 %v6893, 7
      %v6895 = vsub.s32 %v6892, %v6894
      %v6896 = vrot.slane %v6375, %v6895
      %v6898 = vunpack.c.l.s4 1983009808
      %v6899 = vunpack.c.0.s8 %v6898
      %v6900 = vlaneseq
      %v6901 = vshrl.u32 %v6900, 7
      %v6902 = vsub.s32 %v6899, %v6901
      %v6903 = vrot.slane %v6889, %v6902
      %v6904 = vcombine.high %v6896, %v6896
      %v6905 = vcombine.high %v6903, %v6903
      %v6906 = vcombine.high %v6376, %v6376
      %v6908 = vunpack.c.l.s4 1983009808
      %v6909 = vunpack.c.0.s8 %v6908
      %v6910 = vlaneseq
      %v6911 = vshrl.u32 %v6910, 7
      %v6912 = vsub.s32 %v6909, %v6911
      %v6913 = vrot.slane %v6376, %v6912
      %v6915 = vunpack.c.l.s4 1983009808
      %v6916 = vunpack.c.0.s8 %v6915
      %v6917 = vlaneseq
      %v6918 = vshrl.u32 %v6917, 7
      %v6919 = vsub.s32 %v6916, %v6918
      %v6920 = vrot.slane %v6906, %v6919
      %v6921 = vcombine.high %v6913, %v6913
      %v6922 = vcombine.high %v6920, %v6920
      %v6923 = vcombine.high %v6377, %v6377
      %v6925 = vunpack.c.l.s4 1983009808
      %v6926 = vunpack.c.0.s8 %v6925
      %v6927 = vlaneseq
      %v6928 = vshrl.u32 %v6927, 7
      %v6929 = vsub.s32 %v6926, %v6928
      %v6930 = vrot.slane %v6377, %v6929
      %v6932 = vunpack.c.l.s4 1983009808
      %v6933 = vunpack.c.0.s8 %v6932
      %v6934 = vlaneseq
      %v6935 = vshrl.u32 %v6934, 7
      %v6936 = vsub.s32 %v6933, %v6935
      %v6937 = vrot.slane %v6923, %v6936
      %v6938 = vcombine.high %v6930, %v6930
      %v6939 = vcombine.high %v6937, %v6937
      %v6940 = vcombine.high %v6378, %v6378
      %v6942 = vunpack.c.l.s4 1983009808
      %v6943 = vunpack.c.0.s8 %v6942
      %v6944 = vlaneseq
      %v6945 = vshrl.u32 %v6944, 7
      %v6946 = vsub.s32 %v6943, %v6945
      %v6947 = vrot.slane %v6378, %v6946
      %v6949 = vunpack.c.l.s4 1983009808
      %v6950 = vunpack.c.0.s8 %v6949
      %v6951 = vlaneseq
      %v6952 = vshrl.u32 %v6951, 7
      %v6953 = vsub.s32 %v6950, %v6952
      %v6954 = vrot.slane %v6940, %v6953
      %v6955 = vcombine.high %v6954, %v6954
      %v6956 = vcombine.high %v6379, %v6379
      %v6958 = vunpack.c.l.s4 1983009808
      %v6959 = vunpack.c.0.s8 %v6958
      %v6960 = vlaneseq
      %v6961 = vshrl.u32 %v6960, 7
      %v6962 = vsub.s32 %v6959, %v6961
      %v6963 = vrot.slane %v6379, %v6962
      %v6965 = vunpack.c.l.s4 1983009808
      %v6966 = vunpack.c.0.s8 %v6965
      %v6967 = vlaneseq
      %v6968 = vshrl.u32 %v6967, 7
      %v6969 = vsub.s32 %v6966, %v6968
      %v6970 = vrot.slane %v6956, %v6969
      %v6971 = vcombine.high %v6963, %v6963
      %v6972 = vcombine.high %v6970, %v6970
      %v6973 = vcombine.high %v6380, %v6380
      %v6975 = vunpack.c.l.s4 1983009808
      %v6976 = vunpack.c.0.s8 %v6975
      %v6977 = vlaneseq
      %v6978 = vshrl.u32 %v6977, 7
      %v6979 = vsub.s32 %v6976, %v6978
      %v6980 = vrot.slane %v6380, %v6979
      %v6982 = vunpack.c.l.s4 1983009808
      %v6983 = vunpack.c.0.s8 %v6982
      %v6984 = vlaneseq
      %v6985 = vshrl.u32 %v6984, 7
      %v6986 = vsub.s32 %v6983, %v6985
      %v6987 = vrot.slane %v6973, %v6986
      %v6988 = vcombine.high %v6980, %v6980
      %v6989 = vcombine.high %v6987, %v6987
      %v6990 = vcombine.high %v6381, %v6381
      %v6992 = vunpack.c.l.s4 1983009808
      %v6993 = vunpack.c.0.s8 %v6992
      %v6994 = vlaneseq
      %v6995 = vshrl.u32 %v6994, 7
      %v6996 = vsub.s32 %v6993, %v6995
      %v6997 = vrot.slane %v6381, %v6996
      %v6999 = vunpack.c.l.s4 1983009808
      %v7000 = vunpack.c.0.s8 %v6999
      %v7001 = vlaneseq
      %v7002 = vshrl.u32 %v7001, 7
      %v7003 = vsub.s32 %v7000, %v7002
      %v7004 = vrot.slane %v6990, %v7003
      %v7005 = vcombine.high %v6997, %v6997
      %v7006 = vcombine.high %v7004, %v7004
      %v7007 = vcombine.high %v6382, %v6382
      %v7009 = vunpack.c.l.s4 1983009808
      %v7010 = vunpack.c.0.s8 %v7009
      %v7011 = vlaneseq
      %v7012 = vshrl.u32 %v7011, 7
      %v7013 = vsub.s32 %v7010, %v7012
      %v7014 = vrot.slane %v6382, %v7013
      %v7016 = vunpack.c.l.s4 1983009808
      %v7017 = vunpack.c.0.s8 %v7016
      %v7018 = vlaneseq
      %v7019 = vshrl.u32 %v7018, 7
      %v7020 = vsub.s32 %v7017, %v7019
      %v7021 = vrot.slane %v7007, %v7020
      %v7022 = vcombine.high %v7014, %v7014
      %v7023 = vcombine.low %v6426, %v6434
      %v7024 = vcombine.low %v6433, %v6435
      %v7026 = vunpack.c.l.s4 1983009808
      %v7027 = vunpack.c.0.s8 %v7026
      %v7028 = vlaneseq
      %v7029 = vshrl.u32 %v7028, 7
      %v7030 = vsub.s32 %v7027, %v7029
      %v7031 = vrot.slane %v7023, %v7030
      %v7033 = vunpack.c.l.s4 1983009808
      %v7034 = vunpack.c.0.s8 %v7033
      %v7035 = vlaneseq
      %v7036 = vshrl.u32 %v7035, 7
      %v7037 = vsub.s32 %v7034, %v7036
      %v7038 = vrot.slane %v7024, %v7037
      %v7039 = vcombine.low %v7031, %v7038
      %v7040 = vcombine.low %v6443, %v6451
      %v7041 = vcombine.low %v6450, %v6452
      %v7043 = vunpack.c.l.s4 1983009808
      %v7044 = vunpack.c.0.s8 %v7043
      %v7045 = vlaneseq
      %v7046 = vshrl.u32 %v7045, 7
      %v7047 = vsub.s32 %v7044, %v7046
      %v7048 = vrot.slane %v7040, %v7047
      %v7050 = vunpack.c.l.s4 1983009808
      %v7051 = vunpack.c.0.s8 %v7050
      %v7052 = vlaneseq
      %v7053 = vshrl.u32 %v7052, 7
      %v7054 = vsub.s32 %v7051, %v7053
      %v7055 = vrot.slane %v7041, %v7054
      %v7056 = vcombine.low %v7048, %v7055
      %v7057 = vcombine.low %v6468, %v6467
      %v7058 = vcombine.low %v6469, %v6477
      %v7060 = vunpack.c.l.s4 1983009808
      %v7061 = vunpack.c.0.s8 %v7060
      %v7062 = vlaneseq
      %v7063 = vshrl.u32 %v7062, 7
      %v7064 = vsub.s32 %v7061, %v7063
      %v7065 = vrot.slane %v7057, %v7064
      %v7067 = vunpack.c.l.s4 1983009808
      %v7068 = vunpack.c.0.s8 %v7067
      %v7069 = vlaneseq
      %v7070 = vshrl.u32 %v7069, 7
      %v7071 = vsub.s32 %v7068, %v7070
      %v7072 = vrot.slane %v7058, %v7071
      %v7073 = vcombine.low %v7065, %v7072
      %v7074 = vcombine.low %v6485, %v6484
      %v7075 = vcombine.low %v6486, %v6494
      %v7077 = vunpack.c.l.s4 1983009808
      %v7078 = vunpack.c.0.s8 %v7077
      %v7079 = vlaneseq
      %v7080 = vshrl.u32 %v7079, 7
      %v7081 = vsub.s32 %v7078, %v7080
      %v7082 = vrot.slane %v7074, %v7081
      %v7084 = vunpack.c.l.s4 1983009808
      %v7085 = vunpack.c.0.s8 %v7084
      %v7086 = vlaneseq
      %v7087 = vshrl.u32 %v7086, 7
      %v7088 = vsub.s32 %v7085, %v7087
      %v7089 = vrot.slane %v7075, %v7088
      %v7090 = vcombine.low %v7082, %v7089
      %v7091 = vcombine.low %v6501, %v6502
      %v7092 = vcombine.low %v6510, %v6518
      %v7094 = vunpack.c.l.s4 1983009808
      %v7095 = vunpack.c.0.s8 %v7094
      %v7096 = vlaneseq
      %v7097 = vshrl.u32 %v7096, 7
      %v7098 = vsub.s32 %v7095, %v7097
      %v7099 = vrot.slane %v7091, %v7098
      %v7101 = vunpack.c.l.s4 1983009808
      %v7102 = vunpack.c.0.s8 %v7101
      %v7103 = vlaneseq
      %v7104 = vshrl.u32 %v7103, 7
      %v7105 = vsub.s32 %v7102, %v7104
      %v7106 = vrot.slane %v7092, %v7105
      %v7107 = vcombine.low %v7099, %v7106
      %v7108 = vcombine.low %v6517, %v6519
      %v7109 = vcombine.low %v6527, %v6535
      %v7111 = vunpack.c.l.s4 1983009808
      %v7112 = vunpack.c.0.s8 %v7111
      %v7113 = vlaneseq
      %v7114 = vshrl.u32 %v7113, 7
      %v7115 = vsub.s32 %v7112, %v7114
      %v7116 = vrot.slane %v7108, %v7115
      %v7118 = vunpack.c.l.s4 1983009808
      %v7119 = vunpack.c.0.s8 %v7118
      %v7120 = vlaneseq
      %v7121 = vshrl.u32 %v7120, 7
      %v7122 = vsub.s32 %v7119, %v7121
      %v7123 = vrot.slane %v7109, %v7122
      %v7124 = vcombine.low %v7116, %v7123
      %v7125 = vcombine.low %v6536, %v6544
      %v7126 = vcombine.low %v6552, %v6551
      %v7128 = vunpack.c.l.s4 1983009808
      %v7129 = vunpack.c.0.s8 %v7128
      %v7130 = vlaneseq
      %v7131 = vshrl.u32 %v7130, 7
      %v7132 = vsub.s32 %v7129, %v7131
      %v7133 = vrot.slane %v7125, %v7132
      %v7135 = vunpack.c.l.s4 1983009808
      %v7136 = vunpack.c.0.s8 %v7135
      %v7137 = vlaneseq
      %v7138 = vshrl.u32 %v7137, 7
      %v7139 = vsub.s32 %v7136, %v7138
      %v7140 = vrot.slane %v7126, %v7139
      %v7141 = vcombine.low %v7133, %v7140
      %v7142 = vcombine.low %v6553, %v6561
      %v7143 = vcombine.low %v6569, %v6568
      %v7145 = vunpack.c.l.s4 1983009808
      %v7146 = vunpack.c.0.s8 %v7145
      %v7147 = vlaneseq
      %v7148 = vshrl.u32 %v7147, 7
      %v7149 = vsub.s32 %v7146, %v7148
      %v7150 = vrot.slane %v7142, %v7149
      %v7152 = vunpack.c.l.s4 1983009808
      %v7153 = vunpack.c.0.s8 %v7152
      %v7154 = vlaneseq
      %v7155 = vshrl.u32 %v7154, 7
      %v7156 = vsub.s32 %v7153, %v7155
      %v7157 = vrot.slane %v7143, %v7156
      %v7158 = vcombine.low %v7150, %v7157
      %v7159 = vcombine.low %v6577, %v6585
      %v7160 = vcombine.low %v6584, %v6586
      %v7162 = vunpack.c.l.s4 1983009808
      %v7163 = vunpack.c.0.s8 %v7162
      %v7164 = vlaneseq
      %v7165 = vshrl.u32 %v7164, 7
      %v7166 = vsub.s32 %v7163, %v7165
      %v7167 = vrot.slane %v7159, %v7166
      %v7169 = vunpack.c.l.s4 1983009808
      %v7170 = vunpack.c.0.s8 %v7169
      %v7171 = vlaneseq
      %v7172 = vshrl.u32 %v7171, 7
      %v7173 = vsub.s32 %v7170, %v7172
      %v7174 = vrot.slane %v7160, %v7173
      %v7175 = vcombine.low %v7167, %v7174
      %v7176 = vcombine.low %v6594, %v6602
      %v7177 = vcombine.low %v6601, %v6603
      %v7179 = vunpack.c.l.s4 1983009808
      %v7180 = vunpack.c.0.s8 %v7179
      %v7181 = vlaneseq
      %v7182 = vshrl.u32 %v7181, 7
      %v7183 = vsub.s32 %v7180, %v7182
      %v7184 = vrot.slane %v7176, %v7183
      %v7186 = vunpack.c.l.s4 1983009808
      %v7187 = vunpack.c.0.s8 %v7186
      %v7188 = vlaneseq
      %v7189 = vshrl.u32 %v7188, 7
      %v7190 = vsub.s32 %v7187, %v7189
      %v7191 = vrot.slane %v7177, %v7190
      %v7192 = vcombine.low %v7184, %v7191
      %v7193 = vcombine.low %v6619, %v6618
      %v7194 = vcombine.low %v6620, %v6628
      %v7196 = vunpack.c.l.s4 1983009808
      %v7197 = vunpack.c.0.s8 %v7196
      %v7198 = vlaneseq
      %v7199 = vshrl.u32 %v7198, 7
      %v7200 = vsub.s32 %v7197, %v7199
      %v7201 = vrot.slane %v7193, %v7200
      %v7203 = vunpack.c.l.s4 1983009808
      %v7204 = vunpack.c.0.s8 %v7203
      %v7205 = vlaneseq
      %v7206 = vshrl.u32 %v7205, 7
      %v7207 = vsub.s32 %v7204, %v7206
      %v7208 = vrot.slane %v7194, %v7207
      %v7209 = vcombine.low %v7201, %v7208
      %v7210 = vcombine.low %v6636, %v6635
      %v7211 = vcombine.low %v6637, %v6645
      %v7213 = vunpack.c.l.s4 1983009808
      %v7214 = vunpack.c.0.s8 %v7213
      %v7215 = vlaneseq
      %v7216 = vshrl.u32 %v7215, 7
      %v7217 = vsub.s32 %v7214, %v7216
      %v7218 = vrot.slane %v7210, %v7217
      %v7220 = vunpack.c.l.s4 1983009808
      %v7221 = vunpack.c.0.s8 %v7220
      %v7222 = vlaneseq
      %v7223 = vshrl.u32 %v7222, 7
      %v7224 = vsub.s32 %v7221, %v7223
      %v7225 = vrot.slane %v7211, %v7224
      %v7226 = vcombine.low %v7218, %v7225
      %v7227 = vcombine.low %v6652, %v6653
      %v7228 = vcombine.low %v6661, %v6669
      %v7230 = vunpack.c.l.s4 1983009808
      %v7231 = vunpack.c.0.s8 %v7230
      %v7232 = vlaneseq
      %v7233 = vshrl.u32 %v7232, 7
      %v7234 = vsub.s32 %v7231, %v7233
      %v7235 = vrot.slane %v7227, %v7234
      %v7237 = vunpack.c.l.s4 1983009808
      %v7238 = vunpack.c.0.s8 %v7237
      %v7239 = vlaneseq
      %v7240 = vshrl.u32 %v7239, 7
      %v7241 = vsub.s32 %v7238, %v7240
      %v7242 = vrot.slane %v7228, %v7241
      %v7243 = vcombine.low %v7235, %v7242
      %v7244 = vcombine.low %v6668, %v6670
      %v7245 = vcombine.low %v6678, %v6686
      %v7247 = vunpack.c.l.s4 1983009808
      %v7248 = vunpack.c.0.s8 %v7247
      %v7249 = vlaneseq
      %v7250 = vshrl.u32 %v7249, 7
      %v7251 = vsub.s32 %v7248, %v7250
      %v7252 = vrot.slane %v7244, %v7251
      %v7254 = vunpack.c.l.s4 1983009808
      %v7255 = vunpack.c.0.s8 %v7254
      %v7256 = vlaneseq
      %v7257 = vshrl.u32 %v7256, 7
      %v7258 = vsub.s32 %v7255, %v7257
      %v7259 = vrot.slane %v7245, %v7258
      %v7260 = vcombine.low %v7252, %v7259
      %v7261 = vcombine.low %v6687, %v6695
      %v7262 = vcombine.low %v6703, %v6702
      %v7264 = vunpack.c.l.s4 1983009808
      %v7265 = vunpack.c.0.s8 %v7264
      %v7266 = vlaneseq
      %v7267 = vshrl.u32 %v7266, 7
      %v7268 = vsub.s32 %v7265, %v7267
      %v7269 = vrot.slane %v7261, %v7268
      %v7271 = vunpack.c.l.s4 1983009808
      %v7272 = vunpack.c.0.s8 %v7271
      %v7273 = vlaneseq
      %v7274 = vshrl.u32 %v7273, 7
      %v7275 = vsub.s32 %v7272, %v7274
      %v7276 = vrot.slane %v7262, %v7275
      %v7277 = vcombine.low %v7269, %v7276
      %v7278 = vcombine.low %v6704, %v6712
      %v7279 = vcombine.low %v6720, %v6719
      %v7281 = vunpack.c.l.s4 1983009808
      %v7282 = vunpack.c.0.s8 %v7281
      %v7283 = vlaneseq
      %v7284 = vshrl.u32 %v7283, 7
      %v7285 = vsub.s32 %v7282, %v7284
      %v7286 = vrot.slane %v7278, %v7285
      %v7288 = vunpack.c.l.s4 1983009808
      %v7289 = vunpack.c.0.s8 %v7288
      %v7290 = vlaneseq
      %v7291 = vshrl.u32 %v7290, 7
      %v7292 = vsub.s32 %v7289, %v7291
      %v7293 = vrot.slane %v7279, %v7292
      %v7294 = vcombine.low %v7286, %v7293
      %v7295 = vcombine.low %v6728, %v6736
      %v7296 = vcombine.low %v6735, %v6737
      %v7298 = vunpack.c.l.s4 1983009808
      %v7299 = vunpack.c.0.s8 %v7298
      %v7300 = vlaneseq
      %v7301 = vshrl.u32 %v7300, 7
      %v7302 = vsub.s32 %v7299, %v7301
      %v7303 = vrot.slane %v7295, %v7302
      %v7305 = vunpack.c.l.s4 1983009808
      %v7306 = vunpack.c.0.s8 %v7305
      %v7307 = vlaneseq
      %v7308 = vshrl.u32 %v7307, 7
      %v7309 = vsub.s32 %v7306, %v7308
      %v7310 = vrot.slane %v7296, %v7309
      %v7311 = vcombine.low %v7303, %v7310
      %v7312 = vcombine.low %v6745, %v6753
      %v7313 = vcombine.low %v6752, %v6754
      %v7315 = vunpack.c.l.s4 1983009808
      %v7316 = vunpack.c.0.s8 %v7315
      %v7317 = vlaneseq
      %v7318 = vshrl.u32 %v7317, 7
      %v7319 = vsub.s32 %v7316, %v7318
      %v7320 = vrot.slane %v7312, %v7319
      %v7322 = vunpack.c.l.s4 1983009808
      %v7323 = vunpack.c.0.s8 %v7322
      %v7324 = vlaneseq
      %v7325 = vshrl.u32 %v7324, 7
      %v7326 = vsub.s32 %v7323, %v7325
      %v7327 = vrot.slane %v7313, %v7326
      %v7328 = vcombine.low %v7320, %v7327
      %v7329 = vcombine.low %v6770, %v6769
      %v7330 = vcombine.low %v6771, %v6779
      %v7332 = vunpack.c.l.s4 1983009808
      %v7333 = vunpack.c.0.s8 %v7332
      %v7334 = vlaneseq
      %v7335 = vshrl.u32 %v7334, 7
      %v7336 = vsub.s32 %v7333, %v7335
      %v7337 = vrot.slane %v7329, %v7336
      %v7339 = vunpack.c.l.s4 1983009808
      %v7340 = vunpack.c.0.s8 %v7339
      %v7341 = vlaneseq
      %v7342 = vshrl.u32 %v7341, 7
      %v7343 = vsub.s32 %v7340, %v7342
      %v7344 = vrot.slane %v7330, %v7343
      %v7345 = vcombine.low %v7337, %v7344
      %v7346 = vcombine.low %v6787, %v6786
      %v7347 = vcombine.low %v6788, %v6796
      %v7349 = vunpack.c.l.s4 1983009808
      %v7350 = vunpack.c.0.s8 %v7349
      %v7351 = vlaneseq
      %v7352 = vshrl.u32 %v7351, 7
      %v7353 = vsub.s32 %v7350, %v7352
      %v7354 = vrot.slane %v7346, %v7353
      %v7356 = vunpack.c.l.s4 1983009808
      %v7357 = vunpack.c.0.s8 %v7356
      %v7358 = vlaneseq
      %v7359 = vshrl.u32 %v7358, 7
      %v7360 = vsub.s32 %v7357, %v7359
      %v7361 = vrot.slane %v7347, %v7360
      %v7362 = vcombine.low %v7354, %v7361
      %v7363 = vcombine.low %v6803, %v6804
      %v7364 = vcombine.low %v6812, %v6820
      %v7366 = vunpack.c.l.s4 1983009808
      %v7367 = vunpack.c.0.s8 %v7366
      %v7368 = vlaneseq
      %v7369 = vshrl.u32 %v7368, 7
      %v7370 = vsub.s32 %v7367, %v7369
      %v7371 = vrot.slane %v7363, %v7370
      %v7373 = vunpack.c.l.s4 1983009808
      %v7374 = vunpack.c.0.s8 %v7373
      %v7375 = vlaneseq
      %v7376 = vshrl.u32 %v7375, 7
      %v7377 = vsub.s32 %v7374, %v7376
      %v7378 = vrot.slane %v7364, %v7377
      %v7379 = vcombine.low %v7371, %v7378
      %v7380 = vcombine.low %v6819, %v6821
      %v7381 = vcombine.low %v6829, %v6837
      %v7383 = vunpack.c.l.s4 1983009808
      %v7384 = vunpack.c.0.s8 %v7383
      %v7385 = vlaneseq
      %v7386 = vshrl.u32 %v7385, 7
      %v7387 = vsub.s32 %v7384, %v7386
      %v7388 = vrot.slane %v7380, %v7387
      %v7390 = vunpack.c.l.s4 1983009808
      %v7391 = vunpack.c.0.s8 %v7390
      %v7392 = vlaneseq
      %v7393 = vshrl.u32 %v7392, 7
      %v7394 = vsub.s32 %v7391, %v7393
      %v7395 = vrot.slane %v7381, %v7394
      %v7396 = vcombine.low %v7388, %v7395
      %v7397 = vcombine.low %v6838, %v6846
      %v7398 = vcombine.low %v6854, %v6853
      %v7400 = vunpack.c.l.s4 1983009808
      %v7401 = vunpack.c.0.s8 %v7400
      %v7402 = vlaneseq
      %v7403 = vshrl.u32 %v7402, 7
      %v7404 = vsub.s32 %v7401, %v7403
      %v7405 = vrot.slane %v7397, %v7404
      %v7407 = vunpack.c.l.s4 1983009808
      %v7408 = vunpack.c.0.s8 %v7407
      %v7409 = vlaneseq
      %v7410 = vshrl.u32 %v7409, 7
      %v7411 = vsub.s32 %v7408, %v7410
      %v7412 = vrot.slane %v7398, %v7411
      %v7413 = vcombine.low %v7405, %v7412
      %v7414 = vcombine.low %v6855, %v6863
      %v7415 = vcombine.low %v6871, %v6870
      %v7417 = vunpack.c.l.s4 1983009808
      %v7418 = vunpack.c.0.s8 %v7417
      %v7419 = vlaneseq
      %v7420 = vshrl.u32 %v7419, 7
      %v7421 = vsub.s32 %v7418, %v7420
      %v7422 = vrot.slane %v7414, %v7421
      %v7424 = vunpack.c.l.s4 1983009808
      %v7425 = vunpack.c.0.s8 %v7424
      %v7426 = vlaneseq
      %v7427 = vshrl.u32 %v7426, 7
      %v7428 = vsub.s32 %v7425, %v7427
      %v7429 = vrot.slane %v7415, %v7428
      %v7430 = vcombine.low %v7422, %v7429
      %v7431 = vcombine.low %v6879, %v6887
      %v7432 = vcombine.low %v6886, %v6888
      %v7434 = vunpack.c.l.s4 1983009808
      %v7435 = vunpack.c.0.s8 %v7434
      %v7436 = vlaneseq
      %v7437 = vshrl.u32 %v7436, 7
      %v7438 = vsub.s32 %v7435, %v7437
      %v7439 = vrot.slane %v7431, %v7438
      %v7441 = vunpack.c.l.s4 1983009808
      %v7442 = vunpack.c.0.s8 %v7441
      %v7443 = vlaneseq
      %v7444 = vshrl.u32 %v7443, 7
      %v7445 = vsub.s32 %v7442, %v7444
      %v7446 = vrot.slane %v7432, %v7445
      %v7447 = vcombine.low %v7439, %v7446
      %v7448 = vcombine.low %v6896, %v6904
      %v7449 = vcombine.low %v6903, %v6905
      %v7451 = vunpack.c.l.s4 1983009808
      %v7452 = vunpack.c.0.s8 %v7451
      %v7453 = vlaneseq
      %v7454 = vshrl.u32 %v7453, 7
      %v7455 = vsub.s32 %v7452, %v7454
      %v7456 = vrot.slane %v7448, %v7455
      %v7458 = vunpack.c.l.s4 1983009808
      %v7459 = vunpack.c.0.s8 %v7458
      %v7460 = vlaneseq
      %v7461 = vshrl.u32 %v7460, 7
      %v7462 = vsub.s32 %v7459, %v7461
      %v7463 = vrot.slane %v7449, %v7462
      %v7464 = vcombine.low %v7456, %v7463
      %v7465 = vcombine.low %v6921, %v6920
      %v7466 = vcombine.low %v6922, %v6930
      %v7468 = vunpack.c.l.s4 1983009808
      %v7469 = vunpack.c.0.s8 %v7468
      %v7470 = vlaneseq
      %v7471 = vshrl.u32 %v7470, 7
      %v7472 = vsub.s32 %v7469, %v7471
      %v7473 = vrot.slane %v7465, %v7472
      %v7475 = vunpack.c.l.s4 1983009808
      %v7476 = vunpack.c.0.s8 %v7475
      %v7477 = vlaneseq
      %v7478 = vshrl.u32 %v7477, 7
      %v7479 = vsub.s32 %v7476, %v7478
      %v7480 = vrot.slane %v7466, %v7479
      %v7481 = vcombine.low %v7473, %v7480
      %v7482 = vcombine.low %v6938, %v6937
      %v7483 = vcombine.low %v6939, %v6947
      %v7485 = vunpack.c.l.s4 1983009808
      %v7486 = vunpack.c.0.s8 %v7485
      %v7487 = vlaneseq
      %v7488 = vshrl.u32 %v7487, 7
      %v7489 = vsub.s32 %v7486, %v7488
      %v7490 = vrot.slane %v7482, %v7489
      %v7492 = vunpack.c.l.s4 1983009808
      %v7493 = vunpack.c.0.s8 %v7492
      %v7494 = vlaneseq
      %v7495 = vshrl.u32 %v7494, 7
      %v7496 = vsub.s32 %v7493, %v7495
      %v7497 = vrot.slane %v7483, %v7496
      %v7498 = vcombine.low %v7490, %v7497
      %v7499 = vcombine.low %v6954, %v6955
      %v7500 = vcombine.low %v6963, %v6971
      %v7502 = vunpack.c.l.s4 1983009808
      %v7503 = vunpack.c.0.s8 %v7502
      %v7504 = vlaneseq
      %v7505 = vshrl.u32 %v7504, 7
      %v7506 = vsub.s32 %v7503, %v7505
      %v7507 = vrot.slane %v7499, %v7506
      %v7509 = vunpack.c.l.s4 1983009808
      %v7510 = vunpack.c.0.s8 %v7509
      %v7511 = vlaneseq
      %v7512 = vshrl.u32 %v7511, 7
      %v7513 = vsub.s32 %v7510, %v7512
      %v7514 = vrot.slane %v7500, %v7513
      %v7515 = vcombine.low %v7507, %v7514
      %v7516 = vcombine.low %v6970, %v6972
      %v7517 = vcombine.low %v6980, %v6988
      %v7519 = vunpack.c.l.s4 1983009808
      %v7520 = vunpack.c.0.s8 %v7519
      %v7521 = vlaneseq
      %v7522 = vshrl.u32 %v7521, 7
      %v7523 = vsub.s32 %v7520, %v7522
      %v7524 = vrot.slane %v7516, %v7523
      %v7526 = vunpack.c.l.s4 1983009808
      %v7527 = vunpack.c.0.s8 %v7526
      %v7528 = vlaneseq
      %v7529 = vshrl.u32 %v7528, 7
      %v7530 = vsub.s32 %v7527, %v7529
      %v7531 = vrot.slane %v7517, %v7530
      %v7532 = vcombine.low %v7524, %v7531
      %v7533 = vcombine.low %v6989, %v6997
      %v7534 = vcombine.low %v7005, %v7004
      %v7536 = vunpack.c.l.s4 1983009808
      %v7537 = vunpack.c.0.s8 %v7536
      %v7538 = vlaneseq
      %v7539 = vshrl.u32 %v7538, 7
      %v7540 = vsub.s32 %v7537, %v7539
      %v7541 = vrot.slane %v7533, %v7540
      %v7543 = vunpack.c.l.s4 1983009808
      %v7544 = vunpack.c.0.s8 %v7543
      %v7545 = vlaneseq
      %v7546 = vshrl.u32 %v7545, 7
      %v7547 = vsub.s32 %v7544, %v7546
      %v7548 = vrot.slane %v7534, %v7547
      %v7549 = vcombine.low %v7541, %v7548
      %v7550 = vcombine.low %v7006, %v7014
      %v7551 = vcombine.low %v7022, %v7021
      %v7553 = vunpack.c.l.s4 1983009808
      %v7554 = vunpack.c.0.s8 %v7553
      %v7555 = vlaneseq
      %v7556 = vshrl.u32 %v7555, 7
      %v7557 = vsub.s32 %v7554, %v7556
      %v7558 = vrot.slane %v7550, %v7557
      %v7560 = vunpack.c.l.s4 1983009808
      %v7561 = vunpack.c.0.s8 %v7560
      %v7562 = vlaneseq
      %v7563 = vshrl.u32 %v7562, 7
      %v7564 = vsub.s32 %v7561, %v7563
      %v7565 = vrot.slane %v7551, %v7564
      %v7566 = vcombine.low %v7558, %v7565
      %7599 = vst.msk [vmem:[%s246] sm:$0xff] %vm2193, %v7039
      %7600 = vst.msk [vmem:[%s246 + $0x8] sm:$0xff] %vm2193, %v7056
      %7601 = vst.msk [vmem:[%s246 + $0x10] sm:$0xff] %vm2193, %v7073
      %7602 = vst.msk [vmem:[%s246 + $0x18] sm:$0xff] %vm2193, %v7090
      %7603 = vst.msk [vmem:[%s246 + $0x20] sm:$0xff] %vm2193, %v7107
      %7604 = vst.msk [vmem:[%s246 + $0x28] sm:$0xff] %vm2193, %v7124
      %7605 = vst.msk [vmem:[%s246 + $0x30] sm:$0xff] %vm2193, %v7141
      %7606 = vst.msk [vmem:[%s246 + $0x38] sm:$0xff] %vm2193, %v7158
      %7607 = vst.msk [vmem:[%s246 + $0x40] sm:$0xff] %vm2193, %v7175
      %7608 = vst.msk [vmem:[%s246 + $0x48] sm:$0xff] %vm2193, %v7192
      %7609 = vst.msk [vmem:[%s246 + $0x50] sm:$0xff] %vm2193, %v7209
      %7610 = vst.msk [vmem:[%s246 + $0x58] sm:$0xff] %vm2193, %v7226
      %7611 = vst.msk [vmem:[%s246 + $0x60] sm:$0xff] %vm2193, %v7243
      %7612 = vst.msk [vmem:[%s246 + $0x68] sm:$0xff] %vm2193, %v7260
      %7613 = vst.msk [vmem:[%s246 + $0x70] sm:$0xff] %vm2193, %v7277
      %7614 = vst.msk [vmem:[%s246 + $0x78] sm:$0xff] %vm2193, %v7294
      %7615 = vst.msk [vmem:[%s246 + $0x80] sm:$0xff] %vm2193, %v7311
      %7616 = vst.msk [vmem:[%s246 + $0x88] sm:$0xff] %vm2193, %v7328
      %7617 = vst.msk [vmem:[%s246 + $0x90] sm:$0xff] %vm2193, %v7345
      %7618 = vst.msk [vmem:[%s246 + $0x98] sm:$0xff] %vm2193, %v7362
      %7619 = vst.msk [vmem:[%s246 + $0xa0] sm:$0xff] %vm2193, %v7379
      %7620 = vst.msk [vmem:[%s246 + $0xa8] sm:$0xff] %vm2193, %v7396
      %7621 = vst.msk [vmem:[%s246 + $0xb0] sm:$0xff] %vm2193, %v7413
      %7622 = vst.msk [vmem:[%s246 + $0xb8] sm:$0xff] %vm2193, %v7430
      %7623 = vst.msk [vmem:[%s246 + $0xc0] sm:$0xff] %vm2193, %v7447
      %7624 = vst.msk [vmem:[%s246 + $0xc8] sm:$0xff] %vm2193, %v7464
      %7625 = vst.msk [vmem:[%s246 + $0xd0] sm:$0xff] %vm2193, %v7481
      %7626 = vst.msk [vmem:[%s246 + $0xd8] sm:$0xff] %vm2193, %v7498
      %7627 = vst.msk [vmem:[%s246 + $0xe0] sm:$0xff] %vm2193, %v7515
      %7628 = vst.msk [vmem:[%s246 + $0xe8] sm:$0xff] %vm2193, %v7532
      %7629 = vst.msk [vmem:[%s246 + $0xf0] sm:$0xff] %vm2193, %v7549
      %7630 = vst.msk [vmem:[%s246 + $0xf8] sm:$0xff] %vm2193, %v7566
      %s7631 = smul.u32 32, %s21
      %p7632 = scmp.lt.s32.totalorder %s20, 1
      %s7633 = scalar_select %p7632, %s20, 1
      %p7634 = scmp.lt.s32.totalorder %s7631, 31
      %s7635 = scalar_select %p7634, %s7631, 31
      %s7636 = smul.addr %s7633, 32
      %s7637 = sadd.s32 %s7635, %s7636
      %s7638 = smul.addr %s7637, 8
      %s7639 = scalar_lea.vmem %s5, %s7638
      // Predicated region
      $region57: #{bottleneck_forward.2} parent=39 // pred_check
        %p7640 = pneg %p158
      $region58: #{bottleneck_forward.2} parent=39 // pred_check_branch
        %7642 = sbr.rel (%p7640) target = $region60
      $region59: #{bottleneck_forward.2} parent=39 // pred_region
        %s7643 = smul.u32 32, %s21
      $region60: #{bottleneck_forward.2} parent=39 // pred_fallthru
        _
    $region40: #{bottleneck_forward.2} parent=5 // pred_fallthru
      _
    %p7644 = scmp.le.s32.totalorder 2, %s11
    // Predicated region
    $region61: #{bottleneck_forward.2} parent=5 // pred_check
      %p7645 = pneg %p7644
    $region62: #{bottleneck_forward.2} parent=5 // pred_check_branch
      %7647 = sbr.rel (%p7645) target = $region64
    $region63: #{bottleneck_forward.2} parent=5 // pred_region
      %s7648 = ssub.s32 %s11, 2
      // Predicated region
      $region65: #{bottleneck_forward.2} parent=63 // pred_check
        %p7649 = pneg %p164
      $region66: #{bottleneck_forward.2} parent=63 // pred_check_branch
        %7651 = sbr.rel (%p7649) target = $region68
      $region67: #{bottleneck_forward.2} parent=63 // pred_region
        %s7652 = smul.u32 32, %s23
        %p7653 = scmp.lt.s32.totalorder %s22, 1
        %s7654 = scalar_select %p7653, %s22, 1
        %p7655 = scmp.lt.s32.totalorder %s7652, 31
        %s7656 = scalar_select %p7655, %s7652, 31
        %s7657 = smul.addr %s7654, 32
        %s7658 = sadd.s32 %s7656, %s7657
        %s7659 = smul.addr %s7658, 8
        %s7660 = scalar_lea.vmem %s5, %s7659
      $region68: #{bottleneck_forward.2} parent=63 // pred_fallthru
        _
    $region64: #{bottleneck_forward.2} parent=5 // pred_fallthru
      _
  $region6: #{bottleneck_forward.2} parent=0 // loop_footer
    %s15 = sadd.s32 1, %s11
  $region7: #{bottleneck_forward.2} parent=0 // loop_footer_branch
    %10 = sbr.rel target = $region3
  $region8: #{bottleneck_forward.2} parent=0 // loop_exit
    _

</llo_original>
